<compile_context>
chip_gen: v7x
topology: tpu7x:2x2x1
jax: 0.10.0
libtpu: 0.0.40
codegen_flags: <defaults>
</compile_context>

<pallas_src>
import functools

import jax
import jax.numpy as jnp
import numpy as np
from jax.experimental import pallas as pl
from jax.experimental.pallas import tpu as pltpu

EPS = 1e-5
LANE = 128
_FUSED_UNROLL_MAX_IMAGES = 16   # bound on static per-image unrolling in the fused kernel


def _round_up(x, m):
    return ((x + m - 1) // m) * m


def _vmem_budget_bytes():
    """Per-generation scoped-VMEM budget.

    v7x has 64 MiB per TensorCore -> cap at 48 MiB (DMA headroom); v5e/v6e have
    128 MiB, where a larger budget enables bigger row blocks / deeper buffering.
    """
    cap = 64 * 1024 * 1024
    try:
        info = pltpu.get_tpu_info()
        cap = int(getattr(info, "vmem_capacity_bytes", cap)) or cap
    except Exception:
        pass
    if cap >= 128 * 1024 * 1024:
        return 96 * 1024 * 1024
    return min(48 * 1024 * 1024, (3 * cap) // 4)


def _compiler_params(sem, vmem_bytes):
    return pltpu.CompilerParams(dimension_semantics=sem,
                                vmem_limit_bytes=int(vmem_bytes))


# ----------------------------------------------------------------------------
# Shared in-kernel helpers
# ----------------------------------------------------------------------------
def _border_masks(HW, W):
    """Left/right column validity masks, built in-kernel (no mask input DMA)."""
    w_idx = jax.lax.broadcasted_iota(jnp.int32, (HW, 1), 0) % W
    lmask = (w_idx > 0).astype(jnp.float32)        # kw=0 tap valid
    rmask = (w_idx < W - 1).astype(jnp.float32)    # kw=2 tap valid
    return lmask, rmask


def _conv3x3_accumulate(ypad_ref, w2_ref, acc_ref, lmask, rmask, W, pad):
    """3x3 conv as 9 accumulating MXU matmuls from row-shifted windows of the
    zero-padded VMEM scratch (no (HW, 9*Pp) tap concatenation)."""
    HW, Pp = acc_ref.shape
    acc_ref[...] = jnp.zeros_like(acc_ref)
    for kh in range(3):
        for kw in range(3):
            s = (kh - 1) * W + (kw - 1)
            win = ypad_ref[pad + s:pad + s + HW, :]
            if kw == 0:
                win = win * lmask
            elif kw == 2:
                win = win * rmask
            acc_ref[...] += jnp.dot(
                win.astype(jnp.bfloat16),
                w2_ref[pl.ds((kh * 3 + kw) * Pp, Pp), :],
                preferred_element_type=jnp.float32)


# ----------------------------------------------------------------------------
# Fused single-kernel path (whole Bottleneck resident in VMEM)
# ----------------------------------------------------------------------------
def _fused_bottleneck_kernel(x_ref, w1_ref, w2_ref, w3_ref,
                             g1_ref, b1_ref, g2_ref, b2_ref, g3_ref, b3_ref,
                             o_ref,
                             t1_ref, t2_ref, t3_ref, ypad_ref, acc_ref,
                             *, N, H, W, pad):
    HW = H * W
    M = N * HW
    Pp = t1_ref.shape[1]
    inv_m = 1.0 / M

    def fold(t, g, b):
        # global (N,H,W) batch statistics, f32 accumulation
        mu = jnp.sum(t, axis=0, keepdims=True) * inv_m
        var = jnp.maximum(
            jnp.sum(t * t, axis=0, keepdims=True) * inv_m - mu * mu, 0.0)
        sc = g * jax.lax.rsqrt(var + EPS)
        return sc, b - mu * sc

    # ---- conv1 (1x1) ---------------------------------------------------------
    t1_ref[...] = jnp.dot(x_ref[...].astype(jnp.bfloat16), w1_ref[...],
                          preferred_element_type=jnp.float32)
    sc1, sh1 = fold(t1_ref[...], g1_ref[...], b1_ref[...])

    # ---- bn1 + relu + conv2 (3x3), one image at a time -----------------------
    lmask, rmask = _border_masks(HW, W)
    zero_band = jnp.zeros((pad, Pp), jnp.float32)
    ypad_ref[0:pad, :] = zero_band                       # top halo
    ypad_ref[pad + HW:pad + HW + pad, :] = zero_band     # bottom halo
    for n in range(N):                                   # small, static unroll
        rows = pl.ds(n * HW, HW)
        y1 = jnp.maximum(t1_ref[rows, :] * sc1 + sh1, 0.0)
        ypad_ref[pad:pad + HW, :] = y1
        _conv3x3_accumulate(ypad_ref, w2_ref, acc_ref, lmask, rmask, W, pad)
        t2_ref[rows, :] = acc_ref[...]
    sc2, sh2 = fold(t2_ref[...], g2_ref[...], b2_ref[...])

    # ---- bn2 + relu + conv3 (1x1) --------------------------------------------
    y2 = jnp.maximum(t2_ref[...] * sc2 + sh2, 0.0).astype(jnp.bfloat16)
    t3_ref[...] = jnp.dot(y2, w3_ref[...], preferred_element_type=jnp.float32)
    sc3, sh3 = fold(t3_ref[...], g3_ref[...], b3_ref[...])

    # ---- bn3 + identity shortcut + relu --------------------------------------
    o_ref[...] = jnp.maximum(t3_ref[...] * sc3 + sh3 + x_ref[...], 0.0)


# ----------------------------------------------------------------------------
# Tiled multi-pass path kernels
# ----------------------------------------------------------------------------
def _conv1x1_stats_kernel(x_ref, w_ref, t_ref, st_ref):
    t = jnp.dot(x_ref[...], w_ref[...], preferred_element_type=jnp.float32)
    t_ref[...] = t.astype(t_ref.dtype)
    s1 = jnp.sum(t, axis=0, keepdims=True)
    s2 = jnp.sum(t * t, axis=0, keepdims=True)
    st_ref[...] = jnp.concatenate([s1, s2], axis=0)[None, :, :]


def _conv3x3_stats_kernel(t1_ref, sc_ref, sh_ref, w2_ref, t2_ref, st_ref,
                          ypad_ref, acc_ref, *, W, pad):
    HW, Pp = acc_ref.shape
    # bn1 (folded scale/shift) + relu in f32
    y1 = jnp.maximum(
        t1_ref[...].astype(jnp.float32) * sc_ref[...] + sh_ref[...], 0.0)
    zero_band = jnp.zeros((pad, Pp), jnp.float32)
    ypad_ref[0:pad, :] = zero_band
    ypad_ref[pad + HW:pad + HW + pad, :] = zero_band
    ypad_ref[pad:pad + HW, :] = y1
    lmask, rmask = _border_masks(HW, W)
    _conv3x3_accumulate(ypad_ref, w2_ref, acc_ref, lmask, rmask, W, pad)
    t2 = acc_ref[...]
    t2_ref[...] = t2.astype(t2_ref.dtype)
    s1 = jnp.sum(t2, axis=0, keepdims=True)
    s2 = jnp.sum(t2 * t2, axis=0, keepdims=True)
    st_ref[...] = jnp.concatenate([s1, s2], axis=0)[None, :, :]


def _bn_relu_conv1x1_stats_kernel(t2_ref, sc_ref, sh_ref, w_ref, t3_ref, st_ref):
    y2 = jnp.maximum(
        t2_ref[...].astype(jnp.float32) * sc_ref[...] + sh_ref[...], 0.0)
    t3 = jnp.dot(y2.astype(jnp.bfloat16), w_ref[...],
                 preferred_element_type=jnp.float32)
    t3_ref[...] = t3.astype(t3_ref.dtype)
    s1 = jnp.sum(t3, axis=0, keepdims=True)
    s2 = jnp.sum(t3 * t3, axis=0, keepdims=True)
    st_ref[...] = jnp.concatenate([s1, s2], axis=0)[None, :, :]


def _bn_residual_relu_kernel(t3_ref, x_ref, sc_ref, sh_ref, o_ref):
    y = (t3_ref[...].astype(jnp.float32) * sc_ref[...] + sh_ref[...]
         + x_ref[...].astype(jnp.float32))
    o_ref[...] = jnp.maximum(y, 0.0).astype(o_ref.dtype)


# ----------------------------------------------------------------------------
# Wrapper helpers
# ----------------------------------------------------------------------------
def _fold_bn(stats, count, gamma_p, beta_p):
    """Reduce per-block (sum, sumsq) partials -> folded BN scale/shift."""
    s = jnp.sum(stats[:, 0, :], axis=0)
    ss = jnp.sum(stats[:, 1, :], axis=0)
    mu = s / count
    var = jnp.maximum(ss / count - mu * mu, 0.0)
    scale = gamma_p * jax.lax.rsqrt(var + EPS)
    shift = beta_p - mu * scale
    return scale.reshape(1, -1), shift.reshape(1, -1)


def _pad_lane_vec(v, n):
    v = jnp.asarray(v).reshape(-1).astype(jnp.float32)
    return jnp.pad(v, (0, n - v.shape[0]))


def _pick_rows_block(N, HW, target_rows=2048):
    """Largest whole-image multiple of HW that divides M and is ~target_rows."""
    r = max(1, min(N, max(1, target_rows // HW)))
    while N % r:
        r -= 1
    return r * HW


# ----------------------------------------------------------------------------
# Forward pass of the Bottleneck block
# ----------------------------------------------------------------------------
@functools.partial(jax.jit, static_argnames=("force_tiled",))
def bottleneck_forward(x_nchw, params, force_tiled=False):
    w1, g1, b1 = params["w1"], params["g1"], params["b1"]
    w2, g2, b2 = params["w2"], params["g2"], params["b2"]
    w3, g3, b3 = params["w3"], params["g3"], params["b3"]

    N, Cin, H, W = x_nchw.shape
    P = w1.shape[1]
    Cout = w3.shape[1]
    assert Cin == Cout, "identity shortcut requires Cin == Cout"
    HW = H * W
    M = N * HW
    assert HW % 8 == 0, "H*W must be a multiple of 8 for (8,128) tiling"

    Cp = _round_up(Cin, LANE)      # padded residual / input channels
    Pp = _round_up(P, LANE)        # padded bottleneck width
    Op = _round_up(Cout, LANE)     # padded output channels (== Cp here)
    pad = _round_up(W + 1, 8)      # halo band for the 3x3 conv scratch

    budget = _vmem_budget_bytes()

    # ---- lane-padded weights / BN params (bf16 weights for the MXU) ----------
    w1p = jnp.pad(w1.astype(jnp.float32),
                  ((0, Cp - Cin), (0, Pp - P))).astype(jnp.bfloat16)
    w2p = jnp.pad(w2.astype(jnp.float32),
                  ((0, 0), (0, 0), (0, Pp - P), (0, Pp - P)))
    w2p = w2p.reshape(9 * Pp, Pp).astype(jnp.bfloat16)   # tap-stacked HWIO
    w3p = jnp.pad(w3.astype(jnp.float32),
                  ((0, Pp - P), (0, Op - Cout))).astype(jnp.bfloat16)
    g1p, b1p = _pad_lane_vec(g1, Pp), _pad_lane_vec(b1, Pp)
    g2p, b2p = _pad_lane_vec(g2, Pp), _pad_lane_vec(b2, Pp)
    g3p, b3p = _pad_lane_vec(g3, Op), _pad_lane_vec(b3, Op)

    # ---- layout glue: NCHW -> NHWC -> (M, Cp), lane-padded channels ----------
    x_nhwc = jnp.transpose(x_nchw, (0, 2, 3, 1)).astype(jnp.float32)
    x2d_f32 = jnp.pad(x_nhwc.reshape(M, Cin), ((0, 0), (0, Cp - Cin)))

    # Estimated VMEM footprint of the fully fused kernel (everything resident).
    fused_bytes = (4 * M * (Cp + Op)                 # x in + out (f32)
                   + 4 * M * (2 * Pp + Op)           # t1/t2/t3 scratch (f32)
                   + 4 * (2 * HW + 2 * pad) * Pp     # ypad + acc scratch
                   + 2 * (Cp * Pp + 9 * Pp * Pp + Pp * Op))   # bf16 weights
    use_fused = (not force_tiled
                 and 2 * fused_bytes <= budget
                 and N <= _FUSED_UNROLL_MAX_IMAGES)

    if use_fused:
        # ---- single fused pass: no intermediate HBM traffic ------------------
        def full(r, c):
            return pl.BlockSpec((r, c), lambda i: (0, 0))

        out2d = pl.pallas_call(
            functools.partial(_fused_bottleneck_kernel, N=N, H=H, W=W, pad=pad),
            grid=(1,),
            in_specs=[full(M, Cp), full(Cp, Pp), full(9 * Pp, Pp), full(Pp, Op),
                      full(1, Pp), full(1, Pp), full(1, Pp), full(1, Pp),
                      full(1, Op), full(1, Op)],
            out_specs=full(M, Op),
            out_shape=jax.ShapeDtypeStruct((M, Op), jnp.float32),
            scratch_shapes=[pltpu.VMEM((M, Pp), jnp.float32),           # t1
                            pltpu.VMEM((M, Pp), jnp.float32),           # t2
                            pltpu.VMEM((M, Op), jnp.float32),           # t3
                            pltpu.VMEM((HW + 2 * pad, Pp), jnp.float32),  # ypad
                            pltpu.VMEM((HW, Pp), jnp.float32)],         # acc
            compiler_params=_compiler_params(("arbitrary",), budget),
        )(x2d_f32, w1p, w2p, w3p,
          g1p.reshape(1, Pp), b1p.reshape(1, Pp),
          g2p.reshape(1, Pp), b2p.reshape(1, Pp),
          g3p.reshape(1, Op), b3p.reshape(1, Op))
    else:
        # ---- tiled 4-pass path: bf16 intermediates, flat-M re-gridding --------
        x2d = x2d_f32.astype(jnp.bfloat16)
        MB = _pick_rows_block(N, HW)
        G = M // MB

        def row_spec(rows, c):
            return pl.BlockSpec((rows, c), lambda i: (i, 0))

        def full_spec(r, c):
            return pl.BlockSpec((r, c), lambda i: (0, 0))

        def stat_spec(c):
            return pl.BlockSpec((1, 2, c), lambda i: (i, 0, 0))

        cp_flat = _compiler_params(("parallel",), budget)

        # K1: conv1 (1x1) + per-block BN partials (flat-M grid)
        t1, st1 = pl.pallas_call(
            _conv1x1_stats_kernel,
            grid=(G,),
            in_specs=[row_spec(MB, Cp), full_spec(Cp, Pp)],
            out_specs=(row_spec(MB, Pp), stat_spec(Pp)),
            out_shape=(jax.ShapeDtypeStruct((M, Pp), jnp.bfloat16),
                       jax.ShapeDtypeStruct((G, 2, Pp), jnp.float32)),
            compiler_params=cp_flat,
        )(x2d, w1p)
        sc1, sh1 = _fold_bn(st1, M, g1p, b1p)

        # K2: bn1+relu + conv2 (3x3, accumulating matmuls); image-aligned grid
        t2, st2 = pl.pallas_call(
            functools.partial(_conv3x3_stats_kernel, W=W, pad=pad),
            grid=(N,),
            in_specs=[row_spec(HW, Pp), full_spec(1, Pp), full_spec(1, Pp),
                      full_spec(9 * Pp, Pp)],
            out_specs=(row_spec(HW, Pp), stat_spec(Pp)),
            out_shape=(jax.ShapeDtypeStruct((M, Pp), jnp.bfloat16),
                       jax.ShapeDtypeStruct((N, 2, Pp), jnp.float32)),
            scratch_shapes=[pltpu.VMEM((HW + 2 * pad, Pp), jnp.float32),
                            pltpu.VMEM((HW, Pp), jnp.float32)],
            compiler_params=_compiler_params(("parallel",), budget),
        )(t1, sc1, sh1, w2p)
        sc2, sh2 = _fold_bn(st2, M, g2p, b2p)

        # K3: bn2+relu + conv3 (1x1) + per-block BN partials (flat-M grid)
        t3, st3 = pl.pallas_call(
            _bn_relu_conv1x1_stats_kernel,
            grid=(G,),
            in_specs=[row_spec(MB, Pp), full_spec(1, Pp), full_spec(1, Pp),
                      full_spec(Pp, Op)],
            out_specs=(row_spec(MB, Op), stat_spec(Op)),
            out_shape=(jax.ShapeDtypeStruct((M, Op), jnp.bfloat16),
                       jax.ShapeDtypeStruct((G, 2, Op), jnp.float32)),
            compiler_params=cp_flat,
        )(t2, sc2, sh2, w3p)
        sc3, sh3 = _fold_bn(st3, M, g3p, b3p)

        # K4: bn3 + residual add + relu; output overwrites t3 (P8 aliasing)
        out2d = pl.pallas_call(
            _bn_residual_relu_kernel,
            grid=(G,),
            in_specs=[row_spec(MB, Op), row_spec(MB, Cp),
                      full_spec(1, Op), full_spec(1, Op)],
            out_specs=row_spec(MB, Op),
            out_shape=jax.ShapeDtypeStruct((M, Op), jnp.bfloat16),
            input_output_aliases={0: 0},
            compiler_params=cp_flat,
        )(t3, x2d, sc3, sh3)
        out2d = out2d.astype(jnp.float32)

    # ---- layout glue back: (M, Op) -> NCHW, drop lane padding ----------------
    out = out2d[:, :Cout].reshape(N, H, W, Cout)
    return jnp.transpose(out, (0, 3, 1, 2))


# ----------------------------------------------------------------------------
# Pure-JAX reference (f32 lax.conv) for correctness checking
# ----------------------------------------------------------------------------
def _bn_train(x_nhwc, g, b):
    mu = jnp.mean(x_nhwc, axis=(0, 1, 2), keepdims=True)
    var = jnp.mean((x_nhwc - mu) ** 2, axis=(0, 1, 2), keepdims=True)
    return (x_nhwc - mu) * jax.lax.rsqrt(var + EPS) * g.reshape(1, 1, 1, -1) \
        + b.reshape(1, 1, 1, -1)


def reference_forward(x_nchw, params):
    dn = ("NHWC", "HWIO", "NHWC")
    x = jnp.transpose(x_nchw, (0, 2, 3, 1)).astype(jnp.float32)
    Cin = x.shape[-1]
    P = params["w1"].shape[1]
    Cout = params["w3"].shape[1]

    y = jax.lax.conv_general_dilated(
        x, params["w1"].reshape(1, 1, Cin, P), (1, 1), "SAME",
        dimension_numbers=dn)
    y = jnp.maximum(_bn_train(y, params["g1"], params["b1"]), 0.0)

    y = jax.lax.conv_general_dilated(
        y, params["w2"], (1, 1), "SAME", dimension_numbers=dn)
    y = jnp.maximum(_bn_train(y, params["g2"], params["b2"]), 0.0)

    y = jax.lax.conv_general_dilated(
        y, params["w3"].reshape(1, 1, P, Cout), (1, 1), "SAME",
        dimension_numbers=dn)
    y = _bn_train(y, params["g3"], params["b3"])

    out = jnp.maximum(y + x, 0.0)
    return jnp.transpose(out, (0, 3, 1, 2))


# ----------------------------------------------------------------------------
if __name__ == "__main__":
    # Bottleneck(in_planes=16, planes=4, stride=1, downsample=None)
    N, H, W = 2, 16, 16
    planes = 4
    in_planes = planes * 4        # expansion=4 -> identity shortcut is valid
    out_planes = planes * 4

    key = jax.random.PRNGKey(0)
    k = jax.random.split(key, 8)

    x = jax.random.normal(k[0], (N, in_planes, H, W), dtype=jnp.float32)

    params = {
        # conv1: PyTorch weight (planes, in_planes, 1, 1) -> (in_planes, planes)
        "w1": 0.1 * jax.random.normal(k[1], (in_planes, planes), jnp.float32),
        "g1": 1.0 + 0.1 * jax.random.normal(k[2], (1, planes), jnp.float32),
        "b1": 0.1 * jax.random.normal(k[3], (1, planes), jnp.float32),
        # conv2: PyTorch weight (planes, planes, 3, 3) -> HWIO (3, 3, planes, planes)
        "w2": 0.1 * jax.random.normal(k[4], (3, 3, planes, planes), jnp.float32),
        "g2": 1.0 + 0.1 * jax.random.normal(k[5], (1, planes), jnp.float32),
        "b2": 0.1 * jax.random.normal(k[6], (1, planes), jnp.float32),
        # conv3: PyTorch weight (planes*4, planes, 1, 1) -> (planes, planes*4)
        "w3": 0.1 * jax.random.normal(k[7], (planes, out_planes), jnp.float32),
        "g3": jnp.linspace(0.9, 1.1, out_planes, dtype=jnp.float32).reshape(1, -1),
        "b3": jnp.linspace(-0.1, 0.1, out_planes, dtype=jnp.float32).reshape(1, -1),
    }

    ref = jax.block_until_ready(reference_forward(x, params))

    # Fused single-kernel path (default for VMEM-resident problems like this one)
    out_fused = jax.block_until_ready(bottleneck_forward(x, params))
    assert out_fused.shape == (N, out_planes, H, W), out_fused.shape
    np.testing.assert_allclose(np.asarray(out_fused), np.asarray(ref),
                               rtol=5e-2, atol=5e-2)

    # Tiled multi-pass path (the one large problems take) — validated too.
    out_tiled = jax.block_until_ready(
        bottleneck_forward(x, params, force_tiled=True))
    np.testing.assert_allclose(np.asarray(out_tiled), np.asarray(ref),
                               rtol=5e-2, atol=5e-2)

    print("KERNEL_OK")
</pallas_src>

<mosaic_0001>
module attributes {stable_mosaic.version = 11 : i64} {
  func.func @_fused_bottleneck_kernel(%arg0: i32, %arg1: memref<512x128xf32, #tpu.memory_space<vmem>>, %arg2: memref<128x128xbf16, #tpu.memory_space<vmem>>, %arg3: memref<1152x128xbf16, #tpu.memory_space<vmem>>, %arg4: memref<128x128xbf16, #tpu.memory_space<vmem>>, %arg5: memref<1x128xf32, #tpu.memory_space<vmem>>, %arg6: memref<1x128xf32, #tpu.memory_space<vmem>>, %arg7: memref<1x128xf32, #tpu.memory_space<vmem>>, %arg8: memref<1x128xf32, #tpu.memory_space<vmem>>, %arg9: memref<1x128xf32, #tpu.memory_space<vmem>>, %arg10: memref<1x128xf32, #tpu.memory_space<vmem>>, %arg11: memref<512x128xf32, #tpu.memory_space<vmem>>, %arg12: memref<512x128xf32, #tpu.memory_space<vmem>>, %arg13: memref<512x128xf32, #tpu.memory_space<vmem>>, %arg14: memref<512x128xf32, #tpu.memory_space<vmem>>, %arg15: memref<304x128xf32, #tpu.memory_space<vmem>>, %arg16: memref<256x128xf32, #tpu.memory_space<vmem>>) attributes {dimension_semantics = [#tpu.dimension_semantics<arbitrary>], iteration_bounds = array<i64: 1>, scalar_prefetch = 0 : i64, scratch_operands = 5 : i64, tpu.core_type = #tpu.core_type<tc>, window_params = [{pipeline_mode = #tpu.pipeline_mode<synchronous>, transform_indices = @transform_0, window_bounds = array<i64: 512, 128>}, {pipeline_mode = #tpu.pipeline_mode<synchronous>, transform_indices = @transform_1, window_bounds = array<i64: 128, 128>}, {pipeline_mode = #tpu.pipeline_mode<synchronous>, transform_indices = @transform_2, window_bounds = array<i64: 1152, 128>}, {pipeline_mode = #tpu.pipeline_mode<synchronous>, transform_indices = @transform_3, window_bounds = array<i64: 128, 128>}, {pipeline_mode = #tpu.pipeline_mode<synchronous>, transform_indices = @transform_4, window_bounds = array<i64: 1, 128>}, {pipeline_mode = #tpu.pipeline_mode<synchronous>, transform_indices = @transform_5, window_bounds = array<i64: 1, 128>}, {pipeline_mode = #tpu.pipeline_mode<synchronous>, transform_indices = @transform_6, window_bounds = array<i64: 1, 128>}, {pipeline_mode = #tpu.pipeline_mode<synchronous>, transform_indices = @transform_7, window_bounds = array<i64: 1, 128>}, {pipeline_mode = #tpu.pipeline_mode<synchronous>, transform_indices = @transform_8, window_bounds = array<i64: 1, 128>}, {pipeline_mode = #tpu.pipeline_mode<synchronous>, transform_indices = @transform_9, window_bounds = array<i64: 1, 128>}, {pipeline_mode = #tpu.pipeline_mode<synchronous>, transform_indices = @transform_10, window_bounds = array<i64: 512, 128>}]} {
    %c0 = arith.constant 0 : index
    %c0_0 = arith.constant 0 : index
    %0 = vector.load %arg1[%c0, %c0_0] : memref<512x128xf32, #tpu.memory_space<vmem>>, vector<512x128xf32>
    %1 = arith.truncf %0 : vector<512x128xf32> to vector<512x128xbf16>
    %c0_1 = arith.constant 0 : index
    %c0_2 = arith.constant 0 : index
    %2 = vector.load %arg2[%c0_1, %c0_2] : memref<128x128xbf16, #tpu.memory_space<vmem>>, vector<128x128xbf16>
    %cst = arith.constant dense<0.000000e+00> : vector<512x128xf32>
    %3 = tpu.matmul %1, %2, %cst {dimension_numbers = #tpu.dot_dimension_numbers<[1], [0], [0], [1], [0, 0, 1, 1], [], []>} : vector<512x128xbf16>, vector<128x128xbf16>, vector<512x128xf32> -> vector<512x128xf32>
    %c0_3 = arith.constant 0 : index
    %c0_4 = arith.constant 0 : index
    %4 = vector.load %arg12[%c0_3, %c0_4] : memref<512x128xf32, #tpu.memory_space<vmem>>, vector<512x128xf32>
    tpu.vector_store %arg12[%c0_3, %c0_4], %3 {strides = array<i32>} : memref<512x128xf32, #tpu.memory_space<vmem>>, vector<512x128xf32>,
    %c0_5 = arith.constant 0 : index
    %c0_6 = arith.constant 0 : index
    %5 = vector.load %arg12[%c0_5, %c0_6] : memref<512x128xf32, #tpu.memory_space<vmem>>, vector<512x128xf32>
    %c0_7 = arith.constant 0 : index
    %c0_8 = arith.constant 0 : index
    %6 = vector.load %arg5[%c0_7, %c0_8] : memref<1x128xf32, #tpu.memory_space<vmem>>, vector<1x128xf32>
    %c0_9 = arith.constant 0 : index
    %c0_10 = arith.constant 0 : index
    %7 = vector.load %arg6[%c0_9, %c0_10] : memref<1x128xf32, #tpu.memory_space<vmem>>, vector<1x128xf32>
    %cst_11 = arith.constant dense<0.000000e+00> : vector<128xf32>
    %8 = vector.multi_reduction <add>, %5, %cst_11 [0] : vector<512x128xf32> to vector<128xf32>
    %9 = vector.shape_cast %8 : vector<128xf32> to vector<1x128xf32>
    %cst_12 = arith.constant 0.001953125 : f32
    %10 = vector.broadcast %cst_12 : f32 to vector<1x128xf32>
    %11 = arith.mulf %9, %10 : vector<1x128xf32>
    %12 = arith.mulf %5, %5 : vector<512x128xf32>
    %cst_13 = arith.constant dense<0.000000e+00> : vector<128xf32>
    %13 = vector.multi_reduction <add>, %12, %cst_13 [0] : vector<512x128xf32> to vector<128xf32>
    %14 = vector.shape_cast %13 : vector<128xf32> to vector<1x128xf32>
    %cst_14 = arith.constant 0.001953125 : f32
    %15 = vector.broadcast %cst_14 : f32 to vector<1x128xf32>
    %16 = arith.mulf %14, %15 : vector<1x128xf32>
    %17 = arith.mulf %11, %11 : vector<1x128xf32>
    %18 = arith.subf %16, %17 : vector<1x128xf32>
    %cst_15 = arith.constant 0.000000e+00 : f32
    %19 = vector.broadcast %cst_15 : f32 to vector<1x128xf32>
    %20 = arith.maximumf %18, %19 : vector<1x128xf32>
    %cst_16 = arith.constant 9.99999974E-6 : f32
    %21 = vector.broadcast %cst_16 : f32 to vector<1x128xf32>
    %22 = arith.addf %20, %21 : vector<1x128xf32>
    %23 = math.rsqrt %22 : vector<1x128xf32>
    %24 = arith.mulf %6, %23 : vector<1x128xf32>
    %25 = arith.mulf %11, %24 : vector<1x128xf32>
    %26 = arith.subf %7, %25 : vector<1x128xf32>
    %27 = tpu.iota {dimensions = array<i32: 0>} : vector<256x1xi32>
    %c16_i32 = arith.constant 16 : i32
    %c0_i32 = arith.constant 0 : i32
    %28 = arith.cmpi eq, %c16_i32, %c0_i32 : i32
    %c1_i32 = arith.constant 1 : i32
    %29 = arith.select %28, %c1_i32, %c16_i32 : i32
    %30 = vector.broadcast %29 : i32 to vector<256x1xi32>
    %31 = arith.remsi %27, %30 : vector<256x1xi32>
    %c0_i32_17 = arith.constant 0 : i32
    %32 = vector.broadcast %c0_i32_17 : i32 to vector<256x1xi32>
    %33 = arith.cmpi ne, %31, %32 : vector<256x1xi32>
    %c0_i32_18 = arith.constant 0 : i32
    %34 = vector.broadcast %c0_i32_18 : i32 to vector<256x1xi32>
    %35 = arith.cmpi slt, %31, %34 : vector<256x1xi32>
    %c0_i32_19 = arith.constant 0 : i32
    %36 = arith.cmpi slt, %29, %c0_i32_19 : i32
    %37 = vector.broadcast %36 : i1 to vector<256x1xi1>
    %38 = vector.broadcast %37 : vector<256x1xi1> to vector<256x1xi1>
    %39 = arith.xori %35, %38 : vector<256x1xi1>
    %40 = arith.andi %39, %33 : vector<256x1xi1>
    %41 = vector.broadcast %29 : i32 to vector<256x1xi32>
    %42 = arith.addi %31, %41 : vector<256x1xi32>
    %43 = arith.select %40, %42, %31 : vector<256x1xi1>, vector<256x1xi32>
    %c0_i32_20 = arith.constant 0 : i32
    %44 = vector.broadcast %c0_i32_20 : i32 to vector<256x1xi32>
    %45 = arith.cmpi sgt, %43, %44 : vector<256x1xi32>
    %46 = arith.extui %45 : vector<256x1xi1> to vector<256x1xi32>
    %47 = arith.sitofp %46 : vector<256x1xi32> to vector<256x1xf32>
    %c15_i32 = arith.constant 15 : i32
    %48 = vector.broadcast %c15_i32 : i32 to vector<256x1xi32>
    %49 = arith.cmpi slt, %43, %48 : vector<256x1xi32>
    %50 = arith.extui %49 : vector<256x1xi1> to vector<256x1xi32>
    %51 = arith.sitofp %50 : vector<256x1xi32> to vector<256x1xf32>
    %cst_21 = arith.constant 0.000000e+00 : f32
    %52 = vector.broadcast %cst_21 : f32 to vector<24x128xf32>
    %c0_22 = arith.constant 0 : index
    %c0_23 = arith.constant 0 : index
    %53 = vector.load %arg15[%c0_22, %c0_23] : memref<304x128xf32, #tpu.memory_space<vmem>>, vector<24x128xf32>
    tpu.vector_store %arg15[%c0_22, %c0_23], %52 {strides = array<i32>} : memref<304x128xf32, #tpu.memory_space<vmem>>, vector<24x128xf32>,
    %c280 = arith.constant 280 : index
    %c0_24 = arith.constant 0 : index
    %54 = vector.load %arg15[%c280, %c0_24] : memref<304x128xf32, #tpu.memory_space<vmem>>, vector<24x128xf32>
    tpu.vector_store %arg15[%c280, %c0_24], %52 {strides = array<i32>} : memref<304x128xf32, #tpu.memory_space<vmem>>, vector<24x128xf32>,
    %c0_25 = arith.constant 0 : index
    %c0_26 = arith.constant 0 : index
    %55 = vector.load %arg12[%c0_25, %c0_26] : memref<512x128xf32, #tpu.memory_space<vmem>>, vector<256x128xf32>
    %56 = vector.broadcast %24 : vector<1x128xf32> to vector<256x128xf32>
    %57 = arith.mulf %55, %56 : vector<256x128xf32>
    %58 = vector.broadcast %26 : vector<1x128xf32> to vector<256x128xf32>
    %59 = arith.addf %57, %58 : vector<256x128xf32>
    %cst_27 = arith.constant 0.000000e+00 : f32
    %60 = vector.broadcast %cst_27 : f32 to vector<256x128xf32>
    %61 = arith.maximumf %59, %60 : vector<256x128xf32>
    %c24 = arith.constant 24 : index
    %c0_28 = arith.constant 0 : index
    %62 = vector.load %arg15[%c24, %c0_28] : memref<304x128xf32, #tpu.memory_space<vmem>>, vector<256x128xf32>
    tpu.vector_store %arg15[%c24, %c0_28], %61 {strides = array<i32>} : memref<304x128xf32, #tpu.memory_space<vmem>>, vector<256x128xf32>,
    %cst_29 = arith.constant 0.000000e+00 : f32
    %63 = vector.broadcast %cst_29 : f32 to vector<256x128xf32>
    %c0_30 = arith.constant 0 : index
    %c0_31 = arith.constant 0 : index
    %64 = vector.load %arg16[%c0_30, %c0_31] : memref<256x128xf32, #tpu.memory_space<vmem>>, vector<256x128xf32>
    tpu.vector_store %arg16[%c0_30, %c0_31], %63 {strides = array<i32>} : memref<256x128xf32, #tpu.memory_space<vmem>>, vector<256x128xf32>,
    %c7 = arith.constant 7 : index
    %c0_32 = arith.constant 0 : index
    %65 = vector.load %arg15[%c7, %c0_32] : memref<304x128xf32, #tpu.memory_space<vmem>>, vector<256x128xf32>
    %66 = vector.broadcast %47 : vector<256x1xf32> to vector<256x128xf32>
    %67 = arith.mulf %65, %66 : vector<256x128xf32>
    %c0_33 = arith.constant 0 : index
    %c0_34 = arith.constant 0 : index
    %68 = vector.load %arg16[%c0_33, %c0_34] : memref<256x128xf32, #tpu.memory_space<vmem>>, vector<256x128xf32>
    %69 = arith.truncf %67 : vector<256x128xf32> to vector<256x128xbf16>
    %c0_35 = arith.constant 0 : index
    %c0_36 = arith.constant 0 : index
    %70 = vector.load %arg3[%c0_35, %c0_36] : memref<1152x128xbf16, #tpu.memory_space<vmem>>, vector<128x128xbf16>
    %cst_37 = arith.constant dense<0.000000e+00> : vector<256x128xf32>
    %71 = tpu.matmul %69, %70, %cst_37 {dimension_numbers = #tpu.dot_dimension_numbers<[1], [0], [0], [1], [0, 0, 1, 1], [], []>} : vector<256x128xbf16>, vector<128x128xbf16>, vector<256x128xf32> -> vector<256x128xf32>
    %72 = arith.addf %68, %71 : vector<256x128xf32>
    %c0_38 = arith.constant 0 : index
    %c0_39 = arith.constant 0 : index
    %73 = vector.load %arg16[%c0_38, %c0_39] : memref<256x128xf32, #tpu.memory_space<vmem>>, vector<256x128xf32>
    tpu.vector_store %arg16[%c0_38, %c0_39], %72 {strides = array<i32>} : memref<256x128xf32, #tpu.memory_space<vmem>>, vector<256x128xf32>,
    %c8 = arith.constant 8 : index
    %c0_40 = arith.constant 0 : index
    %74 = vector.load %arg15[%c8, %c0_40] : memref<304x128xf32, #tpu.memory_space<vmem>>, vector<256x128xf32>
    %c0_41 = arith.constant 0 : index
    %c0_42 = arith.constant 0 : index
    %75 = vector.load %arg16[%c0_41, %c0_42] : memref<256x128xf32, #tpu.memory_space<vmem>>, vector<256x128xf32>
    %76 = arith.truncf %74 : vector<256x128xf32> to vector<256x128xbf16>
    %c128 = arith.constant 128 : index
    %c0_43 = arith.constant 0 : index
    %77 = vector.load %arg3[%c128, %c0_43] : memref<1152x128xbf16, #tpu.memory_space<vmem>>, vector<128x128xbf16>
    %cst_44 = arith.constant dense<0.000000e+00> : vector<256x128xf32>
    %78 = tpu.matmul %76, %77, %cst_44 {dimension_numbers = #tpu.dot_dimension_numbers<[1], [0], [0], [1], [0, 0, 1, 1], [], []>} : vector<256x128xbf16>, vector<128x128xbf16>, vector<256x128xf32> -> vector<256x128xf32>
    %79 = arith.addf %75, %78 : vector<256x128xf32>
    %c0_45 = arith.constant 0 : index
    %c0_46 = arith.constant 0 : index
    %80 = vector.load %arg16[%c0_45, %c0_46] : memref<256x128xf32, #tpu.memory_space<vmem>>, vector<256x128xf32>
    tpu.vector_store %arg16[%c0_45, %c0_46], %79 {strides = array<i32>} : memref<256x128xf32, #tpu.memory_space<vmem>>, vector<256x128xf32>,
    %c9 = arith.constant 9 : index
    %c0_47 = arith.constant 0 : index
    %81 = vector.load %arg15[%c9, %c0_47] : memref<304x128xf32, #tpu.memory_space<vmem>>, vector<256x128xf32>
    %82 = vector.broadcast %51 : vector<256x1xf32> to vector<256x128xf32>
    %83 = arith.mulf %81, %82 : vector<256x128xf32>
    %c0_48 = arith.constant 0 : index
    %c0_49 = arith.constant 0 : index
    %84 = vector.load %arg16[%c0_48, %c0_49] : memref<256x128xf32, #tpu.memory_space<vmem>>, vector<256x128xf32>
    %85 = arith.truncf %83 : vector<256x128xf32> to vector<256x128xbf16>
    %c256 = arith.constant 256 : index
    %c0_50 = arith.constant 0 : index
    %86 = vector.load %arg3[%c256, %c0_50] : memref<1152x128xbf16, #tpu.memory_space<vmem>>, vector<128x128xbf16>
    %cst_51 = arith.constant dense<0.000000e+00> : vector<256x128xf32>
    %87 = tpu.matmul %85, %86, %cst_51 {dimension_numbers = #tpu.dot_dimension_numbers<[1], [0], [0], [1], [0, 0, 1, 1], [], []>} : vector<256x128xbf16>, vector<128x128xbf16>, vector<256x128xf32> -> vector<256x128xf32>
    %88 = arith.addf %84, %87 : vector<256x128xf32>
    %c0_52 = arith.constant 0 : index
    %c0_53 = arith.constant 0 : index
    %89 = vector.load %arg16[%c0_52, %c0_53] : memref<256x128xf32, #tpu.memory_space<vmem>>, vector<256x128xf32>
    tpu.vector_store %arg16[%c0_52, %c0_53], %88 {strides = array<i32>} : memref<256x128xf32, #tpu.memory_space<vmem>>, vector<256x128xf32>,
    %c23 = arith.constant 23 : index
    %c0_54 = arith.constant 0 : index
    %90 = vector.load %arg15[%c23, %c0_54] : memref<304x128xf32, #tpu.memory_space<vmem>>, vector<256x128xf32>
    %91 = vector.broadcast %47 : vector<256x1xf32> to vector<256x128xf32>
    %92 = arith.mulf %90, %91 : vector<256x128xf32>
    %c0_55 = arith.constant 0 : index
    %c0_56 = arith.constant 0 : index
    %93 = vector.load %arg16[%c0_55, %c0_56] : memref<256x128xf32, #tpu.memory_space<vmem>>, vector<256x128xf32>
    %94 = arith.truncf %92 : vector<256x128xf32> to vector<256x128xbf16>
    %c384 = arith.constant 384 : index
    %c0_57 = arith.constant 0 : index
    %95 = vector.load %arg3[%c384, %c0_57] : memref<1152x128xbf16, #tpu.memory_space<vmem>>, vector<128x128xbf16>
    %cst_58 = arith.constant dense<0.000000e+00> : vector<256x128xf32>
    %96 = tpu.matmul %94, %95, %cst_58 {dimension_numbers = #tpu.dot_dimension_numbers<[1], [0], [0], [1], [0, 0, 1, 1], [], []>} : vector<256x128xbf16>, vector<128x128xbf16>, vector<256x128xf32> -> vector<256x128xf32>
    %97 = arith.addf %93, %96 : vector<256x128xf32>
    %c0_59 = arith.constant 0 : index
    %c0_60 = arith.constant 0 : index
    %98 = vector.load %arg16[%c0_59, %c0_60] : memref<256x128xf32, #tpu.memory_space<vmem>>, vector<256x128xf32>
    tpu.vector_store %arg16[%c0_59, %c0_60], %97 {strides = array<i32>} : memref<256x128xf32, #tpu.memory_space<vmem>>, vector<256x128xf32>,
    %c24_61 = arith.constant 24 : index
    %c0_62 = arith.constant 0 : index
    %99 = vector.load %arg15[%c24_61, %c0_62] : memref<304x128xf32, #tpu.memory_space<vmem>>, vector<256x128xf32>
    %c0_63 = arith.constant 0 : index
    %c0_64 = arith.constant 0 : index
    %100 = vector.load %arg16[%c0_63, %c0_64] : memref<256x128xf32, #tpu.memory_space<vmem>>, vector<256x128xf32>
    %101 = arith.truncf %99 : vector<256x128xf32> to vector<256x128xbf16>
    %c512 = arith.constant 512 : index
    %c0_65 = arith.constant 0 : index
    %102 = vector.load %arg3[%c512, %c0_65] : memref<1152x128xbf16, #tpu.memory_space<vmem>>, vector<128x128xbf16>
    %cst_66 = arith.constant dense<0.000000e+00> : vector<256x128xf32>
    %103 = tpu.matmul %101, %102, %cst_66 {dimension_numbers = #tpu.dot_dimension_numbers<[1], [0], [0], [1], [0, 0, 1, 1], [], []>} : vector<256x128xbf16>, vector<128x128xbf16>, vector<256x128xf32> -> vector<256x128xf32>
    %104 = arith.addf %100, %103 : vector<256x128xf32>
    %c0_67 = arith.constant 0 : index
    %c0_68 = arith.constant 0 : index
    %105 = vector.load %arg16[%c0_67, %c0_68] : memref<256x128xf32, #tpu.memory_space<vmem>>, vector<256x128xf32>
    tpu.vector_store %arg16[%c0_67, %c0_68], %104 {strides = array<i32>} : memref<256x128xf32, #tpu.memory_space<vmem>>, vector<256x128xf32>,
    %c25 = arith.constant 25 : index
    %c0_69 = arith.constant 0 : index
    %106 = vector.load %arg15[%c25, %c0_69] : memref<304x128xf32, #tpu.memory_space<vmem>>, vector<256x128xf32>
    %107 = vector.broadcast %51 : vector<256x1xf32> to vector<256x128xf32>
    %108 = arith.mulf %106, %107 : vector<256x128xf32>
    %c0_70 = arith.constant 0 : index
    %c0_71 = arith.constant 0 : index
    %109 = vector.load %arg16[%c0_70, %c0_71] : memref<256x128xf32, #tpu.memory_space<vmem>>, vector<256x128xf32>
    %110 = arith.truncf %108 : vector<256x128xf32> to vector<256x128xbf16>
    %c640 = arith.constant 640 : index
    %c0_72 = arith.constant 0 : index
    %111 = vector.load %arg3[%c640, %c0_72] : memref<1152x128xbf16, #tpu.memory_space<vmem>>, vector<128x128xbf16>
    %cst_73 = arith.constant dense<0.000000e+00> : vector<256x128xf32>
    %112 = tpu.matmul %110, %111, %cst_73 {dimension_numbers = #tpu.dot_dimension_numbers<[1], [0], [0], [1], [0, 0, 1, 1], [], []>} : vector<256x128xbf16>, vector<128x128xbf16>, vector<256x128xf32> -> vector<256x128xf32>
    %113 = arith.addf %109, %112 : vector<256x128xf32>
    %c0_74 = arith.constant 0 : index
    %c0_75 = arith.constant 0 : index
    %114 = vector.load %arg16[%c0_74, %c0_75] : memref<256x128xf32, #tpu.memory_space<vmem>>, vector<256x128xf32>
    tpu.vector_store %arg16[%c0_74, %c0_75], %113 {strides = array<i32>} : memref<256x128xf32, #tpu.memory_space<vmem>>, vector<256x128xf32>,
    %c39 = arith.constant 39 : index
    %c0_76 = arith.constant 0 : index
    %115 = vector.load %arg15[%c39, %c0_76] : memref<304x128xf32, #tpu.memory_space<vmem>>, vector<256x128xf32>
    %116 = vector.broadcast %47 : vector<256x1xf32> to vector<256x128xf32>
    %117 = arith.mulf %115, %116 : vector<256x128xf32>
    %c0_77 = arith.constant 0 : index
    %c0_78 = arith.constant 0 : index
    %118 = vector.load %arg16[%c0_77, %c0_78] : memref<256x128xf32, #tpu.memory_space<vmem>>, vector<256x128xf32>
    %119 = arith.truncf %117 : vector<256x128xf32> to vector<256x128xbf16>
    %c768 = arith.constant 768 : index
    %c0_79 = arith.constant 0 : index
    %120 = vector.load %arg3[%c768, %c0_79] : memref<1152x128xbf16, #tpu.memory_space<vmem>>, vector<128x128xbf16>
    %cst_80 = arith.constant dense<0.000000e+00> : vector<256x128xf32>
    %121 = tpu.matmul %119, %120, %cst_80 {dimension_numbers = #tpu.dot_dimension_numbers<[1], [0], [0], [1], [0, 0, 1, 1], [], []>} : vector<256x128xbf16>, vector<128x128xbf16>, vector<256x128xf32> -> vector<256x128xf32>
    %122 = arith.addf %118, %121 : vector<256x128xf32>
    %c0_81 = arith.constant 0 : index
    %c0_82 = arith.constant 0 : index
    %123 = vector.load %arg16[%c0_81, %c0_82] : memref<256x128xf32, #tpu.memory_space<vmem>>, vector<256x128xf32>
    tpu.vector_store %arg16[%c0_81, %c0_82], %122 {strides = array<i32>} : memref<256x128xf32, #tpu.memory_space<vmem>>, vector<256x128xf32>,
    %c40 = arith.constant 40 : index
    %c0_83 = arith.constant 0 : index
    %124 = vector.load %arg15[%c40, %c0_83] : memref<304x128xf32, #tpu.memory_space<vmem>>, vector<256x128xf32>
    %c0_84 = arith.constant 0 : index
    %c0_85 = arith.constant 0 : index
    %125 = vector.load %arg16[%c0_84, %c0_85] : memref<256x128xf32, #tpu.memory_space<vmem>>, vector<256x128xf32>
    %126 = arith.truncf %124 : vector<256x128xf32> to vector<256x128xbf16>
    %c896 = arith.constant 896 : index
    %c0_86 = arith.constant 0 : index
    %127 = vector.load %arg3[%c896, %c0_86] : memref<1152x128xbf16, #tpu.memory_space<vmem>>, vector<128x128xbf16>
    %cst_87 = arith.constant dense<0.000000e+00> : vector<256x128xf32>
    %128 = tpu.matmul %126, %127, %cst_87 {dimension_numbers = #tpu.dot_dimension_numbers<[1], [0], [0], [1], [0, 0, 1, 1], [], []>} : vector<256x128xbf16>, vector<128x128xbf16>, vector<256x128xf32> -> vector<256x128xf32>
    %129 = arith.addf %125, %128 : vector<256x128xf32>
    %c0_88 = arith.constant 0 : index
    %c0_89 = arith.constant 0 : index
    %130 = vector.load %arg16[%c0_88, %c0_89] : memref<256x128xf32, #tpu.memory_space<vmem>>, vector<256x128xf32>
    tpu.vector_store %arg16[%c0_88, %c0_89], %129 {strides = array<i32>} : memref<256x128xf32, #tpu.memory_space<vmem>>, vector<256x128xf32>,
    %c41 = arith.constant 41 : index
    %c0_90 = arith.constant 0 : index
    %131 = vector.load %arg15[%c41, %c0_90] : memref<304x128xf32, #tpu.memory_space<vmem>>, vector<256x128xf32>
    %132 = vector.broadcast %51 : vector<256x1xf32> to vector<256x128xf32>
    %133 = arith.mulf %131, %132 : vector<256x128xf32>
    %c0_91 = arith.constant 0 : index
    %c0_92 = arith.constant 0 : index
    %134 = vector.load %arg16[%c0_91, %c0_92] : memref<256x128xf32, #tpu.memory_space<vmem>>, vector<256x128xf32>
    %135 = arith.truncf %133 : vector<256x128xf32> to vector<256x128xbf16>
    %c1024 = arith.constant 1024 : index
    %c0_93 = arith.constant 0 : index
    %136 = vector.load %arg3[%c1024, %c0_93] : memref<1152x128xbf16, #tpu.memory_space<vmem>>, vector<128x128xbf16>
    %cst_94 = arith.constant dense<0.000000e+00> : vector<256x128xf32>
    %137 = tpu.matmul %135, %136, %cst_94 {dimension_numbers = #tpu.dot_dimension_numbers<[1], [0], [0], [1], [0, 0, 1, 1], [], []>} : vector<256x128xbf16>, vector<128x128xbf16>, vector<256x128xf32> -> vector<256x128xf32>
    %138 = arith.addf %134, %137 : vector<256x128xf32>
    %c0_95 = arith.constant 0 : index
    %c0_96 = arith.constant 0 : index
    %139 = vector.load %arg16[%c0_95, %c0_96] : memref<256x128xf32, #tpu.memory_space<vmem>>, vector<256x128xf32>
    tpu.vector_store %arg16[%c0_95, %c0_96], %138 {strides = array<i32>} : memref<256x128xf32, #tpu.memory_space<vmem>>, vector<256x128xf32>,
    %c0_97 = arith.constant 0 : index
    %c0_98 = arith.constant 0 : index
    %140 = vector.load %arg16[%c0_97, %c0_98] : memref<256x128xf32, #tpu.memory_space<vmem>>, vector<256x128xf32>
    %c0_99 = arith.constant 0 : index
    %c0_100 = arith.constant 0 : index
    %141 = vector.load %arg13[%c0_99, %c0_100] : memref<512x128xf32, #tpu.memory_space<vmem>>, vector<256x128xf32>
    tpu.vector_store %arg13[%c0_99, %c0_100], %140 {strides = array<i32>} : memref<512x128xf32, #tpu.memory_space<vmem>>, vector<256x128xf32>,
    %c256_101 = arith.constant 256 : index
    %c0_102 = arith.constant 0 : index
    %142 = vector.load %arg12[%c256_101, %c0_102] : memref<512x128xf32, #tpu.memory_space<vmem>>, vector<256x128xf32>
    %143 = vector.broadcast %24 : vector<1x128xf32> to vector<256x128xf32>
    %144 = arith.mulf %142, %143 : vector<256x128xf32>
    %145 = vector.broadcast %26 : vector<1x128xf32> to vector<256x128xf32>
    %146 = arith.addf %144, %145 : vector<256x128xf32>
    %cst_103 = arith.constant 0.000000e+00 : f32
    %147 = vector.broadcast %cst_103 : f32 to vector<256x128xf32>
    %148 = arith.maximumf %146, %147 : vector<256x128xf32>
    %c24_104 = arith.constant 24 : index
    %c0_105 = arith.constant 0 : index
    %149 = vector.load %arg15[%c24_104, %c0_105] : memref<304x128xf32, #tpu.memory_space<vmem>>, vector<256x128xf32>
    tpu.vector_store %arg15[%c24_104, %c0_105], %148 {strides = array<i32>} : memref<304x128xf32, #tpu.memory_space<vmem>>, vector<256x128xf32>,
    %cst_106 = arith.constant 0.000000e+00 : f32
    %150 = vector.broadcast %cst_106 : f32 to vector<256x128xf32>
    %c0_107 = arith.constant 0 : index
    %c0_108 = arith.constant 0 : index
    %151 = vector.load %arg16[%c0_107, %c0_108] : memref<256x128xf32, #tpu.memory_space<vmem>>, vector<256x128xf32>
    tpu.vector_store %arg16[%c0_107, %c0_108], %150 {strides = array<i32>} : memref<256x128xf32, #tpu.memory_space<vmem>>, vector<256x128xf32>,
    %c7_109 = arith.constant 7 : index
    %c0_110 = arith.constant 0 : index
    %152 = vector.load %arg15[%c7_109, %c0_110] : memref<304x128xf32, #tpu.memory_space<vmem>>, vector<256x128xf32>
    %153 = vector.broadcast %47 : vector<256x1xf32> to vector<256x128xf32>
    %154 = arith.mulf %152, %153 : vector<256x128xf32>
    %c0_111 = arith.constant 0 : index
    %c0_112 = arith.constant 0 : index
    %155 = vector.load %arg16[%c0_111, %c0_112] : memref<256x128xf32, #tpu.memory_space<vmem>>, vector<256x128xf32>
    %156 = arith.truncf %154 : vector<256x128xf32> to vector<256x128xbf16>
    %c0_113 = arith.constant 0 : index
    %c0_114 = arith.constant 0 : index
    %157 = vector.load %arg3[%c0_113, %c0_114] : memref<1152x128xbf16, #tpu.memory_space<vmem>>, vector<128x128xbf16>
    %cst_115 = arith.constant dense<0.000000e+00> : vector<256x128xf32>
    %158 = tpu.matmul %156, %157, %cst_115 {dimension_numbers = #tpu.dot_dimension_numbers<[1], [0], [0], [1], [0, 0, 1, 1], [], []>} : vector<256x128xbf16>, vector<128x128xbf16>, vector<256x128xf32> -> vector<256x128xf32>
    %159 = arith.addf %155, %158 : vector<256x128xf32>
    %c0_116 = arith.constant 0 : index
    %c0_117 = arith.constant 0 : index
    %160 = vector.load %arg16[%c0_116, %c0_117] : memref<256x128xf32, #tpu.memory_space<vmem>>, vector<256x128xf32>
    tpu.vector_store %arg16[%c0_116, %c0_117], %159 {strides = array<i32>} : memref<256x128xf32, #tpu.memory_space<vmem>>, vector<256x128xf32>,
    %c8_118 = arith.constant 8 : index
    %c0_119 = arith.constant 0 : index
    %161 = vector.load %arg15[%c8_118, %c0_119] : memref<304x128xf32, #tpu.memory_space<vmem>>, vector<256x128xf32>
    %c0_120 = arith.constant 0 : index
    %c0_121 = arith.constant 0 : index
    %162 = vector.load %arg16[%c0_120, %c0_121] : memref<256x128xf32, #tpu.memory_space<vmem>>, vector<256x128xf32>
    %163 = arith.truncf %161 : vector<256x128xf32> to vector<256x128xbf16>
    %c128_122 = arith.constant 128 : index
    %c0_123 = arith.constant 0 : index
    %164 = vector.load %arg3[%c128_122, %c0_123] : memref<1152x128xbf16, #tpu.memory_space<vmem>>, vector<128x128xbf16>
    %cst_124 = arith.constant dense<0.000000e+00> : vector<256x128xf32>
    %165 = tpu.matmul %163, %164, %cst_124 {dimension_numbers = #tpu.dot_dimension_numbers<[1], [0], [0], [1], [0, 0, 1, 1], [], []>} : vector<256x128xbf16>, vector<128x128xbf16>, vector<256x128xf32> -> vector<256x128xf32>
    %166 = arith.addf %162, %165 : vector<256x128xf32>
    %c0_125 = arith.constant 0 : index
    %c0_126 = arith.constant 0 : index
    %167 = vector.load %arg16[%c0_125, %c0_126] : memref<256x128xf32, #tpu.memory_space<vmem>>, vector<256x128xf32>
    tpu.vector_store %arg16[%c0_125, %c0_126], %166 {strides = array<i32>} : memref<256x128xf32, #tpu.memory_space<vmem>>, vector<256x128xf32>,
    %c9_127 = arith.constant 9 : index
    %c0_128 = arith.constant 0 : index
    %168 = vector.load %arg15[%c9_127, %c0_128] : memref<304x128xf32, #tpu.memory_space<vmem>>, vector<256x128xf32>
    %169 = vector.broadcast %51 : vector<256x1xf32> to vector<256x128xf32>
    %170 = arith.mulf %168, %169 : vector<256x128xf32>
    %c0_129 = arith.constant 0 : index
    %c0_130 = arith.constant 0 : index
    %171 = vector.load %arg16[%c0_129, %c0_130] : memref<256x128xf32, #tpu.memory_space<vmem>>, vector<256x128xf32>
    %172 = arith.truncf %170 : vector<256x128xf32> to vector<256x128xbf16>
    %c256_131 = arith.constant 256 : index
    %c0_132 = arith.constant 0 : index
    %173 = vector.load %arg3[%c256_131, %c0_132] : memref<1152x128xbf16, #tpu.memory_space<vmem>>, vector<128x128xbf16>
    %cst_133 = arith.constant dense<0.000000e+00> : vector<256x128xf32>
    %174 = tpu.matmul %172, %173, %cst_133 {dimension_numbers = #tpu.dot_dimension_numbers<[1], [0], [0], [1], [0, 0, 1, 1], [], []>} : vector<256x128xbf16>, vector<128x128xbf16>, vector<256x128xf32> -> vector<256x128xf32>
    %175 = arith.addf %171, %174 : vector<256x128xf32>
    %c0_134 = arith.constant 0 : index
    %c0_135 = arith.constant 0 : index
    %176 = vector.load %arg16[%c0_134, %c0_135] : memref<256x128xf32, #tpu.memory_space<vmem>>, vector<256x128xf32>
    tpu.vector_store %arg16[%c0_134, %c0_135], %175 {strides = array<i32>} : memref<256x128xf32, #tpu.memory_space<vmem>>, vector<256x128xf32>,
    %c23_136 = arith.constant 23 : index
    %c0_137 = arith.constant 0 : index
    %177 = vector.load %arg15[%c23_136, %c0_137] : memref<304x128xf32, #tpu.memory_space<vmem>>, vector<256x128xf32>
    %178 = vector.broadcast %47 : vector<256x1xf32> to vector<256x128xf32>
    %179 = arith.mulf %177, %178 : vector<256x128xf32>
    %c0_138 = arith.constant 0 : index
    %c0_139 = arith.constant 0 : index
    %180 = vector.load %arg16[%c0_138, %c0_139] : memref<256x128xf32, #tpu.memory_space<vmem>>, vector<256x128xf32>
    %181 = arith.truncf %179 : vector<256x128xf32> to vector<256x128xbf16>
    %c384_140 = arith.constant 384 : index
    %c0_141 = arith.constant 0 : index
    %182 = vector.load %arg3[%c384_140, %c0_141] : memref<1152x128xbf16, #tpu.memory_space<vmem>>, vector<128x128xbf16>
    %cst_142 = arith.constant dense<0.000000e+00> : vector<256x128xf32>
    %183 = tpu.matmul %181, %182, %cst_142 {dimension_numbers = #tpu.dot_dimension_numbers<[1], [0], [0], [1], [0, 0, 1, 1], [], []>} : vector<256x128xbf16>, vector<128x128xbf16>, vector<256x128xf32> -> vector<256x128xf32>
    %184 = arith.addf %180, %183 : vector<256x128xf32>
    %c0_143 = arith.constant 0 : index
    %c0_144 = arith.constant 0 : index
    %185 = vector.load %arg16[%c0_143, %c0_144] : memref<256x128xf32, #tpu.memory_space<vmem>>, vector<256x128xf32>
    tpu.vector_store %arg16[%c0_143, %c0_144], %184 {strides = array<i32>} : memref<256x128xf32, #tpu.memory_space<vmem>>, vector<256x128xf32>,
    %c24_145 = arith.constant 24 : index
    %c0_146 = arith.constant 0 : index
    %186 = vector.load %arg15[%c24_145, %c0_146] : memref<304x128xf32, #tpu.memory_space<vmem>>, vector<256x128xf32>
    %c0_147 = arith.constant 0 : index
    %c0_148 = arith.constant 0 : index
    %187 = vector.load %arg16[%c0_147, %c0_148] : memref<256x128xf32, #tpu.memory_space<vmem>>, vector<256x128xf32>
    %188 = arith.truncf %186 : vector<256x128xf32> to vector<256x128xbf16>
    %c512_149 = arith.constant 512 : index
    %c0_150 = arith.constant 0 : index
    %189 = vector.load %arg3[%c512_149, %c0_150] : memref<1152x128xbf16, #tpu.memory_space<vmem>>, vector<128x128xbf16>
    %cst_151 = arith.constant dense<0.000000e+00> : vector<256x128xf32>
    %190 = tpu.matmul %188, %189, %cst_151 {dimension_numbers = #tpu.dot_dimension_numbers<[1], [0], [0], [1], [0, 0, 1, 1], [], []>} : vector<256x128xbf16>, vector<128x128xbf16>, vector<256x128xf32> -> vector<256x128xf32>
    %191 = arith.addf %187, %190 : vector<256x128xf32>
    %c0_152 = arith.constant 0 : index
    %c0_153 = arith.constant 0 : index
    %192 = vector.load %arg16[%c0_152, %c0_153] : memref<256x128xf32, #tpu.memory_space<vmem>>, vector<256x128xf32>
    tpu.vector_store %arg16[%c0_152, %c0_153], %191 {strides = array<i32>} : memref<256x128xf32, #tpu.memory_space<vmem>>, vector<256x128xf32>,
    %c25_154 = arith.constant 25 : index
    %c0_155 = arith.constant 0 : index
    %193 = vector.load %arg15[%c25_154, %c0_155] : memref<304x128xf32, #tpu.memory_space<vmem>>, vector<256x128xf32>
    %194 = vector.broadcast %51 : vector<256x1xf32> to vector<256x128xf32>
    %195 = arith.mulf %193, %194 : vector<256x128xf32>
    %c0_156 = arith.constant 0 : index
    %c0_157 = arith.constant 0 : index
    %196 = vector.load %arg16[%c0_156, %c0_157] : memref<256x128xf32, #tpu.memory_space<vmem>>, vector<256x128xf32>
    %197 = arith.truncf %195 : vector<256x128xf32> to vector<256x128xbf16>
    %c640_158 = arith.constant 640 : index
    %c0_159 = arith.constant 0 : index
    %198 = vector.load %arg3[%c640_158, %c0_159] : memref<1152x128xbf16, #tpu.memory_space<vmem>>, vector<128x128xbf16>
    %cst_160 = arith.constant dense<0.000000e+00> : vector<256x128xf32>
    %199 = tpu.matmul %197, %198, %cst_160 {dimension_numbers = #tpu.dot_dimension_numbers<[1], [0], [0], [1], [0, 0, 1, 1], [], []>} : vector<256x128xbf16>, vector<128x128xbf16>, vector<256x128xf32> -> vector<256x128xf32>
    %200 = arith.addf %196, %199 : vector<256x128xf32>
    %c0_161 = arith.constant 0 : index
    %c0_162 = arith.constant 0 : index
    %201 = vector.load %arg16[%c0_161, %c0_162] : memref<256x128xf32, #tpu.memory_space<vmem>>, vector<256x128xf32>
    tpu.vector_store %arg16[%c0_161, %c0_162], %200 {strides = array<i32>} : memref<256x128xf32, #tpu.memory_space<vmem>>, vector<256x128xf32>,
    %c39_163 = arith.constant 39 : index
    %c0_164 = arith.constant 0 : index
    %202 = vector.load %arg15[%c39_163, %c0_164] : memref<304x128xf32, #tpu.memory_space<vmem>>, vector<256x128xf32>
    %203 = vector.broadcast %47 : vector<256x1xf32> to vector<256x128xf32>
    %204 = arith.mulf %202, %203 : vector<256x128xf32>
    %c0_165 = arith.constant 0 : index
    %c0_166 = arith.constant 0 : index
    %205 = vector.load %arg16[%c0_165, %c0_166] : memref<256x128xf32, #tpu.memory_space<vmem>>, vector<256x128xf32>
    %206 = arith.truncf %204 : vector<256x128xf32> to vector<256x128xbf16>
    %c768_167 = arith.constant 768 : index
    %c0_168 = arith.constant 0 : index
    %207 = vector.load %arg3[%c768_167, %c0_168] : memref<1152x128xbf16, #tpu.memory_space<vmem>>, vector<128x128xbf16>
    %cst_169 = arith.constant dense<0.000000e+00> : vector<256x128xf32>
    %208 = tpu.matmul %206, %207, %cst_169 {dimension_numbers = #tpu.dot_dimension_numbers<[1], [0], [0], [1], [0, 0, 1, 1], [], []>} : vector<256x128xbf16>, vector<128x128xbf16>, vector<256x128xf32> -> vector<256x128xf32>
    %209 = arith.addf %205, %208 : vector<256x128xf32>
    %c0_170 = arith.constant 0 : index
    %c0_171 = arith.constant 0 : index
    %210 = vector.load %arg16[%c0_170, %c0_171] : memref<256x128xf32, #tpu.memory_space<vmem>>, vector<256x128xf32>
    tpu.vector_store %arg16[%c0_170, %c0_171], %209 {strides = array<i32>} : memref<256x128xf32, #tpu.memory_space<vmem>>, vector<256x128xf32>,
    %c40_172 = arith.constant 40 : index
    %c0_173 = arith.constant 0 : index
    %211 = vector.load %arg15[%c40_172, %c0_173] : memref<304x128xf32, #tpu.memory_space<vmem>>, vector<256x128xf32>
    %c0_174 = arith.constant 0 : index
    %c0_175 = arith.constant 0 : index
    %212 = vector.load %arg16[%c0_174, %c0_175] : memref<256x128xf32, #tpu.memory_space<vmem>>, vector<256x128xf32>
    %213 = arith.truncf %211 : vector<256x128xf32> to vector<256x128xbf16>
    %c896_176 = arith.constant 896 : index
    %c0_177 = arith.constant 0 : index
    %214 = vector.load %arg3[%c896_176, %c0_177] : memref<1152x128xbf16, #tpu.memory_space<vmem>>, vector<128x128xbf16>
    %cst_178 = arith.constant dense<0.000000e+00> : vector<256x128xf32>
    %215 = tpu.matmul %213, %214, %cst_178 {dimension_numbers = #tpu.dot_dimension_numbers<[1], [0], [0], [1], [0, 0, 1, 1], [], []>} : vector<256x128xbf16>, vector<128x128xbf16>, vector<256x128xf32> -> vector<256x128xf32>
    %216 = arith.addf %212, %215 : vector<256x128xf32>
    %c0_179 = arith.constant 0 : index
    %c0_180 = arith.constant 0 : index
    %217 = vector.load %arg16[%c0_179, %c0_180] : memref<256x128xf32, #tpu.memory_space<vmem>>, vector<256x128xf32>
    tpu.vector_store %arg16[%c0_179, %c0_180], %216 {strides = array<i32>} : memref<256x128xf32, #tpu.memory_space<vmem>>, vector<256x128xf32>,
    %c41_181 = arith.constant 41 : index
    %c0_182 = arith.constant 0 : index
    %218 = vector.load %arg15[%c41_181, %c0_182] : memref<304x128xf32, #tpu.memory_space<vmem>>, vector<256x128xf32>
    %219 = vector.broadcast %51 : vector<256x1xf32> to vector<256x128xf32>
    %220 = arith.mulf %218, %219 : vector<256x128xf32>
    %c0_183 = arith.constant 0 : index
    %c0_184 = arith.constant 0 : index
    %221 = vector.load %arg16[%c0_183, %c0_184] : memref<256x128xf32, #tpu.memory_space<vmem>>, vector<256x128xf32>
    %222 = arith.truncf %220 : vector<256x128xf32> to vector<256x128xbf16>
    %c1024_185 = arith.constant 1024 : index
    %c0_186 = arith.constant 0 : index
    %223 = vector.load %arg3[%c1024_185, %c0_186] : memref<1152x128xbf16, #tpu.memory_space<vmem>>, vector<128x128xbf16>
    %cst_187 = arith.constant dense<0.000000e+00> : vector<256x128xf32>
    %224 = tpu.matmul %222, %223, %cst_187 {dimension_numbers = #tpu.dot_dimension_numbers<[1], [0], [0], [1], [0, 0, 1, 1], [], []>} : vector<256x128xbf16>, vector<128x128xbf16>, vector<256x128xf32> -> vector<256x128xf32>
    %225 = arith.addf %221, %224 : vector<256x128xf32>
    %c0_188 = arith.constant 0 : index
    %c0_189 = arith.constant 0 : index
    %226 = vector.load %arg16[%c0_188, %c0_189] : memref<256x128xf32, #tpu.memory_space<vmem>>, vector<256x128xf32>
    tpu.vector_store %arg16[%c0_188, %c0_189], %225 {strides = array<i32>} : memref<256x128xf32, #tpu.memory_space<vmem>>, vector<256x128xf32>,
    %c0_190 = arith.constant 0 : index
    %c0_191 = arith.constant 0 : index
    %227 = vector.load %arg16[%c0_190, %c0_191] : memref<256x128xf32, #tpu.memory_space<vmem>>, vector<256x128xf32>
    %c256_192 = arith.constant 256 : index
    %c0_193 = arith.constant 0 : index
    %228 = vector.load %arg13[%c256_192, %c0_193] : memref<512x128xf32, #tpu.memory_space<vmem>>, vector<256x128xf32>
    tpu.vector_store %arg13[%c256_192, %c0_193], %227 {strides = array<i32>} : memref<512x128xf32, #tpu.memory_space<vmem>>, vector<256x128xf32>,
    %c0_194 = arith.constant 0 : index
    %c0_195 = arith.constant 0 : index
    %229 = vector.load %arg13[%c0_194, %c0_195] : memref<512x128xf32, #tpu.memory_space<vmem>>, vector<512x128xf32>
    %c0_196 = arith.constant 0 : index
    %c0_197 = arith.constant 0 : index
    %230 = vector.load %arg7[%c0_196, %c0_197] : memref<1x128xf32, #tpu.memory_space<vmem>>, vector<1x128xf32>
    %c0_198 = arith.constant 0 : index
    %c0_199 = arith.constant 0 : index
    %231 = vector.load %arg8[%c0_198, %c0_199] : memref<1x128xf32, #tpu.memory_space<vmem>>, vector<1x128xf32>
    %cst_200 = arith.constant dense<0.000000e+00> : vector<128xf32>
    %232 = vector.multi_reduction <add>, %229, %cst_200 [0] : vector<512x128xf32> to vector<128xf32>
    %233 = vector.shape_cast %232 : vector<128xf32> to vector<1x128xf32>
    %cst_201 = arith.constant 0.001953125 : f32
    %234 = vector.broadcast %cst_201 : f32 to vector<1x128xf32>
    %235 = arith.mulf %233, %234 : vector<1x128xf32>
    %236 = arith.mulf %229, %229 : vector<512x128xf32>
    %cst_202 = arith.constant dense<0.000000e+00> : vector<128xf32>
    %237 = vector.multi_reduction <add>, %236, %cst_202 [0] : vector<512x128xf32> to vector<128xf32>
    %238 = vector.shape_cast %237 : vector<128xf32> to vector<1x128xf32>
    %cst_203 = arith.constant 0.001953125 : f32
    %239 = vector.broadcast %cst_203 : f32 to vector<1x128xf32>
    %240 = arith.mulf %238, %239 : vector<1x128xf32>
    %241 = arith.mulf %235, %235 : vector<1x128xf32>
    %242 = arith.subf %240, %241 : vector<1x128xf32>
    %cst_204 = arith.constant 0.000000e+00 : f32
    %243 = vector.broadcast %cst_204 : f32 to vector<1x128xf32>
    %244 = arith.maximumf %242, %243 : vector<1x128xf32>
    %cst_205 = arith.constant 9.99999974E-6 : f32
    %245 = vector.broadcast %cst_205 : f32 to vector<1x128xf32>
    %246 = arith.addf %244, %245 : vector<1x128xf32>
    %247 = math.rsqrt %246 : vector<1x128xf32>
    %248 = arith.mulf %230, %247 : vector<1x128xf32>
    %249 = arith.mulf %235, %248 : vector<1x128xf32>
    %250 = arith.subf %231, %249 : vector<1x128xf32>
    %c0_206 = arith.constant 0 : index
    %c0_207 = arith.constant 0 : index
    %251 = vector.load %arg13[%c0_206, %c0_207] : memref<512x128xf32, #tpu.memory_space<vmem>>, vector<512x128xf32>
    %252 = vector.broadcast %248 : vector<1x128xf32> to vector<512x128xf32>
    %253 = arith.mulf %251, %252 : vector<512x128xf32>
    %254 = vector.broadcast %250 : vector<1x128xf32> to vector<512x128xf32>
    %255 = arith.addf %253, %254 : vector<512x128xf32>
    %cst_208 = arith.constant 0.000000e+00 : f32
    %256 = vector.broadcast %cst_208 : f32 to vector<512x128xf32>
    %257 = arith.maximumf %255, %256 : vector<512x128xf32>
    %258 = arith.truncf %257 : vector<512x128xf32> to vector<512x128xbf16>
    %c0_209 = arith.constant 0 : index
    %c0_210 = arith.constant 0 : index
    %259 = vector.load %arg4[%c0_209, %c0_210] : memref<128x128xbf16, #tpu.memory_space<vmem>>, vector<128x128xbf16>
    %cst_211 = arith.constant dense<0.000000e+00> : vector<512x128xf32>
    %260 = tpu.matmul %258, %259, %cst_211 {dimension_numbers = #tpu.dot_dimension_numbers<[1], [0], [0], [1], [0, 0, 1, 1], [], []>} : vector<512x128xbf16>, vector<128x128xbf16>, vector<512x128xf32> -> vector<512x128xf32>
    %c0_212 = arith.constant 0 : index
    %c0_213 = arith.constant 0 : index
    %261 = vector.load %arg14[%c0_212, %c0_213] : memref<512x128xf32, #tpu.memory_space<vmem>>, vector<512x128xf32>
    tpu.vector_store %arg14[%c0_212, %c0_213], %260 {strides = array<i32>} : memref<512x128xf32, #tpu.memory_space<vmem>>, vector<512x128xf32>,
    %c0_214 = arith.constant 0 : index
    %c0_215 = arith.constant 0 : index
    %262 = vector.load %arg14[%c0_214, %c0_215] : memref<512x128xf32, #tpu.memory_space<vmem>>, vector<512x128xf32>
    %c0_216 = arith.constant 0 : index
    %c0_217 = arith.constant 0 : index
    %263 = vector.load %arg9[%c0_216, %c0_217] : memref<1x128xf32, #tpu.memory_space<vmem>>, vector<1x128xf32>
    %c0_218 = arith.constant 0 : index
    %c0_219 = arith.constant 0 : index
    %264 = vector.load %arg10[%c0_218, %c0_219] : memref<1x128xf32, #tpu.memory_space<vmem>>, vector<1x128xf32>
    %cst_220 = arith.constant dense<0.000000e+00> : vector<128xf32>
    %265 = vector.multi_reduction <add>, %262, %cst_220 [0] : vector<512x128xf32> to vector<128xf32>
    %266 = vector.shape_cast %265 : vector<128xf32> to vector<1x128xf32>
    %cst_221 = arith.constant 0.001953125 : f32
    %267 = vector.broadcast %cst_221 : f32 to vector<1x128xf32>
    %268 = arith.mulf %266, %267 : vector<1x128xf32>
    %269 = arith.mulf %262, %262 : vector<512x128xf32>
    %cst_222 = arith.constant dense<0.000000e+00> : vector<128xf32>
    %270 = vector.multi_reduction <add>, %269, %cst_222 [0] : vector<512x128xf32> to vector<128xf32>
    %271 = vector.shape_cast %270 : vector<128xf32> to vector<1x128xf32>
    %cst_223 = arith.constant 0.001953125 : f32
    %272 = vector.broadcast %cst_223 : f32 to vector<1x128xf32>
    %273 = arith.mulf %271, %272 : vector<1x128xf32>
    %274 = arith.mulf %268, %268 : vector<1x128xf32>
    %275 = arith.subf %273, %274 : vector<1x128xf32>
    %cst_224 = arith.constant 0.000000e+00 : f32
    %276 = vector.broadcast %cst_224 : f32 to vector<1x128xf32>
    %277 = arith.maximumf %275, %276 : vector<1x128xf32>
    %cst_225 = arith.constant 9.99999974E-6 : f32
    %278 = vector.broadcast %cst_225 : f32 to vector<1x128xf32>
    %279 = arith.addf %277, %278 : vector<1x128xf32>
    %280 = math.rsqrt %279 : vector<1x128xf32>
    %281 = arith.mulf %263, %280 : vector<1x128xf32>
    %282 = arith.mulf %268, %281 : vector<1x128xf32>
    %283 = arith.subf %264, %282 : vector<1x128xf32>
    %c0_226 = arith.constant 0 : index
    %c0_227 = arith.constant 0 : index
    %284 = vector.load %arg14[%c0_226, %c0_227] : memref<512x128xf32, #tpu.memory_space<vmem>>, vector<512x128xf32>
    %285 = vector.broadcast %281 : vector<1x128xf32> to vector<512x128xf32>
    %286 = arith.mulf %284, %285 : vector<512x128xf32>
    %287 = vector.broadcast %283 : vector<1x128xf32> to vector<512x128xf32>
    %288 = arith.addf %286, %287 : vector<512x128xf32>
    %c0_228 = arith.constant 0 : index
    %c0_229 = arith.constant 0 : index
    %289 = vector.load %arg1[%c0_228, %c0_229] : memref<512x128xf32, #tpu.memory_space<vmem>>, vector<512x128xf32>
    %290 = arith.addf %288, %289 : vector<512x128xf32>
    %cst_230 = arith.constant 0.000000e+00 : f32
    %291 = vector.broadcast %cst_230 : f32 to vector<512x128xf32>
    %292 = arith.maximumf %290, %291 : vector<512x128xf32>
    %c0_231 = arith.constant 0 : index
    %c0_232 = arith.constant 0 : index
    %293 = vector.load %arg11[%c0_231, %c0_232] : memref<512x128xf32, #tpu.memory_space<vmem>>, vector<512x128xf32>
    tpu.vector_store %arg11[%c0_231, %c0_232], %292 {strides = array<i32>} : memref<512x128xf32, #tpu.memory_space<vmem>>, vector<512x128xf32>,
    return
  }
  func.func @transform_0(%arg0: i32) -> (i32, i32) {
    %c0_i32 = arith.constant 0 : i32
    %c0_i32_0 = arith.constant 0 : i32
    %c0_i32_1 = arith.constant 0 : i32
    return %c0_i32, %c0_i32_0 : i32, i32
  }
  func.func @transform_1(%arg0: i32) -> (i32, i32) {
    %c0_i32 = arith.constant 0 : i32
    %c0_i32_0 = arith.constant 0 : i32
    %c0_i32_1 = arith.constant 0 : i32
    return %c0_i32, %c0_i32_0 : i32, i32
  }
  func.func @transform_2(%arg0: i32) -> (i32, i32) {
    %c0_i32 = arith.constant 0 : i32
    %c0_i32_0 = arith.constant 0 : i32
    %c0_i32_1 = arith.constant 0 : i32
    return %c0_i32, %c0_i32_0 : i32, i32
  }
  func.func @transform_3(%arg0: i32) -> (i32, i32) {
    %c0_i32 = arith.constant 0 : i32
    %c0_i32_0 = arith.constant 0 : i32
    %c0_i32_1 = arith.constant 0 : i32
    return %c0_i32, %c0_i32_0 : i32, i32
  }
  func.func @transform_4(%arg0: i32) -> (i32, i32) {
    %c0_i32 = arith.constant 0 : i32
    %c0_i32_0 = arith.constant 0 : i32
    %c0_i32_1 = arith.constant 0 : i32
    return %c0_i32, %c0_i32_0 : i32, i32
  }
  func.func @transform_5(%arg0: i32) -> (i32, i32) {
    %c0_i32 = arith.constant 0 : i32
    %c0_i32_0 = arith.constant 0 : i32
    %c0_i32_1 = arith.constant 0 : i32
    return %c0_i32, %c0_i32_0 : i32, i32
  }
  func.func @transform_6(%arg0: i32) -> (i32, i32) {
    %c0_i32 = arith.constant 0 : i32
    %c0_i32_0 = arith.constant 0 : i32
    %c0_i32_1 = arith.constant 0 : i32
    return %c0_i32, %c0_i32_0 : i32, i32
  }
  func.func @transform_7(%arg0: i32) -> (i32, i32) {
    %c0_i32 = arith.constant 0 : i32
    %c0_i32_0 = arith.constant 0 : i32
    %c0_i32_1 = arith.constant 0 : i32
    return %c0_i32, %c0_i32_0 : i32, i32
  }
  func.func @transform_8(%arg0: i32) -> (i32, i32) {
    %c0_i32 = arith.constant 0 : i32
    %c0_i32_0 = arith.constant 0 : i32
    %c0_i32_1 = arith.constant 0 : i32
    return %c0_i32, %c0_i32_0 : i32, i32
  }
  func.func @transform_9(%arg0: i32) -> (i32, i32) {
    %c0_i32 = arith.constant 0 : i32
    %c0_i32_0 = arith.constant 0 : i32
    %c0_i32_1 = arith.constant 0 : i32
    return %c0_i32, %c0_i32_0 : i32, i32
  }
  func.func @transform_10(%arg0: i32) -> (i32, i32) {
    %c0_i32 = arith.constant 0 : i32
    %c0_i32_0 = arith.constant 0 : i32
    %c0_i32_1 = arith.constant 0 : i32
    return %c0_i32, %c0_i32_0 : i32, i32
  }
}

</mosaic_0001>

<llo_original>
// kernel: bottleneck_forward.1
$region0: #{bottleneck_forward.1}
  #allocation0 [shape = 'u32[]', space=smem, size = 0x4, offset = 0x4, fixed_abs, tag = 'smem constant byte address 0x4 - core index']
  #allocation1 [shape = 'u32[144,128]{1,0:T(1,128)}', space=vmem, size = 0x12000, scoped, tag = 'internal scratch']
  #allocation2 [shape = 'f32[512,128]{1,0:T(8,128)}', space=vmem, size = 0x40000, scoped, tag = 'scratch operand']
  #allocation3 [shape = 'f32[512,128]{1,0:T(8,128)}', space=vmem, size = 0x40000, scoped, tag = 'scratch operand']
  #allocation4 [shape = 'f32[512,128]{1,0:T(8,128)}', space=vmem, size = 0x40000, scoped, tag = 'scratch operand']
  #allocation5 [shape = 'f32[304,128]{1,0:T(8,128)}', space=vmem, size = 0x26000, scoped, tag = 'scratch operand']
  #allocation6 [shape = 'f32[256,128]{1,0:T(8,128)}', space=vmem, size = 0x20000, scoped, tag = 'scratch operand']
  %s0 = inlined_call_operand.vmem [shape: f32[512,128], index: 0, kind: input, shape index: {}]
  %s1 = inlined_call_operand.vmem [shape: bf16[128,128], index: 1, kind: input, shape index: {}]
  %s2 = inlined_call_operand.vmem [shape: bf16[1152,128], index: 2, kind: input, shape index: {}]
  %s3 = inlined_call_operand.vmem [shape: bf16[128,128], index: 3, kind: input, shape index: {}]
  %s4 = inlined_call_operand.vmem [shape: f32[1,128], index: 4, kind: input, shape index: {}]
  %s5 = inlined_call_operand.vmem [shape: f32[1,128], index: 5, kind: input, shape index: {}]
  %s6 = inlined_call_operand.vmem [shape: f32[1,128], index: 6, kind: input, shape index: {}]
  %s7 = inlined_call_operand.vmem [shape: f32[1,128], index: 7, kind: input, shape index: {}]
  %s8 = inlined_call_operand.vmem [shape: f32[1,128], index: 8, kind: input, shape index: {}]
  %s9 = inlined_call_operand.vmem [shape: f32[1,128], index: 9, kind: input, shape index: {}]
  %s10 = inlined_call_operand.vmem [shape: f32[512,128], index: 10, kind: output, shape index: {}]
  %s11 = sld [smem:[#allocation0]]
  $region50: #{bottleneck_forward.1} parent=0
    _
  %s13 = ssub.s32 1, %s11
  %s14 = scalar_select 0, %s13, %s11
  // Predicated region
  $region2: #{bottleneck_forward.1} parent=0 // pred_check
    _
  $region3: #{bottleneck_forward.1} parent=0 // pred_check_branch
    %16 = sbr.rel (0) target = $region5
  $region4: #{bottleneck_forward.1} parent=0 // pred_region
    _
  $region5: #{bottleneck_forward.1} parent=0 // pred_fallthru
    _
  // Predicated region
  $region6: #{bottleneck_forward.1} parent=0 // pred_check
    _
  $region7: #{bottleneck_forward.1} parent=0 // pred_check_branch
    %18 = sbr.rel (0) target = $region9
  $region8: #{bottleneck_forward.1} parent=0 // pred_region
    _
  $region9: #{bottleneck_forward.1} parent=0 // pred_fallthru
    _
  // Predicated region
  $region10: #{bottleneck_forward.1} parent=0 // pred_check
    _
  $region11: #{bottleneck_forward.1} parent=0 // pred_check_branch
    %20 = sbr.rel (0) target = $region13
  $region12: #{bottleneck_forward.1} parent=0 // pred_region
    _
  $region13: #{bottleneck_forward.1} parent=0 // pred_fallthru
    _
  // Predicated region
  $region14: #{bottleneck_forward.1} parent=0 // pred_check
    _
  $region15: #{bottleneck_forward.1} parent=0 // pred_check_branch
    %22 = sbr.rel (0) target = $region17
  $region16: #{bottleneck_forward.1} parent=0 // pred_region
    _
  $region17: #{bottleneck_forward.1} parent=0 // pred_fallthru
    _
  // Predicated region
  $region18: #{bottleneck_forward.1} parent=0 // pred_check
    _
  $region19: #{bottleneck_forward.1} parent=0 // pred_check_branch
    %24 = sbr.rel (0) target = $region21
  $region20: #{bottleneck_forward.1} parent=0 // pred_region
    _
  $region21: #{bottleneck_forward.1} parent=0 // pred_fallthru
    _
  // Predicated region
  $region22: #{bottleneck_forward.1} parent=0 // pred_check
    _
  $region23: #{bottleneck_forward.1} parent=0 // pred_check_branch
    %26 = sbr.rel (0) target = $region25
  $region24: #{bottleneck_forward.1} parent=0 // pred_region
    _
  $region25: #{bottleneck_forward.1} parent=0 // pred_fallthru
    _
  // Predicated region
  $region26: #{bottleneck_forward.1} parent=0 // pred_check
    _
  $region27: #{bottleneck_forward.1} parent=0 // pred_check_branch
    %28 = sbr.rel (0) target = $region29
  $region28: #{bottleneck_forward.1} parent=0 // pred_region
    _
  $region29: #{bottleneck_forward.1} parent=0 // pred_fallthru
    _
  // Predicated region
  $region30: #{bottleneck_forward.1} parent=0 // pred_check
    _
  $region31: #{bottleneck_forward.1} parent=0 // pred_check_branch
    %30 = sbr.rel (0) target = $region33
  $region32: #{bottleneck_forward.1} parent=0 // pred_region
    _
  $region33: #{bottleneck_forward.1} parent=0 // pred_fallthru
    _
  // Predicated region
  $region34: #{bottleneck_forward.1} parent=0 // pred_check
    _
  $region35: #{bottleneck_forward.1} parent=0 // pred_check_branch
    %32 = sbr.rel (0) target = $region37
  $region36: #{bottleneck_forward.1} parent=0 // pred_region
    _
  $region37: #{bottleneck_forward.1} parent=0 // pred_fallthru
    _
  // Predicated region
  $region38: #{bottleneck_forward.1} parent=0 // pred_check
    _
  $region39: #{bottleneck_forward.1} parent=0 // pred_check_branch
    %34 = sbr.rel (0) target = $region41
  $region40: #{bottleneck_forward.1} parent=0 // pred_region
    _
  $region41: #{bottleneck_forward.1} parent=0 // pred_fallthru
    _
  %v36 = vld [vmem:[%s0] sm:$0xff]
  %v37 = vld [vmem:[%s0 + $0x8] sm:$0xff]
  %v38 = vld [vmem:[%s0 + $0x10] sm:$0xff]
  %v39 = vld [vmem:[%s0 + $0x18] sm:$0xff]
  %v40 = vld [vmem:[%s0 + $0x20] sm:$0xff]
  %v41 = vld [vmem:[%s0 + $0x28] sm:$0xff]
  %v42 = vld [vmem:[%s0 + $0x30] sm:$0xff]
  %v43 = vld [vmem:[%s0 + $0x38] sm:$0xff]
  %v44 = vld [vmem:[%s0 + $0x40] sm:$0xff]
  %v45 = vld [vmem:[%s0 + $0x48] sm:$0xff]
  %v46 = vld [vmem:[%s0 + $0x50] sm:$0xff]
  %v47 = vld [vmem:[%s0 + $0x58] sm:$0xff]
  %v48 = vld [vmem:[%s0 + $0x60] sm:$0xff]
  %v49 = vld [vmem:[%s0 + $0x68] sm:$0xff]
  %v50 = vld [vmem:[%s0 + $0x70] sm:$0xff]
  %v51 = vld [vmem:[%s0 + $0x78] sm:$0xff]
  %v52 = vld [vmem:[%s0 + $0x80] sm:$0xff]
  %v53 = vld [vmem:[%s0 + $0x88] sm:$0xff]
  %v54 = vld [vmem:[%s0 + $0x90] sm:$0xff]
  %v55 = vld [vmem:[%s0 + $0x98] sm:$0xff]
  %v56 = vld [vmem:[%s0 + $0xa0] sm:$0xff]
  %v57 = vld [vmem:[%s0 + $0xa8] sm:$0xff]
  %v58 = vld [vmem:[%s0 + $0xb0] sm:$0xff]
  %v59 = vld [vmem:[%s0 + $0xb8] sm:$0xff]
  %v60 = vld [vmem:[%s0 + $0xc0] sm:$0xff]
  %v61 = vld [vmem:[%s0 + $0xc8] sm:$0xff]
  %v62 = vld [vmem:[%s0 + $0xd0] sm:$0xff]
  %v63 = vld [vmem:[%s0 + $0xd8] sm:$0xff]
  %v64 = vld [vmem:[%s0 + $0xe0] sm:$0xff]
  %v65 = vld [vmem:[%s0 + $0xe8] sm:$0xff]
  %v66 = vld [vmem:[%s0 + $0xf0] sm:$0xff]
  %v67 = vld [vmem:[%s0 + $0xf8] sm:$0xff]
  %v68 = vld [vmem:[%s0 + $0x100] sm:$0xff]
  %v69 = vld [vmem:[%s0 + $0x108] sm:$0xff]
  %v70 = vld [vmem:[%s0 + $0x110] sm:$0xff]
  %v71 = vld [vmem:[%s0 + $0x118] sm:$0xff]
  %v72 = vld [vmem:[%s0 + $0x120] sm:$0xff]
  %v73 = vld [vmem:[%s0 + $0x128] sm:$0xff]
  %v74 = vld [vmem:[%s0 + $0x130] sm:$0xff]
  %v75 = vld [vmem:[%s0 + $0x138] sm:$0xff]
  %v76 = vld [vmem:[%s0 + $0x140] sm:$0xff]
  %v77 = vld [vmem:[%s0 + $0x148] sm:$0xff]
  %v78 = vld [vmem:[%s0 + $0x150] sm:$0xff]
  %v79 = vld [vmem:[%s0 + $0x158] sm:$0xff]
  %v80 = vld [vmem:[%s0 + $0x160] sm:$0xff]
  %v81 = vld [vmem:[%s0 + $0x168] sm:$0xff]
  %v82 = vld [vmem:[%s0 + $0x170] sm:$0xff]
  %v83 = vld [vmem:[%s0 + $0x178] sm:$0xff]
  %v84 = vld [vmem:[%s0 + $0x180] sm:$0xff]
  %v85 = vld [vmem:[%s0 + $0x188] sm:$0xff]
  %v86 = vld [vmem:[%s0 + $0x190] sm:$0xff]
  %v87 = vld [vmem:[%s0 + $0x198] sm:$0xff]
  %v88 = vld [vmem:[%s0 + $0x1a0] sm:$0xff]
  %v89 = vld [vmem:[%s0 + $0x1a8] sm:$0xff]
  %v90 = vld [vmem:[%s0 + $0x1b0] sm:$0xff]
  %v91 = vld [vmem:[%s0 + $0x1b8] sm:$0xff]
  %v92 = vld [vmem:[%s0 + $0x1c0] sm:$0xff]
  %v93 = vld [vmem:[%s0 + $0x1c8] sm:$0xff]
  %v94 = vld [vmem:[%s0 + $0x1d0] sm:$0xff]
  %v95 = vld [vmem:[%s0 + $0x1d8] sm:$0xff]
  %v96 = vld [vmem:[%s0 + $0x1e0] sm:$0xff]
  %v97 = vld [vmem:[%s0 + $0x1e8] sm:$0xff]
  %v98 = vld [vmem:[%s0 + $0x1f0] sm:$0xff]
  %v99 = vld [vmem:[%s0 + $0x1f8] sm:$0xff]
  %v100 = vpack.c.bf16 %v37, %v36
  %v101 = vpack.c.bf16 %v39, %v38
  %v102 = vpack.c.bf16 %v41, %v40
  %v103 = vpack.c.bf16 %v43, %v42
  %v104 = vpack.c.bf16 %v45, %v44
  %v105 = vpack.c.bf16 %v47, %v46
  %v106 = vpack.c.bf16 %v49, %v48
  %v107 = vpack.c.bf16 %v51, %v50
  %v108 = vpack.c.bf16 %v53, %v52
  %v109 = vpack.c.bf16 %v55, %v54
  %v110 = vpack.c.bf16 %v57, %v56
  %v111 = vpack.c.bf16 %v59, %v58
  %v112 = vpack.c.bf16 %v61, %v60
  %v113 = vpack.c.bf16 %v63, %v62
  %v114 = vpack.c.bf16 %v65, %v64
  %v115 = vpack.c.bf16 %v67, %v66
  %v116 = vpack.c.bf16 %v69, %v68
  %v117 = vpack.c.bf16 %v71, %v70
  %v118 = vpack.c.bf16 %v73, %v72
  %v119 = vpack.c.bf16 %v75, %v74
  %v120 = vpack.c.bf16 %v77, %v76
  %v121 = vpack.c.bf16 %v79, %v78
  %v122 = vpack.c.bf16 %v81, %v80
  %v123 = vpack.c.bf16 %v83, %v82
  %v124 = vpack.c.bf16 %v85, %v84
  %v125 = vpack.c.bf16 %v87, %v86
  %v126 = vpack.c.bf16 %v89, %v88
  %v127 = vpack.c.bf16 %v91, %v90
  %v128 = vpack.c.bf16 %v93, %v92
  %v129 = vpack.c.bf16 %v95, %v94
  %v130 = vpack.c.bf16 %v97, %v96
  %v131 = vpack.c.bf16 %v99, %v98
  %v132 = vld [vmem:[%s1] sm:$0xf]
  %v133 = vld [vmem:[%s1 + $0x4] sm:$0xf]
  %v134 = vld [vmem:[%s1 + $0x8] sm:$0xf]
  %v135 = vld [vmem:[%s1 + $0xc] sm:$0xf]
  %v136 = vld [vmem:[%s1 + $0x10] sm:$0xf]
  %v137 = vld [vmem:[%s1 + $0x14] sm:$0xf]
  %v138 = vld [vmem:[%s1 + $0x18] sm:$0xf]
  %v139 = vld [vmem:[%s1 + $0x1c] sm:$0xf]
  %v140 = vld [vmem:[%s1 + $0x20] sm:$0xf]
  %v141 = vld [vmem:[%s1 + $0x24] sm:$0xf]
  %v142 = vld [vmem:[%s1 + $0x28] sm:$0xf]
  %v143 = vld [vmem:[%s1 + $0x2c] sm:$0xf]
  %v144 = vld [vmem:[%s1 + $0x30] sm:$0xf]
  %v145 = vld [vmem:[%s1 + $0x34] sm:$0xf]
  %v146 = vld [vmem:[%s1 + $0x38] sm:$0xf]
  %v147 = vld [vmem:[%s1 + $0x3c] sm:$0xf]
  %v164 = vunpack.c.l.b16 %v132
  %v165 = vunpack.c.l.b16 %v133
  %v166 = vunpack.c.l.b16 %v134
  %v167 = vunpack.c.l.b16 %v135
  %v168 = vunpack.c.l.b16 %v136
  %v169 = vunpack.c.l.b16 %v137
  %v170 = vunpack.c.l.b16 %v138
  %v171 = vunpack.c.l.b16 %v139
  %v172 = vunpack.c.l.b16 %v140
  %v173 = vunpack.c.l.b16 %v141
  %v174 = vunpack.c.l.b16 %v142
  %v175 = vunpack.c.l.b16 %v143
  %v176 = vunpack.c.l.b16 %v144
  %v177 = vunpack.c.l.b16 %v145
  %v178 = vunpack.c.l.b16 %v146
  %v179 = vunpack.c.l.b16 %v147
  %v180 = vpack.c.b16 %v165, %v164
  %v181 = vpack.c.b16 %v167, %v166
  %v182 = vpack.c.b16 %v169, %v168
  %v183 = vpack.c.b16 %v171, %v170
  %v184 = vpack.c.b16 %v173, %v172
  %v185 = vpack.c.b16 %v175, %v174
  %v186 = vpack.c.b16 %v177, %v176
  %v187 = vpack.c.b16 %v179, %v178
  %196 = vmatprep.subr.bf16.mxu0 0
  %197 = vmatpush1.bf16.msra.mxu0 %v180
  %198 = vmatprep.subr.bf16.mxu0 0
  %199 = vmatpush1.bf16.msra.mxu0 %v181
  %200 = vmatprep.subr.bf16.mxu0 0
  %201 = vmatpush1.bf16.msra.mxu0 %v182
  %202 = vmatprep.subr.bf16.mxu0 0
  %203 = vmatpush1.bf16.msra.mxu0 %v183
  %204 = vmatprep.subr.bf16.mxu0 0
  %205 = vmatpush1.bf16.msra.mxu0 %v184
  %206 = vmatprep.subr.bf16.mxu0 0
  %207 = vmatpush1.bf16.msra.mxu0 %v185
  %208 = vmatprep.subr.bf16.mxu0 0
  %209 = vmatpush1.bf16.msra.mxu0 %v186
  %210 = vmatprep.subr.bf16.mxu0 0
  %211 = vmatpush1.bf16.msra.mxu0 %v187
  %212 = vmatprep.subr.bf16.mxu0 0
  %213 = vmatpush1.bf16.msra.mxu0 0
  %214 = vmatprep.subr.bf16.mxu0 0
  %215 = vmatpush1.bf16.msra.mxu0 0
  %216 = vmatprep.subr.bf16.mxu0 0
  %217 = vmatpush1.bf16.msra.mxu0 0
  %218 = vmatprep.subr.bf16.mxu0 0
  %219 = vmatpush1.bf16.msra.mxu0 0
  %220 = vmatprep.subr.bf16.mxu0 0
  %221 = vmatpush1.bf16.msra.mxu0 0
  %222 = vmatprep.subr.bf16.mxu0 0
  %223 = vmatpush1.bf16.msra.mxu0 0
  %224 = vmatprep.subr.bf16.mxu0 0
  %225 = vmatpush1.bf16.msra.mxu0 0
  %226 = vmatprep.subr.bf16.mxu0 0
  %227 = vmatpush1.bf16.msra.mxu0 0
  %228 = vmatprep.mubr.bf16.mxu0 0
  %229 = vmatmul.mubr.bf16.gmra.mrb[0].mxu0 %v100
  %v230 = vpop.f32.mrb[0].mxu0
  %v231 = vadd.f32 0.0, %v230
  %v232 = vpop.f32.mrb[0].mxu0
  %v233 = vpop.f32.mrb[0].mxu0
  %v234 = vadd.f32 0.0, %v233
  %v235 = vpop.f32.mrb[0].mxu0
  %236 = vmatprep.mubr.bf16.mxu0 0
  %237 = vmatmul.mubr.bf16.gmra.mrb[0].mxu0 %v101
  %v238 = vpop.f32.mrb[0].mxu0
  %v239 = vadd.f32 0.0, %v238
  %v240 = vpop.f32.mrb[0].mxu0
  %v241 = vpop.f32.mrb[0].mxu0
  %v242 = vadd.f32 0.0, %v241
  %v243 = vpop.f32.mrb[0].mxu0
  %244 = vmatprep.mubr.bf16.mxu0 0
  %245 = vmatmul.mubr.bf16.gmra.mrb[0].mxu0 %v102
  %v246 = vpop.f32.mrb[0].mxu0
  %v247 = vadd.f32 0.0, %v246
  %v248 = vpop.f32.mrb[0].mxu0
  %v249 = vpop.f32.mrb[0].mxu0
  %v250 = vadd.f32 0.0, %v249
  %v251 = vpop.f32.mrb[0].mxu0
  %252 = vmatprep.mubr.bf16.mxu0 0
  %253 = vmatmul.mubr.bf16.gmra.mrb[0].mxu0 %v103
  %v254 = vpop.f32.mrb[0].mxu0
  %v255 = vadd.f32 0.0, %v254
  %v256 = vpop.f32.mrb[0].mxu0
  %v257 = vpop.f32.mrb[0].mxu0
  %v258 = vadd.f32 0.0, %v257
  %v259 = vpop.f32.mrb[0].mxu0
  %260 = vmatprep.mubr.bf16.mxu0 0
  %261 = vmatmul.mubr.bf16.gmra.mrb[0].mxu0 %v104
  %v262 = vpop.f32.mrb[0].mxu0
  %v263 = vadd.f32 0.0, %v262
  %v264 = vpop.f32.mrb[0].mxu0
  %v265 = vpop.f32.mrb[0].mxu0
  %v266 = vadd.f32 0.0, %v265
  %v267 = vpop.f32.mrb[0].mxu0
  %268 = vmatprep.mubr.bf16.mxu0 0
  %269 = vmatmul.mubr.bf16.gmra.mrb[0].mxu0 %v105
  %v270 = vpop.f32.mrb[0].mxu0
  %v271 = vadd.f32 0.0, %v270
  %v272 = vpop.f32.mrb[0].mxu0
  %v273 = vpop.f32.mrb[0].mxu0
  %v274 = vadd.f32 0.0, %v273
  %v275 = vpop.f32.mrb[0].mxu0
  %276 = vmatprep.mubr.bf16.mxu0 0
  %277 = vmatmul.mubr.bf16.gmra.mrb[0].mxu0 %v106
  %v278 = vpop.f32.mrb[0].mxu0
  %v279 = vadd.f32 0.0, %v278
  %v280 = vpop.f32.mrb[0].mxu0
  %v281 = vpop.f32.mrb[0].mxu0
  %v282 = vadd.f32 0.0, %v281
  %v283 = vpop.f32.mrb[0].mxu0
  %284 = vmatprep.mubr.bf16.mxu0 0
  %285 = vmatmul.mubr.bf16.gmra.mrb[0].mxu0 %v107
  %v286 = vpop.f32.mrb[0].mxu0
  %v287 = vadd.f32 0.0, %v286
  %v288 = vpop.f32.mrb[0].mxu0
  %v289 = vpop.f32.mrb[0].mxu0
  %v290 = vadd.f32 0.0, %v289
  %v291 = vpop.f32.mrb[0].mxu0
  %292 = vmatprep.mubr.bf16.mxu0 0
  %293 = vmatmul.mubr.bf16.gmra.mrb[0].mxu0 %v108
  %v294 = vpop.f32.mrb[0].mxu0
  %v295 = vadd.f32 0.0, %v294
  %v296 = vpop.f32.mrb[0].mxu0
  %v297 = vpop.f32.mrb[0].mxu0
  %v298 = vadd.f32 0.0, %v297
  %v299 = vpop.f32.mrb[0].mxu0
  %300 = vmatprep.mubr.bf16.mxu0 0
  %301 = vmatmul.mubr.bf16.gmra.mrb[0].mxu0 %v109
  %v302 = vpop.f32.mrb[0].mxu0
  %v303 = vadd.f32 0.0, %v302
  %v304 = vpop.f32.mrb[0].mxu0
  %v305 = vpop.f32.mrb[0].mxu0
  %v306 = vadd.f32 0.0, %v305
  %v307 = vpop.f32.mrb[0].mxu0
  %308 = vmatprep.mubr.bf16.mxu0 0
  %309 = vmatmul.mubr.bf16.gmra.mrb[0].mxu0 %v110
  %v310 = vpop.f32.mrb[0].mxu0
  %v311 = vadd.f32 0.0, %v310
  %v312 = vpop.f32.mrb[0].mxu0
  %v313 = vpop.f32.mrb[0].mxu0
  %v314 = vadd.f32 0.0, %v313
  %v315 = vpop.f32.mrb[0].mxu0
  %316 = vmatprep.mubr.bf16.mxu0 0
  %317 = vmatmul.mubr.bf16.gmra.mrb[0].mxu0 %v111
  %v318 = vpop.f32.mrb[0].mxu0
  %v319 = vadd.f32 0.0, %v318
  %v320 = vpop.f32.mrb[0].mxu0
  %v321 = vpop.f32.mrb[0].mxu0
  %v322 = vadd.f32 0.0, %v321
  %v323 = vpop.f32.mrb[0].mxu0
  %324 = vmatprep.mubr.bf16.mxu0 0
  %325 = vmatmul.mubr.bf16.gmra.mrb[0].mxu0 %v112
  %v326 = vpop.f32.mrb[0].mxu0
  %v327 = vadd.f32 0.0, %v326
  %v328 = vpop.f32.mrb[0].mxu0
  %v329 = vpop.f32.mrb[0].mxu0
  %v330 = vadd.f32 0.0, %v329
  %v331 = vpop.f32.mrb[0].mxu0
  %332 = vmatprep.mubr.bf16.mxu0 0
  %333 = vmatmul.mubr.bf16.gmra.mrb[0].mxu0 %v113
  %v334 = vpop.f32.mrb[0].mxu0
  %v335 = vadd.f32 0.0, %v334
  %v336 = vpop.f32.mrb[0].mxu0
  %v337 = vpop.f32.mrb[0].mxu0
  %v338 = vadd.f32 0.0, %v337
  %v339 = vpop.f32.mrb[0].mxu0
  %340 = vmatprep.mubr.bf16.mxu0 0
  %341 = vmatmul.mubr.bf16.gmra.mrb[0].mxu0 %v114
  %v342 = vpop.f32.mrb[0].mxu0
  %v343 = vadd.f32 0.0, %v342
  %v344 = vpop.f32.mrb[0].mxu0
  %v345 = vpop.f32.mrb[0].mxu0
  %v346 = vadd.f32 0.0, %v345
  %v347 = vpop.f32.mrb[0].mxu0
  %348 = vmatprep.mubr.bf16.mxu0 0
  %349 = vmatmul.mubr.bf16.gmra.mrb[0].mxu0 %v115
  %v350 = vpop.f32.mrb[0].mxu0
  %v351 = vadd.f32 0.0, %v350
  %v352 = vpop.f32.mrb[0].mxu0
  %v353 = vpop.f32.mrb[0].mxu0
  %v354 = vadd.f32 0.0, %v353
  %v355 = vpop.f32.mrb[0].mxu0
  %356 = vmatprep.mubr.bf16.mxu0 0
  %357 = vmatmul.mubr.bf16.gmra.mrb[0].mxu0 %v116
  %v358 = vpop.f32.mrb[0].mxu0
  %v359 = vadd.f32 0.0, %v358
  %v360 = vpop.f32.mrb[0].mxu0
  %v361 = vpop.f32.mrb[0].mxu0
  %v362 = vadd.f32 0.0, %v361
  %v363 = vpop.f32.mrb[0].mxu0
  %364 = vmatprep.mubr.bf16.mxu0 0
  %365 = vmatmul.mubr.bf16.gmra.mrb[0].mxu0 %v117
  %v366 = vpop.f32.mrb[0].mxu0
  %v367 = vadd.f32 0.0, %v366
  %v368 = vpop.f32.mrb[0].mxu0
  %v369 = vpop.f32.mrb[0].mxu0
  %v370 = vadd.f32 0.0, %v369
  %v371 = vpop.f32.mrb[0].mxu0
  %372 = vmatprep.mubr.bf16.mxu0 0
  %373 = vmatmul.mubr.bf16.gmra.mrb[0].mxu0 %v118
  %v374 = vpop.f32.mrb[0].mxu0
  %v375 = vadd.f32 0.0, %v374
  %v376 = vpop.f32.mrb[0].mxu0
  %v377 = vpop.f32.mrb[0].mxu0
  %v378 = vadd.f32 0.0, %v377
  %v379 = vpop.f32.mrb[0].mxu0
  %380 = vmatprep.mubr.bf16.mxu0 0
  %381 = vmatmul.mubr.bf16.gmra.mrb[0].mxu0 %v119
  %v382 = vpop.f32.mrb[0].mxu0
  %v383 = vadd.f32 0.0, %v382
  %v384 = vpop.f32.mrb[0].mxu0
  %v385 = vpop.f32.mrb[0].mxu0
  %v386 = vadd.f32 0.0, %v385
  %v387 = vpop.f32.mrb[0].mxu0
  %388 = vmatprep.mubr.bf16.mxu0 0
  %389 = vmatmul.mubr.bf16.gmra.mrb[0].mxu0 %v120
  %v390 = vpop.f32.mrb[0].mxu0
  %v391 = vadd.f32 0.0, %v390
  %v392 = vpop.f32.mrb[0].mxu0
  %v393 = vpop.f32.mrb[0].mxu0
  %v394 = vadd.f32 0.0, %v393
  %v395 = vpop.f32.mrb[0].mxu0
  %396 = vmatprep.mubr.bf16.mxu0 0
  %397 = vmatmul.mubr.bf16.gmra.mrb[0].mxu0 %v121
  %v398 = vpop.f32.mrb[0].mxu0
  %v399 = vadd.f32 0.0, %v398
  %v400 = vpop.f32.mrb[0].mxu0
  %v401 = vpop.f32.mrb[0].mxu0
  %v402 = vadd.f32 0.0, %v401
  %v403 = vpop.f32.mrb[0].mxu0
  %404 = vmatprep.mubr.bf16.mxu0 0
  %405 = vmatmul.mubr.bf16.gmra.mrb[0].mxu0 %v122
  %v406 = vpop.f32.mrb[0].mxu0
  %v407 = vadd.f32 0.0, %v406
  %v408 = vpop.f32.mrb[0].mxu0
  %v409 = vpop.f32.mrb[0].mxu0
  %v410 = vadd.f32 0.0, %v409
  %v411 = vpop.f32.mrb[0].mxu0
  %412 = vmatprep.mubr.bf16.mxu0 0
  %413 = vmatmul.mubr.bf16.gmra.mrb[0].mxu0 %v123
  %v414 = vpop.f32.mrb[0].mxu0
  %v415 = vadd.f32 0.0, %v414
  %v416 = vpop.f32.mrb[0].mxu0
  %v417 = vpop.f32.mrb[0].mxu0
  %v418 = vadd.f32 0.0, %v417
  %v419 = vpop.f32.mrb[0].mxu0
  %420 = vmatprep.mubr.bf16.mxu0 0
  %421 = vmatmul.mubr.bf16.gmra.mrb[0].mxu0 %v124
  %v422 = vpop.f32.mrb[0].mxu0
  %v423 = vadd.f32 0.0, %v422
  %v424 = vpop.f32.mrb[0].mxu0
  %v425 = vpop.f32.mrb[0].mxu0
  %v426 = vadd.f32 0.0, %v425
  %v427 = vpop.f32.mrb[0].mxu0
  %428 = vmatprep.mubr.bf16.mxu0 0
  %429 = vmatmul.mubr.bf16.gmra.mrb[0].mxu0 %v125
  %v430 = vpop.f32.mrb[0].mxu0
  %v431 = vadd.f32 0.0, %v430
  %v432 = vpop.f32.mrb[0].mxu0
  %v433 = vpop.f32.mrb[0].mxu0
  %v434 = vadd.f32 0.0, %v433
  %v435 = vpop.f32.mrb[0].mxu0
  %436 = vmatprep.mubr.bf16.mxu0 0
  %437 = vmatmul.mubr.bf16.gmra.mrb[0].mxu0 %v126
  %v438 = vpop.f32.mrb[0].mxu0
  %v439 = vadd.f32 0.0, %v438
  %v440 = vpop.f32.mrb[0].mxu0
  %v441 = vpop.f32.mrb[0].mxu0
  %v442 = vadd.f32 0.0, %v441
  %v443 = vpop.f32.mrb[0].mxu0
  %444 = vmatprep.mubr.bf16.mxu0 0
  %445 = vmatmul.mubr.bf16.gmra.mrb[0].mxu0 %v127
  %v446 = vpop.f32.mrb[0].mxu0
  %v447 = vadd.f32 0.0, %v446
  %v448 = vpop.f32.mrb[0].mxu0
  %v449 = vpop.f32.mrb[0].mxu0
  %v450 = vadd.f32 0.0, %v449
  %v451 = vpop.f32.mrb[0].mxu0
  %452 = vmatprep.mubr.bf16.mxu0 0
  %453 = vmatmul.mubr.bf16.gmra.mrb[0].mxu0 %v128
  %v454 = vpop.f32.mrb[0].mxu0
  %v455 = vadd.f32 0.0, %v454
  %v456 = vpop.f32.mrb[0].mxu0
  %v457 = vpop.f32.mrb[0].mxu0
  %v458 = vadd.f32 0.0, %v457
  %v459 = vpop.f32.mrb[0].mxu0
  %460 = vmatprep.mubr.bf16.mxu0 0
  %461 = vmatmul.mubr.bf16.gmra.mrb[0].mxu0 %v129
  %v462 = vpop.f32.mrb[0].mxu0
  %v463 = vadd.f32 0.0, %v462
  %v464 = vpop.f32.mrb[0].mxu0
  %v465 = vpop.f32.mrb[0].mxu0
  %v466 = vadd.f32 0.0, %v465
  %v467 = vpop.f32.mrb[0].mxu0
  %468 = vmatprep.mubr.bf16.mxu0 0
  %469 = vmatmul.mubr.bf16.gmra.mrb[0].mxu0 %v130
  %v470 = vpop.f32.mrb[0].mxu0
  %v471 = vadd.f32 0.0, %v470
  %v472 = vpop.f32.mrb[0].mxu0
  %v473 = vpop.f32.mrb[0].mxu0
  %v474 = vadd.f32 0.0, %v473
  %v475 = vpop.f32.mrb[0].mxu0
  %476 = vmatprep.mubr.bf16.mxu0 0
  %477 = vmatmul.mubr.bf16.gmra.mrb[0].mxu0 %v131
  %v478 = vpop.f32.mrb[0].mxu0
  %v479 = vadd.f32 0.0, %v478
  %v480 = vpop.f32.mrb[0].mxu0
  %v481 = vpop.f32.mrb[0].mxu0
  %v482 = vadd.f32 0.0, %v481
  %v483 = vpop.f32.mrb[0].mxu0
  %484 = vdwg.mxu0
  %485 = vst [vmem:[#allocation2] sm:$0xff] %v231
  %486 = vst [vmem:[#allocation2 + $0x8] sm:$0xff] %v234
  %487 = vst [vmem:[#allocation2 + $0x10] sm:$0xff] %v239
  %488 = vst [vmem:[#allocation2 + $0x18] sm:$0xff] %v242
  %489 = vst [vmem:[#allocation2 + $0x20] sm:$0xff] %v247
  %490 = vst [vmem:[#allocation2 + $0x28] sm:$0xff] %v250
  %491 = vst [vmem:[#allocation2 + $0x30] sm:$0xff] %v255
  %492 = vst [vmem:[#allocation2 + $0x38] sm:$0xff] %v258
  %493 = vst [vmem:[#allocation2 + $0x40] sm:$0xff] %v263
  %494 = vst [vmem:[#allocation2 + $0x48] sm:$0xff] %v266
  %495 = vst [vmem:[#allocation2 + $0x50] sm:$0xff] %v271
  %496 = vst [vmem:[#allocation2 + $0x58] sm:$0xff] %v274
  %497 = vst [vmem:[#allocation2 + $0x60] sm:$0xff] %v279
  %498 = vst [vmem:[#allocation2 + $0x68] sm:$0xff] %v282
  %499 = vst [vmem:[#allocation2 + $0x70] sm:$0xff] %v287
  %500 = vst [vmem:[#allocation2 + $0x78] sm:$0xff] %v290
  %501 = vst [vmem:[#allocation2 + $0x80] sm:$0xff] %v295
  %502 = vst [vmem:[#allocation2 + $0x88] sm:$0xff] %v298
  %503 = vst [vmem:[#allocation2 + $0x90] sm:$0xff] %v303
  %504 = vst [vmem:[#allocation2 + $0x98] sm:$0xff] %v306
  %505 = vst [vmem:[#allocation2 + $0xa0] sm:$0xff] %v311
  %506 = vst [vmem:[#allocation2 + $0xa8] sm:$0xff] %v314
  %507 = vst [vmem:[#allocation2 + $0xb0] sm:$0xff] %v319
  %508 = vst [vmem:[#allocation2 + $0xb8] sm:$0xff] %v322
  %509 = vst [vmem:[#allocation2 + $0xc0] sm:$0xff] %v327
  %510 = vst [vmem:[#allocation2 + $0xc8] sm:$0xff] %v330
  %511 = vst [vmem:[#allocation2 + $0xd0] sm:$0xff] %v335
  %512 = vst [vmem:[#allocation2 + $0xd8] sm:$0xff] %v338
  %513 = vst [vmem:[#allocation2 + $0xe0] sm:$0xff] %v343
  %514 = vst [vmem:[#allocation2 + $0xe8] sm:$0xff] %v346
  %515 = vst [vmem:[#allocation2 + $0xf0] sm:$0xff] %v351
  %516 = vst [vmem:[#allocation2 + $0xf8] sm:$0xff] %v354
  %517 = vst [vmem:[#allocation2 + $0x100] sm:$0xff] %v359
  %518 = vst [vmem:[#allocation2 + $0x108] sm:$0xff] %v362
  %519 = vst [vmem:[#allocation2 + $0x110] sm:$0xff] %v367
  %520 = vst [vmem:[#allocation2 + $0x118] sm:$0xff] %v370
  %521 = vst [vmem:[#allocation2 + $0x120] sm:$0xff] %v375
  %522 = vst [vmem:[#allocation2 + $0x128] sm:$0xff] %v378
  %523 = vst [vmem:[#allocation2 + $0x130] sm:$0xff] %v383
  %524 = vst [vmem:[#allocation2 + $0x138] sm:$0xff] %v386
  %525 = vst [vmem:[#allocation2 + $0x140] sm:$0xff] %v391
  %526 = vst [vmem:[#allocation2 + $0x148] sm:$0xff] %v394
  %527 = vst [vmem:[#allocation2 + $0x150] sm:$0xff] %v399
  %528 = vst [vmem:[#allocation2 + $0x158] sm:$0xff] %v402
  %529 = vst [vmem:[#allocation2 + $0x160] sm:$0xff] %v407
  %530 = vst [vmem:[#allocation2 + $0x168] sm:$0xff] %v410
  %531 = vst [vmem:[#allocation2 + $0x170] sm:$0xff] %v415
  %532 = vst [vmem:[#allocation2 + $0x178] sm:$0xff] %v418
  %533 = vst [vmem:[#allocation2 + $0x180] sm:$0xff] %v423
  %534 = vst [vmem:[#allocation2 + $0x188] sm:$0xff] %v426
  %535 = vst [vmem:[#allocation2 + $0x190] sm:$0xff] %v431
  %536 = vst [vmem:[#allocation2 + $0x198] sm:$0xff] %v434
  %537 = vst [vmem:[#allocation2 + $0x1a0] sm:$0xff] %v439
  %538 = vst [vmem:[#allocation2 + $0x1a8] sm:$0xff] %v442
  %539 = vst [vmem:[#allocation2 + $0x1b0] sm:$0xff] %v447
  %540 = vst [vmem:[#allocation2 + $0x1b8] sm:$0xff] %v450
  %541 = vst [vmem:[#allocation2 + $0x1c0] sm:$0xff] %v455
  %542 = vst [vmem:[#allocation2 + $0x1c8] sm:$0xff] %v458
  %543 = vst [vmem:[#allocation2 + $0x1d0] sm:$0xff] %v463
  %544 = vst [vmem:[#allocation2 + $0x1d8] sm:$0xff] %v466
  %545 = vst [vmem:[#allocation2 + $0x1e0] sm:$0xff] %v471
  %546 = vst [vmem:[#allocation2 + $0x1e8] sm:$0xff] %v474
  %547 = vst [vmem:[#allocation2 + $0x1f0] sm:$0xff] %v479
  %548 = vst [vmem:[#allocation2 + $0x1f8] sm:$0xff] %v482
  %v549 = vld [vmem:[#allocation2] sm:$0xff]
  %v550 = vld [vmem:[#allocation2 + $0x8] sm:$0xff]
  %v551 = vld [vmem:[#allocation2 + $0x10] sm:$0xff]
  %v552 = vld [vmem:[#allocation2 + $0x18] sm:$0xff]
  %v553 = vld [vmem:[#allocation2 + $0x20] sm:$0xff]
  %v554 = vld [vmem:[#allocation2 + $0x28] sm:$0xff]
  %v555 = vld [vmem:[#allocation2 + $0x30] sm:$0xff]
  %v556 = vld [vmem:[#allocation2 + $0x38] sm:$0xff]
  %v557 = vld [vmem:[#allocation2 + $0x40] sm:$0xff]
  %v558 = vld [vmem:[#allocation2 + $0x48] sm:$0xff]
  %v559 = vld [vmem:[#allocation2 + $0x50] sm:$0xff]
  %v560 = vld [vmem:[#allocation2 + $0x58] sm:$0xff]
  %v561 = vld [vmem:[#allocation2 + $0x60] sm:$0xff]
  %v562 = vld [vmem:[#allocation2 + $0x68] sm:$0xff]
  %v563 = vld [vmem:[#allocation2 + $0x70] sm:$0xff]
  %v564 = vld [vmem:[#allocation2 + $0x78] sm:$0xff]
  %v565 = vld [vmem:[#allocation2 + $0x80] sm:$0xff]
  %v566 = vld [vmem:[#allocation2 + $0x88] sm:$0xff]
  %v567 = vld [vmem:[#allocation2 + $0x90] sm:$0xff]
  %v568 = vld [vmem:[#allocation2 + $0x98] sm:$0xff]
  %v569 = vld [vmem:[#allocation2 + $0xa0] sm:$0xff]
  %v570 = vld [vmem:[#allocation2 + $0xa8] sm:$0xff]
  %v571 = vld [vmem:[#allocation2 + $0xb0] sm:$0xff]
  %v572 = vld [vmem:[#allocation2 + $0xb8] sm:$0xff]
  %v573 = vld [vmem:[#allocation2 + $0xc0] sm:$0xff]
  %v574 = vld [vmem:[#allocation2 + $0xc8] sm:$0xff]
  %v575 = vld [vmem:[#allocation2 + $0xd0] sm:$0xff]
  %v576 = vld [vmem:[#allocation2 + $0xd8] sm:$0xff]
  %v577 = vld [vmem:[#allocation2 + $0xe0] sm:$0xff]
  %v578 = vld [vmem:[#allocation2 + $0xe8] sm:$0xff]
  %v579 = vld [vmem:[#allocation2 + $0xf0] sm:$0xff]
  %v580 = vld [vmem:[#allocation2 + $0xf8] sm:$0xff]
  %v581 = vld [vmem:[#allocation2 + $0x100] sm:$0xff]
  %v582 = vld [vmem:[#allocation2 + $0x108] sm:$0xff]
  %v583 = vld [vmem:[#allocation2 + $0x110] sm:$0xff]
  %v584 = vld [vmem:[#allocation2 + $0x118] sm:$0xff]
  %v585 = vld [vmem:[#allocation2 + $0x120] sm:$0xff]
  %v586 = vld [vmem:[#allocation2 + $0x128] sm:$0xff]
  %v587 = vld [vmem:[#allocation2 + $0x130] sm:$0xff]
  %v588 = vld [vmem:[#allocation2 + $0x138] sm:$0xff]
  %v589 = vld [vmem:[#allocation2 + $0x140] sm:$0xff]
  %v590 = vld [vmem:[#allocation2 + $0x148] sm:$0xff]
  %v591 = vld [vmem:[#allocation2 + $0x150] sm:$0xff]
  %v592 = vld [vmem:[#allocation2 + $0x158] sm:$0xff]
  %v593 = vld [vmem:[#allocation2 + $0x160] sm:$0xff]
  %v594 = vld [vmem:[#allocation2 + $0x168] sm:$0xff]
  %v595 = vld [vmem:[#allocation2 + $0x170] sm:$0xff]
  %v596 = vld [vmem:[#allocation2 + $0x178] sm:$0xff]
  %v597 = vld [vmem:[#allocation2 + $0x180] sm:$0xff]
  %v598 = vld [vmem:[#allocation2 + $0x188] sm:$0xff]
  %v599 = vld [vmem:[#allocation2 + $0x190] sm:$0xff]
  %v600 = vld [vmem:[#allocation2 + $0x198] sm:$0xff]
  %v601 = vld [vmem:[#allocation2 + $0x1a0] sm:$0xff]
  %v602 = vld [vmem:[#allocation2 + $0x1a8] sm:$0xff]
  %v603 = vld [vmem:[#allocation2 + $0x1b0] sm:$0xff]
  %v604 = vld [vmem:[#allocation2 + $0x1b8] sm:$0xff]
  %v605 = vld [vmem:[#allocation2 + $0x1c0] sm:$0xff]
  %v606 = vld [vmem:[#allocation2 + $0x1c8] sm:$0xff]
  %v607 = vld [vmem:[#allocation2 + $0x1d0] sm:$0xff]
  %v608 = vld [vmem:[#allocation2 + $0x1d8] sm:$0xff]
  %v609 = vld [vmem:[#allocation2 + $0x1e0] sm:$0xff]
  %v610 = vld [vmem:[#allocation2 + $0x1e8] sm:$0xff]
  %v611 = vld [vmem:[#allocation2 + $0x1f0] sm:$0xff]
  %v612 = vld [vmem:[#allocation2 + $0x1f8] sm:$0xff]
  %v613 = vld [vmem:[%s4] sm:$0x1]
  %v614 = vld [vmem:[%s5] sm:$0x1]
  %v615 = vadd.f32 %v549, %v550
  %v616 = vadd.f32 %v615, %v551
  %v617 = vadd.f32 %v616, %v552
  %v618 = vadd.f32 %v617, %v553
  %v619 = vadd.f32 %v618, %v554
  %v620 = vadd.f32 %v619, %v555
  %v621 = vadd.f32 %v620, %v556
  %v622 = vadd.f32 %v621, %v557
  %v623 = vadd.f32 %v622, %v558
  %v624 = vadd.f32 %v623, %v559
  %v625 = vadd.f32 %v624, %v560
  %v626 = vadd.f32 %v625, %v561
  %v627 = vadd.f32 %v626, %v562
  %v628 = vadd.f32 %v627, %v563
  %v629 = vadd.f32 %v628, %v564
  %v630 = vadd.f32 %v629, %v565
  %v631 = vadd.f32 %v630, %v566
  %v632 = vadd.f32 %v631, %v567
  %v633 = vadd.f32 %v632, %v568
  %v634 = vadd.f32 %v633, %v569
  %v635 = vadd.f32 %v634, %v570
  %v636 = vadd.f32 %v635, %v571
  %v637 = vadd.f32 %v636, %v572
  %v638 = vadd.f32 %v637, %v573
  %v639 = vadd.f32 %v638, %v574
  %v640 = vadd.f32 %v639, %v575
  %v641 = vadd.f32 %v640, %v576
  %v642 = vadd.f32 %v641, %v577
  %v643 = vadd.f32 %v642, %v578
  %v644 = vadd.f32 %v643, %v579
  %v645 = vadd.f32 %v644, %v580
  %v646 = vadd.f32 %v645, %v581
  %v647 = vadd.f32 %v646, %v582
  %v648 = vadd.f32 %v647, %v583
  %v649 = vadd.f32 %v648, %v584
  %v650 = vadd.f32 %v649, %v585
  %v651 = vadd.f32 %v650, %v586
  %v652 = vadd.f32 %v651, %v587
  %v653 = vadd.f32 %v652, %v588
  %v654 = vadd.f32 %v653, %v589
  %v655 = vadd.f32 %v654, %v590
  %v656 = vadd.f32 %v655, %v591
  %v657 = vadd.f32 %v656, %v592
  %v658 = vadd.f32 %v657, %v593
  %v659 = vadd.f32 %v658, %v594
  %v660 = vadd.f32 %v659, %v595
  %v661 = vadd.f32 %v660, %v596
  %v662 = vadd.f32 %v661, %v597
  %v663 = vadd.f32 %v662, %v598
  %v664 = vadd.f32 %v663, %v599
  %v665 = vadd.f32 %v664, %v600
  %v666 = vadd.f32 %v665, %v601
  %v667 = vadd.f32 %v666, %v602
  %v668 = vadd.f32 %v667, %v603
  %v669 = vadd.f32 %v668, %v604
  %v670 = vadd.f32 %v669, %v605
  %v671 = vadd.f32 %v670, %v606
  %v672 = vadd.f32 %v671, %v607
  %v673 = vadd.f32 %v672, %v608
  %v674 = vadd.f32 %v673, %v609
  %v675 = vadd.f32 %v674, %v610
  %v676 = vadd.f32 %v675, %v611
  %v677 = vadd.f32 %v676, %v612
  %v678 = vrot.slane %v677, 4
  %v679 = vadd.f32 %v677, %v678
  %v680 = vrot.slane %v679, 2
  %v681 = vadd.f32 %v679, %v680
  %v682 = vrot.slane %v681, 1
  %v683 = vadd.f32 %v681, %v682
  %v684 = vmul.f32 %v683, 0.001953125
  %v685 = vmul.f32 %v549, %v549
  %v686 = vmul.f32 %v550, %v550
  %v687 = vmul.f32 %v551, %v551
  %v688 = vmul.f32 %v552, %v552
  %v689 = vmul.f32 %v553, %v553
  %v690 = vmul.f32 %v554, %v554
  %v691 = vmul.f32 %v555, %v555
  %v692 = vmul.f32 %v556, %v556
  %v693 = vmul.f32 %v557, %v557
  %v694 = vmul.f32 %v558, %v558
  %v695 = vmul.f32 %v559, %v559
  %v696 = vmul.f32 %v560, %v560
  %v697 = vmul.f32 %v561, %v561
  %v698 = vmul.f32 %v562, %v562
  %v699 = vmul.f32 %v563, %v563
  %v700 = vmul.f32 %v564, %v564
  %v701 = vmul.f32 %v565, %v565
  %v702 = vmul.f32 %v566, %v566
  %v703 = vmul.f32 %v567, %v567
  %v704 = vmul.f32 %v568, %v568
  %v705 = vmul.f32 %v569, %v569
  %v706 = vmul.f32 %v570, %v570
  %v707 = vmul.f32 %v571, %v571
  %v708 = vmul.f32 %v572, %v572
  %v709 = vmul.f32 %v573, %v573
  %v710 = vmul.f32 %v574, %v574
  %v711 = vmul.f32 %v575, %v575
  %v712 = vmul.f32 %v576, %v576
  %v713 = vmul.f32 %v577, %v577
  %v714 = vmul.f32 %v578, %v578
  %v715 = vmul.f32 %v579, %v579
  %v716 = vmul.f32 %v580, %v580
  %v717 = vmul.f32 %v581, %v581
  %v718 = vmul.f32 %v582, %v582
  %v719 = vmul.f32 %v583, %v583
  %v720 = vmul.f32 %v584, %v584
  %v721 = vmul.f32 %v585, %v585
  %v722 = vmul.f32 %v586, %v586
  %v723 = vmul.f32 %v587, %v587
  %v724 = vmul.f32 %v588, %v588
  %v725 = vmul.f32 %v589, %v589
  %v726 = vmul.f32 %v590, %v590
  %v727 = vmul.f32 %v591, %v591
  %v728 = vmul.f32 %v592, %v592
  %v729 = vmul.f32 %v593, %v593
  %v730 = vmul.f32 %v594, %v594
  %v731 = vmul.f32 %v595, %v595
  %v732 = vmul.f32 %v596, %v596
  %v733 = vmul.f32 %v597, %v597
  %v734 = vmul.f32 %v598, %v598
  %v735 = vmul.f32 %v599, %v599
  %v736 = vmul.f32 %v600, %v600
  %v737 = vmul.f32 %v601, %v601
  %v738 = vmul.f32 %v602, %v602
  %v739 = vmul.f32 %v603, %v603
  %v740 = vmul.f32 %v604, %v604
  %v741 = vmul.f32 %v605, %v605
  %v742 = vmul.f32 %v606, %v606
  %v743 = vmul.f32 %v607, %v607
  %v744 = vmul.f32 %v608, %v608
  %v745 = vmul.f32 %v609, %v609
  %v746 = vmul.f32 %v610, %v610
  %v747 = vmul.f32 %v611, %v611
  %v748 = vmul.f32 %v612, %v612
  %v749 = vadd.f32 %v685, %v686
  %v750 = vadd.f32 %v749, %v687
  %v751 = vadd.f32 %v750, %v688
  %v752 = vadd.f32 %v751, %v689
  %v753 = vadd.f32 %v752, %v690
  %v754 = vadd.f32 %v753, %v691
  %v755 = vadd.f32 %v754, %v692
  %v756 = vadd.f32 %v755, %v693
  %v757 = vadd.f32 %v756, %v694
  %v758 = vadd.f32 %v757, %v695
  %v759 = vadd.f32 %v758, %v696
  %v760 = vadd.f32 %v759, %v697
  %v761 = vadd.f32 %v760, %v698
  %v762 = vadd.f32 %v761, %v699
  %v763 = vadd.f32 %v762, %v700
  %v764 = vadd.f32 %v763, %v701
  %v765 = vadd.f32 %v764, %v702
  %v766 = vadd.f32 %v765, %v703
  %v767 = vadd.f32 %v766, %v704
  %v768 = vadd.f32 %v767, %v705
  %v769 = vadd.f32 %v768, %v706
  %v770 = vadd.f32 %v769, %v707
  %v771 = vadd.f32 %v770, %v708
  %v772 = vadd.f32 %v771, %v709
  %v773 = vadd.f32 %v772, %v710
  %v774 = vadd.f32 %v773, %v711
  %v775 = vadd.f32 %v774, %v712
  %v776 = vadd.f32 %v775, %v713
  %v777 = vadd.f32 %v776, %v714
  %v778 = vadd.f32 %v777, %v715
  %v779 = vadd.f32 %v778, %v716
  %v780 = vadd.f32 %v779, %v717
  %v781 = vadd.f32 %v780, %v718
  %v782 = vadd.f32 %v781, %v719
  %v783 = vadd.f32 %v782, %v720
  %v784 = vadd.f32 %v783, %v721
  %v785 = vadd.f32 %v784, %v722
  %v786 = vadd.f32 %v785, %v723
  %v787 = vadd.f32 %v786, %v724
  %v788 = vadd.f32 %v787, %v725
  %v789 = vadd.f32 %v788, %v726
  %v790 = vadd.f32 %v789, %v727
  %v791 = vadd.f32 %v790, %v728
  %v792 = vadd.f32 %v791, %v729
  %v793 = vadd.f32 %v792, %v730
  %v794 = vadd.f32 %v793, %v731
  %v795 = vadd.f32 %v794, %v732
  %v796 = vadd.f32 %v795, %v733
  %v797 = vadd.f32 %v796, %v734
  %v798 = vadd.f32 %v797, %v735
  %v799 = vadd.f32 %v798, %v736
  %v800 = vadd.f32 %v799, %v737
  %v801 = vadd.f32 %v800, %v738
  %v802 = vadd.f32 %v801, %v739
  %v803 = vadd.f32 %v802, %v740
  %v804 = vadd.f32 %v803, %v741
  %v805 = vadd.f32 %v804, %v742
  %v806 = vadd.f32 %v805, %v743
  %v807 = vadd.f32 %v806, %v744
  %v808 = vadd.f32 %v807, %v745
  %v809 = vadd.f32 %v808, %v746
  %v810 = vadd.f32 %v809, %v747
  %v811 = vadd.f32 %v810, %v748
  %v812 = vrot.slane %v811, 4
  %v813 = vadd.f32 %v811, %v812
  %v814 = vrot.slane %v813, 2
  %v815 = vadd.f32 %v813, %v814
  %v816 = vrot.slane %v815, 1
  %v817 = vadd.f32 %v815, %v816
  %v818 = vmul.f32 %v817, 0.001953125
  %v819 = vmul.f32 %v684, %v684
  %v820 = vsub.f32 %v818, %v819
  %v821 = vmax.f32 %v820, 0.0
  %v822 = vadd.f32 %v821, 1e-05
  %v823 = vrsqrt.pop %v822
  %v824 = vmul.f32 %v613, %v823
  %v825 = vmul.f32 %v684, %v824
  %v826 = vsub.f32 %v614, %v825
  %v827 = vlaneseq
  %v828 = vshrl.u32 %v827, 7
  %v829 = vadd.s32 %v828, 8
  %v830 = vadd.s32 %v828, 16
  %v831 = vadd.s32 %v828, 24
  %v832 = vadd.s32 %v828, 32
  %v833 = vadd.s32 %v828, 40
  %v834 = vadd.s32 %v828, 48
  %v835 = vadd.s32 %v828, 56
  %v836 = vadd.s32 %v828, 64
  %v837 = vadd.s32 %v828, 72
  %v838 = vadd.s32 %v828, 80
  %v839 = vadd.s32 %v828, 88
  %v840 = vadd.s32 %v828, 96
  %v841 = vadd.s32 %v828, 104
  %v842 = vadd.s32 %v828, 112
  %v843 = vadd.s32 %v828, 120
  %v844 = vadd.s32 %v828, 128
  %v845 = vadd.s32 %v828, 136
  %v846 = vadd.s32 %v828, 144
  %v847 = vadd.s32 %v828, 152
  %v848 = vadd.s32 %v828, 160
  %v849 = vadd.s32 %v828, 168
  %v850 = vadd.s32 %v828, 176
  %v851 = vadd.s32 %v828, 184
  %v852 = vadd.s32 %v828, 192
  %v853 = vadd.s32 %v828, 200
  %v854 = vadd.s32 %v828, 208
  %v855 = vadd.s32 %v828, 216
  %v856 = vadd.s32 %v828, 224
  %v857 = vadd.s32 %v828, 232
  %v858 = vadd.s32 %v828, 240
  %v859 = vadd.s32 %v828, 248
  %vm860 = vcmp.lt.s32.totalorder %v828, 0
  %v861 = vsub.s32 0, %v828
  %v862 = vsel %vm860, %v861, %v828
  %v863 = vshrl.u32 %v862, 4
  %v864 = vand.u32 %v862, 15
  %v865 = vsub.s32 0, %v864
  %v866 = vsel %vm860, %v865, %v864
  %vm867 = vcmp.lt.s32.totalorder %v829, 0
  %v868 = vsub.s32 0, %v829
  %v869 = vsel %vm867, %v868, %v829
  %v870 = vshrl.u32 %v869, 4
  %v871 = vand.u32 %v869, 15
  %v872 = vsub.s32 0, %v871
  %v873 = vsel %vm867, %v872, %v871
  %vm874 = vcmp.lt.s32.totalorder %v830, 0
  %v875 = vsub.s32 0, %v830
  %v876 = vsel %vm874, %v875, %v830
  %v877 = vshrl.u32 %v876, 4
  %v878 = vand.u32 %v876, 15
  %v879 = vsub.s32 0, %v878
  %v880 = vsel %vm874, %v879, %v878
  %vm881 = vcmp.lt.s32.totalorder %v831, 0
  %v882 = vsub.s32 0, %v831
  %v883 = vsel %vm881, %v882, %v831
  %v884 = vshrl.u32 %v883, 4
  %v885 = vand.u32 %v883, 15
  %v886 = vsub.s32 0, %v885
  %v887 = vsel %vm881, %v886, %v885
  %vm888 = vcmp.lt.s32.totalorder %v832, 0
  %v889 = vsub.s32 0, %v832
  %v890 = vsel %vm888, %v889, %v832
  %v891 = vshrl.u32 %v890, 4
  %v892 = vand.u32 %v890, 15
  %v893 = vsub.s32 0, %v892
  %v894 = vsel %vm888, %v893, %v892
  %vm895 = vcmp.lt.s32.totalorder %v833, 0
  %v896 = vsub.s32 0, %v833
  %v897 = vsel %vm895, %v896, %v833
  %v898 = vshrl.u32 %v897, 4
  %v899 = vand.u32 %v897, 15
  %v900 = vsub.s32 0, %v899
  %v901 = vsel %vm895, %v900, %v899
  %vm902 = vcmp.lt.s32.totalorder %v834, 0
  %v903 = vsub.s32 0, %v834
  %v904 = vsel %vm902, %v903, %v834
  %v905 = vshrl.u32 %v904, 4
  %v906 = vand.u32 %v904, 15
  %v907 = vsub.s32 0, %v906
  %v908 = vsel %vm902, %v907, %v906
  %vm909 = vcmp.lt.s32.totalorder %v835, 0
  %v910 = vsub.s32 0, %v835
  %v911 = vsel %vm909, %v910, %v835
  %v912 = vshrl.u32 %v911, 4
  %v913 = vand.u32 %v911, 15
  %v914 = vsub.s32 0, %v913
  %v915 = vsel %vm909, %v914, %v913
  %vm916 = vcmp.lt.s32.totalorder %v836, 0
  %v917 = vsub.s32 0, %v836
  %v918 = vsel %vm916, %v917, %v836
  %v919 = vshrl.u32 %v918, 4
  %v920 = vand.u32 %v918, 15
  %v921 = vsub.s32 0, %v920
  %v922 = vsel %vm916, %v921, %v920
  %vm923 = vcmp.lt.s32.totalorder %v837, 0
  %v924 = vsub.s32 0, %v837
  %v925 = vsel %vm923, %v924, %v837
  %v926 = vshrl.u32 %v925, 4
  %v927 = vand.u32 %v925, 15
  %v928 = vsub.s32 0, %v927
  %v929 = vsel %vm923, %v928, %v927
  %vm930 = vcmp.lt.s32.totalorder %v838, 0
  %v931 = vsub.s32 0, %v838
  %v932 = vsel %vm930, %v931, %v838
  %v933 = vshrl.u32 %v932, 4
  %v934 = vand.u32 %v932, 15
  %v935 = vsub.s32 0, %v934
  %v936 = vsel %vm930, %v935, %v934
  %vm937 = vcmp.lt.s32.totalorder %v839, 0
  %v938 = vsub.s32 0, %v839
  %v939 = vsel %vm937, %v938, %v839
  %v940 = vshrl.u32 %v939, 4
  %v941 = vand.u32 %v939, 15
  %v942 = vsub.s32 0, %v941
  %v943 = vsel %vm937, %v942, %v941
  %vm944 = vcmp.lt.s32.totalorder %v840, 0
  %v945 = vsub.s32 0, %v840
  %v946 = vsel %vm944, %v945, %v840
  %v947 = vshrl.u32 %v946, 4
  %v948 = vand.u32 %v946, 15
  %v949 = vsub.s32 0, %v948
  %v950 = vsel %vm944, %v949, %v948
  %vm951 = vcmp.lt.s32.totalorder %v841, 0
  %v952 = vsub.s32 0, %v841
  %v953 = vsel %vm951, %v952, %v841
  %v954 = vshrl.u32 %v953, 4
  %v955 = vand.u32 %v953, 15
  %v956 = vsub.s32 0, %v955
  %v957 = vsel %vm951, %v956, %v955
  %vm958 = vcmp.lt.s32.totalorder %v842, 0
  %v959 = vsub.s32 0, %v842
  %v960 = vsel %vm958, %v959, %v842
  %v961 = vshrl.u32 %v960, 4
  %v962 = vand.u32 %v960, 15
  %v963 = vsub.s32 0, %v962
  %v964 = vsel %vm958, %v963, %v962
  %vm965 = vcmp.lt.s32.totalorder %v843, 0
  %v966 = vsub.s32 0, %v843
  %v967 = vsel %vm965, %v966, %v843
  %v968 = vshrl.u32 %v967, 4
  %v969 = vand.u32 %v967, 15
  %v970 = vsub.s32 0, %v969
  %v971 = vsel %vm965, %v970, %v969
  %vm972 = vcmp.lt.s32.totalorder %v844, 0
  %v973 = vsub.s32 0, %v844
  %v974 = vsel %vm972, %v973, %v844
  %v975 = vshrl.u32 %v974, 4
  %v976 = vand.u32 %v974, 15
  %v977 = vsub.s32 0, %v976
  %v978 = vsel %vm972, %v977, %v976
  %vm979 = vcmp.lt.s32.totalorder %v845, 0
  %v980 = vsub.s32 0, %v845
  %v981 = vsel %vm979, %v980, %v845
  %v982 = vshrl.u32 %v981, 4
  %v983 = vand.u32 %v981, 15
  %v984 = vsub.s32 0, %v983
  %v985 = vsel %vm979, %v984, %v983
  %vm986 = vcmp.lt.s32.totalorder %v846, 0
  %v987 = vsub.s32 0, %v846
  %v988 = vsel %vm986, %v987, %v846
  %v989 = vshrl.u32 %v988, 4
  %v990 = vand.u32 %v988, 15
  %v991 = vsub.s32 0, %v990
  %v992 = vsel %vm986, %v991, %v990
  %vm993 = vcmp.lt.s32.totalorder %v847, 0
  %v994 = vsub.s32 0, %v847
  %v995 = vsel %vm993, %v994, %v847
  %v996 = vshrl.u32 %v995, 4
  %v997 = vand.u32 %v995, 15
  %v998 = vsub.s32 0, %v997
  %v999 = vsel %vm993, %v998, %v997
  %vm1000 = vcmp.lt.s32.totalorder %v848, 0
  %v1001 = vsub.s32 0, %v848
  %v1002 = vsel %vm1000, %v1001, %v848
  %v1003 = vshrl.u32 %v1002, 4
  %v1004 = vand.u32 %v1002, 15
  %v1005 = vsub.s32 0, %v1004
  %v1006 = vsel %vm1000, %v1005, %v1004
  %vm1007 = vcmp.lt.s32.totalorder %v849, 0
  %v1008 = vsub.s32 0, %v849
  %v1009 = vsel %vm1007, %v1008, %v849
  %v1010 = vshrl.u32 %v1009, 4
  %v1011 = vand.u32 %v1009, 15
  %v1012 = vsub.s32 0, %v1011
  %v1013 = vsel %vm1007, %v1012, %v1011
  %vm1014 = vcmp.lt.s32.totalorder %v850, 0
  %v1015 = vsub.s32 0, %v850
  %v1016 = vsel %vm1014, %v1015, %v850
  %v1017 = vshrl.u32 %v1016, 4
  %v1018 = vand.u32 %v1016, 15
  %v1019 = vsub.s32 0, %v1018
  %v1020 = vsel %vm1014, %v1019, %v1018
  %vm1021 = vcmp.lt.s32.totalorder %v851, 0
  %v1022 = vsub.s32 0, %v851
  %v1023 = vsel %vm1021, %v1022, %v851
  %v1024 = vshrl.u32 %v1023, 4
  %v1025 = vand.u32 %v1023, 15
  %v1026 = vsub.s32 0, %v1025
  %v1027 = vsel %vm1021, %v1026, %v1025
  %vm1028 = vcmp.lt.s32.totalorder %v852, 0
  %v1029 = vsub.s32 0, %v852
  %v1030 = vsel %vm1028, %v1029, %v852
  %v1031 = vshrl.u32 %v1030, 4
  %v1032 = vand.u32 %v1030, 15
  %v1033 = vsub.s32 0, %v1032
  %v1034 = vsel %vm1028, %v1033, %v1032
  %vm1035 = vcmp.lt.s32.totalorder %v853, 0
  %v1036 = vsub.s32 0, %v853
  %v1037 = vsel %vm1035, %v1036, %v853
  %v1038 = vshrl.u32 %v1037, 4
  %v1039 = vand.u32 %v1037, 15
  %v1040 = vsub.s32 0, %v1039
  %v1041 = vsel %vm1035, %v1040, %v1039
  %vm1042 = vcmp.lt.s32.totalorder %v854, 0
  %v1043 = vsub.s32 0, %v854
  %v1044 = vsel %vm1042, %v1043, %v854
  %v1045 = vshrl.u32 %v1044, 4
  %v1046 = vand.u32 %v1044, 15
  %v1047 = vsub.s32 0, %v1046
  %v1048 = vsel %vm1042, %v1047, %v1046
  %vm1049 = vcmp.lt.s32.totalorder %v855, 0
  %v1050 = vsub.s32 0, %v855
  %v1051 = vsel %vm1049, %v1050, %v855
  %v1052 = vshrl.u32 %v1051, 4
  %v1053 = vand.u32 %v1051, 15
  %v1054 = vsub.s32 0, %v1053
  %v1055 = vsel %vm1049, %v1054, %v1053
  %vm1056 = vcmp.lt.s32.totalorder %v856, 0
  %v1057 = vsub.s32 0, %v856
  %v1058 = vsel %vm1056, %v1057, %v856
  %v1059 = vshrl.u32 %v1058, 4
  %v1060 = vand.u32 %v1058, 15
  %v1061 = vsub.s32 0, %v1060
  %v1062 = vsel %vm1056, %v1061, %v1060
  %vm1063 = vcmp.lt.s32.totalorder %v857, 0
  %v1064 = vsub.s32 0, %v857
  %v1065 = vsel %vm1063, %v1064, %v857
  %v1066 = vshrl.u32 %v1065, 4
  %v1067 = vand.u32 %v1065, 15
  %v1068 = vsub.s32 0, %v1067
  %v1069 = vsel %vm1063, %v1068, %v1067
  %vm1070 = vcmp.lt.s32.totalorder %v858, 0
  %v1071 = vsub.s32 0, %v858
  %v1072 = vsel %vm1070, %v1071, %v858
  %v1073 = vshrl.u32 %v1072, 4
  %v1074 = vand.u32 %v1072, 15
  %v1075 = vsub.s32 0, %v1074
  %v1076 = vsel %vm1070, %v1075, %v1074
  %vm1077 = vcmp.lt.s32.totalorder %v859, 0
  %v1078 = vsub.s32 0, %v859
  %v1079 = vsel %vm1077, %v1078, %v859
  %v1080 = vshrl.u32 %v1079, 4
  %v1081 = vand.u32 %v1079, 15
  %v1082 = vsub.s32 0, %v1081
  %v1083 = vsel %vm1077, %v1082, %v1081
  %vm1084 = vcmp.ne.s32.totalorder %v866, 0
  %vm1085 = vcmp.ne.s32.totalorder %v873, 0
  %vm1086 = vcmp.ne.s32.totalorder %v880, 0
  %vm1087 = vcmp.ne.s32.totalorder %v887, 0
  %vm1088 = vcmp.ne.s32.totalorder %v894, 0
  %vm1089 = vcmp.ne.s32.totalorder %v901, 0
  %vm1090 = vcmp.ne.s32.totalorder %v908, 0
  %vm1091 = vcmp.ne.s32.totalorder %v915, 0
  %vm1092 = vcmp.ne.s32.totalorder %v922, 0
  %vm1093 = vcmp.ne.s32.totalorder %v929, 0
  %vm1094 = vcmp.ne.s32.totalorder %v936, 0
  %vm1095 = vcmp.ne.s32.totalorder %v943, 0
  %vm1096 = vcmp.ne.s32.totalorder %v950, 0
  %vm1097 = vcmp.ne.s32.totalorder %v957, 0
  %vm1098 = vcmp.ne.s32.totalorder %v964, 0
  %vm1099 = vcmp.ne.s32.totalorder %v971, 0
  %vm1100 = vcmp.ne.s32.totalorder %v978, 0
  %vm1101 = vcmp.ne.s32.totalorder %v985, 0
  %vm1102 = vcmp.ne.s32.totalorder %v992, 0
  %vm1103 = vcmp.ne.s32.totalorder %v999, 0
  %vm1104 = vcmp.ne.s32.totalorder %v1006, 0
  %vm1105 = vcmp.ne.s32.totalorder %v1013, 0
  %vm1106 = vcmp.ne.s32.totalorder %v1020, 0
  %vm1107 = vcmp.ne.s32.totalorder %v1027, 0
  %vm1108 = vcmp.ne.s32.totalorder %v1034, 0
  %vm1109 = vcmp.ne.s32.totalorder %v1041, 0
  %vm1110 = vcmp.ne.s32.totalorder %v1048, 0
  %vm1111 = vcmp.ne.s32.totalorder %v1055, 0
  %vm1112 = vcmp.ne.s32.totalorder %v1062, 0
  %vm1113 = vcmp.ne.s32.totalorder %v1069, 0
  %vm1114 = vcmp.ne.s32.totalorder %v1076, 0
  %vm1115 = vcmp.ne.s32.totalorder %v1083, 0
  %vm1116 = vcmp.lt.s32.totalorder %v866, 0
  %vm1117 = vcmp.lt.s32.totalorder %v873, 0
  %vm1118 = vcmp.lt.s32.totalorder %v880, 0
  %vm1119 = vcmp.lt.s32.totalorder %v887, 0
  %vm1120 = vcmp.lt.s32.totalorder %v894, 0
  %vm1121 = vcmp.lt.s32.totalorder %v901, 0
  %vm1122 = vcmp.lt.s32.totalorder %v908, 0
  %vm1123 = vcmp.lt.s32.totalorder %v915, 0
  %vm1124 = vcmp.lt.s32.totalorder %v922, 0
  %vm1125 = vcmp.lt.s32.totalorder %v929, 0
  %vm1126 = vcmp.lt.s32.totalorder %v936, 0
  %vm1127 = vcmp.lt.s32.totalorder %v943, 0
  %vm1128 = vcmp.lt.s32.totalorder %v950, 0
  %vm1129 = vcmp.lt.s32.totalorder %v957, 0
  %vm1130 = vcmp.lt.s32.totalorder %v964, 0
  %vm1131 = vcmp.lt.s32.totalorder %v971, 0
  %vm1132 = vcmp.lt.s32.totalorder %v978, 0
  %vm1133 = vcmp.lt.s32.totalorder %v985, 0
  %vm1134 = vcmp.lt.s32.totalorder %v992, 0
  %vm1135 = vcmp.lt.s32.totalorder %v999, 0
  %vm1136 = vcmp.lt.s32.totalorder %v1006, 0
  %vm1137 = vcmp.lt.s32.totalorder %v1013, 0
  %vm1138 = vcmp.lt.s32.totalorder %v1020, 0
  %vm1139 = vcmp.lt.s32.totalorder %v1027, 0
  %vm1140 = vcmp.lt.s32.totalorder %v1034, 0
  %vm1141 = vcmp.lt.s32.totalorder %v1041, 0
  %vm1142 = vcmp.lt.s32.totalorder %v1048, 0
  %vm1143 = vcmp.lt.s32.totalorder %v1055, 0
  %vm1144 = vcmp.lt.s32.totalorder %v1062, 0
  %vm1145 = vcmp.lt.s32.totalorder %v1069, 0
  %vm1146 = vcmp.lt.s32.totalorder %v1076, 0
  %vm1147 = vcmp.lt.s32.totalorder %v1083, 0
  %vm1148 = vmand %vm1116, %vm1084
  %vm1149 = vmand %vm1117, %vm1085
  %vm1150 = vmand %vm1118, %vm1086
  %vm1151 = vmand %vm1119, %vm1087
  %vm1152 = vmand %vm1120, %vm1088
  %vm1153 = vmand %vm1121, %vm1089
  %vm1154 = vmand %vm1122, %vm1090
  %vm1155 = vmand %vm1123, %vm1091
  %vm1156 = vmand %vm1124, %vm1092
  %vm1157 = vmand %vm1125, %vm1093
  %vm1158 = vmand %vm1126, %vm1094
  %vm1159 = vmand %vm1127, %vm1095
  %vm1160 = vmand %vm1128, %vm1096
  %vm1161 = vmand %vm1129, %vm1097
  %vm1162 = vmand %vm1130, %vm1098
  %vm1163 = vmand %vm1131, %vm1099
  %vm1164 = vmand %vm1132, %vm1100
  %vm1165 = vmand %vm1133, %vm1101
  %vm1166 = vmand %vm1134, %vm1102
  %vm1167 = vmand %vm1135, %vm1103
  %vm1168 = vmand %vm1136, %vm1104
  %vm1169 = vmand %vm1137, %vm1105
  %vm1170 = vmand %vm1138, %vm1106
  %vm1171 = vmand %vm1139, %vm1107
  %vm1172 = vmand %vm1140, %vm1108
  %vm1173 = vmand %vm1141, %vm1109
  %vm1174 = vmand %vm1142, %vm1110
  %vm1175 = vmand %vm1143, %vm1111
  %vm1176 = vmand %vm1144, %vm1112
  %vm1177 = vmand %vm1145, %vm1113
  %vm1178 = vmand %vm1146, %vm1114
  %vm1179 = vmand %vm1147, %vm1115
  %v1180 = vadd.s32 %v866, 16
  %v1181 = vadd.s32 %v873, 16
  %v1182 = vadd.s32 %v880, 16
  %v1183 = vadd.s32 %v887, 16
  %v1184 = vadd.s32 %v894, 16
  %v1185 = vadd.s32 %v901, 16
  %v1186 = vadd.s32 %v908, 16
  %v1187 = vadd.s32 %v915, 16
  %v1188 = vadd.s32 %v922, 16
  %v1189 = vadd.s32 %v929, 16
  %v1190 = vadd.s32 %v936, 16
  %v1191 = vadd.s32 %v943, 16
  %v1192 = vadd.s32 %v950, 16
  %v1193 = vadd.s32 %v957, 16
  %v1194 = vadd.s32 %v964, 16
  %v1195 = vadd.s32 %v971, 16
  %v1196 = vadd.s32 %v978, 16
  %v1197 = vadd.s32 %v985, 16
  %v1198 = vadd.s32 %v992, 16
  %v1199 = vadd.s32 %v999, 16
  %v1200 = vadd.s32 %v1006, 16
  %v1201 = vadd.s32 %v1013, 16
  %v1202 = vadd.s32 %v1020, 16
  %v1203 = vadd.s32 %v1027, 16
  %v1204 = vadd.s32 %v1034, 16
  %v1205 = vadd.s32 %v1041, 16
  %v1206 = vadd.s32 %v1048, 16
  %v1207 = vadd.s32 %v1055, 16
  %v1208 = vadd.s32 %v1062, 16
  %v1209 = vadd.s32 %v1069, 16
  %v1210 = vadd.s32 %v1076, 16
  %v1211 = vadd.s32 %v1083, 16
  %v1212 = vsel %vm1148, %v1180, %v866
  %v1213 = vsel %vm1149, %v1181, %v873
  %v1214 = vsel %vm1150, %v1182, %v880
  %v1215 = vsel %vm1151, %v1183, %v887
  %v1216 = vsel %vm1152, %v1184, %v894
  %v1217 = vsel %vm1153, %v1185, %v901
  %v1218 = vsel %vm1154, %v1186, %v908
  %v1219 = vsel %vm1155, %v1187, %v915
  %v1220 = vsel %vm1156, %v1188, %v922
  %v1221 = vsel %vm1157, %v1189, %v929
  %v1222 = vsel %vm1158, %v1190, %v936
  %v1223 = vsel %vm1159, %v1191, %v943
  %v1224 = vsel %vm1160, %v1192, %v950
  %v1225 = vsel %vm1161, %v1193, %v957
  %v1226 = vsel %vm1162, %v1194, %v964
  %v1227 = vsel %vm1163, %v1195, %v971
  %v1228 = vsel %vm1164, %v1196, %v978
  %v1229 = vsel %vm1165, %v1197, %v985
  %v1230 = vsel %vm1166, %v1198, %v992
  %v1231 = vsel %vm1167, %v1199, %v999
  %v1232 = vsel %vm1168, %v1200, %v1006
  %v1233 = vsel %vm1169, %v1201, %v1013
  %v1234 = vsel %vm1170, %v1202, %v1020
  %v1235 = vsel %vm1171, %v1203, %v1027
  %v1236 = vsel %vm1172, %v1204, %v1034
  %v1237 = vsel %vm1173, %v1205, %v1041
  %v1238 = vsel %vm1174, %v1206, %v1048
  %v1239 = vsel %vm1175, %v1207, %v1055
  %v1240 = vsel %vm1176, %v1208, %v1062
  %v1241 = vsel %vm1177, %v1209, %v1069
  %v1242 = vsel %vm1178, %v1210, %v1076
  %v1243 = vsel %vm1179, %v1211, %v1083
  %vm1244 = vcmp.gt.s32.totalorder %v1212, 0
  %vm1245 = vcmp.gt.s32.totalorder %v1213, 0
  %vm1246 = vcmp.gt.s32.totalorder %v1214, 0
  %vm1247 = vcmp.gt.s32.totalorder %v1215, 0
  %vm1248 = vcmp.gt.s32.totalorder %v1216, 0
  %vm1249 = vcmp.gt.s32.totalorder %v1217, 0
  %vm1250 = vcmp.gt.s32.totalorder %v1218, 0
  %vm1251 = vcmp.gt.s32.totalorder %v1219, 0
  %vm1252 = vcmp.gt.s32.totalorder %v1220, 0
  %vm1253 = vcmp.gt.s32.totalorder %v1221, 0
  %vm1254 = vcmp.gt.s32.totalorder %v1222, 0
  %vm1255 = vcmp.gt.s32.totalorder %v1223, 0
  %vm1256 = vcmp.gt.s32.totalorder %v1224, 0
  %vm1257 = vcmp.gt.s32.totalorder %v1225, 0
  %vm1258 = vcmp.gt.s32.totalorder %v1226, 0
  %vm1259 = vcmp.gt.s32.totalorder %v1227, 0
  %vm1260 = vcmp.gt.s32.totalorder %v1228, 0
  %vm1261 = vcmp.gt.s32.totalorder %v1229, 0
  %vm1262 = vcmp.gt.s32.totalorder %v1230, 0
  %vm1263 = vcmp.gt.s32.totalorder %v1231, 0
  %vm1264 = vcmp.gt.s32.totalorder %v1232, 0
  %vm1265 = vcmp.gt.s32.totalorder %v1233, 0
  %vm1266 = vcmp.gt.s32.totalorder %v1234, 0
  %vm1267 = vcmp.gt.s32.totalorder %v1235, 0
  %vm1268 = vcmp.gt.s32.totalorder %v1236, 0
  %vm1269 = vcmp.gt.s32.totalorder %v1237, 0
  %vm1270 = vcmp.gt.s32.totalorder %v1238, 0
  %vm1271 = vcmp.gt.s32.totalorder %v1239, 0
  %vm1272 = vcmp.gt.s32.totalorder %v1240, 0
  %vm1273 = vcmp.gt.s32.totalorder %v1241, 0
  %vm1274 = vcmp.gt.s32.totalorder %v1242, 0
  %vm1275 = vcmp.gt.s32.totalorder %v1243, 0
  %v1276 = vsel %vm1244, 1, 0
  %v1277 = vsel %vm1245, 1, 0
  %v1278 = vsel %vm1246, 1, 0
  %v1279 = vsel %vm1247, 1, 0
  %v1280 = vsel %vm1248, 1, 0
  %v1281 = vsel %vm1249, 1, 0
  %v1282 = vsel %vm1250, 1, 0
  %v1283 = vsel %vm1251, 1, 0
  %v1284 = vsel %vm1252, 1, 0
  %v1285 = vsel %vm1253, 1, 0
  %v1286 = vsel %vm1254, 1, 0
  %v1287 = vsel %vm1255, 1, 0
  %v1288 = vsel %vm1256, 1, 0
  %v1289 = vsel %vm1257, 1, 0
  %v1290 = vsel %vm1258, 1, 0
  %v1291 = vsel %vm1259, 1, 0
  %v1292 = vsel %vm1260, 1, 0
  %v1293 = vsel %vm1261, 1, 0
  %v1294 = vsel %vm1262, 1, 0
  %v1295 = vsel %vm1263, 1, 0
  %v1296 = vsel %vm1264, 1, 0
  %v1297 = vsel %vm1265, 1, 0
  %v1298 = vsel %vm1266, 1, 0
  %v1299 = vsel %vm1267, 1, 0
  %v1300 = vsel %vm1268, 1, 0
  %v1301 = vsel %vm1269, 1, 0
  %v1302 = vsel %vm1270, 1, 0
  %v1303 = vsel %vm1271, 1, 0
  %v1304 = vsel %vm1272, 1, 0
  %v1305 = vsel %vm1273, 1, 0
  %v1306 = vsel %vm1274, 1, 0
  %v1307 = vsel %vm1275, 1, 0
  %v1308 = vcvt.s32.f32 %v1276
  %v1309 = vcvt.s32.f32 %v1277
  %v1310 = vcvt.s32.f32 %v1278
  %v1311 = vcvt.s32.f32 %v1279
  %v1312 = vcvt.s32.f32 %v1280
  %v1313 = vcvt.s32.f32 %v1281
  %v1314 = vcvt.s32.f32 %v1282
  %v1315 = vcvt.s32.f32 %v1283
  %v1316 = vcvt.s32.f32 %v1284
  %v1317 = vcvt.s32.f32 %v1285
  %v1318 = vcvt.s32.f32 %v1286
  %v1319 = vcvt.s32.f32 %v1287
  %v1320 = vcvt.s32.f32 %v1288
  %v1321 = vcvt.s32.f32 %v1289
  %v1322 = vcvt.s32.f32 %v1290
  %v1323 = vcvt.s32.f32 %v1291
  %v1324 = vcvt.s32.f32 %v1292
  %v1325 = vcvt.s32.f32 %v1293
  %v1326 = vcvt.s32.f32 %v1294
  %v1327 = vcvt.s32.f32 %v1295
  %v1328 = vcvt.s32.f32 %v1296
  %v1329 = vcvt.s32.f32 %v1297
  %v1330 = vcvt.s32.f32 %v1298
  %v1331 = vcvt.s32.f32 %v1299
  %v1332 = vcvt.s32.f32 %v1300
  %v1333 = vcvt.s32.f32 %v1301
  %v1334 = vcvt.s32.f32 %v1302
  %v1335 = vcvt.s32.f32 %v1303
  %v1336 = vcvt.s32.f32 %v1304
  %v1337 = vcvt.s32.f32 %v1305
  %v1338 = vcvt.s32.f32 %v1306
  %v1339 = vcvt.s32.f32 %v1307
  %vm1340 = vcmp.lt.s32.totalorder %v1212, 15
  %vm1341 = vcmp.lt.s32.totalorder %v1213, 15
  %vm1342 = vcmp.lt.s32.totalorder %v1214, 15
  %vm1343 = vcmp.lt.s32.totalorder %v1215, 15
  %vm1344 = vcmp.lt.s32.totalorder %v1216, 15
  %vm1345 = vcmp.lt.s32.totalorder %v1217, 15
  %vm1346 = vcmp.lt.s32.totalorder %v1218, 15
  %vm1347 = vcmp.lt.s32.totalorder %v1219, 15
  %vm1348 = vcmp.lt.s32.totalorder %v1220, 15
  %vm1349 = vcmp.lt.s32.totalorder %v1221, 15
  %vm1350 = vcmp.lt.s32.totalorder %v1222, 15
  %vm1351 = vcmp.lt.s32.totalorder %v1223, 15
  %vm1352 = vcmp.lt.s32.totalorder %v1224, 15
  %vm1353 = vcmp.lt.s32.totalorder %v1225, 15
  %vm1354 = vcmp.lt.s32.totalorder %v1226, 15
  %vm1355 = vcmp.lt.s32.totalorder %v1227, 15
  %vm1356 = vcmp.lt.s32.totalorder %v1228, 15
  %vm1357 = vcmp.lt.s32.totalorder %v1229, 15
  %vm1358 = vcmp.lt.s32.totalorder %v1230, 15
  %vm1359 = vcmp.lt.s32.totalorder %v1231, 15
  %vm1360 = vcmp.lt.s32.totalorder %v1232, 15
  %vm1361 = vcmp.lt.s32.totalorder %v1233, 15
  %vm1362 = vcmp.lt.s32.totalorder %v1234, 15
  %vm1363 = vcmp.lt.s32.totalorder %v1235, 15
  %vm1364 = vcmp.lt.s32.totalorder %v1236, 15
  %vm1365 = vcmp.lt.s32.totalorder %v1237, 15
  %vm1366 = vcmp.lt.s32.totalorder %v1238, 15
  %vm1367 = vcmp.lt.s32.totalorder %v1239, 15
  %vm1368 = vcmp.lt.s32.totalorder %v1240, 15
  %vm1369 = vcmp.lt.s32.totalorder %v1241, 15
  %vm1370 = vcmp.lt.s32.totalorder %v1242, 15
  %vm1371 = vcmp.lt.s32.totalorder %v1243, 15
  %v1372 = vsel %vm1340, 1, 0
  %v1373 = vsel %vm1341, 1, 0
  %v1374 = vsel %vm1342, 1, 0
  %v1375 = vsel %vm1343, 1, 0
  %v1376 = vsel %vm1344, 1, 0
  %v1377 = vsel %vm1345, 1, 0
  %v1378 = vsel %vm1346, 1, 0
  %v1379 = vsel %vm1347, 1, 0
  %v1380 = vsel %vm1348, 1, 0
  %v1381 = vsel %vm1349, 1, 0
  %v1382 = vsel %vm1350, 1, 0
  %v1383 = vsel %vm1351, 1, 0
  %v1384 = vsel %vm1352, 1, 0
  %v1385 = vsel %vm1353, 1, 0
  %v1386 = vsel %vm1354, 1, 0
  %v1387 = vsel %vm1355, 1, 0
  %v1388 = vsel %vm1356, 1, 0
  %v1389 = vsel %vm1357, 1, 0
  %v1390 = vsel %vm1358, 1, 0
  %v1391 = vsel %vm1359, 1, 0
  %v1392 = vsel %vm1360, 1, 0
  %v1393 = vsel %vm1361, 1, 0
  %v1394 = vsel %vm1362, 1, 0
  %v1395 = vsel %vm1363, 1, 0
  %v1396 = vsel %vm1364, 1, 0
  %v1397 = vsel %vm1365, 1, 0
  %v1398 = vsel %vm1366, 1, 0
  %v1399 = vsel %vm1367, 1, 0
  %v1400 = vsel %vm1368, 1, 0
  %v1401 = vsel %vm1369, 1, 0
  %v1402 = vsel %vm1370, 1, 0
  %v1403 = vsel %vm1371, 1, 0
  %v1404 = vcvt.s32.f32 %v1372
  %v1405 = vcvt.s32.f32 %v1373
  %v1406 = vcvt.s32.f32 %v1374
  %v1407 = vcvt.s32.f32 %v1375
  %v1408 = vcvt.s32.f32 %v1376
  %v1409 = vcvt.s32.f32 %v1377
  %v1410 = vcvt.s32.f32 %v1378
  %v1411 = vcvt.s32.f32 %v1379
  %v1412 = vcvt.s32.f32 %v1380
  %v1413 = vcvt.s32.f32 %v1381
  %v1414 = vcvt.s32.f32 %v1382
  %v1415 = vcvt.s32.f32 %v1383
  %v1416 = vcvt.s32.f32 %v1384
  %v1417 = vcvt.s32.f32 %v1385
  %v1418 = vcvt.s32.f32 %v1386
  %v1419 = vcvt.s32.f32 %v1387
  %v1420 = vcvt.s32.f32 %v1388
  %v1421 = vcvt.s32.f32 %v1389
  %v1422 = vcvt.s32.f32 %v1390
  %v1423 = vcvt.s32.f32 %v1391
  %v1424 = vcvt.s32.f32 %v1392
  %v1425 = vcvt.s32.f32 %v1393
  %v1426 = vcvt.s32.f32 %v1394
  %v1427 = vcvt.s32.f32 %v1395
  %v1428 = vcvt.s32.f32 %v1396
  %v1429 = vcvt.s32.f32 %v1397
  %v1430 = vcvt.s32.f32 %v1398
  %v1431 = vcvt.s32.f32 %v1399
  %v1432 = vcvt.s32.f32 %v1400
  %v1433 = vcvt.s32.f32 %v1401
  %v1434 = vcvt.s32.f32 %v1402
  %v1435 = vcvt.s32.f32 %v1403
  %1436 = vst [vmem:[#allocation5] sm:$0xff] 0.0
  %1437 = vst [vmem:[#allocation5 + $0x8] sm:$0xff] 0.0
  %1438 = vst [vmem:[#allocation5 + $0x10] sm:$0xff] 0.0
  %1439 = vst [vmem:[#allocation5 + $0x118] sm:$0xff] 0.0
  %1440 = vst [vmem:[#allocation5 + $0x120] sm:$0xff] 0.0
  %1441 = vst [vmem:[#allocation5 + $0x128] sm:$0xff] 0.0
  %v1442 = vld [vmem:[#allocation2] sm:$0xff]
  %v1443 = vld [vmem:[#allocation2 + $0x8] sm:$0xff]
  %v1444 = vld [vmem:[#allocation2 + $0x10] sm:$0xff]
  %v1445 = vld [vmem:[#allocation2 + $0x18] sm:$0xff]
  %v1446 = vld [vmem:[#allocation2 + $0x20] sm:$0xff]
  %v1447 = vld [vmem:[#allocation2 + $0x28] sm:$0xff]
  %v1448 = vld [vmem:[#allocation2 + $0x30] sm:$0xff]
  %v1449 = vld [vmem:[#allocation2 + $0x38] sm:$0xff]
  %v1450 = vld [vmem:[#allocation2 + $0x40] sm:$0xff]
  %v1451 = vld [vmem:[#allocation2 + $0x48] sm:$0xff]
  %v1452 = vld [vmem:[#allocation2 + $0x50] sm:$0xff]
  %v1453 = vld [vmem:[#allocation2 + $0x58] sm:$0xff]
  %v1454 = vld [vmem:[#allocation2 + $0x60] sm:$0xff]
  %v1455 = vld [vmem:[#allocation2 + $0x68] sm:$0xff]
  %v1456 = vld [vmem:[#allocation2 + $0x70] sm:$0xff]
  %v1457 = vld [vmem:[#allocation2 + $0x78] sm:$0xff]
  %v1458 = vld [vmem:[#allocation2 + $0x80] sm:$0xff]
  %v1459 = vld [vmem:[#allocation2 + $0x88] sm:$0xff]
  %v1460 = vld [vmem:[#allocation2 + $0x90] sm:$0xff]
  %v1461 = vld [vmem:[#allocation2 + $0x98] sm:$0xff]
  %v1462 = vld [vmem:[#allocation2 + $0xa0] sm:$0xff]
  %v1463 = vld [vmem:[#allocation2 + $0xa8] sm:$0xff]
  %v1464 = vld [vmem:[#allocation2 + $0xb0] sm:$0xff]
  %v1465 = vld [vmem:[#allocation2 + $0xb8] sm:$0xff]
  %v1466 = vld [vmem:[#allocation2 + $0xc0] sm:$0xff]
  %v1467 = vld [vmem:[#allocation2 + $0xc8] sm:$0xff]
  %v1468 = vld [vmem:[#allocation2 + $0xd0] sm:$0xff]
  %v1469 = vld [vmem:[#allocation2 + $0xd8] sm:$0xff]
  %v1470 = vld [vmem:[#allocation2 + $0xe0] sm:$0xff]
  %v1471 = vld [vmem:[#allocation2 + $0xe8] sm:$0xff]
  %v1472 = vld [vmem:[#allocation2 + $0xf0] sm:$0xff]
  %v1473 = vld [vmem:[#allocation2 + $0xf8] sm:$0xff]
  %v1475 = vlaneseq
  %v1476 = vshrl.u32 %v1475, 7
  %v1477 = vsub.s32 0, %v1476
  %v1478 = vrot.slane %v824, %v1477
  %v1480 = vmul.f32 %v1442, %v1478
  %v1481 = vmul.f32 %v1443, %v1478
  %v1482 = vmul.f32 %v1444, %v1478
  %v1483 = vmul.f32 %v1445, %v1478
  %v1484 = vmul.f32 %v1446, %v1478
  %v1485 = vmul.f32 %v1447, %v1478
  %v1486 = vmul.f32 %v1448, %v1478
  %v1487 = vmul.f32 %v1449, %v1478
  %v1488 = vmul.f32 %v1450, %v1478
  %v1489 = vmul.f32 %v1451, %v1478
  %v1490 = vmul.f32 %v1452, %v1478
  %v1491 = vmul.f32 %v1453, %v1478
  %v1492 = vmul.f32 %v1454, %v1478
  %v1493 = vmul.f32 %v1455, %v1478
  %v1494 = vmul.f32 %v1456, %v1478
  %v1495 = vmul.f32 %v1457, %v1478
  %v1496 = vmul.f32 %v1458, %v1478
  %v1497 = vmul.f32 %v1459, %v1478
  %v1498 = vmul.f32 %v1460, %v1478
  %v1499 = vmul.f32 %v1461, %v1478
  %v1500 = vmul.f32 %v1462, %v1478
  %v1501 = vmul.f32 %v1463, %v1478
  %v1502 = vmul.f32 %v1464, %v1478
  %v1503 = vmul.f32 %v1465, %v1478
  %v1504 = vmul.f32 %v1466, %v1478
  %v1505 = vmul.f32 %v1467, %v1478
  %v1506 = vmul.f32 %v1468, %v1478
  %v1507 = vmul.f32 %v1469, %v1478
  %v1508 = vmul.f32 %v1470, %v1478
  %v1509 = vmul.f32 %v1471, %v1478
  %v1510 = vmul.f32 %v1472, %v1478
  %v1511 = vmul.f32 %v1473, %v1478
  %v1513 = vlaneseq
  %v1514 = vshrl.u32 %v1513, 7
  %v1515 = vsub.s32 0, %v1514
  %v1516 = vrot.slane %v826, %v1515
  %v1518 = vadd.f32 %v1480, %v1516
  %v1519 = vadd.f32 %v1481, %v1516
  %v1520 = vadd.f32 %v1482, %v1516
  %v1521 = vadd.f32 %v1483, %v1516
  %v1522 = vadd.f32 %v1484, %v1516
  %v1523 = vadd.f32 %v1485, %v1516
  %v1524 = vadd.f32 %v1486, %v1516
  %v1525 = vadd.f32 %v1487, %v1516
  %v1526 = vadd.f32 %v1488, %v1516
  %v1527 = vadd.f32 %v1489, %v1516
  %v1528 = vadd.f32 %v1490, %v1516
  %v1529 = vadd.f32 %v1491, %v1516
  %v1530 = vadd.f32 %v1492, %v1516
  %v1531 = vadd.f32 %v1493, %v1516
  %v1532 = vadd.f32 %v1494, %v1516
  %v1533 = vadd.f32 %v1495, %v1516
  %v1534 = vadd.f32 %v1496, %v1516
  %v1535 = vadd.f32 %v1497, %v1516
  %v1536 = vadd.f32 %v1498, %v1516
  %v1537 = vadd.f32 %v1499, %v1516
  %v1538 = vadd.f32 %v1500, %v1516
  %v1539 = vadd.f32 %v1501, %v1516
  %v1540 = vadd.f32 %v1502, %v1516
  %v1541 = vadd.f32 %v1503, %v1516
  %v1542 = vadd.f32 %v1504, %v1516
  %v1543 = vadd.f32 %v1505, %v1516
  %v1544 = vadd.f32 %v1506, %v1516
  %v1545 = vadd.f32 %v1507, %v1516
  %v1546 = vadd.f32 %v1508, %v1516
  %v1547 = vadd.f32 %v1509, %v1516
  %v1548 = vadd.f32 %v1510, %v1516
  %v1549 = vadd.f32 %v1511, %v1516
  %v1550 = vmax.f32 %v1518, 0.0
  %v1551 = vmax.f32 %v1519, 0.0
  %v1552 = vmax.f32 %v1520, 0.0
  %v1553 = vmax.f32 %v1521, 0.0
  %v1554 = vmax.f32 %v1522, 0.0
  %v1555 = vmax.f32 %v1523, 0.0
  %v1556 = vmax.f32 %v1524, 0.0
  %v1557 = vmax.f32 %v1525, 0.0
  %v1558 = vmax.f32 %v1526, 0.0
  %v1559 = vmax.f32 %v1527, 0.0
  %v1560 = vmax.f32 %v1528, 0.0
  %v1561 = vmax.f32 %v1529, 0.0
  %v1562 = vmax.f32 %v1530, 0.0
  %v1563 = vmax.f32 %v1531, 0.0
  %v1564 = vmax.f32 %v1532, 0.0
  %v1565 = vmax.f32 %v1533, 0.0
  %v1566 = vmax.f32 %v1534, 0.0
  %v1567 = vmax.f32 %v1535, 0.0
  %v1568 = vmax.f32 %v1536, 0.0
  %v1569 = vmax.f32 %v1537, 0.0
  %v1570 = vmax.f32 %v1538, 0.0
  %v1571 = vmax.f32 %v1539, 0.0
  %v1572 = vmax.f32 %v1540, 0.0
  %v1573 = vmax.f32 %v1541, 0.0
  %v1574 = vmax.f32 %v1542, 0.0
  %v1575 = vmax.f32 %v1543, 0.0
  %v1576 = vmax.f32 %v1544, 0.0
  %v1577 = vmax.f32 %v1545, 0.0
  %v1578 = vmax.f32 %v1546, 0.0
  %v1579 = vmax.f32 %v1547, 0.0
  %v1580 = vmax.f32 %v1548, 0.0
  %v1581 = vmax.f32 %v1549, 0.0
  %1582 = vst [vmem:[#allocation5 + $0x18] sm:$0xff] %v1550
  %1583 = vst [vmem:[#allocation5 + $0x20] sm:$0xff] %v1551
  %1584 = vst [vmem:[#allocation5 + $0x28] sm:$0xff] %v1552
  %1585 = vst [vmem:[#allocation5 + $0x30] sm:$0xff] %v1553
  %1586 = vst [vmem:[#allocation5 + $0x38] sm:$0xff] %v1554
  %1587 = vst [vmem:[#allocation5 + $0x40] sm:$0xff] %v1555
  %1588 = vst [vmem:[#allocation5 + $0x48] sm:$0xff] %v1556
  %1589 = vst [vmem:[#allocation5 + $0x50] sm:$0xff] %v1557
  %1590 = vst [vmem:[#allocation5 + $0x58] sm:$0xff] %v1558
  %1591 = vst [vmem:[#allocation5 + $0x60] sm:$0xff] %v1559
  %1592 = vst [vmem:[#allocation5 + $0x68] sm:$0xff] %v1560
  %1593 = vst [vmem:[#allocation5 + $0x70] sm:$0xff] %v1561
  %1594 = vst [vmem:[#allocation5 + $0x78] sm:$0xff] %v1562
  %1595 = vst [vmem:[#allocation5 + $0x80] sm:$0xff] %v1563
  %1596 = vst [vmem:[#allocation5 + $0x88] sm:$0xff] %v1564
  %1597 = vst [vmem:[#allocation5 + $0x90] sm:$0xff] %v1565
  %1598 = vst [vmem:[#allocation5 + $0x98] sm:$0xff] %v1566
  %1599 = vst [vmem:[#allocation5 + $0xa0] sm:$0xff] %v1567
  %1600 = vst [vmem:[#allocation5 + $0xa8] sm:$0xff] %v1568
  %1601 = vst [vmem:[#allocation5 + $0xb0] sm:$0xff] %v1569
  %1602 = vst [vmem:[#allocation5 + $0xb8] sm:$0xff] %v1570
  %1603 = vst [vmem:[#allocation5 + $0xc0] sm:$0xff] %v1571
  %1604 = vst [vmem:[#allocation5 + $0xc8] sm:$0xff] %v1572
  %1605 = vst [vmem:[#allocation5 + $0xd0] sm:$0xff] %v1573
  %1606 = vst [vmem:[#allocation5 + $0xd8] sm:$0xff] %v1574
  %1607 = vst [vmem:[#allocation5 + $0xe0] sm:$0xff] %v1575
  %1608 = vst [vmem:[#allocation5 + $0xe8] sm:$0xff] %v1576
  %1609 = vst [vmem:[#allocation5 + $0xf0] sm:$0xff] %v1577
  %1610 = vst [vmem:[#allocation5 + $0xf8] sm:$0xff] %v1578
  %1611 = vst [vmem:[#allocation5 + $0x100] sm:$0xff] %v1579
  %1612 = vst [vmem:[#allocation5 + $0x108] sm:$0xff] %v1580
  %1613 = vst [vmem:[#allocation5 + $0x110] sm:$0xff] %v1581
  %1614 = vst [vmem:[#allocation6] sm:$0xff] 0.0
  %1615 = vst [vmem:[#allocation6 + $0x8] sm:$0xff] 0.0
  %1616 = vst [vmem:[#allocation6 + $0x10] sm:$0xff] 0.0
  %1617 = vst [vmem:[#allocation6 + $0x18] sm:$0xff] 0.0
  %1618 = vst [vmem:[#allocation6 + $0x20] sm:$0xff] 0.0
  %1619 = vst [vmem:[#allocation6 + $0x28] sm:$0xff] 0.0
  %1620 = vst [vmem:[#allocation6 + $0x30] sm:$0xff] 0.0
  %1621 = vst [vmem:[#allocation6 + $0x38] sm:$0xff] 0.0
  %1622 = vst [vmem:[#allocation6 + $0x40] sm:$0xff] 0.0
  %1623 = vst [vmem:[#allocation6 + $0x48] sm:$0xff] 0.0
  %1624 = vst [vmem:[#allocation6 + $0x50] sm:$0xff] 0.0
  %1625 = vst [vmem:[#allocation6 + $0x58] sm:$0xff] 0.0
  %1626 = vst [vmem:[#allocation6 + $0x60] sm:$0xff] 0.0
  %1627 = vst [vmem:[#allocation6 + $0x68] sm:$0xff] 0.0
  %1628 = vst [vmem:[#allocation6 + $0x70] sm:$0xff] 0.0
  %1629 = vst [vmem:[#allocation6 + $0x78] sm:$0xff] 0.0
  %1630 = vst [vmem:[#allocation6 + $0x80] sm:$0xff] 0.0
  %1631 = vst [vmem:[#allocation6 + $0x88] sm:$0xff] 0.0
  %1632 = vst [vmem:[#allocation6 + $0x90] sm:$0xff] 0.0
  %1633 = vst [vmem:[#allocation6 + $0x98] sm:$0xff] 0.0
  %1634 = vst [vmem:[#allocation6 + $0xa0] sm:$0xff] 0.0
  %1635 = vst [vmem:[#allocation6 + $0xa8] sm:$0xff] 0.0
  %1636 = vst [vmem:[#allocation6 + $0xb0] sm:$0xff] 0.0
  %1637 = vst [vmem:[#allocation6 + $0xb8] sm:$0xff] 0.0
  %1638 = vst [vmem:[#allocation6 + $0xc0] sm:$0xff] 0.0
  %1639 = vst [vmem:[#allocation6 + $0xc8] sm:$0xff] 0.0
  %1640 = vst [vmem:[#allocation6 + $0xd0] sm:$0xff] 0.0
  %1641 = vst [vmem:[#allocation6 + $0xd8] sm:$0xff] 0.0
  %1642 = vst [vmem:[#allocation6 + $0xe0] sm:$0xff] 0.0
  %1643 = vst [vmem:[#allocation6 + $0xe8] sm:$0xff] 0.0
  %1644 = vst [vmem:[#allocation6 + $0xf0] sm:$0xff] 0.0
  %1645 = vst [vmem:[#allocation6 + $0xf8] sm:$0xff] 0.0
  %v1646 = vld [vmem:[#allocation5 + $0x7] sm:$0xff]
  %v1647 = vld [vmem:[#allocation5 + $0xf] sm:$0xff]
  %v1648 = vld [vmem:[#allocation5 + $0x17] sm:$0xff]
  %v1649 = vld [vmem:[#allocation5 + $0x1f] sm:$0xff]
  %v1650 = vld [vmem:[#allocation5 + $0x27] sm:$0xff]
  %v1651 = vld [vmem:[#allocation5 + $0x2f] sm:$0xff]
  %v1652 = vld [vmem:[#allocation5 + $0x37] sm:$0xff]
  %v1653 = vld [vmem:[#allocation5 + $0x3f] sm:$0xff]
  %v1654 = vld [vmem:[#allocation5 + $0x47] sm:$0xff]
  %v1655 = vld [vmem:[#allocation5 + $0x4f] sm:$0xff]
  %v1656 = vld [vmem:[#allocation5 + $0x57] sm:$0xff]
  %v1657 = vld [vmem:[#allocation5 + $0x5f] sm:$0xff]
  %v1658 = vld [vmem:[#allocation5 + $0x67] sm:$0xff]
  %v1659 = vld [vmem:[#allocation5 + $0x6f] sm:$0xff]
  %v1660 = vld [vmem:[#allocation5 + $0x77] sm:$0xff]
  %v1661 = vld [vmem:[#allocation5 + $0x7f] sm:$0xff]
  %v1662 = vld [vmem:[#allocation5 + $0x87] sm:$0xff]
  %v1663 = vld [vmem:[#allocation5 + $0x8f] sm:$0xff]
  %v1664 = vld [vmem:[#allocation5 + $0x97] sm:$0xff]
  %v1665 = vld [vmem:[#allocation5 + $0x9f] sm:$0xff]
  %v1666 = vld [vmem:[#allocation5 + $0xa7] sm:$0xff]
  %v1667 = vld [vmem:[#allocation5 + $0xaf] sm:$0xff]
  %v1668 = vld [vmem:[#allocation5 + $0xb7] sm:$0xff]
  %v1669 = vld [vmem:[#allocation5 + $0xbf] sm:$0xff]
  %v1670 = vld [vmem:[#allocation5 + $0xc7] sm:$0xff]
  %v1671 = vld [vmem:[#allocation5 + $0xcf] sm:$0xff]
  %v1672 = vld [vmem:[#allocation5 + $0xd7] sm:$0xff]
  %v1673 = vld [vmem:[#allocation5 + $0xdf] sm:$0xff]
  %v1674 = vld [vmem:[#allocation5 + $0xe7] sm:$0xff]
  %v1675 = vld [vmem:[#allocation5 + $0xef] sm:$0xff]
  %v1676 = vld [vmem:[#allocation5 + $0xf7] sm:$0xff]
  %v1677 = vld [vmem:[#allocation5 + $0xff] sm:$0xff]
  %v1678 = vmul.f32 %v1646, %v1308
  %v1679 = vmul.f32 %v1647, %v1309
  %v1680 = vmul.f32 %v1648, %v1310
  %v1681 = vmul.f32 %v1649, %v1311
  %v1682 = vmul.f32 %v1650, %v1312
  %v1683 = vmul.f32 %v1651, %v1313
  %v1684 = vmul.f32 %v1652, %v1314
  %v1685 = vmul.f32 %v1653, %v1315
  %v1686 = vmul.f32 %v1654, %v1316
  %v1687 = vmul.f32 %v1655, %v1317
  %v1688 = vmul.f32 %v1656, %v1318
  %v1689 = vmul.f32 %v1657, %v1319
  %v1690 = vmul.f32 %v1658, %v1320
  %v1691 = vmul.f32 %v1659, %v1321
  %v1692 = vmul.f32 %v1660, %v1322
  %v1693 = vmul.f32 %v1661, %v1323
  %v1694 = vmul.f32 %v1662, %v1324
  %v1695 = vmul.f32 %v1663, %v1325
  %v1696 = vmul.f32 %v1664, %v1326
  %v1697 = vmul.f32 %v1665, %v1327
  %v1698 = vmul.f32 %v1666, %v1328
  %v1699 = vmul.f32 %v1667, %v1329
  %v1700 = vmul.f32 %v1668, %v1330
  %v1701 = vmul.f32 %v1669, %v1331
  %v1702 = vmul.f32 %v1670, %v1332
  %v1703 = vmul.f32 %v1671, %v1333
  %v1704 = vmul.f32 %v1672, %v1334
  %v1705 = vmul.f32 %v1673, %v1335
  %v1706 = vmul.f32 %v1674, %v1336
  %v1707 = vmul.f32 %v1675, %v1337
  %v1708 = vmul.f32 %v1676, %v1338
  %v1709 = vmul.f32 %v1677, %v1339
  %v1710 = vld [vmem:[#allocation6] sm:$0xff]
  %v1711 = vld [vmem:[#allocation6 + $0x8] sm:$0xff]
  %v1712 = vld [vmem:[#allocation6 + $0x10] sm:$0xff]
  %v1713 = vld [vmem:[#allocation6 + $0x18] sm:$0xff]
  %v1714 = vld [vmem:[#allocation6 + $0x20] sm:$0xff]
  %v1715 = vld [vmem:[#allocation6 + $0x28] sm:$0xff]
  %v1716 = vld [vmem:[#allocation6 + $0x30] sm:$0xff]
  %v1717 = vld [vmem:[#allocation6 + $0x38] sm:$0xff]
  %v1718 = vld [vmem:[#allocation6 + $0x40] sm:$0xff]
  %v1719 = vld [vmem:[#allocation6 + $0x48] sm:$0xff]
  %v1720 = vld [vmem:[#allocation6 + $0x50] sm:$0xff]
  %v1721 = vld [vmem:[#allocation6 + $0x58] sm:$0xff]
  %v1722 = vld [vmem:[#allocation6 + $0x60] sm:$0xff]
  %v1723 = vld [vmem:[#allocation6 + $0x68] sm:$0xff]
  %v1724 = vld [vmem:[#allocation6 + $0x70] sm:$0xff]
  %v1725 = vld [vmem:[#allocation6 + $0x78] sm:$0xff]
  %v1726 = vld [vmem:[#allocation6 + $0x80] sm:$0xff]
  %v1727 = vld [vmem:[#allocation6 + $0x88] sm:$0xff]
  %v1728 = vld [vmem:[#allocation6 + $0x90] sm:$0xff]
  %v1729 = vld [vmem:[#allocation6 + $0x98] sm:$0xff]
  %v1730 = vld [vmem:[#allocation6 + $0xa0] sm:$0xff]
  %v1731 = vld [vmem:[#allocation6 + $0xa8] sm:$0xff]
  %v1732 = vld [vmem:[#allocation6 + $0xb0] sm:$0xff]
  %v1733 = vld [vmem:[#allocation6 + $0xb8] sm:$0xff]
  %v1734 = vld [vmem:[#allocation6 + $0xc0] sm:$0xff]
  %v1735 = vld [vmem:[#allocation6 + $0xc8] sm:$0xff]
  %v1736 = vld [vmem:[#allocation6 + $0xd0] sm:$0xff]
  %v1737 = vld [vmem:[#allocation6 + $0xd8] sm:$0xff]
  %v1738 = vld [vmem:[#allocation6 + $0xe0] sm:$0xff]
  %v1739 = vld [vmem:[#allocation6 + $0xe8] sm:$0xff]
  %v1740 = vld [vmem:[#allocation6 + $0xf0] sm:$0xff]
  %v1741 = vld [vmem:[#allocation6 + $0xf8] sm:$0xff]
  %v1742 = vpack.c.bf16 %v1679, %v1678
  %v1743 = vpack.c.bf16 %v1681, %v1680
  %v1744 = vpack.c.bf16 %v1683, %v1682
  %v1745 = vpack.c.bf16 %v1685, %v1684
  %v1746 = vpack.c.bf16 %v1687, %v1686
  %v1747 = vpack.c.bf16 %v1689, %v1688
  %v1748 = vpack.c.bf16 %v1691, %v1690
  %v1749 = vpack.c.bf16 %v1693, %v1692
  %v1750 = vpack.c.bf16 %v1695, %v1694
  %v1751 = vpack.c.bf16 %v1697, %v1696
  %v1752 = vpack.c.bf16 %v1699, %v1698
  %v1753 = vpack.c.bf16 %v1701, %v1700
  %v1754 = vpack.c.bf16 %v1703, %v1702
  %v1755 = vpack.c.bf16 %v1705, %v1704
  %v1756 = vpack.c.bf16 %v1707, %v1706
  %v1757 = vpack.c.bf16 %v1709, %v1708
  %v1758 = vld [vmem:[%s2] sm:$0xf]
  %v1759 = vld [vmem:[%s2 + $0x4] sm:$0xf]
  %v1760 = vld [vmem:[%s2 + $0x8] sm:$0xf]
  %v1761 = vld [vmem:[%s2 + $0xc] sm:$0xf]
  %v1762 = vld [vmem:[%s2 + $0x10] sm:$0xf]
  %v1763 = vld [vmem:[%s2 + $0x14] sm:$0xf]
  %v1764 = vld [vmem:[%s2 + $0x18] sm:$0xf]
  %v1765 = vld [vmem:[%s2 + $0x1c] sm:$0xf]
  %v1766 = vld [vmem:[%s2 + $0x20] sm:$0xf]
  %v1767 = vld [vmem:[%s2 + $0x24] sm:$0xf]
  %v1768 = vld [vmem:[%s2 + $0x28] sm:$0xf]
  %v1769 = vld [vmem:[%s2 + $0x2c] sm:$0xf]
  %v1770 = vld [vmem:[%s2 + $0x30] sm:$0xf]
  %v1771 = vld [vmem:[%s2 + $0x34] sm:$0xf]
  %v1772 = vld [vmem:[%s2 + $0x38] sm:$0xf]
  %v1773 = vld [vmem:[%s2 + $0x3c] sm:$0xf]
  %v1790 = vunpack.c.l.b16 %v1758
  %v1791 = vunpack.c.l.b16 %v1759
  %v1792 = vunpack.c.l.b16 %v1760
  %v1793 = vunpack.c.l.b16 %v1761
  %v1794 = vunpack.c.l.b16 %v1762
  %v1795 = vunpack.c.l.b16 %v1763
  %v1796 = vunpack.c.l.b16 %v1764
  %v1797 = vunpack.c.l.b16 %v1765
  %v1798 = vunpack.c.l.b16 %v1766
  %v1799 = vunpack.c.l.b16 %v1767
  %v1800 = vunpack.c.l.b16 %v1768
  %v1801 = vunpack.c.l.b16 %v1769
  %v1802 = vunpack.c.l.b16 %v1770
  %v1803 = vunpack.c.l.b16 %v1771
  %v1804 = vunpack.c.l.b16 %v1772
  %v1805 = vunpack.c.l.b16 %v1773
  %v1806 = vpack.c.b16 %v1791, %v1790
  %v1807 = vpack.c.b16 %v1793, %v1792
  %v1808 = vpack.c.b16 %v1795, %v1794
  %v1809 = vpack.c.b16 %v1797, %v1796
  %v1810 = vpack.c.b16 %v1799, %v1798
  %v1811 = vpack.c.b16 %v1801, %v1800
  %v1812 = vpack.c.b16 %v1803, %v1802
  %v1813 = vpack.c.b16 %v1805, %v1804
  %1822 = vmatprep.subr.bf16.mxu0 0
  %1823 = vmatpush1.bf16.msra.mxu0 %v1806
  %1824 = vmatprep.subr.bf16.mxu0 0
  %1825 = vmatpush1.bf16.msra.mxu0 %v1807
  %1826 = vmatprep.subr.bf16.mxu0 0
  %1827 = vmatpush1.bf16.msra.mxu0 %v1808
  %1828 = vmatprep.subr.bf16.mxu0 0
  %1829 = vmatpush1.bf16.msra.mxu0 %v1809
  %1830 = vmatprep.subr.bf16.mxu0 0
  %1831 = vmatpush1.bf16.msra.mxu0 %v1810
  %1832 = vmatprep.subr.bf16.mxu0 0
  %1833 = vmatpush1.bf16.msra.mxu0 %v1811
  %1834 = vmatprep.subr.bf16.mxu0 0
  %1835 = vmatpush1.bf16.msra.mxu0 %v1812
  %1836 = vmatprep.subr.bf16.mxu0 0
  %1837 = vmatpush1.bf16.msra.mxu0 %v1813
  %1838 = vmatprep.subr.bf16.mxu0 0
  %1839 = vmatpush1.bf16.msra.mxu0 0
  %1840 = vmatprep.subr.bf16.mxu0 0
  %1841 = vmatpush1.bf16.msra.mxu0 0
  %1842 = vmatprep.subr.bf16.mxu0 0
  %1843 = vmatpush1.bf16.msra.mxu0 0
  %1844 = vmatprep.subr.bf16.mxu0 0
  %1845 = vmatpush1.bf16.msra.mxu0 0
  %1846 = vmatprep.subr.bf16.mxu0 0
  %1847 = vmatpush1.bf16.msra.mxu0 0
  %1848 = vmatprep.subr.bf16.mxu0 0
  %1849 = vmatpush1.bf16.msra.mxu0 0
  %1850 = vmatprep.subr.bf16.mxu0 0
  %1851 = vmatpush1.bf16.msra.mxu0 0
  %1852 = vmatprep.subr.bf16.mxu0 0
  %1853 = vmatpush1.bf16.msra.mxu0 0
  %1854 = vmatprep.mubr.bf16.mxu0 0
  %1855 = vmatmul.mubr.bf16.gmra.mrb[0].mxu0 %v1742
  %v1856 = vpop.f32.mrb[0].mxu0
  %v1857 = vadd.f32 0.0, %v1856
  %v1858 = vpop.f32.mrb[0].mxu0
  %v1859 = vpop.f32.mrb[0].mxu0
  %v1860 = vadd.f32 0.0, %v1859
  %v1861 = vpop.f32.mrb[0].mxu0
  %1862 = vmatprep.mubr.bf16.mxu0 0
  %1863 = vmatmul.mubr.bf16.gmra.mrb[0].mxu0 %v1743
  %v1864 = vpop.f32.mrb[0].mxu0
  %v1865 = vadd.f32 0.0, %v1864
  %v1866 = vpop.f32.mrb[0].mxu0
  %v1867 = vpop.f32.mrb[0].mxu0
  %v1868 = vadd.f32 0.0, %v1867
  %v1869 = vpop.f32.mrb[0].mxu0
  %1870 = vmatprep.mubr.bf16.mxu0 0
  %1871 = vmatmul.mubr.bf16.gmra.mrb[0].mxu0 %v1744
  %v1872 = vpop.f32.mrb[0].mxu0
  %v1873 = vadd.f32 0.0, %v1872
  %v1874 = vpop.f32.mrb[0].mxu0
  %v1875 = vpop.f32.mrb[0].mxu0
  %v1876 = vadd.f32 0.0, %v1875
  %v1877 = vpop.f32.mrb[0].mxu0
  %1878 = vmatprep.mubr.bf16.mxu0 0
  %1879 = vmatmul.mubr.bf16.gmra.mrb[0].mxu0 %v1745
  %v1880 = vpop.f32.mrb[0].mxu0
  %v1881 = vadd.f32 0.0, %v1880
  %v1882 = vpop.f32.mrb[0].mxu0
  %v1883 = vpop.f32.mrb[0].mxu0
  %v1884 = vadd.f32 0.0, %v1883
  %v1885 = vpop.f32.mrb[0].mxu0
  %1886 = vmatprep.mubr.bf16.mxu0 0
  %1887 = vmatmul.mubr.bf16.gmra.mrb[0].mxu0 %v1746
  %v1888 = vpop.f32.mrb[0].mxu0
  %v1889 = vadd.f32 0.0, %v1888
  %v1890 = vpop.f32.mrb[0].mxu0
  %v1891 = vpop.f32.mrb[0].mxu0
  %v1892 = vadd.f32 0.0, %v1891
  %v1893 = vpop.f32.mrb[0].mxu0
  %1894 = vmatprep.mubr.bf16.mxu0 0
  %1895 = vmatmul.mubr.bf16.gmra.mrb[0].mxu0 %v1747
  %v1896 = vpop.f32.mrb[0].mxu0
  %v1897 = vadd.f32 0.0, %v1896
  %v1898 = vpop.f32.mrb[0].mxu0
  %v1899 = vpop.f32.mrb[0].mxu0
  %v1900 = vadd.f32 0.0, %v1899
  %v1901 = vpop.f32.mrb[0].mxu0
  %1902 = vmatprep.mubr.bf16.mxu0 0
  %1903 = vmatmul.mubr.bf16.gmra.mrb[0].mxu0 %v1748
  %v1904 = vpop.f32.mrb[0].mxu0
  %v1905 = vadd.f32 0.0, %v1904
  %v1906 = vpop.f32.mrb[0].mxu0
  %v1907 = vpop.f32.mrb[0].mxu0
  %v1908 = vadd.f32 0.0, %v1907
  %v1909 = vpop.f32.mrb[0].mxu0
  %1910 = vmatprep.mubr.bf16.mxu0 0
  %1911 = vmatmul.mubr.bf16.gmra.mrb[0].mxu0 %v1749
  %v1912 = vpop.f32.mrb[0].mxu0
  %v1913 = vadd.f32 0.0, %v1912
  %v1914 = vpop.f32.mrb[0].mxu0
  %v1915 = vpop.f32.mrb[0].mxu0
  %v1916 = vadd.f32 0.0, %v1915
  %v1917 = vpop.f32.mrb[0].mxu0
  %1918 = vmatprep.mubr.bf16.mxu0 0
  %1919 = vmatmul.mubr.bf16.gmra.mrb[0].mxu0 %v1750
  %v1920 = vpop.f32.mrb[0].mxu0
  %v1921 = vadd.f32 0.0, %v1920
  %v1922 = vpop.f32.mrb[0].mxu0
  %v1923 = vpop.f32.mrb[0].mxu0
  %v1924 = vadd.f32 0.0, %v1923
  %v1925 = vpop.f32.mrb[0].mxu0
  %1926 = vmatprep.mubr.bf16.mxu0 0
  %1927 = vmatmul.mubr.bf16.gmra.mrb[0].mxu0 %v1751
  %v1928 = vpop.f32.mrb[0].mxu0
  %v1929 = vadd.f32 0.0, %v1928
  %v1930 = vpop.f32.mrb[0].mxu0
  %v1931 = vpop.f32.mrb[0].mxu0
  %v1932 = vadd.f32 0.0, %v1931
  %v1933 = vpop.f32.mrb[0].mxu0
  %1934 = vmatprep.mubr.bf16.mxu0 0
  %1935 = vmatmul.mubr.bf16.gmra.mrb[0].mxu0 %v1752
  %v1936 = vpop.f32.mrb[0].mxu0
  %v1937 = vadd.f32 0.0, %v1936
  %v1938 = vpop.f32.mrb[0].mxu0
  %v1939 = vpop.f32.mrb[0].mxu0
  %v1940 = vadd.f32 0.0, %v1939
  %v1941 = vpop.f32.mrb[0].mxu0
  %1942 = vmatprep.mubr.bf16.mxu0 0
  %1943 = vmatmul.mubr.bf16.gmra.mrb[0].mxu0 %v1753
  %v1944 = vpop.f32.mrb[0].mxu0
  %v1945 = vadd.f32 0.0, %v1944
  %v1946 = vpop.f32.mrb[0].mxu0
  %v1947 = vpop.f32.mrb[0].mxu0
  %v1948 = vadd.f32 0.0, %v1947
  %v1949 = vpop.f32.mrb[0].mxu0
  %1950 = vmatprep.mubr.bf16.mxu0 0
  %1951 = vmatmul.mubr.bf16.gmra.mrb[0].mxu0 %v1754
  %v1952 = vpop.f32.mrb[0].mxu0
  %v1953 = vadd.f32 0.0, %v1952
  %v1954 = vpop.f32.mrb[0].mxu0
  %v1955 = vpop.f32.mrb[0].mxu0
  %v1956 = vadd.f32 0.0, %v1955
  %v1957 = vpop.f32.mrb[0].mxu0
  %1958 = vmatprep.mubr.bf16.mxu0 0
  %1959 = vmatmul.mubr.bf16.gmra.mrb[0].mxu0 %v1755
  %v1960 = vpop.f32.mrb[0].mxu0
  %v1961 = vadd.f32 0.0, %v1960
  %v1962 = vpop.f32.mrb[0].mxu0
  %v1963 = vpop.f32.mrb[0].mxu0
  %v1964 = vadd.f32 0.0, %v1963
  %v1965 = vpop.f32.mrb[0].mxu0
  %1966 = vmatprep.mubr.bf16.mxu0 0
  %1967 = vmatmul.mubr.bf16.gmra.mrb[0].mxu0 %v1756
  %v1968 = vpop.f32.mrb[0].mxu0
  %v1969 = vadd.f32 0.0, %v1968
  %v1970 = vpop.f32.mrb[0].mxu0
  %v1971 = vpop.f32.mrb[0].mxu0
  %v1972 = vadd.f32 0.0, %v1971
  %v1973 = vpop.f32.mrb[0].mxu0
  %1974 = vmatprep.mubr.bf16.mxu0 0
  %1975 = vmatmul.mubr.bf16.gmra.mrb[0].mxu0 %v1757
  %v1976 = vpop.f32.mrb[0].mxu0
  %v1977 = vadd.f32 0.0, %v1976
  %v1978 = vpop.f32.mrb[0].mxu0
  %v1979 = vpop.f32.mrb[0].mxu0
  %v1980 = vadd.f32 0.0, %v1979
  %v1981 = vpop.f32.mrb[0].mxu0
  %1982 = vdwg.mxu0
  %v1983 = vadd.f32 %v1710, %v1857
  %v1984 = vadd.f32 %v1711, %v1860
  %v1985 = vadd.f32 %v1712, %v1865
  %v1986 = vadd.f32 %v1713, %v1868
  %v1987 = vadd.f32 %v1714, %v1873
  %v1988 = vadd.f32 %v1715, %v1876
  %v1989 = vadd.f32 %v1716, %v1881
  %v1990 = vadd.f32 %v1717, %v1884
  %v1991 = vadd.f32 %v1718, %v1889
  %v1992 = vadd.f32 %v1719, %v1892
  %v1993 = vadd.f32 %v1720, %v1897
  %v1994 = vadd.f32 %v1721, %v1900
  %v1995 = vadd.f32 %v1722, %v1905
  %v1996 = vadd.f32 %v1723, %v1908
  %v1997 = vadd.f32 %v1724, %v1913
  %v1998 = vadd.f32 %v1725, %v1916
  %v1999 = vadd.f32 %v1726, %v1921
  %v2000 = vadd.f32 %v1727, %v1924
  %v2001 = vadd.f32 %v1728, %v1929
  %v2002 = vadd.f32 %v1729, %v1932
  %v2003 = vadd.f32 %v1730, %v1937
  %v2004 = vadd.f32 %v1731, %v1940
  %v2005 = vadd.f32 %v1732, %v1945
  %v2006 = vadd.f32 %v1733, %v1948
  %v2007 = vadd.f32 %v1734, %v1953
  %v2008 = vadd.f32 %v1735, %v1956
  %v2009 = vadd.f32 %v1736, %v1961
  %v2010 = vadd.f32 %v1737, %v1964
  %v2011 = vadd.f32 %v1738, %v1969
  %v2012 = vadd.f32 %v1739, %v1972
  %v2013 = vadd.f32 %v1740, %v1977
  %v2014 = vadd.f32 %v1741, %v1980
  %2015 = vst [vmem:[#allocation6] sm:$0xff] %v1983
  %2016 = vst [vmem:[#allocation6 + $0x8] sm:$0xff] %v1984
  %2017 = vst [vmem:[#allocation6 + $0x10] sm:$0xff] %v1985
  %2018 = vst [vmem:[#allocation6 + $0x18] sm:$0xff] %v1986
  %2019 = vst [vmem:[#allocation6 + $0x20] sm:$0xff] %v1987
  %2020 = vst [vmem:[#allocation6 + $0x28] sm:$0xff] %v1988
  %2021 = vst [vmem:[#allocation6 + $0x30] sm:$0xff] %v1989
  %2022 = vst [vmem:[#allocation6 + $0x38] sm:$0xff] %v1990
  %2023 = vst [vmem:[#allocation6 + $0x40] sm:$0xff] %v1991
  %2024 = vst [vmem:[#allocation6 + $0x48] sm:$0xff] %v1992
  %2025 = vst [vmem:[#allocation6 + $0x50] sm:$0xff] %v1993
  %2026 = vst [vmem:[#allocation6 + $0x58] sm:$0xff] %v1994
  %2027 = vst [vmem:[#allocation6 + $0x60] sm:$0xff] %v1995
  %2028 = vst [vmem:[#allocation6 + $0x68] sm:$0xff] %v1996
  %2029 = vst [vmem:[#allocation6 + $0x70] sm:$0xff] %v1997
  %2030 = vst [vmem:[#allocation6 + $0x78] sm:$0xff] %v1998
  %2031 = vst [vmem:[#allocation6 + $0x80] sm:$0xff] %v1999
  %2032 = vst [vmem:[#allocation6 + $0x88] sm:$0xff] %v2000
  %2033 = vst [vmem:[#allocation6 + $0x90] sm:$0xff] %v2001
  %2034 = vst [vmem:[#allocation6 + $0x98] sm:$0xff] %v2002
  %2035 = vst [vmem:[#allocation6 + $0xa0] sm:$0xff] %v2003
  %2036 = vst [vmem:[#allocation6 + $0xa8] sm:$0xff] %v2004
  %2037 = vst [vmem:[#allocation6 + $0xb0] sm:$0xff] %v2005
  %2038 = vst [vmem:[#allocation6 + $0xb8] sm:$0xff] %v2006
  %2039 = vst [vmem:[#allocation6 + $0xc0] sm:$0xff] %v2007
  %2040 = vst [vmem:[#allocation6 + $0xc8] sm:$0xff] %v2008
  %2041 = vst [vmem:[#allocation6 + $0xd0] sm:$0xff] %v2009
  %2042 = vst [vmem:[#allocation6 + $0xd8] sm:$0xff] %v2010
  %2043 = vst [vmem:[#allocation6 + $0xe0] sm:$0xff] %v2011
  %2044 = vst [vmem:[#allocation6 + $0xe8] sm:$0xff] %v2012
  %2045 = vst [vmem:[#allocation6 + $0xf0] sm:$0xff] %v2013
  %2046 = vst [vmem:[#allocation6 + $0xf8] sm:$0xff] %v2014
  %v2047 = vld [vmem:[#allocation5 + $0x8] sm:$0xff]
  %v2048 = vld [vmem:[#allocation5 + $0x10] sm:$0xff]
  %v2049 = vld [vmem:[#allocation5 + $0x18] sm:$0xff]
  %v2050 = vld [vmem:[#allocation5 + $0x20] sm:$0xff]
  %v2051 = vld [vmem:[#allocation5 + $0x28] sm:$0xff]
  %v2052 = vld [vmem:[#allocation5 + $0x30] sm:$0xff]
  %v2053 = vld [vmem:[#allocation5 + $0x38] sm:$0xff]
  %v2054 = vld [vmem:[#allocation5 + $0x40] sm:$0xff]
  %v2055 = vld [vmem:[#allocation5 + $0x48] sm:$0xff]
  %v2056 = vld [vmem:[#allocation5 + $0x50] sm:$0xff]
  %v2057 = vld [vmem:[#allocation5 + $0x58] sm:$0xff]
  %v2058 = vld [vmem:[#allocation5 + $0x60] sm:$0xff]
  %v2059 = vld [vmem:[#allocation5 + $0x68] sm:$0xff]
  %v2060 = vld [vmem:[#allocation5 + $0x70] sm:$0xff]
  %v2061 = vld [vmem:[#allocation5 + $0x78] sm:$0xff]
  %v2062 = vld [vmem:[#allocation5 + $0x80] sm:$0xff]
  %v2063 = vld [vmem:[#allocation5 + $0x88] sm:$0xff]
  %v2064 = vld [vmem:[#allocation5 + $0x90] sm:$0xff]
  %v2065 = vld [vmem:[#allocation5 + $0x98] sm:$0xff]
  %v2066 = vld [vmem:[#allocation5 + $0xa0] sm:$0xff]
  %v2067 = vld [vmem:[#allocation5 + $0xa8] sm:$0xff]
  %v2068 = vld [vmem:[#allocation5 + $0xb0] sm:$0xff]
  %v2069 = vld [vmem:[#allocation5 + $0xb8] sm:$0xff]
  %v2070 = vld [vmem:[#allocation5 + $0xc0] sm:$0xff]
  %v2071 = vld [vmem:[#allocation5 + $0xc8] sm:$0xff]
  %v2072 = vld [vmem:[#allocation5 + $0xd0] sm:$0xff]
  %v2073 = vld [vmem:[#allocation5 + $0xd8] sm:$0xff]
  %v2074 = vld [vmem:[#allocation5 + $0xe0] sm:$0xff]
  %v2075 = vld [vmem:[#allocation5 + $0xe8] sm:$0xff]
  %v2076 = vld [vmem:[#allocation5 + $0xf0] sm:$0xff]
  %v2077 = vld [vmem:[#allocation5 + $0xf8] sm:$0xff]
  %v2078 = vld [vmem:[#allocation5 + $0x100] sm:$0xff]
  %v2079 = vld [vmem:[#allocation6] sm:$0xff]
  %v2080 = vld [vmem:[#allocation6 + $0x8] sm:$0xff]
  %v2081 = vld [vmem:[#allocation6 + $0x10] sm:$0xff]
  %v2082 = vld [vmem:[#allocation6 + $0x18] sm:$0xff]
  %v2083 = vld [vmem:[#allocation6 + $0x20] sm:$0xff]
  %v2084 = vld [vmem:[#allocation6 + $0x28] sm:$0xff]
  %v2085 = vld [vmem:[#allocation6 + $0x30] sm:$0xff]
  %v2086 = vld [vmem:[#allocation6 + $0x38] sm:$0xff]
  %v2087 = vld [vmem:[#allocation6 + $0x40] sm:$0xff]
  %v2088 = vld [vmem:[#allocation6 + $0x48] sm:$0xff]
  %v2089 = vld [vmem:[#allocation6 + $0x50] sm:$0xff]
  %v2090 = vld [vmem:[#allocation6 + $0x58] sm:$0xff]
  %v2091 = vld [vmem:[#allocation6 + $0x60] sm:$0xff]
  %v2092 = vld [vmem:[#allocation6 + $0x68] sm:$0xff]
  %v2093 = vld [vmem:[#allocation6 + $0x70] sm:$0xff]
  %v2094 = vld [vmem:[#allocation6 + $0x78] sm:$0xff]
  %v2095 = vld [vmem:[#allocation6 + $0x80] sm:$0xff]
  %v2096 = vld [vmem:[#allocation6 + $0x88] sm:$0xff]
  %v2097 = vld [vmem:[#allocation6 + $0x90] sm:$0xff]
  %v2098 = vld [vmem:[#allocation6 + $0x98] sm:$0xff]
  %v2099 = vld [vmem:[#allocation6 + $0xa0] sm:$0xff]
  %v2100 = vld [vmem:[#allocation6 + $0xa8] sm:$0xff]
  %v2101 = vld [vmem:[#allocation6 + $0xb0] sm:$0xff]
  %v2102 = vld [vmem:[#allocation6 + $0xb8] sm:$0xff]
  %v2103 = vld [vmem:[#allocation6 + $0xc0] sm:$0xff]
  %v2104 = vld [vmem:[#allocation6 + $0xc8] sm:$0xff]
  %v2105 = vld [vmem:[#allocation6 + $0xd0] sm:$0xff]
  %v2106 = vld [vmem:[#allocation6 + $0xd8] sm:$0xff]
  %v2107 = vld [vmem:[#allocation6 + $0xe0] sm:$0xff]
  %v2108 = vld [vmem:[#allocation6 + $0xe8] sm:$0xff]
  %v2109 = vld [vmem:[#allocation6 + $0xf0] sm:$0xff]
  %v2110 = vld [vmem:[#allocation6 + $0xf8] sm:$0xff]
  %v2111 = vpack.c.bf16 %v2048, %v2047
  %v2112 = vpack.c.bf16 %v2050, %v2049
  %v2113 = vpack.c.bf16 %v2052, %v2051
  %v2114 = vpack.c.bf16 %v2054, %v2053
  %v2115 = vpack.c.bf16 %v2056, %v2055
  %v2116 = vpack.c.bf16 %v2058, %v2057
  %v2117 = vpack.c.bf16 %v2060, %v2059
  %v2118 = vpack.c.bf16 %v2062, %v2061
  %v2119 = vpack.c.bf16 %v2064, %v2063
  %v2120 = vpack.c.bf16 %v2066, %v2065
  %v2121 = vpack.c.bf16 %v2068, %v2067
  %v2122 = vpack.c.bf16 %v2070, %v2069
  %v2123 = vpack.c.bf16 %v2072, %v2071
  %v2124 = vpack.c.bf16 %v2074, %v2073
  %v2125 = vpack.c.bf16 %v2076, %v2075
  %v2126 = vpack.c.bf16 %v2078, %v2077
  %v2127 = vld [vmem:[%s2 + $0x40] sm:$0xf]
  %v2128 = vld [vmem:[%s2 + $0x44] sm:$0xf]
  %v2129 = vld [vmem:[%s2 + $0x48] sm:$0xf]
  %v2130 = vld [vmem:[%s2 + $0x4c] sm:$0xf]
  %v2131 = vld [vmem:[%s2 + $0x50] sm:$0xf]
  %v2132 = vld [vmem:[%s2 + $0x54] sm:$0xf]
  %v2133 = vld [vmem:[%s2 + $0x58] sm:$0xf]
  %v2134 = vld [vmem:[%s2 + $0x5c] sm:$0xf]
  %v2135 = vld [vmem:[%s2 + $0x60] sm:$0xf]
  %v2136 = vld [vmem:[%s2 + $0x64] sm:$0xf]
  %v2137 = vld [vmem:[%s2 + $0x68] sm:$0xf]
  %v2138 = vld [vmem:[%s2 + $0x6c] sm:$0xf]
  %v2139 = vld [vmem:[%s2 + $0x70] sm:$0xf]
  %v2140 = vld [vmem:[%s2 + $0x74] sm:$0xf]
  %v2141 = vld [vmem:[%s2 + $0x78] sm:$0xf]
  %v2142 = vld [vmem:[%s2 + $0x7c] sm:$0xf]
  %v2159 = vunpack.c.l.b16 %v2127
  %v2160 = vunpack.c.l.b16 %v2128
  %v2161 = vunpack.c.l.b16 %v2129
  %v2162 = vunpack.c.l.b16 %v2130
  %v2163 = vunpack.c.l.b16 %v2131
  %v2164 = vunpack.c.l.b16 %v2132
  %v2165 = vunpack.c.l.b16 %v2133
  %v2166 = vunpack.c.l.b16 %v2134
  %v2167 = vunpack.c.l.b16 %v2135
  %v2168 = vunpack.c.l.b16 %v2136
  %v2169 = vunpack.c.l.b16 %v2137
  %v2170 = vunpack.c.l.b16 %v2138
  %v2171 = vunpack.c.l.b16 %v2139
  %v2172 = vunpack.c.l.b16 %v2140
  %v2173 = vunpack.c.l.b16 %v2141
  %v2174 = vunpack.c.l.b16 %v2142
  %v2175 = vpack.c.b16 %v2160, %v2159
  %v2176 = vpack.c.b16 %v2162, %v2161
  %v2177 = vpack.c.b16 %v2164, %v2163
  %v2178 = vpack.c.b16 %v2166, %v2165
  %v2179 = vpack.c.b16 %v2168, %v2167
  %v2180 = vpack.c.b16 %v2170, %v2169
  %v2181 = vpack.c.b16 %v2172, %v2171
  %v2182 = vpack.c.b16 %v2174, %v2173
  %2191 = vmatprep.subr.bf16.mxu0 0
  %2192 = vmatpush1.bf16.msra.mxu0 %v2175
  %2193 = vmatprep.subr.bf16.mxu0 0
  %2194 = vmatpush1.bf16.msra.mxu0 %v2176
  %2195 = vmatprep.subr.bf16.mxu0 0
  %2196 = vmatpush1.bf16.msra.mxu0 %v2177
  %2197 = vmatprep.subr.bf16.mxu0 0
  %2198 = vmatpush1.bf16.msra.mxu0 %v2178
  %2199 = vmatprep.subr.bf16.mxu0 0
  %2200 = vmatpush1.bf16.msra.mxu0 %v2179
  %2201 = vmatprep.subr.bf16.mxu0 0
  %2202 = vmatpush1.bf16.msra.mxu0 %v2180
  %2203 = vmatprep.subr.bf16.mxu0 0
  %2204 = vmatpush1.bf16.msra.mxu0 %v2181
  %2205 = vmatprep.subr.bf16.mxu0 0
  %2206 = vmatpush1.bf16.msra.mxu0 %v2182
  %2207 = vmatprep.subr.bf16.mxu0 0
  %2208 = vmatpush1.bf16.msra.mxu0 0
  %2209 = vmatprep.subr.bf16.mxu0 0
  %2210 = vmatpush1.bf16.msra.mxu0 0
  %2211 = vmatprep.subr.bf16.mxu0 0
  %2212 = vmatpush1.bf16.msra.mxu0 0
  %2213 = vmatprep.subr.bf16.mxu0 0
  %2214 = vmatpush1.bf16.msra.mxu0 0
  %2215 = vmatprep.subr.bf16.mxu0 0
  %2216 = vmatpush1.bf16.msra.mxu0 0
  %2217 = vmatprep.subr.bf16.mxu0 0
  %2218 = vmatpush1.bf16.msra.mxu0 0
  %2219 = vmatprep.subr.bf16.mxu0 0
  %2220 = vmatpush1.bf16.msra.mxu0 0
  %2221 = vmatprep.subr.bf16.mxu0 0
  %2222 = vmatpush1.bf16.msra.mxu0 0
  %2223 = vmatprep.mubr.bf16.mxu0 0
  %2224 = vmatmul.mubr.bf16.gmra.mrb[0].mxu0 %v2111
  %v2225 = vpop.f32.mrb[0].mxu0
  %v2226 = vadd.f32 0.0, %v2225
  %v2227 = vpop.f32.mrb[0].mxu0
  %v2228 = vpop.f32.mrb[0].mxu0
  %v2229 = vadd.f32 0.0, %v2228
  %v2230 = vpop.f32.mrb[0].mxu0
  %2231 = vmatprep.mubr.bf16.mxu0 0
  %2232 = vmatmul.mubr.bf16.gmra.mrb[0].mxu0 %v2112
  %v2233 = vpop.f32.mrb[0].mxu0
  %v2234 = vadd.f32 0.0, %v2233
  %v2235 = vpop.f32.mrb[0].mxu0
  %v2236 = vpop.f32.mrb[0].mxu0
  %v2237 = vadd.f32 0.0, %v2236
  %v2238 = vpop.f32.mrb[0].mxu0
  %2239 = vmatprep.mubr.bf16.mxu0 0
  %2240 = vmatmul.mubr.bf16.gmra.mrb[0].mxu0 %v2113
  %v2241 = vpop.f32.mrb[0].mxu0
  %v2242 = vadd.f32 0.0, %v2241
  %v2243 = vpop.f32.mrb[0].mxu0
  %v2244 = vpop.f32.mrb[0].mxu0
  %v2245 = vadd.f32 0.0, %v2244
  %v2246 = vpop.f32.mrb[0].mxu0
  %2247 = vmatprep.mubr.bf16.mxu0 0
  %2248 = vmatmul.mubr.bf16.gmra.mrb[0].mxu0 %v2114
  %v2249 = vpop.f32.mrb[0].mxu0
  %v2250 = vadd.f32 0.0, %v2249
  %v2251 = vpop.f32.mrb[0].mxu0
  %v2252 = vpop.f32.mrb[0].mxu0
  %v2253 = vadd.f32 0.0, %v2252
  %v2254 = vpop.f32.mrb[0].mxu0
  %2255 = vmatprep.mubr.bf16.mxu0 0
  %2256 = vmatmul.mubr.bf16.gmra.mrb[0].mxu0 %v2115
  %v2257 = vpop.f32.mrb[0].mxu0
  %v2258 = vadd.f32 0.0, %v2257
  %v2259 = vpop.f32.mrb[0].mxu0
  %v2260 = vpop.f32.mrb[0].mxu0
  %v2261 = vadd.f32 0.0, %v2260
  %v2262 = vpop.f32.mrb[0].mxu0
  %2263 = vmatprep.mubr.bf16.mxu0 0
  %2264 = vmatmul.mubr.bf16.gmra.mrb[0].mxu0 %v2116
  %v2265 = vpop.f32.mrb[0].mxu0
  %v2266 = vadd.f32 0.0, %v2265
  %v2267 = vpop.f32.mrb[0].mxu0
  %v2268 = vpop.f32.mrb[0].mxu0
  %v2269 = vadd.f32 0.0, %v2268
  %v2270 = vpop.f32.mrb[0].mxu0
  %2271 = vmatprep.mubr.bf16.mxu0 0
  %2272 = vmatmul.mubr.bf16.gmra.mrb[0].mxu0 %v2117
  %v2273 = vpop.f32.mrb[0].mxu0
  %v2274 = vadd.f32 0.0, %v2273
  %v2275 = vpop.f32.mrb[0].mxu0
  %v2276 = vpop.f32.mrb[0].mxu0
  %v2277 = vadd.f32 0.0, %v2276
  %v2278 = vpop.f32.mrb[0].mxu0
  %2279 = vmatprep.mubr.bf16.mxu0 0
  %2280 = vmatmul.mubr.bf16.gmra.mrb[0].mxu0 %v2118
  %v2281 = vpop.f32.mrb[0].mxu0
  %v2282 = vadd.f32 0.0, %v2281
  %v2283 = vpop.f32.mrb[0].mxu0
  %v2284 = vpop.f32.mrb[0].mxu0
  %v2285 = vadd.f32 0.0, %v2284
  %v2286 = vpop.f32.mrb[0].mxu0
  %2287 = vmatprep.mubr.bf16.mxu0 0
  %2288 = vmatmul.mubr.bf16.gmra.mrb[0].mxu0 %v2119
  %v2289 = vpop.f32.mrb[0].mxu0
  %v2290 = vadd.f32 0.0, %v2289
  %v2291 = vpop.f32.mrb[0].mxu0
  %v2292 = vpop.f32.mrb[0].mxu0
  %v2293 = vadd.f32 0.0, %v2292
  %v2294 = vpop.f32.mrb[0].mxu0
  %2295 = vmatprep.mubr.bf16.mxu0 0
  %2296 = vmatmul.mubr.bf16.gmra.mrb[0].mxu0 %v2120
  %v2297 = vpop.f32.mrb[0].mxu0
  %v2298 = vadd.f32 0.0, %v2297
  %v2299 = vpop.f32.mrb[0].mxu0
  %v2300 = vpop.f32.mrb[0].mxu0
  %v2301 = vadd.f32 0.0, %v2300
  %v2302 = vpop.f32.mrb[0].mxu0
  %2303 = vmatprep.mubr.bf16.mxu0 0
  %2304 = vmatmul.mubr.bf16.gmra.mrb[0].mxu0 %v2121
  %v2305 = vpop.f32.mrb[0].mxu0
  %v2306 = vadd.f32 0.0, %v2305
  %v2307 = vpop.f32.mrb[0].mxu0
  %v2308 = vpop.f32.mrb[0].mxu0
  %v2309 = vadd.f32 0.0, %v2308
  %v2310 = vpop.f32.mrb[0].mxu0
  %2311 = vmatprep.mubr.bf16.mxu0 0
  %2312 = vmatmul.mubr.bf16.gmra.mrb[0].mxu0 %v2122
  %v2313 = vpop.f32.mrb[0].mxu0
  %v2314 = vadd.f32 0.0, %v2313
  %v2315 = vpop.f32.mrb[0].mxu0
  %v2316 = vpop.f32.mrb[0].mxu0
  %v2317 = vadd.f32 0.0, %v2316
  %v2318 = vpop.f32.mrb[0].mxu0
  %2319 = vmatprep.mubr.bf16.mxu0 0
  %2320 = vmatmul.mubr.bf16.gmra.mrb[0].mxu0 %v2123
  %v2321 = vpop.f32.mrb[0].mxu0
  %v2322 = vadd.f32 0.0, %v2321
  %v2323 = vpop.f32.mrb[0].mxu0
  %v2324 = vpop.f32.mrb[0].mxu0
  %v2325 = vadd.f32 0.0, %v2324
  %v2326 = vpop.f32.mrb[0].mxu0
  %2327 = vmatprep.mubr.bf16.mxu0 0
  %2328 = vmatmul.mubr.bf16.gmra.mrb[0].mxu0 %v2124
  %v2329 = vpop.f32.mrb[0].mxu0
  %v2330 = vadd.f32 0.0, %v2329
  %v2331 = vpop.f32.mrb[0].mxu0
  %v2332 = vpop.f32.mrb[0].mxu0
  %v2333 = vadd.f32 0.0, %v2332
  %v2334 = vpop.f32.mrb[0].mxu0
  %2335 = vmatprep.mubr.bf16.mxu0 0
  %2336 = vmatmul.mubr.bf16.gmra.mrb[0].mxu0 %v2125
  %v2337 = vpop.f32.mrb[0].mxu0
  %v2338 = vadd.f32 0.0, %v2337
  %v2339 = vpop.f32.mrb[0].mxu0
  %v2340 = vpop.f32.mrb[0].mxu0
  %v2341 = vadd.f32 0.0, %v2340
  %v2342 = vpop.f32.mrb[0].mxu0
  %2343 = vmatprep.mubr.bf16.mxu0 0
  %2344 = vmatmul.mubr.bf16.gmra.mrb[0].mxu0 %v2126
  %v2345 = vpop.f32.mrb[0].mxu0
  %v2346 = vadd.f32 0.0, %v2345
  %v2347 = vpop.f32.mrb[0].mxu0
  %v2348 = vpop.f32.mrb[0].mxu0
  %v2349 = vadd.f32 0.0, %v2348
  %v2350 = vpop.f32.mrb[0].mxu0
  %2351 = vdwg.mxu0
  %v2352 = vadd.f32 %v2079, %v2226
  %v2353 = vadd.f32 %v2080, %v2229
  %v2354 = vadd.f32 %v2081, %v2234
  %v2355 = vadd.f32 %v2082, %v2237
  %v2356 = vadd.f32 %v2083, %v2242
  %v2357 = vadd.f32 %v2084, %v2245
  %v2358 = vadd.f32 %v2085, %v2250
  %v2359 = vadd.f32 %v2086, %v2253
  %v2360 = vadd.f32 %v2087, %v2258
  %v2361 = vadd.f32 %v2088, %v2261
  %v2362 = vadd.f32 %v2089, %v2266
  %v2363 = vadd.f32 %v2090, %v2269
  %v2364 = vadd.f32 %v2091, %v2274
  %v2365 = vadd.f32 %v2092, %v2277
  %v2366 = vadd.f32 %v2093, %v2282
  %v2367 = vadd.f32 %v2094, %v2285
  %v2368 = vadd.f32 %v2095, %v2290
  %v2369 = vadd.f32 %v2096, %v2293
  %v2370 = vadd.f32 %v2097, %v2298
  %v2371 = vadd.f32 %v2098, %v2301
  %v2372 = vadd.f32 %v2099, %v2306
  %v2373 = vadd.f32 %v2100, %v2309
  %v2374 = vadd.f32 %v2101, %v2314
  %v2375 = vadd.f32 %v2102, %v2317
  %v2376 = vadd.f32 %v2103, %v2322
  %v2377 = vadd.f32 %v2104, %v2325
  %v2378 = vadd.f32 %v2105, %v2330
  %v2379 = vadd.f32 %v2106, %v2333
  %v2380 = vadd.f32 %v2107, %v2338
  %v2381 = vadd.f32 %v2108, %v2341
  %v2382 = vadd.f32 %v2109, %v2346
  %v2383 = vadd.f32 %v2110, %v2349
  %2384 = vst [vmem:[#allocation6] sm:$0xff] %v2352
  %2385 = vst [vmem:[#allocation6 + $0x8] sm:$0xff] %v2353
  %2386 = vst [vmem:[#allocation6 + $0x10] sm:$0xff] %v2354
  %2387 = vst [vmem:[#allocation6 + $0x18] sm:$0xff] %v2355
  %2388 = vst [vmem:[#allocation6 + $0x20] sm:$0xff] %v2356
  %2389 = vst [vmem:[#allocation6 + $0x28] sm:$0xff] %v2357
  %2390 = vst [vmem:[#allocation6 + $0x30] sm:$0xff] %v2358
  %2391 = vst [vmem:[#allocation6 + $0x38] sm:$0xff] %v2359
  %2392 = vst [vmem:[#allocation6 + $0x40] sm:$0xff] %v2360
  %2393 = vst [vmem:[#allocation6 + $0x48] sm:$0xff] %v2361
  %2394 = vst [vmem:[#allocation6 + $0x50] sm:$0xff] %v2362
  %2395 = vst [vmem:[#allocation6 + $0x58] sm:$0xff] %v2363
  %2396 = vst [vmem:[#allocation6 + $0x60] sm:$0xff] %v2364
  %2397 = vst [vmem:[#allocation6 + $0x68] sm:$0xff] %v2365
  %2398 = vst [vmem:[#allocation6 + $0x70] sm:$0xff] %v2366
  %2399 = vst [vmem:[#allocation6 + $0x78] sm:$0xff] %v2367
  %2400 = vst [vmem:[#allocation6 + $0x80] sm:$0xff] %v2368
  %2401 = vst [vmem:[#allocation6 + $0x88] sm:$0xff] %v2369
  %2402 = vst [vmem:[#allocation6 + $0x90] sm:$0xff] %v2370
  %2403 = vst [vmem:[#allocation6 + $0x98] sm:$0xff] %v2371
  %2404 = vst [vmem:[#allocation6 + $0xa0] sm:$0xff] %v2372
  %2405 = vst [vmem:[#allocation6 + $0xa8] sm:$0xff] %v2373
  %2406 = vst [vmem:[#allocation6 + $0xb0] sm:$0xff] %v2374
  %2407 = vst [vmem:[#allocation6 + $0xb8] sm:$0xff] %v2375
  %2408 = vst [vmem:[#allocation6 + $0xc0] sm:$0xff] %v2376
  %2409 = vst [vmem:[#allocation6 + $0xc8] sm:$0xff] %v2377
  %2410 = vst [vmem:[#allocation6 + $0xd0] sm:$0xff] %v2378
  %2411 = vst [vmem:[#allocation6 + $0xd8] sm:$0xff] %v2379
  %2412 = vst [vmem:[#allocation6 + $0xe0] sm:$0xff] %v2380
  %2413 = vst [vmem:[#allocation6 + $0xe8] sm:$0xff] %v2381
  %2414 = vst [vmem:[#allocation6 + $0xf0] sm:$0xff] %v2382
  %2415 = vst [vmem:[#allocation6 + $0xf8] sm:$0xff] %v2383
  %v2416 = vld [vmem:[#allocation5 + $0x9] sm:$0xff]
  %v2417 = vld [vmem:[#allocation5 + $0x11] sm:$0xff]
  %v2418 = vld [vmem:[#allocation5 + $0x19] sm:$0xff]
  %v2419 = vld [vmem:[#allocation5 + $0x21] sm:$0xff]
  %v2420 = vld [vmem:[#allocation5 + $0x29] sm:$0xff]
  %v2421 = vld [vmem:[#allocation5 + $0x31] sm:$0xff]
  %v2422 = vld [vmem:[#allocation5 + $0x39] sm:$0xff]
  %v2423 = vld [vmem:[#allocation5 + $0x41] sm:$0xff]
  %v2424 = vld [vmem:[#allocation5 + $0x49] sm:$0xff]
  %v2425 = vld [vmem:[#allocation5 + $0x51] sm:$0xff]
  %v2426 = vld [vmem:[#allocation5 + $0x59] sm:$0xff]
  %v2427 = vld [vmem:[#allocation5 + $0x61] sm:$0xff]
  %v2428 = vld [vmem:[#allocation5 + $0x69] sm:$0xff]
  %v2429 = vld [vmem:[#allocation5 + $0x71] sm:$0xff]
  %v2430 = vld [vmem:[#allocation5 + $0x79] sm:$0xff]
  %v2431 = vld [vmem:[#allocation5 + $0x81] sm:$0xff]
  %v2432 = vld [vmem:[#allocation5 + $0x89] sm:$0xff]
  %v2433 = vld [vmem:[#allocation5 + $0x91] sm:$0xff]
  %v2434 = vld [vmem:[#allocation5 + $0x99] sm:$0xff]
  %v2435 = vld [vmem:[#allocation5 + $0xa1] sm:$0xff]
  %v2436 = vld [vmem:[#allocation5 + $0xa9] sm:$0xff]
  %v2437 = vld [vmem:[#allocation5 + $0xb1] sm:$0xff]
  %v2438 = vld [vmem:[#allocation5 + $0xb9] sm:$0xff]
  %v2439 = vld [vmem:[#allocation5 + $0xc1] sm:$0xff]
  %v2440 = vld [vmem:[#allocation5 + $0xc9] sm:$0xff]
  %v2441 = vld [vmem:[#allocation5 + $0xd1] sm:$0xff]
  %v2442 = vld [vmem:[#allocation5 + $0xd9] sm:$0xff]
  %v2443 = vld [vmem:[#allocation5 + $0xe1] sm:$0xff]
  %v2444 = vld [vmem:[#allocation5 + $0xe9] sm:$0xff]
  %v2445 = vld [vmem:[#allocation5 + $0xf1] sm:$0xff]
  %v2446 = vld [vmem:[#allocation5 + $0xf9] sm:$0xff]
  %v2447 = vld [vmem:[#allocation5 + $0x101] sm:$0xff]
  %v2448 = vmul.f32 %v2416, %v1404
  %v2449 = vmul.f32 %v2417, %v1405
  %v2450 = vmul.f32 %v2418, %v1406
  %v2451 = vmul.f32 %v2419, %v1407
  %v2452 = vmul.f32 %v2420, %v1408
  %v2453 = vmul.f32 %v2421, %v1409
  %v2454 = vmul.f32 %v2422, %v1410
  %v2455 = vmul.f32 %v2423, %v1411
  %v2456 = vmul.f32 %v2424, %v1412
  %v2457 = vmul.f32 %v2425, %v1413
  %v2458 = vmul.f32 %v2426, %v1414
  %v2459 = vmul.f32 %v2427, %v1415
  %v2460 = vmul.f32 %v2428, %v1416
  %v2461 = vmul.f32 %v2429, %v1417
  %v2462 = vmul.f32 %v2430, %v1418
  %v2463 = vmul.f32 %v2431, %v1419
  %v2464 = vmul.f32 %v2432, %v1420
  %v2465 = vmul.f32 %v2433, %v1421
  %v2466 = vmul.f32 %v2434, %v1422
  %v2467 = vmul.f32 %v2435, %v1423
  %v2468 = vmul.f32 %v2436, %v1424
  %v2469 = vmul.f32 %v2437, %v1425
  %v2470 = vmul.f32 %v2438, %v1426
  %v2471 = vmul.f32 %v2439, %v1427
  %v2472 = vmul.f32 %v2440, %v1428
  %v2473 = vmul.f32 %v2441, %v1429
  %v2474 = vmul.f32 %v2442, %v1430
  %v2475 = vmul.f32 %v2443, %v1431
  %v2476 = vmul.f32 %v2444, %v1432
  %v2477 = vmul.f32 %v2445, %v1433
  %v2478 = vmul.f32 %v2446, %v1434
  %v2479 = vmul.f32 %v2447, %v1435
  %v2480 = vld [vmem:[#allocation6] sm:$0xff]
  %v2481 = vld [vmem:[#allocation6 + $0x8] sm:$0xff]
  %v2482 = vld [vmem:[#allocation6 + $0x10] sm:$0xff]
  %v2483 = vld [vmem:[#allocation6 + $0x18] sm:$0xff]
  %v2484 = vld [vmem:[#allocation6 + $0x20] sm:$0xff]
  %v2485 = vld [vmem:[#allocation6 + $0x28] sm:$0xff]
  %v2486 = vld [vmem:[#allocation6 + $0x30] sm:$0xff]
  %v2487 = vld [vmem:[#allocation6 + $0x38] sm:$0xff]
  %v2488 = vld [vmem:[#allocation6 + $0x40] sm:$0xff]
  %v2489 = vld [vmem:[#allocation6 + $0x48] sm:$0xff]
  %v2490 = vld [vmem:[#allocation6 + $0x50] sm:$0xff]
  %v2491 = vld [vmem:[#allocation6 + $0x58] sm:$0xff]
  %v2492 = vld [vmem:[#allocation6 + $0x60] sm:$0xff]
  %v2493 = vld [vmem:[#allocation6 + $0x68] sm:$0xff]
  %v2494 = vld [vmem:[#allocation6 + $0x70] sm:$0xff]
  %v2495 = vld [vmem:[#allocation6 + $0x78] sm:$0xff]
  %v2496 = vld [vmem:[#allocation6 + $0x80] sm:$0xff]
  %v2497 = vld [vmem:[#allocation6 + $0x88] sm:$0xff]
  %v2498 = vld [vmem:[#allocation6 + $0x90] sm:$0xff]
  %v2499 = vld [vmem:[#allocation6 + $0x98] sm:$0xff]
  %v2500 = vld [vmem:[#allocation6 + $0xa0] sm:$0xff]
  %v2501 = vld [vmem:[#allocation6 + $0xa8] sm:$0xff]
  %v2502 = vld [vmem:[#allocation6 + $0xb0] sm:$0xff]
  %v2503 = vld [vmem:[#allocation6 + $0xb8] sm:$0xff]
  %v2504 = vld [vmem:[#allocation6 + $0xc0] sm:$0xff]
  %v2505 = vld [vmem:[#allocation6 + $0xc8] sm:$0xff]
  %v2506 = vld [vmem:[#allocation6 + $0xd0] sm:$0xff]
  %v2507 = vld [vmem:[#allocation6 + $0xd8] sm:$0xff]
  %v2508 = vld [vmem:[#allocation6 + $0xe0] sm:$0xff]
  %v2509 = vld [vmem:[#allocation6 + $0xe8] sm:$0xff]
  %v2510 = vld [vmem:[#allocation6 + $0xf0] sm:$0xff]
  %v2511 = vld [vmem:[#allocation6 + $0xf8] sm:$0xff]
  %v2512 = vpack.c.bf16 %v2449, %v2448
  %v2513 = vpack.c.bf16 %v2451, %v2450
  %v2514 = vpack.c.bf16 %v2453, %v2452
  %v2515 = vpack.c.bf16 %v2455, %v2454
  %v2516 = vpack.c.bf16 %v2457, %v2456
  %v2517 = vpack.c.bf16 %v2459, %v2458
  %v2518 = vpack.c.bf16 %v2461, %v2460
  %v2519 = vpack.c.bf16 %v2463, %v2462
  %v2520 = vpack.c.bf16 %v2465, %v2464
  %v2521 = vpack.c.bf16 %v2467, %v2466
  %v2522 = vpack.c.bf16 %v2469, %v2468
  %v2523 = vpack.c.bf16 %v2471, %v2470
  %v2524 = vpack.c.bf16 %v2473, %v2472
  %v2525 = vpack.c.bf16 %v2475, %v2474
  %v2526 = vpack.c.bf16 %v2477, %v2476
  %v2527 = vpack.c.bf16 %v2479, %v2478
  %v2528 = vld [vmem:[%s2 + $0x80] sm:$0xf]
  %v2529 = vld [vmem:[%s2 + $0x84] sm:$0xf]
  %v2530 = vld [vmem:[%s2 + $0x88] sm:$0xf]
  %v2531 = vld [vmem:[%s2 + $0x8c] sm:$0xf]
  %v2532 = vld [vmem:[%s2 + $0x90] sm:$0xf]
  %v2533 = vld [vmem:[%s2 + $0x94] sm:$0xf]
  %v2534 = vld [vmem:[%s2 + $0x98] sm:$0xf]
  %v2535 = vld [vmem:[%s2 + $0x9c] sm:$0xf]
  %v2536 = vld [vmem:[%s2 + $0xa0] sm:$0xf]
  %v2537 = vld [vmem:[%s2 + $0xa4] sm:$0xf]
  %v2538 = vld [vmem:[%s2 + $0xa8] sm:$0xf]
  %v2539 = vld [vmem:[%s2 + $0xac] sm:$0xf]
  %v2540 = vld [vmem:[%s2 + $0xb0] sm:$0xf]
  %v2541 = vld [vmem:[%s2 + $0xb4] sm:$0xf]
  %v2542 = vld [vmem:[%s2 + $0xb8] sm:$0xf]
  %v2543 = vld [vmem:[%s2 + $0xbc] sm:$0xf]
  %v2560 = vunpack.c.l.b16 %v2528
  %v2561 = vunpack.c.l.b16 %v2529
  %v2562 = vunpack.c.l.b16 %v2530
  %v2563 = vunpack.c.l.b16 %v2531
  %v2564 = vunpack.c.l.b16 %v2532
  %v2565 = vunpack.c.l.b16 %v2533
  %v2566 = vunpack.c.l.b16 %v2534
  %v2567 = vunpack.c.l.b16 %v2535
  %v2568 = vunpack.c.l.b16 %v2536
  %v2569 = vunpack.c.l.b16 %v2537
  %v2570 = vunpack.c.l.b16 %v2538
  %v2571 = vunpack.c.l.b16 %v2539
  %v2572 = vunpack.c.l.b16 %v2540
  %v2573 = vunpack.c.l.b16 %v2541
  %v2574 = vunpack.c.l.b16 %v2542
  %v2575 = vunpack.c.l.b16 %v2543
  %v2576 = vpack.c.b16 %v2561, %v2560
  %v2577 = vpack.c.b16 %v2563, %v2562
  %v2578 = vpack.c.b16 %v2565, %v2564
  %v2579 = vpack.c.b16 %v2567, %v2566
  %v2580 = vpack.c.b16 %v2569, %v2568
  %v2581 = vpack.c.b16 %v2571, %v2570
  %v2582 = vpack.c.b16 %v2573, %v2572
  %v2583 = vpack.c.b16 %v2575, %v2574
  %2592 = vmatprep.subr.bf16.mxu0 0
  %2593 = vmatpush1.bf16.msra.mxu0 %v2576
  %2594 = vmatprep.subr.bf16.mxu0 0
  %2595 = vmatpush1.bf16.msra.mxu0 %v2577
  %2596 = vmatprep.subr.bf16.mxu0 0
  %2597 = vmatpush1.bf16.msra.mxu0 %v2578
  %2598 = vmatprep.subr.bf16.mxu0 0
  %2599 = vmatpush1.bf16.msra.mxu0 %v2579
  %2600 = vmatprep.subr.bf16.mxu0 0
  %2601 = vmatpush1.bf16.msra.mxu0 %v2580
  %2602 = vmatprep.subr.bf16.mxu0 0
  %2603 = vmatpush1.bf16.msra.mxu0 %v2581
  %2604 = vmatprep.subr.bf16.mxu0 0
  %2605 = vmatpush1.bf16.msra.mxu0 %v2582
  %2606 = vmatprep.subr.bf16.mxu0 0
  %2607 = vmatpush1.bf16.msra.mxu0 %v2583
  %2608 = vmatprep.subr.bf16.mxu0 0
  %2609 = vmatpush1.bf16.msra.mxu0 0
  %2610 = vmatprep.subr.bf16.mxu0 0
  %2611 = vmatpush1.bf16.msra.mxu0 0
  %2612 = vmatprep.subr.bf16.mxu0 0
  %2613 = vmatpush1.bf16.msra.mxu0 0
  %2614 = vmatprep.subr.bf16.mxu0 0
  %2615 = vmatpush1.bf16.msra.mxu0 0
  %2616 = vmatprep.subr.bf16.mxu0 0
  %2617 = vmatpush1.bf16.msra.mxu0 0
  %2618 = vmatprep.subr.bf16.mxu0 0
  %2619 = vmatpush1.bf16.msra.mxu0 0
  %2620 = vmatprep.subr.bf16.mxu0 0
  %2621 = vmatpush1.bf16.msra.mxu0 0
  %2622 = vmatprep.subr.bf16.mxu0 0
  %2623 = vmatpush1.bf16.msra.mxu0 0
  %2624 = vmatprep.mubr.bf16.mxu0 0
  %2625 = vmatmul.mubr.bf16.gmra.mrb[0].mxu0 %v2512
  %v2626 = vpop.f32.mrb[0].mxu0
  %v2627 = vadd.f32 0.0, %v2626
  %v2628 = vpop.f32.mrb[0].mxu0
  %v2629 = vpop.f32.mrb[0].mxu0
  %v2630 = vadd.f32 0.0, %v2629
  %v2631 = vpop.f32.mrb[0].mxu0
  %2632 = vmatprep.mubr.bf16.mxu0 0
  %2633 = vmatmul.mubr.bf16.gmra.mrb[0].mxu0 %v2513
  %v2634 = vpop.f32.mrb[0].mxu0
  %v2635 = vadd.f32 0.0, %v2634
  %v2636 = vpop.f32.mrb[0].mxu0
  %v2637 = vpop.f32.mrb[0].mxu0
  %v2638 = vadd.f32 0.0, %v2637
  %v2639 = vpop.f32.mrb[0].mxu0
  %2640 = vmatprep.mubr.bf16.mxu0 0
  %2641 = vmatmul.mubr.bf16.gmra.mrb[0].mxu0 %v2514
  %v2642 = vpop.f32.mrb[0].mxu0
  %v2643 = vadd.f32 0.0, %v2642
  %v2644 = vpop.f32.mrb[0].mxu0
  %v2645 = vpop.f32.mrb[0].mxu0
  %v2646 = vadd.f32 0.0, %v2645
  %v2647 = vpop.f32.mrb[0].mxu0
  %2648 = vmatprep.mubr.bf16.mxu0 0
  %2649 = vmatmul.mubr.bf16.gmra.mrb[0].mxu0 %v2515
  %v2650 = vpop.f32.mrb[0].mxu0
  %v2651 = vadd.f32 0.0, %v2650
  %v2652 = vpop.f32.mrb[0].mxu0
  %v2653 = vpop.f32.mrb[0].mxu0
  %v2654 = vadd.f32 0.0, %v2653
  %v2655 = vpop.f32.mrb[0].mxu0
  %2656 = vmatprep.mubr.bf16.mxu0 0
  %2657 = vmatmul.mubr.bf16.gmra.mrb[0].mxu0 %v2516
  %v2658 = vpop.f32.mrb[0].mxu0
  %v2659 = vadd.f32 0.0, %v2658
  %v2660 = vpop.f32.mrb[0].mxu0
  %v2661 = vpop.f32.mrb[0].mxu0
  %v2662 = vadd.f32 0.0, %v2661
  %v2663 = vpop.f32.mrb[0].mxu0
  %2664 = vmatprep.mubr.bf16.mxu0 0
  %2665 = vmatmul.mubr.bf16.gmra.mrb[0].mxu0 %v2517
  %v2666 = vpop.f32.mrb[0].mxu0
  %v2667 = vadd.f32 0.0, %v2666
  %v2668 = vpop.f32.mrb[0].mxu0
  %v2669 = vpop.f32.mrb[0].mxu0
  %v2670 = vadd.f32 0.0, %v2669
  %v2671 = vpop.f32.mrb[0].mxu0
  %2672 = vmatprep.mubr.bf16.mxu0 0
  %2673 = vmatmul.mubr.bf16.gmra.mrb[0].mxu0 %v2518
  %v2674 = vpop.f32.mrb[0].mxu0
  %v2675 = vadd.f32 0.0, %v2674
  %v2676 = vpop.f32.mrb[0].mxu0
  %v2677 = vpop.f32.mrb[0].mxu0
  %v2678 = vadd.f32 0.0, %v2677
  %v2679 = vpop.f32.mrb[0].mxu0
  %2680 = vmatprep.mubr.bf16.mxu0 0
  %2681 = vmatmul.mubr.bf16.gmra.mrb[0].mxu0 %v2519
  %v2682 = vpop.f32.mrb[0].mxu0
  %v2683 = vadd.f32 0.0, %v2682
  %v2684 = vpop.f32.mrb[0].mxu0
  %v2685 = vpop.f32.mrb[0].mxu0
  %v2686 = vadd.f32 0.0, %v2685
  %v2687 = vpop.f32.mrb[0].mxu0
  %2688 = vmatprep.mubr.bf16.mxu0 0
  %2689 = vmatmul.mubr.bf16.gmra.mrb[0].mxu0 %v2520
  %v2690 = vpop.f32.mrb[0].mxu0
  %v2691 = vadd.f32 0.0, %v2690
  %v2692 = vpop.f32.mrb[0].mxu0
  %v2693 = vpop.f32.mrb[0].mxu0
  %v2694 = vadd.f32 0.0, %v2693
  %v2695 = vpop.f32.mrb[0].mxu0
  %2696 = vmatprep.mubr.bf16.mxu0 0
  %2697 = vmatmul.mubr.bf16.gmra.mrb[0].mxu0 %v2521
  %v2698 = vpop.f32.mrb[0].mxu0
  %v2699 = vadd.f32 0.0, %v2698
  %v2700 = vpop.f32.mrb[0].mxu0
  %v2701 = vpop.f32.mrb[0].mxu0
  %v2702 = vadd.f32 0.0, %v2701
  %v2703 = vpop.f32.mrb[0].mxu0
  %2704 = vmatprep.mubr.bf16.mxu0 0
  %2705 = vmatmul.mubr.bf16.gmra.mrb[0].mxu0 %v2522
  %v2706 = vpop.f32.mrb[0].mxu0
  %v2707 = vadd.f32 0.0, %v2706
  %v2708 = vpop.f32.mrb[0].mxu0
  %v2709 = vpop.f32.mrb[0].mxu0
  %v2710 = vadd.f32 0.0, %v2709
  %v2711 = vpop.f32.mrb[0].mxu0
  %2712 = vmatprep.mubr.bf16.mxu0 0
  %2713 = vmatmul.mubr.bf16.gmra.mrb[0].mxu0 %v2523
  %v2714 = vpop.f32.mrb[0].mxu0
  %v2715 = vadd.f32 0.0, %v2714
  %v2716 = vpop.f32.mrb[0].mxu0
  %v2717 = vpop.f32.mrb[0].mxu0
  %v2718 = vadd.f32 0.0, %v2717
  %v2719 = vpop.f32.mrb[0].mxu0
  %2720 = vmatprep.mubr.bf16.mxu0 0
  %2721 = vmatmul.mubr.bf16.gmra.mrb[0].mxu0 %v2524
  %v2722 = vpop.f32.mrb[0].mxu0
  %v2723 = vadd.f32 0.0, %v2722
  %v2724 = vpop.f32.mrb[0].mxu0
  %v2725 = vpop.f32.mrb[0].mxu0
  %v2726 = vadd.f32 0.0, %v2725
  %v2727 = vpop.f32.mrb[0].mxu0
  %2728 = vmatprep.mubr.bf16.mxu0 0
  %2729 = vmatmul.mubr.bf16.gmra.mrb[0].mxu0 %v2525
  %v2730 = vpop.f32.mrb[0].mxu0
  %v2731 = vadd.f32 0.0, %v2730
  %v2732 = vpop.f32.mrb[0].mxu0
  %v2733 = vpop.f32.mrb[0].mxu0
  %v2734 = vadd.f32 0.0, %v2733
  %v2735 = vpop.f32.mrb[0].mxu0
  %2736 = vmatprep.mubr.bf16.mxu0 0
  %2737 = vmatmul.mubr.bf16.gmra.mrb[0].mxu0 %v2526
  %v2738 = vpop.f32.mrb[0].mxu0
  %v2739 = vadd.f32 0.0, %v2738
  %v2740 = vpop.f32.mrb[0].mxu0
  %v2741 = vpop.f32.mrb[0].mxu0
  %v2742 = vadd.f32 0.0, %v2741
  %v2743 = vpop.f32.mrb[0].mxu0
  %2744 = vmatprep.mubr.bf16.mxu0 0
  %2745 = vmatmul.mubr.bf16.gmra.mrb[0].mxu0 %v2527
  %v2746 = vpop.f32.mrb[0].mxu0
  %v2747 = vadd.f32 0.0, %v2746
  %v2748 = vpop.f32.mrb[0].mxu0
  %v2749 = vpop.f32.mrb[0].mxu0
  %v2750 = vadd.f32 0.0, %v2749
  %v2751 = vpop.f32.mrb[0].mxu0
  %2752 = vdwg.mxu0
  %v2753 = vadd.f32 %v2480, %v2627
  %v2754 = vadd.f32 %v2481, %v2630
  %v2755 = vadd.f32 %v2482, %v2635
  %v2756 = vadd.f32 %v2483, %v2638
  %v2757 = vadd.f32 %v2484, %v2643
  %v2758 = vadd.f32 %v2485, %v2646
  %v2759 = vadd.f32 %v2486, %v2651
  %v2760 = vadd.f32 %v2487, %v2654
  %v2761 = vadd.f32 %v2488, %v2659
  %v2762 = vadd.f32 %v2489, %v2662
  %v2763 = vadd.f32 %v2490, %v2667
  %v2764 = vadd.f32 %v2491, %v2670
  %v2765 = vadd.f32 %v2492, %v2675
  %v2766 = vadd.f32 %v2493, %v2678
  %v2767 = vadd.f32 %v2494, %v2683
  %v2768 = vadd.f32 %v2495, %v2686
  %v2769 = vadd.f32 %v2496, %v2691
  %v2770 = vadd.f32 %v2497, %v2694
  %v2771 = vadd.f32 %v2498, %v2699
  %v2772 = vadd.f32 %v2499, %v2702
  %v2773 = vadd.f32 %v2500, %v2707
  %v2774 = vadd.f32 %v2501, %v2710
  %v2775 = vadd.f32 %v2502, %v2715
  %v2776 = vadd.f32 %v2503, %v2718
  %v2777 = vadd.f32 %v2504, %v2723
  %v2778 = vadd.f32 %v2505, %v2726
  %v2779 = vadd.f32 %v2506, %v2731
  %v2780 = vadd.f32 %v2507, %v2734
  %v2781 = vadd.f32 %v2508, %v2739
  %v2782 = vadd.f32 %v2509, %v2742
  %v2783 = vadd.f32 %v2510, %v2747
  %v2784 = vadd.f32 %v2511, %v2750
  %2785 = vst [vmem:[#allocation6] sm:$0xff] %v2753
  %2786 = vst [vmem:[#allocation6 + $0x8] sm:$0xff] %v2754
  %2787 = vst [vmem:[#allocation6 + $0x10] sm:$0xff] %v2755
  %2788 = vst [vmem:[#allocation6 + $0x18] sm:$0xff] %v2756
  %2789 = vst [vmem:[#allocation6 + $0x20] sm:$0xff] %v2757
  %2790 = vst [vmem:[#allocation6 + $0x28] sm:$0xff] %v2758
  %2791 = vst [vmem:[#allocation6 + $0x30] sm:$0xff] %v2759
  %2792 = vst [vmem:[#allocation6 + $0x38] sm:$0xff] %v2760
  %2793 = vst [vmem:[#allocation6 + $0x40] sm:$0xff] %v2761
  %2794 = vst [vmem:[#allocation6 + $0x48] sm:$0xff] %v2762
  %2795 = vst [vmem:[#allocation6 + $0x50] sm:$0xff] %v2763
  %2796 = vst [vmem:[#allocation6 + $0x58] sm:$0xff] %v2764
  %2797 = vst [vmem:[#allocation6 + $0x60] sm:$0xff] %v2765
  %2798 = vst [vmem:[#allocation6 + $0x68] sm:$0xff] %v2766
  %2799 = vst [vmem:[#allocation6 + $0x70] sm:$0xff] %v2767
  %2800 = vst [vmem:[#allocation6 + $0x78] sm:$0xff] %v2768
  %2801 = vst [vmem:[#allocation6 + $0x80] sm:$0xff] %v2769
  %2802 = vst [vmem:[#allocation6 + $0x88] sm:$0xff] %v2770
  %2803 = vst [vmem:[#allocation6 + $0x90] sm:$0xff] %v2771
  %2804 = vst [vmem:[#allocation6 + $0x98] sm:$0xff] %v2772
  %2805 = vst [vmem:[#allocation6 + $0xa0] sm:$0xff] %v2773
  %2806 = vst [vmem:[#allocation6 + $0xa8] sm:$0xff] %v2774
  %2807 = vst [vmem:[#allocation6 + $0xb0] sm:$0xff] %v2775
  %2808 = vst [vmem:[#allocation6 + $0xb8] sm:$0xff] %v2776
  %2809 = vst [vmem:[#allocation6 + $0xc0] sm:$0xff] %v2777
  %2810 = vst [vmem:[#allocation6 + $0xc8] sm:$0xff] %v2778
  %2811 = vst [vmem:[#allocation6 + $0xd0] sm:$0xff] %v2779
  %2812 = vst [vmem:[#allocation6 + $0xd8] sm:$0xff] %v2780
  %2813 = vst [vmem:[#allocation6 + $0xe0] sm:$0xff] %v2781
  %2814 = vst [vmem:[#allocation6 + $0xe8] sm:$0xff] %v2782
  %2815 = vst [vmem:[#allocation6 + $0xf0] sm:$0xff] %v2783
  %2816 = vst [vmem:[#allocation6 + $0xf8] sm:$0xff] %v2784
  %v2817 = vld [vmem:[#allocation5 + $0x17] sm:$0xff]
  %v2818 = vld [vmem:[#allocation5 + $0x1f] sm:$0xff]
  %v2819 = vld [vmem:[#allocation5 + $0x27] sm:$0xff]
  %v2820 = vld [vmem:[#allocation5 + $0x2f] sm:$0xff]
  %v2821 = vld [vmem:[#allocation5 + $0x37] sm:$0xff]
  %v2822 = vld [vmem:[#allocation5 + $0x3f] sm:$0xff]
  %v2823 = vld [vmem:[#allocation5 + $0x47] sm:$0xff]
  %v2824 = vld [vmem:[#allocation5 + $0x4f] sm:$0xff]
  %v2825 = vld [vmem:[#allocation5 + $0x57] sm:$0xff]
  %v2826 = vld [vmem:[#allocation5 + $0x5f] sm:$0xff]
  %v2827 = vld [vmem:[#allocation5 + $0x67] sm:$0xff]
  %v2828 = vld [vmem:[#allocation5 + $0x6f] sm:$0xff]
  %v2829 = vld [vmem:[#allocation5 + $0x77] sm:$0xff]
  %v2830 = vld [vmem:[#allocation5 + $0x7f] sm:$0xff]
  %v2831 = vld [vmem:[#allocation5 + $0x87] sm:$0xff]
  %v2832 = vld [vmem:[#allocation5 + $0x8f] sm:$0xff]
  %v2833 = vld [vmem:[#allocation5 + $0x97] sm:$0xff]
  %v2834 = vld [vmem:[#allocation5 + $0x9f] sm:$0xff]
  %v2835 = vld [vmem:[#allocation5 + $0xa7] sm:$0xff]
  %v2836 = vld [vmem:[#allocation5 + $0xaf] sm:$0xff]
  %v2837 = vld [vmem:[#allocation5 + $0xb7] sm:$0xff]
  %v2838 = vld [vmem:[#allocation5 + $0xbf] sm:$0xff]
  %v2839 = vld [vmem:[#allocation5 + $0xc7] sm:$0xff]
  %v2840 = vld [vmem:[#allocation5 + $0xcf] sm:$0xff]
  %v2841 = vld [vmem:[#allocation5 + $0xd7] sm:$0xff]
  %v2842 = vld [vmem:[#allocation5 + $0xdf] sm:$0xff]
  %v2843 = vld [vmem:[#allocation5 + $0xe7] sm:$0xff]
  %v2844 = vld [vmem:[#allocation5 + $0xef] sm:$0xff]
  %v2845 = vld [vmem:[#allocation5 + $0xf7] sm:$0xff]
  %v2846 = vld [vmem:[#allocation5 + $0xff] sm:$0xff]
  %v2847 = vld [vmem:[#allocation5 + $0x107] sm:$0xff]
  %v2848 = vld [vmem:[#allocation5 + $0x10f] sm:$0xff]
  %v2849 = vmul.f32 %v2817, %v1308
  %v2850 = vmul.f32 %v2818, %v1309
  %v2851 = vmul.f32 %v2819, %v1310
  %v2852 = vmul.f32 %v2820, %v1311
  %v2853 = vmul.f32 %v2821, %v1312
  %v2854 = vmul.f32 %v2822, %v1313
  %v2855 = vmul.f32 %v2823, %v1314
  %v2856 = vmul.f32 %v2824, %v1315
  %v2857 = vmul.f32 %v2825, %v1316
  %v2858 = vmul.f32 %v2826, %v1317
  %v2859 = vmul.f32 %v2827, %v1318
  %v2860 = vmul.f32 %v2828, %v1319
  %v2861 = vmul.f32 %v2829, %v1320
  %v2862 = vmul.f32 %v2830, %v1321
  %v2863 = vmul.f32 %v2831, %v1322
  %v2864 = vmul.f32 %v2832, %v1323
  %v2865 = vmul.f32 %v2833, %v1324
  %v2866 = vmul.f32 %v2834, %v1325
  %v2867 = vmul.f32 %v2835, %v1326
  %v2868 = vmul.f32 %v2836, %v1327
  %v2869 = vmul.f32 %v2837, %v1328
  %v2870 = vmul.f32 %v2838, %v1329
  %v2871 = vmul.f32 %v2839, %v1330
  %v2872 = vmul.f32 %v2840, %v1331
  %v2873 = vmul.f32 %v2841, %v1332
  %v2874 = vmul.f32 %v2842, %v1333
  %v2875 = vmul.f32 %v2843, %v1334
  %v2876 = vmul.f32 %v2844, %v1335
  %v2877 = vmul.f32 %v2845, %v1336
  %v2878 = vmul.f32 %v2846, %v1337
  %v2879 = vmul.f32 %v2847, %v1338
  %v2880 = vmul.f32 %v2848, %v1339
  %v2881 = vld [vmem:[#allocation6] sm:$0xff]
  %v2882 = vld [vmem:[#allocation6 + $0x8] sm:$0xff]
  %v2883 = vld [vmem:[#allocation6 + $0x10] sm:$0xff]
  %v2884 = vld [vmem:[#allocation6 + $0x18] sm:$0xff]
  %v2885 = vld [vmem:[#allocation6 + $0x20] sm:$0xff]
  %v2886 = vld [vmem:[#allocation6 + $0x28] sm:$0xff]
  %v2887 = vld [vmem:[#allocation6 + $0x30] sm:$0xff]
  %v2888 = vld [vmem:[#allocation6 + $0x38] sm:$0xff]
  %v2889 = vld [vmem:[#allocation6 + $0x40] sm:$0xff]
  %v2890 = vld [vmem:[#allocation6 + $0x48] sm:$0xff]
  %v2891 = vld [vmem:[#allocation6 + $0x50] sm:$0xff]
  %v2892 = vld [vmem:[#allocation6 + $0x58] sm:$0xff]
  %v2893 = vld [vmem:[#allocation6 + $0x60] sm:$0xff]
  %v2894 = vld [vmem:[#allocation6 + $0x68] sm:$0xff]
  %v2895 = vld [vmem:[#allocation6 + $0x70] sm:$0xff]
  %v2896 = vld [vmem:[#allocation6 + $0x78] sm:$0xff]
  %v2897 = vld [vmem:[#allocation6 + $0x80] sm:$0xff]
  %v2898 = vld [vmem:[#allocation6 + $0x88] sm:$0xff]
  %v2899 = vld [vmem:[#allocation6 + $0x90] sm:$0xff]
  %v2900 = vld [vmem:[#allocation6 + $0x98] sm:$0xff]
  %v2901 = vld [vmem:[#allocation6 + $0xa0] sm:$0xff]
  %v2902 = vld [vmem:[#allocation6 + $0xa8] sm:$0xff]
  %v2903 = vld [vmem:[#allocation6 + $0xb0] sm:$0xff]
  %v2904 = vld [vmem:[#allocation6 + $0xb8] sm:$0xff]
  %v2905 = vld [vmem:[#allocation6 + $0xc0] sm:$0xff]
  %v2906 = vld [vmem:[#allocation6 + $0xc8] sm:$0xff]
  %v2907 = vld [vmem:[#allocation6 + $0xd0] sm:$0xff]
  %v2908 = vld [vmem:[#allocation6 + $0xd8] sm:$0xff]
  %v2909 = vld [vmem:[#allocation6 + $0xe0] sm:$0xff]
  %v2910 = vld [vmem:[#allocation6 + $0xe8] sm:$0xff]
  %v2911 = vld [vmem:[#allocation6 + $0xf0] sm:$0xff]
  %v2912 = vld [vmem:[#allocation6 + $0xf8] sm:$0xff]
  %v2913 = vpack.c.bf16 %v2850, %v2849
  %v2914 = vpack.c.bf16 %v2852, %v2851
  %v2915 = vpack.c.bf16 %v2854, %v2853
  %v2916 = vpack.c.bf16 %v2856, %v2855
  %v2917 = vpack.c.bf16 %v2858, %v2857
  %v2918 = vpack.c.bf16 %v2860, %v2859
  %v2919 = vpack.c.bf16 %v2862, %v2861
  %v2920 = vpack.c.bf16 %v2864, %v2863
  %v2921 = vpack.c.bf16 %v2866, %v2865
  %v2922 = vpack.c.bf16 %v2868, %v2867
  %v2923 = vpack.c.bf16 %v2870, %v2869
  %v2924 = vpack.c.bf16 %v2872, %v2871
  %v2925 = vpack.c.bf16 %v2874, %v2873
  %v2926 = vpack.c.bf16 %v2876, %v2875
  %v2927 = vpack.c.bf16 %v2878, %v2877
  %v2928 = vpack.c.bf16 %v2880, %v2879
  %v2929 = vld [vmem:[%s2 + $0xc0] sm:$0xf]
  %v2930 = vld [vmem:[%s2 + $0xc4] sm:$0xf]
  %v2931 = vld [vmem:[%s2 + $0xc8] sm:$0xf]
  %v2932 = vld [vmem:[%s2 + $0xcc] sm:$0xf]
  %v2933 = vld [vmem:[%s2 + $0xd0] sm:$0xf]
  %v2934 = vld [vmem:[%s2 + $0xd4] sm:$0xf]
  %v2935 = vld [vmem:[%s2 + $0xd8] sm:$0xf]
  %v2936 = vld [vmem:[%s2 + $0xdc] sm:$0xf]
  %v2937 = vld [vmem:[%s2 + $0xe0] sm:$0xf]
  %v2938 = vld [vmem:[%s2 + $0xe4] sm:$0xf]
  %v2939 = vld [vmem:[%s2 + $0xe8] sm:$0xf]
  %v2940 = vld [vmem:[%s2 + $0xec] sm:$0xf]
  %v2941 = vld [vmem:[%s2 + $0xf0] sm:$0xf]
  %v2942 = vld [vmem:[%s2 + $0xf4] sm:$0xf]
  %v2943 = vld [vmem:[%s2 + $0xf8] sm:$0xf]
  %v2944 = vld [vmem:[%s2 + $0xfc] sm:$0xf]
  %v2961 = vunpack.c.l.b16 %v2929
  %v2962 = vunpack.c.l.b16 %v2930
  %v2963 = vunpack.c.l.b16 %v2931
  %v2964 = vunpack.c.l.b16 %v2932
  %v2965 = vunpack.c.l.b16 %v2933
  %v2966 = vunpack.c.l.b16 %v2934
  %v2967 = vunpack.c.l.b16 %v2935
  %v2968 = vunpack.c.l.b16 %v2936
  %v2969 = vunpack.c.l.b16 %v2937
  %v2970 = vunpack.c.l.b16 %v2938
  %v2971 = vunpack.c.l.b16 %v2939
  %v2972 = vunpack.c.l.b16 %v2940
  %v2973 = vunpack.c.l.b16 %v2941
  %v2974 = vunpack.c.l.b16 %v2942
  %v2975 = vunpack.c.l.b16 %v2943
  %v2976 = vunpack.c.l.b16 %v2944
  %v2977 = vpack.c.b16 %v2962, %v2961
  %v2978 = vpack.c.b16 %v2964, %v2963
  %v2979 = vpack.c.b16 %v2966, %v2965
  %v2980 = vpack.c.b16 %v2968, %v2967
  %v2981 = vpack.c.b16 %v2970, %v2969
  %v2982 = vpack.c.b16 %v2972, %v2971
  %v2983 = vpack.c.b16 %v2974, %v2973
  %v2984 = vpack.c.b16 %v2976, %v2975
  %2993 = vmatprep.subr.bf16.mxu0 0
  %2994 = vmatpush1.bf16.msra.mxu0 %v2977
  %2995 = vmatprep.subr.bf16.mxu0 0
  %2996 = vmatpush1.bf16.msra.mxu0 %v2978
  %2997 = vmatprep.subr.bf16.mxu0 0
  %2998 = vmatpush1.bf16.msra.mxu0 %v2979
  %2999 = vmatprep.subr.bf16.mxu0 0
  %3000 = vmatpush1.bf16.msra.mxu0 %v2980
  %3001 = vmatprep.subr.bf16.mxu0 0
  %3002 = vmatpush1.bf16.msra.mxu0 %v2981
  %3003 = vmatprep.subr.bf16.mxu0 0
  %3004 = vmatpush1.bf16.msra.mxu0 %v2982
  %3005 = vmatprep.subr.bf16.mxu0 0
  %3006 = vmatpush1.bf16.msra.mxu0 %v2983
  %3007 = vmatprep.subr.bf16.mxu0 0
  %3008 = vmatpush1.bf16.msra.mxu0 %v2984
  %3009 = vmatprep.subr.bf16.mxu0 0
  %3010 = vmatpush1.bf16.msra.mxu0 0
  %3011 = vmatprep.subr.bf16.mxu0 0
  %3012 = vmatpush1.bf16.msra.mxu0 0
  %3013 = vmatprep.subr.bf16.mxu0 0
  %3014 = vmatpush1.bf16.msra.mxu0 0
  %3015 = vmatprep.subr.bf16.mxu0 0
  %3016 = vmatpush1.bf16.msra.mxu0 0
  %3017 = vmatprep.subr.bf16.mxu0 0
  %3018 = vmatpush1.bf16.msra.mxu0 0
  %3019 = vmatprep.subr.bf16.mxu0 0
  %3020 = vmatpush1.bf16.msra.mxu0 0
  %3021 = vmatprep.subr.bf16.mxu0 0
  %3022 = vmatpush1.bf16.msra.mxu0 0
  %3023 = vmatprep.subr.bf16.mxu0 0
  %3024 = vmatpush1.bf16.msra.mxu0 0
  %3025 = vmatprep.mubr.bf16.mxu0 0
  %3026 = vmatmul.mubr.bf16.gmra.mrb[0].mxu0 %v2913
  %v3027 = vpop.f32.mrb[0].mxu0
  %v3028 = vadd.f32 0.0, %v3027
  %v3029 = vpop.f32.mrb[0].mxu0
  %v3030 = vpop.f32.mrb[0].mxu0
  %v3031 = vadd.f32 0.0, %v3030
  %v3032 = vpop.f32.mrb[0].mxu0
  %3033 = vmatprep.mubr.bf16.mxu0 0
  %3034 = vmatmul.mubr.bf16.gmra.mrb[0].mxu0 %v2914
  %v3035 = vpop.f32.mrb[0].mxu0
  %v3036 = vadd.f32 0.0, %v3035
  %v3037 = vpop.f32.mrb[0].mxu0
  %v3038 = vpop.f32.mrb[0].mxu0
  %v3039 = vadd.f32 0.0, %v3038
  %v3040 = vpop.f32.mrb[0].mxu0
  %3041 = vmatprep.mubr.bf16.mxu0 0
  %3042 = vmatmul.mubr.bf16.gmra.mrb[0].mxu0 %v2915
  %v3043 = vpop.f32.mrb[0].mxu0
  %v3044 = vadd.f32 0.0, %v3043
  %v3045 = vpop.f32.mrb[0].mxu0
  %v3046 = vpop.f32.mrb[0].mxu0
  %v3047 = vadd.f32 0.0, %v3046
  %v3048 = vpop.f32.mrb[0].mxu0
  %3049 = vmatprep.mubr.bf16.mxu0 0
  %3050 = vmatmul.mubr.bf16.gmra.mrb[0].mxu0 %v2916
  %v3051 = vpop.f32.mrb[0].mxu0
  %v3052 = vadd.f32 0.0, %v3051
  %v3053 = vpop.f32.mrb[0].mxu0
  %v3054 = vpop.f32.mrb[0].mxu0
  %v3055 = vadd.f32 0.0, %v3054
  %v3056 = vpop.f32.mrb[0].mxu0
  %3057 = vmatprep.mubr.bf16.mxu0 0
  %3058 = vmatmul.mubr.bf16.gmra.mrb[0].mxu0 %v2917
  %v3059 = vpop.f32.mrb[0].mxu0
  %v3060 = vadd.f32 0.0, %v3059
  %v3061 = vpop.f32.mrb[0].mxu0
  %v3062 = vpop.f32.mrb[0].mxu0
  %v3063 = vadd.f32 0.0, %v3062
  %v3064 = vpop.f32.mrb[0].mxu0
  %3065 = vmatprep.mubr.bf16.mxu0 0
  %3066 = vmatmul.mubr.bf16.gmra.mrb[0].mxu0 %v2918
  %v3067 = vpop.f32.mrb[0].mxu0
  %v3068 = vadd.f32 0.0, %v3067
  %v3069 = vpop.f32.mrb[0].mxu0
  %v3070 = vpop.f32.mrb[0].mxu0
  %v3071 = vadd.f32 0.0, %v3070
  %v3072 = vpop.f32.mrb[0].mxu0
  %3073 = vmatprep.mubr.bf16.mxu0 0
  %3074 = vmatmul.mubr.bf16.gmra.mrb[0].mxu0 %v2919
  %v3075 = vpop.f32.mrb[0].mxu0
  %v3076 = vadd.f32 0.0, %v3075
  %v3077 = vpop.f32.mrb[0].mxu0
  %v3078 = vpop.f32.mrb[0].mxu0
  %v3079 = vadd.f32 0.0, %v3078
  %v3080 = vpop.f32.mrb[0].mxu0
  %3081 = vmatprep.mubr.bf16.mxu0 0
  %3082 = vmatmul.mubr.bf16.gmra.mrb[0].mxu0 %v2920
  %v3083 = vpop.f32.mrb[0].mxu0
  %v3084 = vadd.f32 0.0, %v3083
  %v3085 = vpop.f32.mrb[0].mxu0
  %v3086 = vpop.f32.mrb[0].mxu0
  %v3087 = vadd.f32 0.0, %v3086
  %v3088 = vpop.f32.mrb[0].mxu0
  %3089 = vmatprep.mubr.bf16.mxu0 0
  %3090 = vmatmul.mubr.bf16.gmra.mrb[0].mxu0 %v2921
  %v3091 = vpop.f32.mrb[0].mxu0
  %v3092 = vadd.f32 0.0, %v3091
  %v3093 = vpop.f32.mrb[0].mxu0
  %v3094 = vpop.f32.mrb[0].mxu0
  %v3095 = vadd.f32 0.0, %v3094
  %v3096 = vpop.f32.mrb[0].mxu0
  %3097 = vmatprep.mubr.bf16.mxu0 0
  %3098 = vmatmul.mubr.bf16.gmra.mrb[0].mxu0 %v2922
  %v3099 = vpop.f32.mrb[0].mxu0
  %v3100 = vadd.f32 0.0, %v3099
  %v3101 = vpop.f32.mrb[0].mxu0
  %v3102 = vpop.f32.mrb[0].mxu0
  %v3103 = vadd.f32 0.0, %v3102
  %v3104 = vpop.f32.mrb[0].mxu0
  %3105 = vmatprep.mubr.bf16.mxu0 0
  %3106 = vmatmul.mubr.bf16.gmra.mrb[0].mxu0 %v2923
  %v3107 = vpop.f32.mrb[0].mxu0
  %v3108 = vadd.f32 0.0, %v3107
  %v3109 = vpop.f32.mrb[0].mxu0
  %v3110 = vpop.f32.mrb[0].mxu0
  %v3111 = vadd.f32 0.0, %v3110
  %v3112 = vpop.f32.mrb[0].mxu0
  %3113 = vmatprep.mubr.bf16.mxu0 0
  %3114 = vmatmul.mubr.bf16.gmra.mrb[0].mxu0 %v2924
  %v3115 = vpop.f32.mrb[0].mxu0
  %v3116 = vadd.f32 0.0, %v3115
  %v3117 = vpop.f32.mrb[0].mxu0
  %v3118 = vpop.f32.mrb[0].mxu0
  %v3119 = vadd.f32 0.0, %v3118
  %v3120 = vpop.f32.mrb[0].mxu0
  %3121 = vmatprep.mubr.bf16.mxu0 0
  %3122 = vmatmul.mubr.bf16.gmra.mrb[0].mxu0 %v2925
  %v3123 = vpop.f32.mrb[0].mxu0
  %v3124 = vadd.f32 0.0, %v3123
  %v3125 = vpop.f32.mrb[0].mxu0
  %v3126 = vpop.f32.mrb[0].mxu0
  %v3127 = vadd.f32 0.0, %v3126
  %v3128 = vpop.f32.mrb[0].mxu0
  %3129 = vmatprep.mubr.bf16.mxu0 0
  %3130 = vmatmul.mubr.bf16.gmra.mrb[0].mxu0 %v2926
  %v3131 = vpop.f32.mrb[0].mxu0
  %v3132 = vadd.f32 0.0, %v3131
  %v3133 = vpop.f32.mrb[0].mxu0
  %v3134 = vpop.f32.mrb[0].mxu0
  %v3135 = vadd.f32 0.0, %v3134
  %v3136 = vpop.f32.mrb[0].mxu0
  %3137 = vmatprep.mubr.bf16.mxu0 0
  %3138 = vmatmul.mubr.bf16.gmra.mrb[0].mxu0 %v2927
  %v3139 = vpop.f32.mrb[0].mxu0
  %v3140 = vadd.f32 0.0, %v3139
  %v3141 = vpop.f32.mrb[0].mxu0
  %v3142 = vpop.f32.mrb[0].mxu0
  %v3143 = vadd.f32 0.0, %v3142
  %v3144 = vpop.f32.mrb[0].mxu0
  %3145 = vmatprep.mubr.bf16.mxu0 0
  %3146 = vmatmul.mubr.bf16.gmra.mrb[0].mxu0 %v2928
  %v3147 = vpop.f32.mrb[0].mxu0
  %v3148 = vadd.f32 0.0, %v3147
  %v3149 = vpop.f32.mrb[0].mxu0
  %v3150 = vpop.f32.mrb[0].mxu0
  %v3151 = vadd.f32 0.0, %v3150
  %v3152 = vpop.f32.mrb[0].mxu0
  %3153 = vdwg.mxu0
  %v3154 = vadd.f32 %v2881, %v3028
  %v3155 = vadd.f32 %v2882, %v3031
  %v3156 = vadd.f32 %v2883, %v3036
  %v3157 = vadd.f32 %v2884, %v3039
  %v3158 = vadd.f32 %v2885, %v3044
  %v3159 = vadd.f32 %v2886, %v3047
  %v3160 = vadd.f32 %v2887, %v3052
  %v3161 = vadd.f32 %v2888, %v3055
  %v3162 = vadd.f32 %v2889, %v3060
  %v3163 = vadd.f32 %v2890, %v3063
  %v3164 = vadd.f32 %v2891, %v3068
  %v3165 = vadd.f32 %v2892, %v3071
  %v3166 = vadd.f32 %v2893, %v3076
  %v3167 = vadd.f32 %v2894, %v3079
  %v3168 = vadd.f32 %v2895, %v3084
  %v3169 = vadd.f32 %v2896, %v3087
  %v3170 = vadd.f32 %v2897, %v3092
  %v3171 = vadd.f32 %v2898, %v3095
  %v3172 = vadd.f32 %v2899, %v3100
  %v3173 = vadd.f32 %v2900, %v3103
  %v3174 = vadd.f32 %v2901, %v3108
  %v3175 = vadd.f32 %v2902, %v3111
  %v3176 = vadd.f32 %v2903, %v3116
  %v3177 = vadd.f32 %v2904, %v3119
  %v3178 = vadd.f32 %v2905, %v3124
  %v3179 = vadd.f32 %v2906, %v3127
  %v3180 = vadd.f32 %v2907, %v3132
  %v3181 = vadd.f32 %v2908, %v3135
  %v3182 = vadd.f32 %v2909, %v3140
  %v3183 = vadd.f32 %v2910, %v3143
  %v3184 = vadd.f32 %v2911, %v3148
  %v3185 = vadd.f32 %v2912, %v3151
  %3186 = vst [vmem:[#allocation6] sm:$0xff] %v3154
  %3187 = vst [vmem:[#allocation6 + $0x8] sm:$0xff] %v3155
  %3188 = vst [vmem:[#allocation6 + $0x10] sm:$0xff] %v3156
  %3189 = vst [vmem:[#allocation6 + $0x18] sm:$0xff] %v3157
  %3190 = vst [vmem:[#allocation6 + $0x20] sm:$0xff] %v3158
  %3191 = vst [vmem:[#allocation6 + $0x28] sm:$0xff] %v3159
  %3192 = vst [vmem:[#allocation6 + $0x30] sm:$0xff] %v3160
  %3193 = vst [vmem:[#allocation6 + $0x38] sm:$0xff] %v3161
  %3194 = vst [vmem:[#allocation6 + $0x40] sm:$0xff] %v3162
  %3195 = vst [vmem:[#allocation6 + $0x48] sm:$0xff] %v3163
  %3196 = vst [vmem:[#allocation6 + $0x50] sm:$0xff] %v3164
  %3197 = vst [vmem:[#allocation6 + $0x58] sm:$0xff] %v3165
  %3198 = vst [vmem:[#allocation6 + $0x60] sm:$0xff] %v3166
  %3199 = vst [vmem:[#allocation6 + $0x68] sm:$0xff] %v3167
  %3200 = vst [vmem:[#allocation6 + $0x70] sm:$0xff] %v3168
  %3201 = vst [vmem:[#allocation6 + $0x78] sm:$0xff] %v3169
  %3202 = vst [vmem:[#allocation6 + $0x80] sm:$0xff] %v3170
  %3203 = vst [vmem:[#allocation6 + $0x88] sm:$0xff] %v3171
  %3204 = vst [vmem:[#allocation6 + $0x90] sm:$0xff] %v3172
  %3205 = vst [vmem:[#allocation6 + $0x98] sm:$0xff] %v3173
  %3206 = vst [vmem:[#allocation6 + $0xa0] sm:$0xff] %v3174
  %3207 = vst [vmem:[#allocation6 + $0xa8] sm:$0xff] %v3175
  %3208 = vst [vmem:[#allocation6 + $0xb0] sm:$0xff] %v3176
  %3209 = vst [vmem:[#allocation6 + $0xb8] sm:$0xff] %v3177
  %3210 = vst [vmem:[#allocation6 + $0xc0] sm:$0xff] %v3178
  %3211 = vst [vmem:[#allocation6 + $0xc8] sm:$0xff] %v3179
  %3212 = vst [vmem:[#allocation6 + $0xd0] sm:$0xff] %v3180
  %3213 = vst [vmem:[#allocation6 + $0xd8] sm:$0xff] %v3181
  %3214 = vst [vmem:[#allocation6 + $0xe0] sm:$0xff] %v3182
  %3215 = vst [vmem:[#allocation6 + $0xe8] sm:$0xff] %v3183
  %3216 = vst [vmem:[#allocation6 + $0xf0] sm:$0xff] %v3184
  %3217 = vst [vmem:[#allocation6 + $0xf8] sm:$0xff] %v3185
  %v3218 = vld [vmem:[#allocation5 + $0x18] sm:$0xff]
  %v3219 = vld [vmem:[#allocation5 + $0x20] sm:$0xff]
  %v3220 = vld [vmem:[#allocation5 + $0x28] sm:$0xff]
  %v3221 = vld [vmem:[#allocation5 + $0x30] sm:$0xff]
  %v3222 = vld [vmem:[#allocation5 + $0x38] sm:$0xff]
  %v3223 = vld [vmem:[#allocation5 + $0x40] sm:$0xff]
  %v3224 = vld [vmem:[#allocation5 + $0x48] sm:$0xff]
  %v3225 = vld [vmem:[#allocation5 + $0x50] sm:$0xff]
  %v3226 = vld [vmem:[#allocation5 + $0x58] sm:$0xff]
  %v3227 = vld [vmem:[#allocation5 + $0x60] sm:$0xff]
  %v3228 = vld [vmem:[#allocation5 + $0x68] sm:$0xff]
  %v3229 = vld [vmem:[#allocation5 + $0x70] sm:$0xff]
  %v3230 = vld [vmem:[#allocation5 + $0x78] sm:$0xff]
  %v3231 = vld [vmem:[#allocation5 + $0x80] sm:$0xff]
  %v3232 = vld [vmem:[#allocation5 + $0x88] sm:$0xff]
  %v3233 = vld [vmem:[#allocation5 + $0x90] sm:$0xff]
  %v3234 = vld [vmem:[#allocation5 + $0x98] sm:$0xff]
  %v3235 = vld [vmem:[#allocation5 + $0xa0] sm:$0xff]
  %v3236 = vld [vmem:[#allocation5 + $0xa8] sm:$0xff]
  %v3237 = vld [vmem:[#allocation5 + $0xb0] sm:$0xff]
  %v3238 = vld [vmem:[#allocation5 + $0xb8] sm:$0xff]
  %v3239 = vld [vmem:[#allocation5 + $0xc0] sm:$0xff]
  %v3240 = vld [vmem:[#allocation5 + $0xc8] sm:$0xff]
  %v3241 = vld [vmem:[#allocation5 + $0xd0] sm:$0xff]
  %v3242 = vld [vmem:[#allocation5 + $0xd8] sm:$0xff]
  %v3243 = vld [vmem:[#allocation5 + $0xe0] sm:$0xff]
  %v3244 = vld [vmem:[#allocation5 + $0xe8] sm:$0xff]
  %v3245 = vld [vmem:[#allocation5 + $0xf0] sm:$0xff]
  %v3246 = vld [vmem:[#allocation5 + $0xf8] sm:$0xff]
  %v3247 = vld [vmem:[#allocation5 + $0x100] sm:$0xff]
  %v3248 = vld [vmem:[#allocation5 + $0x108] sm:$0xff]
  %v3249 = vld [vmem:[#allocation5 + $0x110] sm:$0xff]
  %v3250 = vld [vmem:[#allocation6] sm:$0xff]
  %v3251 = vld [vmem:[#allocation6 + $0x8] sm:$0xff]
  %v3252 = vld [vmem:[#allocation6 + $0x10] sm:$0xff]
  %v3253 = vld [vmem:[#allocation6 + $0x18] sm:$0xff]
  %v3254 = vld [vmem:[#allocation6 + $0x20] sm:$0xff]
  %v3255 = vld [vmem:[#allocation6 + $0x28] sm:$0xff]
  %v3256 = vld [vmem:[#allocation6 + $0x30] sm:$0xff]
  %v3257 = vld [vmem:[#allocation6 + $0x38] sm:$0xff]
  %v3258 = vld [vmem:[#allocation6 + $0x40] sm:$0xff]
  %v3259 = vld [vmem:[#allocation6 + $0x48] sm:$0xff]
  %v3260 = vld [vmem:[#allocation6 + $0x50] sm:$0xff]
  %v3261 = vld [vmem:[#allocation6 + $0x58] sm:$0xff]
  %v3262 = vld [vmem:[#allocation6 + $0x60] sm:$0xff]
  %v3263 = vld [vmem:[#allocation6 + $0x68] sm:$0xff]
  %v3264 = vld [vmem:[#allocation6 + $0x70] sm:$0xff]
  %v3265 = vld [vmem:[#allocation6 + $0x78] sm:$0xff]
  %v3266 = vld [vmem:[#allocation6 + $0x80] sm:$0xff]
  %v3267 = vld [vmem:[#allocation6 + $0x88] sm:$0xff]
  %v3268 = vld [vmem:[#allocation6 + $0x90] sm:$0xff]
  %v3269 = vld [vmem:[#allocation6 + $0x98] sm:$0xff]
  %v3270 = vld [vmem:[#allocation6 + $0xa0] sm:$0xff]
  %v3271 = vld [vmem:[#allocation6 + $0xa8] sm:$0xff]
  %v3272 = vld [vmem:[#allocation6 + $0xb0] sm:$0xff]
  %v3273 = vld [vmem:[#allocation6 + $0xb8] sm:$0xff]
  %v3274 = vld [vmem:[#allocation6 + $0xc0] sm:$0xff]
  %v3275 = vld [vmem:[#allocation6 + $0xc8] sm:$0xff]
  %v3276 = vld [vmem:[#allocation6 + $0xd0] sm:$0xff]
  %v3277 = vld [vmem:[#allocation6 + $0xd8] sm:$0xff]
  %v3278 = vld [vmem:[#allocation6 + $0xe0] sm:$0xff]
  %v3279 = vld [vmem:[#allocation6 + $0xe8] sm:$0xff]
  %v3280 = vld [vmem:[#allocation6 + $0xf0] sm:$0xff]
  %v3281 = vld [vmem:[#allocation6 + $0xf8] sm:$0xff]
  %v3282 = vpack.c.bf16 %v3219, %v3218
  %v3283 = vpack.c.bf16 %v3221, %v3220
  %v3284 = vpack.c.bf16 %v3223, %v3222
  %v3285 = vpack.c.bf16 %v3225, %v3224
  %v3286 = vpack.c.bf16 %v3227, %v3226
  %v3287 = vpack.c.bf16 %v3229, %v3228
  %v3288 = vpack.c.bf16 %v3231, %v3230
  %v3289 = vpack.c.bf16 %v3233, %v3232
  %v3290 = vpack.c.bf16 %v3235, %v3234
  %v3291 = vpack.c.bf16 %v3237, %v3236
  %v3292 = vpack.c.bf16 %v3239, %v3238
  %v3293 = vpack.c.bf16 %v3241, %v3240
  %v3294 = vpack.c.bf16 %v3243, %v3242
  %v3295 = vpack.c.bf16 %v3245, %v3244
  %v3296 = vpack.c.bf16 %v3247, %v3246
  %v3297 = vpack.c.bf16 %v3249, %v3248
  %v3298 = vld [vmem:[%s2 + $0x100] sm:$0xf]
  %v3299 = vld [vmem:[%s2 + $0x104] sm:$0xf]
  %v3300 = vld [vmem:[%s2 + $0x108] sm:$0xf]
  %v3301 = vld [vmem:[%s2 + $0x10c] sm:$0xf]
  %v3302 = vld [vmem:[%s2 + $0x110] sm:$0xf]
  %v3303 = vld [vmem:[%s2 + $0x114] sm:$0xf]
  %v3304 = vld [vmem:[%s2 + $0x118] sm:$0xf]
  %v3305 = vld [vmem:[%s2 + $0x11c] sm:$0xf]
  %v3306 = vld [vmem:[%s2 + $0x120] sm:$0xf]
  %v3307 = vld [vmem:[%s2 + $0x124] sm:$0xf]
  %v3308 = vld [vmem:[%s2 + $0x128] sm:$0xf]
  %v3309 = vld [vmem:[%s2 + $0x12c] sm:$0xf]
  %v3310 = vld [vmem:[%s2 + $0x130] sm:$0xf]
  %v3311 = vld [vmem:[%s2 + $0x134] sm:$0xf]
  %v3312 = vld [vmem:[%s2 + $0x138] sm:$0xf]
  %v3313 = vld [vmem:[%s2 + $0x13c] sm:$0xf]
  %v3330 = vunpack.c.l.b16 %v3298
  %v3331 = vunpack.c.l.b16 %v3299
  %v3332 = vunpack.c.l.b16 %v3300
  %v3333 = vunpack.c.l.b16 %v3301
  %v3334 = vunpack.c.l.b16 %v3302
  %v3335 = vunpack.c.l.b16 %v3303
  %v3336 = vunpack.c.l.b16 %v3304
  %v3337 = vunpack.c.l.b16 %v3305
  %v3338 = vunpack.c.l.b16 %v3306
  %v3339 = vunpack.c.l.b16 %v3307
  %v3340 = vunpack.c.l.b16 %v3308
  %v3341 = vunpack.c.l.b16 %v3309
  %v3342 = vunpack.c.l.b16 %v3310
  %v3343 = vunpack.c.l.b16 %v3311
  %v3344 = vunpack.c.l.b16 %v3312
  %v3345 = vunpack.c.l.b16 %v3313
  %v3346 = vpack.c.b16 %v3331, %v3330
  %v3347 = vpack.c.b16 %v3333, %v3332
  %v3348 = vpack.c.b16 %v3335, %v3334
  %v3349 = vpack.c.b16 %v3337, %v3336
  %v3350 = vpack.c.b16 %v3339, %v3338
  %v3351 = vpack.c.b16 %v3341, %v3340
  %v3352 = vpack.c.b16 %v3343, %v3342
  %v3353 = vpack.c.b16 %v3345, %v3344
  %3362 = vmatprep.subr.bf16.mxu0 0
  %3363 = vmatpush1.bf16.msra.mxu0 %v3346
  %3364 = vmatprep.subr.bf16.mxu0 0
  %3365 = vmatpush1.bf16.msra.mxu0 %v3347
  %3366 = vmatprep.subr.bf16.mxu0 0
  %3367 = vmatpush1.bf16.msra.mxu0 %v3348
  %3368 = vmatprep.subr.bf16.mxu0 0
  %3369 = vmatpush1.bf16.msra.mxu0 %v3349
  %3370 = vmatprep.subr.bf16.mxu0 0
  %3371 = vmatpush1.bf16.msra.mxu0 %v3350
  %3372 = vmatprep.subr.bf16.mxu0 0
  %3373 = vmatpush1.bf16.msra.mxu0 %v3351
  %3374 = vmatprep.subr.bf16.mxu0 0
  %3375 = vmatpush1.bf16.msra.mxu0 %v3352
  %3376 = vmatprep.subr.bf16.mxu0 0
  %3377 = vmatpush1.bf16.msra.mxu0 %v3353
  %3378 = vmatprep.subr.bf16.mxu0 0
  %3379 = vmatpush1.bf16.msra.mxu0 0
  %3380 = vmatprep.subr.bf16.mxu0 0
  %3381 = vmatpush1.bf16.msra.mxu0 0
  %3382 = vmatprep.subr.bf16.mxu0 0
  %3383 = vmatpush1.bf16.msra.mxu0 0
  %3384 = vmatprep.subr.bf16.mxu0 0
  %3385 = vmatpush1.bf16.msra.mxu0 0
  %3386 = vmatprep.subr.bf16.mxu0 0
  %3387 = vmatpush1.bf16.msra.mxu0 0
  %3388 = vmatprep.subr.bf16.mxu0 0
  %3389 = vmatpush1.bf16.msra.mxu0 0
  %3390 = vmatprep.subr.bf16.mxu0 0
  %3391 = vmatpush1.bf16.msra.mxu0 0
  %3392 = vmatprep.subr.bf16.mxu0 0
  %3393 = vmatpush1.bf16.msra.mxu0 0
  %3394 = vmatprep.mubr.bf16.mxu0 0
  %3395 = vmatmul.mubr.bf16.gmra.mrb[0].mxu0 %v3282
  %v3396 = vpop.f32.mrb[0].mxu0
  %v3397 = vadd.f32 0.0, %v3396
  %v3398 = vpop.f32.mrb[0].mxu0
  %v3399 = vpop.f32.mrb[0].mxu0
  %v3400 = vadd.f32 0.0, %v3399
  %v3401 = vpop.f32.mrb[0].mxu0
  %3402 = vmatprep.mubr.bf16.mxu0 0
  %3403 = vmatmul.mubr.bf16.gmra.mrb[0].mxu0 %v3283
  %v3404 = vpop.f32.mrb[0].mxu0
  %v3405 = vadd.f32 0.0, %v3404
  %v3406 = vpop.f32.mrb[0].mxu0
  %v3407 = vpop.f32.mrb[0].mxu0
  %v3408 = vadd.f32 0.0, %v3407
  %v3409 = vpop.f32.mrb[0].mxu0
  %3410 = vmatprep.mubr.bf16.mxu0 0
  %3411 = vmatmul.mubr.bf16.gmra.mrb[0].mxu0 %v3284
  %v3412 = vpop.f32.mrb[0].mxu0
  %v3413 = vadd.f32 0.0, %v3412
  %v3414 = vpop.f32.mrb[0].mxu0
  %v3415 = vpop.f32.mrb[0].mxu0
  %v3416 = vadd.f32 0.0, %v3415
  %v3417 = vpop.f32.mrb[0].mxu0
  %3418 = vmatprep.mubr.bf16.mxu0 0
  %3419 = vmatmul.mubr.bf16.gmra.mrb[0].mxu0 %v3285
  %v3420 = vpop.f32.mrb[0].mxu0
  %v3421 = vadd.f32 0.0, %v3420
  %v3422 = vpop.f32.mrb[0].mxu0
  %v3423 = vpop.f32.mrb[0].mxu0
  %v3424 = vadd.f32 0.0, %v3423
  %v3425 = vpop.f32.mrb[0].mxu0
  %3426 = vmatprep.mubr.bf16.mxu0 0
  %3427 = vmatmul.mubr.bf16.gmra.mrb[0].mxu0 %v3286
  %v3428 = vpop.f32.mrb[0].mxu0
  %v3429 = vadd.f32 0.0, %v3428
  %v3430 = vpop.f32.mrb[0].mxu0
  %v3431 = vpop.f32.mrb[0].mxu0
  %v3432 = vadd.f32 0.0, %v3431
  %v3433 = vpop.f32.mrb[0].mxu0
  %3434 = vmatprep.mubr.bf16.mxu0 0
  %3435 = vmatmul.mubr.bf16.gmra.mrb[0].mxu0 %v3287
  %v3436 = vpop.f32.mrb[0].mxu0
  %v3437 = vadd.f32 0.0, %v3436
  %v3438 = vpop.f32.mrb[0].mxu0
  %v3439 = vpop.f32.mrb[0].mxu0
  %v3440 = vadd.f32 0.0, %v3439
  %v3441 = vpop.f32.mrb[0].mxu0
  %3442 = vmatprep.mubr.bf16.mxu0 0
  %3443 = vmatmul.mubr.bf16.gmra.mrb[0].mxu0 %v3288
  %v3444 = vpop.f32.mrb[0].mxu0
  %v3445 = vadd.f32 0.0, %v3444
  %v3446 = vpop.f32.mrb[0].mxu0
  %v3447 = vpop.f32.mrb[0].mxu0
  %v3448 = vadd.f32 0.0, %v3447
  %v3449 = vpop.f32.mrb[0].mxu0
  %3450 = vmatprep.mubr.bf16.mxu0 0
  %3451 = vmatmul.mubr.bf16.gmra.mrb[0].mxu0 %v3289
  %v3452 = vpop.f32.mrb[0].mxu0
  %v3453 = vadd.f32 0.0, %v3452
  %v3454 = vpop.f32.mrb[0].mxu0
  %v3455 = vpop.f32.mrb[0].mxu0
  %v3456 = vadd.f32 0.0, %v3455
  %v3457 = vpop.f32.mrb[0].mxu0
  %3458 = vmatprep.mubr.bf16.mxu0 0
  %3459 = vmatmul.mubr.bf16.gmra.mrb[0].mxu0 %v3290
  %v3460 = vpop.f32.mrb[0].mxu0
  %v3461 = vadd.f32 0.0, %v3460
  %v3462 = vpop.f32.mrb[0].mxu0
  %v3463 = vpop.f32.mrb[0].mxu0
  %v3464 = vadd.f32 0.0, %v3463
  %v3465 = vpop.f32.mrb[0].mxu0
  %3466 = vmatprep.mubr.bf16.mxu0 0
  %3467 = vmatmul.mubr.bf16.gmra.mrb[0].mxu0 %v3291
  %v3468 = vpop.f32.mrb[0].mxu0
  %v3469 = vadd.f32 0.0, %v3468
  %v3470 = vpop.f32.mrb[0].mxu0
  %v3471 = vpop.f32.mrb[0].mxu0
  %v3472 = vadd.f32 0.0, %v3471
  %v3473 = vpop.f32.mrb[0].mxu0
  %3474 = vmatprep.mubr.bf16.mxu0 0
  %3475 = vmatmul.mubr.bf16.gmra.mrb[0].mxu0 %v3292
  %v3476 = vpop.f32.mrb[0].mxu0
  %v3477 = vadd.f32 0.0, %v3476
  %v3478 = vpop.f32.mrb[0].mxu0
  %v3479 = vpop.f32.mrb[0].mxu0
  %v3480 = vadd.f32 0.0, %v3479
  %v3481 = vpop.f32.mrb[0].mxu0
  %3482 = vmatprep.mubr.bf16.mxu0 0
  %3483 = vmatmul.mubr.bf16.gmra.mrb[0].mxu0 %v3293
  %v3484 = vpop.f32.mrb[0].mxu0
  %v3485 = vadd.f32 0.0, %v3484
  %v3486 = vpop.f32.mrb[0].mxu0
  %v3487 = vpop.f32.mrb[0].mxu0
  %v3488 = vadd.f32 0.0, %v3487
  %v3489 = vpop.f32.mrb[0].mxu0
  %3490 = vmatprep.mubr.bf16.mxu0 0
  %3491 = vmatmul.mubr.bf16.gmra.mrb[0].mxu0 %v3294
  %v3492 = vpop.f32.mrb[0].mxu0
  %v3493 = vadd.f32 0.0, %v3492
  %v3494 = vpop.f32.mrb[0].mxu0
  %v3495 = vpop.f32.mrb[0].mxu0
  %v3496 = vadd.f32 0.0, %v3495
  %v3497 = vpop.f32.mrb[0].mxu0
  %3498 = vmatprep.mubr.bf16.mxu0 0
  %3499 = vmatmul.mubr.bf16.gmra.mrb[0].mxu0 %v3295
  %v3500 = vpop.f32.mrb[0].mxu0
  %v3501 = vadd.f32 0.0, %v3500
  %v3502 = vpop.f32.mrb[0].mxu0
  %v3503 = vpop.f32.mrb[0].mxu0
  %v3504 = vadd.f32 0.0, %v3503
  %v3505 = vpop.f32.mrb[0].mxu0
  %3506 = vmatprep.mubr.bf16.mxu0 0
  %3507 = vmatmul.mubr.bf16.gmra.mrb[0].mxu0 %v3296
  %v3508 = vpop.f32.mrb[0].mxu0
  %v3509 = vadd.f32 0.0, %v3508
  %v3510 = vpop.f32.mrb[0].mxu0
  %v3511 = vpop.f32.mrb[0].mxu0
  %v3512 = vadd.f32 0.0, %v3511
  %v3513 = vpop.f32.mrb[0].mxu0
  %3514 = vmatprep.mubr.bf16.mxu0 0
  %3515 = vmatmul.mubr.bf16.gmra.mrb[0].mxu0 %v3297
  %v3516 = vpop.f32.mrb[0].mxu0
  %v3517 = vadd.f32 0.0, %v3516
  %v3518 = vpop.f32.mrb[0].mxu0
  %v3519 = vpop.f32.mrb[0].mxu0
  %v3520 = vadd.f32 0.0, %v3519
  %v3521 = vpop.f32.mrb[0].mxu0
  %3522 = vdwg.mxu0
  %v3523 = vadd.f32 %v3250, %v3397
  %v3524 = vadd.f32 %v3251, %v3400
  %v3525 = vadd.f32 %v3252, %v3405
  %v3526 = vadd.f32 %v3253, %v3408
  %v3527 = vadd.f32 %v3254, %v3413
  %v3528 = vadd.f32 %v3255, %v3416
  %v3529 = vadd.f32 %v3256, %v3421
  %v3530 = vadd.f32 %v3257, %v3424
  %v3531 = vadd.f32 %v3258, %v3429
  %v3532 = vadd.f32 %v3259, %v3432
  %v3533 = vadd.f32 %v3260, %v3437
  %v3534 = vadd.f32 %v3261, %v3440
  %v3535 = vadd.f32 %v3262, %v3445
  %v3536 = vadd.f32 %v3263, %v3448
  %v3537 = vadd.f32 %v3264, %v3453
  %v3538 = vadd.f32 %v3265, %v3456
  %v3539 = vadd.f32 %v3266, %v3461
  %v3540 = vadd.f32 %v3267, %v3464
  %v3541 = vadd.f32 %v3268, %v3469
  %v3542 = vadd.f32 %v3269, %v3472
  %v3543 = vadd.f32 %v3270, %v3477
  %v3544 = vadd.f32 %v3271, %v3480
  %v3545 = vadd.f32 %v3272, %v3485
  %v3546 = vadd.f32 %v3273, %v3488
  %v3547 = vadd.f32 %v3274, %v3493
  %v3548 = vadd.f32 %v3275, %v3496
  %v3549 = vadd.f32 %v3276, %v3501
  %v3550 = vadd.f32 %v3277, %v3504
  %v3551 = vadd.f32 %v3278, %v3509
  %v3552 = vadd.f32 %v3279, %v3512
  %v3553 = vadd.f32 %v3280, %v3517
  %v3554 = vadd.f32 %v3281, %v3520
  %3555 = vst [vmem:[#allocation6] sm:$0xff] %v3523
  %3556 = vst [vmem:[#allocation6 + $0x8] sm:$0xff] %v3524
  %3557 = vst [vmem:[#allocation6 + $0x10] sm:$0xff] %v3525
  %3558 = vst [vmem:[#allocation6 + $0x18] sm:$0xff] %v3526
  %3559 = vst [vmem:[#allocation6 + $0x20] sm:$0xff] %v3527
  %3560 = vst [vmem:[#allocation6 + $0x28] sm:$0xff] %v3528
  %3561 = vst [vmem:[#allocation6 + $0x30] sm:$0xff] %v3529
  %3562 = vst [vmem:[#allocation6 + $0x38] sm:$0xff] %v3530
  %3563 = vst [vmem:[#allocation6 + $0x40] sm:$0xff] %v3531
  %3564 = vst [vmem:[#allocation6 + $0x48] sm:$0xff] %v3532
  %3565 = vst [vmem:[#allocation6 + $0x50] sm:$0xff] %v3533
  %3566 = vst [vmem:[#allocation6 + $0x58] sm:$0xff] %v3534
  %3567 = vst [vmem:[#allocation6 + $0x60] sm:$0xff] %v3535
  %3568 = vst [vmem:[#allocation6 + $0x68] sm:$0xff] %v3536
  %3569 = vst [vmem:[#allocation6 + $0x70] sm:$0xff] %v3537
  %3570 = vst [vmem:[#allocation6 + $0x78] sm:$0xff] %v3538
  %3571 = vst [vmem:[#allocation6 + $0x80] sm:$0xff] %v3539
  %3572 = vst [vmem:[#allocation6 + $0x88] sm:$0xff] %v3540
  %3573 = vst [vmem:[#allocation6 + $0x90] sm:$0xff] %v3541
  %3574 = vst [vmem:[#allocation6 + $0x98] sm:$0xff] %v3542
  %3575 = vst [vmem:[#allocation6 + $0xa0] sm:$0xff] %v3543
  %3576 = vst [vmem:[#allocation6 + $0xa8] sm:$0xff] %v3544
  %3577 = vst [vmem:[#allocation6 + $0xb0] sm:$0xff] %v3545
  %3578 = vst [vmem:[#allocation6 + $0xb8] sm:$0xff] %v3546
  %3579 = vst [vmem:[#allocation6 + $0xc0] sm:$0xff] %v3547
  %3580 = vst [vmem:[#allocation6 + $0xc8] sm:$0xff] %v3548
  %3581 = vst [vmem:[#allocation6 + $0xd0] sm:$0xff] %v3549
  %3582 = vst [vmem:[#allocation6 + $0xd8] sm:$0xff] %v3550
  %3583 = vst [vmem:[#allocation6 + $0xe0] sm:$0xff] %v3551
  %3584 = vst [vmem:[#allocation6 + $0xe8] sm:$0xff] %v3552
  %3585 = vst [vmem:[#allocation6 + $0xf0] sm:$0xff] %v3553
  %3586 = vst [vmem:[#allocation6 + $0xf8] sm:$0xff] %v3554
  %v3587 = vld [vmem:[#allocation5 + $0x19] sm:$0xff]
  %v3588 = vld [vmem:[#allocation5 + $0x21] sm:$0xff]
  %v3589 = vld [vmem:[#allocation5 + $0x29] sm:$0xff]
  %v3590 = vld [vmem:[#allocation5 + $0x31] sm:$0xff]
  %v3591 = vld [vmem:[#allocation5 + $0x39] sm:$0xff]
  %v3592 = vld [vmem:[#allocation5 + $0x41] sm:$0xff]
  %v3593 = vld [vmem:[#allocation5 + $0x49] sm:$0xff]
  %v3594 = vld [vmem:[#allocation5 + $0x51] sm:$0xff]
  %v3595 = vld [vmem:[#allocation5 + $0x59] sm:$0xff]
  %v3596 = vld [vmem:[#allocation5 + $0x61] sm:$0xff]
  %v3597 = vld [vmem:[#allocation5 + $0x69] sm:$0xff]
  %v3598 = vld [vmem:[#allocation5 + $0x71] sm:$0xff]
  %v3599 = vld [vmem:[#allocation5 + $0x79] sm:$0xff]
  %v3600 = vld [vmem:[#allocation5 + $0x81] sm:$0xff]
  %v3601 = vld [vmem:[#allocation5 + $0x89] sm:$0xff]
  %v3602 = vld [vmem:[#allocation5 + $0x91] sm:$0xff]
  %v3603 = vld [vmem:[#allocation5 + $0x99] sm:$0xff]
  %v3604 = vld [vmem:[#allocation5 + $0xa1] sm:$0xff]
  %v3605 = vld [vmem:[#allocation5 + $0xa9] sm:$0xff]
  %v3606 = vld [vmem:[#allocation5 + $0xb1] sm:$0xff]
  %v3607 = vld [vmem:[#allocation5 + $0xb9] sm:$0xff]
  %v3608 = vld [vmem:[#allocation5 + $0xc1] sm:$0xff]
  %v3609 = vld [vmem:[#allocation5 + $0xc9] sm:$0xff]
  %v3610 = vld [vmem:[#allocation5 + $0xd1] sm:$0xff]
  %v3611 = vld [vmem:[#allocation5 + $0xd9] sm:$0xff]
  %v3612 = vld [vmem:[#allocation5 + $0xe1] sm:$0xff]
  %v3613 = vld [vmem:[#allocation5 + $0xe9] sm:$0xff]
  %v3614 = vld [vmem:[#allocation5 + $0xf1] sm:$0xff]
  %v3615 = vld [vmem:[#allocation5 + $0xf9] sm:$0xff]
  %v3616 = vld [vmem:[#allocation5 + $0x101] sm:$0xff]
  %v3617 = vld [vmem:[#allocation5 + $0x109] sm:$0xff]
  %v3618 = vld [vmem:[#allocation5 + $0x111] sm:$0xff]
  %v3619 = vmul.f32 %v3587, %v1404
  %v3620 = vmul.f32 %v3588, %v1405
  %v3621 = vmul.f32 %v3589, %v1406
  %v3622 = vmul.f32 %v3590, %v1407
  %v3623 = vmul.f32 %v3591, %v1408
  %v3624 = vmul.f32 %v3592, %v1409
  %v3625 = vmul.f32 %v3593, %v1410
  %v3626 = vmul.f32 %v3594, %v1411
  %v3627 = vmul.f32 %v3595, %v1412
  %v3628 = vmul.f32 %v3596, %v1413
  %v3629 = vmul.f32 %v3597, %v1414
  %v3630 = vmul.f32 %v3598, %v1415
  %v3631 = vmul.f32 %v3599, %v1416
  %v3632 = vmul.f32 %v3600, %v1417
  %v3633 = vmul.f32 %v3601, %v1418
  %v3634 = vmul.f32 %v3602, %v1419
  %v3635 = vmul.f32 %v3603, %v1420
  %v3636 = vmul.f32 %v3604, %v1421
  %v3637 = vmul.f32 %v3605, %v1422
  %v3638 = vmul.f32 %v3606, %v1423
  %v3639 = vmul.f32 %v3607, %v1424
  %v3640 = vmul.f32 %v3608, %v1425
  %v3641 = vmul.f32 %v3609, %v1426
  %v3642 = vmul.f32 %v3610, %v1427
  %v3643 = vmul.f32 %v3611, %v1428
  %v3644 = vmul.f32 %v3612, %v1429
  %v3645 = vmul.f32 %v3613, %v1430
  %v3646 = vmul.f32 %v3614, %v1431
  %v3647 = vmul.f32 %v3615, %v1432
  %v3648 = vmul.f32 %v3616, %v1433
  %v3649 = vmul.f32 %v3617, %v1434
  %v3650 = vmul.f32 %v3618, %v1435
  %v3651 = vld [vmem:[#allocation6] sm:$0xff]
  %v3652 = vld [vmem:[#allocation6 + $0x8] sm:$0xff]
  %v3653 = vld [vmem:[#allocation6 + $0x10] sm:$0xff]
  %v3654 = vld [vmem:[#allocation6 + $0x18] sm:$0xff]
  %v3655 = vld [vmem:[#allocation6 + $0x20] sm:$0xff]
  %v3656 = vld [vmem:[#allocation6 + $0x28] sm:$0xff]
  %v3657 = vld [vmem:[#allocation6 + $0x30] sm:$0xff]
  %v3658 = vld [vmem:[#allocation6 + $0x38] sm:$0xff]
  %v3659 = vld [vmem:[#allocation6 + $0x40] sm:$0xff]
  %v3660 = vld [vmem:[#allocation6 + $0x48] sm:$0xff]
  %v3661 = vld [vmem:[#allocation6 + $0x50] sm:$0xff]
  %v3662 = vld [vmem:[#allocation6 + $0x58] sm:$0xff]
  %v3663 = vld [vmem:[#allocation6 + $0x60] sm:$0xff]
  %v3664 = vld [vmem:[#allocation6 + $0x68] sm:$0xff]
  %v3665 = vld [vmem:[#allocation6 + $0x70] sm:$0xff]
  %v3666 = vld [vmem:[#allocation6 + $0x78] sm:$0xff]
  %v3667 = vld [vmem:[#allocation6 + $0x80] sm:$0xff]
  %v3668 = vld [vmem:[#allocation6 + $0x88] sm:$0xff]
  %v3669 = vld [vmem:[#allocation6 + $0x90] sm:$0xff]
  %v3670 = vld [vmem:[#allocation6 + $0x98] sm:$0xff]
  %v3671 = vld [vmem:[#allocation6 + $0xa0] sm:$0xff]
  %v3672 = vld [vmem:[#allocation6 + $0xa8] sm:$0xff]
  %v3673 = vld [vmem:[#allocation6 + $0xb0] sm:$0xff]
  %v3674 = vld [vmem:[#allocation6 + $0xb8] sm:$0xff]
  %v3675 = vld [vmem:[#allocation6 + $0xc0] sm:$0xff]
  %v3676 = vld [vmem:[#allocation6 + $0xc8] sm:$0xff]
  %v3677 = vld [vmem:[#allocation6 + $0xd0] sm:$0xff]
  %v3678 = vld [vmem:[#allocation6 + $0xd8] sm:$0xff]
  %v3679 = vld [vmem:[#allocation6 + $0xe0] sm:$0xff]
  %v3680 = vld [vmem:[#allocation6 + $0xe8] sm:$0xff]
  %v3681 = vld [vmem:[#allocation6 + $0xf0] sm:$0xff]
  %v3682 = vld [vmem:[#allocation6 + $0xf8] sm:$0xff]
  %v3683 = vpack.c.bf16 %v3620, %v3619
  %v3684 = vpack.c.bf16 %v3622, %v3621
  %v3685 = vpack.c.bf16 %v3624, %v3623
  %v3686 = vpack.c.bf16 %v3626, %v3625
  %v3687 = vpack.c.bf16 %v3628, %v3627
  %v3688 = vpack.c.bf16 %v3630, %v3629
  %v3689 = vpack.c.bf16 %v3632, %v3631
  %v3690 = vpack.c.bf16 %v3634, %v3633
  %v3691 = vpack.c.bf16 %v3636, %v3635
  %v3692 = vpack.c.bf16 %v3638, %v3637
  %v3693 = vpack.c.bf16 %v3640, %v3639
  %v3694 = vpack.c.bf16 %v3642, %v3641
  %v3695 = vpack.c.bf16 %v3644, %v3643
  %v3696 = vpack.c.bf16 %v3646, %v3645
  %v3697 = vpack.c.bf16 %v3648, %v3647
  %v3698 = vpack.c.bf16 %v3650, %v3649
  %v3699 = vld [vmem:[%s2 + $0x140] sm:$0xf]
  %v3700 = vld [vmem:[%s2 + $0x144] sm:$0xf]
  %v3701 = vld [vmem:[%s2 + $0x148] sm:$0xf]
  %v3702 = vld [vmem:[%s2 + $0x14c] sm:$0xf]
  %v3703 = vld [vmem:[%s2 + $0x150] sm:$0xf]
  %v3704 = vld [vmem:[%s2 + $0x154] sm:$0xf]
  %v3705 = vld [vmem:[%s2 + $0x158] sm:$0xf]
  %v3706 = vld [vmem:[%s2 + $0x15c] sm:$0xf]
  %v3707 = vld [vmem:[%s2 + $0x160] sm:$0xf]
  %v3708 = vld [vmem:[%s2 + $0x164] sm:$0xf]
  %v3709 = vld [vmem:[%s2 + $0x168] sm:$0xf]
  %v3710 = vld [vmem:[%s2 + $0x16c] sm:$0xf]
  %v3711 = vld [vmem:[%s2 + $0x170] sm:$0xf]
  %v3712 = vld [vmem:[%s2 + $0x174] sm:$0xf]
  %v3713 = vld [vmem:[%s2 + $0x178] sm:$0xf]
  %v3714 = vld [vmem:[%s2 + $0x17c] sm:$0xf]
  %v3731 = vunpack.c.l.b16 %v3699
  %v3732 = vunpack.c.l.b16 %v3700
  %v3733 = vunpack.c.l.b16 %v3701
  %v3734 = vunpack.c.l.b16 %v3702
  %v3735 = vunpack.c.l.b16 %v3703
  %v3736 = vunpack.c.l.b16 %v3704
  %v3737 = vunpack.c.l.b16 %v3705
  %v3738 = vunpack.c.l.b16 %v3706
  %v3739 = vunpack.c.l.b16 %v3707
  %v3740 = vunpack.c.l.b16 %v3708
  %v3741 = vunpack.c.l.b16 %v3709
  %v3742 = vunpack.c.l.b16 %v3710
  %v3743 = vunpack.c.l.b16 %v3711
  %v3744 = vunpack.c.l.b16 %v3712
  %v3745 = vunpack.c.l.b16 %v3713
  %v3746 = vunpack.c.l.b16 %v3714
  %v3747 = vpack.c.b16 %v3732, %v3731
  %v3748 = vpack.c.b16 %v3734, %v3733
  %v3749 = vpack.c.b16 %v3736, %v3735
  %v3750 = vpack.c.b16 %v3738, %v3737
  %v3751 = vpack.c.b16 %v3740, %v3739
  %v3752 = vpack.c.b16 %v3742, %v3741
  %v3753 = vpack.c.b16 %v3744, %v3743
  %v3754 = vpack.c.b16 %v3746, %v3745
  %3763 = vmatprep.subr.bf16.mxu0 0
  %3764 = vmatpush1.bf16.msra.mxu0 %v3747
  %3765 = vmatprep.subr.bf16.mxu0 0
  %3766 = vmatpush1.bf16.msra.mxu0 %v3748
  %3767 = vmatprep.subr.bf16.mxu0 0
  %3768 = vmatpush1.bf16.msra.mxu0 %v3749
  %3769 = vmatprep.subr.bf16.mxu0 0
  %3770 = vmatpush1.bf16.msra.mxu0 %v3750
  %3771 = vmatprep.subr.bf16.mxu0 0
  %3772 = vmatpush1.bf16.msra.mxu0 %v3751
  %3773 = vmatprep.subr.bf16.mxu0 0
  %3774 = vmatpush1.bf16.msra.mxu0 %v3752
  %3775 = vmatprep.subr.bf16.mxu0 0
  %3776 = vmatpush1.bf16.msra.mxu0 %v3753
  %3777 = vmatprep.subr.bf16.mxu0 0
  %3778 = vmatpush1.bf16.msra.mxu0 %v3754
  %3779 = vmatprep.subr.bf16.mxu0 0
  %3780 = vmatpush1.bf16.msra.mxu0 0
  %3781 = vmatprep.subr.bf16.mxu0 0
  %3782 = vmatpush1.bf16.msra.mxu0 0
  %3783 = vmatprep.subr.bf16.mxu0 0
  %3784 = vmatpush1.bf16.msra.mxu0 0
  %3785 = vmatprep.subr.bf16.mxu0 0
  %3786 = vmatpush1.bf16.msra.mxu0 0
  %3787 = vmatprep.subr.bf16.mxu0 0
  %3788 = vmatpush1.bf16.msra.mxu0 0
  %3789 = vmatprep.subr.bf16.mxu0 0
  %3790 = vmatpush1.bf16.msra.mxu0 0
  %3791 = vmatprep.subr.bf16.mxu0 0
  %3792 = vmatpush1.bf16.msra.mxu0 0
  %3793 = vmatprep.subr.bf16.mxu0 0
  %3794 = vmatpush1.bf16.msra.mxu0 0
  %3795 = vmatprep.mubr.bf16.mxu0 0
  %3796 = vmatmul.mubr.bf16.gmra.mrb[0].mxu0 %v3683
  %v3797 = vpop.f32.mrb[0].mxu0
  %v3798 = vadd.f32 0.0, %v3797
  %v3799 = vpop.f32.mrb[0].mxu0
  %v3800 = vpop.f32.mrb[0].mxu0
  %v3801 = vadd.f32 0.0, %v3800
  %v3802 = vpop.f32.mrb[0].mxu0
  %3803 = vmatprep.mubr.bf16.mxu0 0
  %3804 = vmatmul.mubr.bf16.gmra.mrb[0].mxu0 %v3684
  %v3805 = vpop.f32.mrb[0].mxu0
  %v3806 = vadd.f32 0.0, %v3805
  %v3807 = vpop.f32.mrb[0].mxu0
  %v3808 = vpop.f32.mrb[0].mxu0
  %v3809 = vadd.f32 0.0, %v3808
  %v3810 = vpop.f32.mrb[0].mxu0
  %3811 = vmatprep.mubr.bf16.mxu0 0
  %3812 = vmatmul.mubr.bf16.gmra.mrb[0].mxu0 %v3685
  %v3813 = vpop.f32.mrb[0].mxu0
  %v3814 = vadd.f32 0.0, %v3813
  %v3815 = vpop.f32.mrb[0].mxu0
  %v3816 = vpop.f32.mrb[0].mxu0
  %v3817 = vadd.f32 0.0, %v3816
  %v3818 = vpop.f32.mrb[0].mxu0
  %3819 = vmatprep.mubr.bf16.mxu0 0
  %3820 = vmatmul.mubr.bf16.gmra.mrb[0].mxu0 %v3686
  %v3821 = vpop.f32.mrb[0].mxu0
  %v3822 = vadd.f32 0.0, %v3821
  %v3823 = vpop.f32.mrb[0].mxu0
  %v3824 = vpop.f32.mrb[0].mxu0
  %v3825 = vadd.f32 0.0, %v3824
  %v3826 = vpop.f32.mrb[0].mxu0
  %3827 = vmatprep.mubr.bf16.mxu0 0
  %3828 = vmatmul.mubr.bf16.gmra.mrb[0].mxu0 %v3687
  %v3829 = vpop.f32.mrb[0].mxu0
  %v3830 = vadd.f32 0.0, %v3829
  %v3831 = vpop.f32.mrb[0].mxu0
  %v3832 = vpop.f32.mrb[0].mxu0
  %v3833 = vadd.f32 0.0, %v3832
  %v3834 = vpop.f32.mrb[0].mxu0
  %3835 = vmatprep.mubr.bf16.mxu0 0
  %3836 = vmatmul.mubr.bf16.gmra.mrb[0].mxu0 %v3688
  %v3837 = vpop.f32.mrb[0].mxu0
  %v3838 = vadd.f32 0.0, %v3837
  %v3839 = vpop.f32.mrb[0].mxu0
  %v3840 = vpop.f32.mrb[0].mxu0
  %v3841 = vadd.f32 0.0, %v3840
  %v3842 = vpop.f32.mrb[0].mxu0
  %3843 = vmatprep.mubr.bf16.mxu0 0
  %3844 = vmatmul.mubr.bf16.gmra.mrb[0].mxu0 %v3689
  %v3845 = vpop.f32.mrb[0].mxu0
  %v3846 = vadd.f32 0.0, %v3845
  %v3847 = vpop.f32.mrb[0].mxu0
  %v3848 = vpop.f32.mrb[0].mxu0
  %v3849 = vadd.f32 0.0, %v3848
  %v3850 = vpop.f32.mrb[0].mxu0
  %3851 = vmatprep.mubr.bf16.mxu0 0
  %3852 = vmatmul.mubr.bf16.gmra.mrb[0].mxu0 %v3690
  %v3853 = vpop.f32.mrb[0].mxu0
  %v3854 = vadd.f32 0.0, %v3853
  %v3855 = vpop.f32.mrb[0].mxu0
  %v3856 = vpop.f32.mrb[0].mxu0
  %v3857 = vadd.f32 0.0, %v3856
  %v3858 = vpop.f32.mrb[0].mxu0
  %3859 = vmatprep.mubr.bf16.mxu0 0
  %3860 = vmatmul.mubr.bf16.gmra.mrb[0].mxu0 %v3691
  %v3861 = vpop.f32.mrb[0].mxu0
  %v3862 = vadd.f32 0.0, %v3861
  %v3863 = vpop.f32.mrb[0].mxu0
  %v3864 = vpop.f32.mrb[0].mxu0
  %v3865 = vadd.f32 0.0, %v3864
  %v3866 = vpop.f32.mrb[0].mxu0
  %3867 = vmatprep.mubr.bf16.mxu0 0
  %3868 = vmatmul.mubr.bf16.gmra.mrb[0].mxu0 %v3692
  %v3869 = vpop.f32.mrb[0].mxu0
  %v3870 = vadd.f32 0.0, %v3869
  %v3871 = vpop.f32.mrb[0].mxu0
  %v3872 = vpop.f32.mrb[0].mxu0
  %v3873 = vadd.f32 0.0, %v3872
  %v3874 = vpop.f32.mrb[0].mxu0
  %3875 = vmatprep.mubr.bf16.mxu0 0
  %3876 = vmatmul.mubr.bf16.gmra.mrb[0].mxu0 %v3693
  %v3877 = vpop.f32.mrb[0].mxu0
  %v3878 = vadd.f32 0.0, %v3877
  %v3879 = vpop.f32.mrb[0].mxu0
  %v3880 = vpop.f32.mrb[0].mxu0
  %v3881 = vadd.f32 0.0, %v3880
  %v3882 = vpop.f32.mrb[0].mxu0
  %3883 = vmatprep.mubr.bf16.mxu0 0
  %3884 = vmatmul.mubr.bf16.gmra.mrb[0].mxu0 %v3694
  %v3885 = vpop.f32.mrb[0].mxu0
  %v3886 = vadd.f32 0.0, %v3885
  %v3887 = vpop.f32.mrb[0].mxu0
  %v3888 = vpop.f32.mrb[0].mxu0
  %v3889 = vadd.f32 0.0, %v3888
  %v3890 = vpop.f32.mrb[0].mxu0
  %3891 = vmatprep.mubr.bf16.mxu0 0
  %3892 = vmatmul.mubr.bf16.gmra.mrb[0].mxu0 %v3695
  %v3893 = vpop.f32.mrb[0].mxu0
  %v3894 = vadd.f32 0.0, %v3893
  %v3895 = vpop.f32.mrb[0].mxu0
  %v3896 = vpop.f32.mrb[0].mxu0
  %v3897 = vadd.f32 0.0, %v3896
  %v3898 = vpop.f32.mrb[0].mxu0
  %3899 = vmatprep.mubr.bf16.mxu0 0
  %3900 = vmatmul.mubr.bf16.gmra.mrb[0].mxu0 %v3696
  %v3901 = vpop.f32.mrb[0].mxu0
  %v3902 = vadd.f32 0.0, %v3901
  %v3903 = vpop.f32.mrb[0].mxu0
  %v3904 = vpop.f32.mrb[0].mxu0
  %v3905 = vadd.f32 0.0, %v3904
  %v3906 = vpop.f32.mrb[0].mxu0
  %3907 = vmatprep.mubr.bf16.mxu0 0
  %3908 = vmatmul.mubr.bf16.gmra.mrb[0].mxu0 %v3697
  %v3909 = vpop.f32.mrb[0].mxu0
  %v3910 = vadd.f32 0.0, %v3909
  %v3911 = vpop.f32.mrb[0].mxu0
  %v3912 = vpop.f32.mrb[0].mxu0
  %v3913 = vadd.f32 0.0, %v3912
  %v3914 = vpop.f32.mrb[0].mxu0
  %3915 = vmatprep.mubr.bf16.mxu0 0
  %3916 = vmatmul.mubr.bf16.gmra.mrb[0].mxu0 %v3698
  %v3917 = vpop.f32.mrb[0].mxu0
  %v3918 = vadd.f32 0.0, %v3917
  %v3919 = vpop.f32.mrb[0].mxu0
  %v3920 = vpop.f32.mrb[0].mxu0
  %v3921 = vadd.f32 0.0, %v3920
  %v3922 = vpop.f32.mrb[0].mxu0
  %3923 = vdwg.mxu0
  %v3924 = vadd.f32 %v3651, %v3798
  %v3925 = vadd.f32 %v3652, %v3801
  %v3926 = vadd.f32 %v3653, %v3806
  %v3927 = vadd.f32 %v3654, %v3809
  %v3928 = vadd.f32 %v3655, %v3814
  %v3929 = vadd.f32 %v3656, %v3817
  %v3930 = vadd.f32 %v3657, %v3822
  %v3931 = vadd.f32 %v3658, %v3825
  %v3932 = vadd.f32 %v3659, %v3830
  %v3933 = vadd.f32 %v3660, %v3833
  %v3934 = vadd.f32 %v3661, %v3838
  %v3935 = vadd.f32 %v3662, %v3841
  %v3936 = vadd.f32 %v3663, %v3846
  %v3937 = vadd.f32 %v3664, %v3849
  %v3938 = vadd.f32 %v3665, %v3854
  %v3939 = vadd.f32 %v3666, %v3857
  %v3940 = vadd.f32 %v3667, %v3862
  %v3941 = vadd.f32 %v3668, %v3865
  %v3942 = vadd.f32 %v3669, %v3870
  %v3943 = vadd.f32 %v3670, %v3873
  %v3944 = vadd.f32 %v3671, %v3878
  %v3945 = vadd.f32 %v3672, %v3881
  %v3946 = vadd.f32 %v3673, %v3886
  %v3947 = vadd.f32 %v3674, %v3889
  %v3948 = vadd.f32 %v3675, %v3894
  %v3949 = vadd.f32 %v3676, %v3897
  %v3950 = vadd.f32 %v3677, %v3902
  %v3951 = vadd.f32 %v3678, %v3905
  %v3952 = vadd.f32 %v3679, %v3910
  %v3953 = vadd.f32 %v3680, %v3913
  %v3954 = vadd.f32 %v3681, %v3918
  %v3955 = vadd.f32 %v3682, %v3921
  %3956 = vst [vmem:[#allocation6] sm:$0xff] %v3924
  %3957 = vst [vmem:[#allocation6 + $0x8] sm:$0xff] %v3925
  %3958 = vst [vmem:[#allocation6 + $0x10] sm:$0xff] %v3926
  %3959 = vst [vmem:[#allocation6 + $0x18] sm:$0xff] %v3927
  %3960 = vst [vmem:[#allocation6 + $0x20] sm:$0xff] %v3928
  %3961 = vst [vmem:[#allocation6 + $0x28] sm:$0xff] %v3929
  %3962 = vst [vmem:[#allocation6 + $0x30] sm:$0xff] %v3930
  %3963 = vst [vmem:[#allocation6 + $0x38] sm:$0xff] %v3931
  %3964 = vst [vmem:[#allocation6 + $0x40] sm:$0xff] %v3932
  %3965 = vst [vmem:[#allocation6 + $0x48] sm:$0xff] %v3933
  %3966 = vst [vmem:[#allocation6 + $0x50] sm:$0xff] %v3934
  %3967 = vst [vmem:[#allocation6 + $0x58] sm:$0xff] %v3935
  %3968 = vst [vmem:[#allocation6 + $0x60] sm:$0xff] %v3936
  %3969 = vst [vmem:[#allocation6 + $0x68] sm:$0xff] %v3937
  %3970 = vst [vmem:[#allocation6 + $0x70] sm:$0xff] %v3938
  %3971 = vst [vmem:[#allocation6 + $0x78] sm:$0xff] %v3939
  %3972 = vst [vmem:[#allocation6 + $0x80] sm:$0xff] %v3940
  %3973 = vst [vmem:[#allocation6 + $0x88] sm:$0xff] %v3941
  %3974 = vst [vmem:[#allocation6 + $0x90] sm:$0xff] %v3942
  %3975 = vst [vmem:[#allocation6 + $0x98] sm:$0xff] %v3943
  %3976 = vst [vmem:[#allocation6 + $0xa0] sm:$0xff] %v3944
  %3977 = vst [vmem:[#allocation6 + $0xa8] sm:$0xff] %v3945
  %3978 = vst [vmem:[#allocation6 + $0xb0] sm:$0xff] %v3946
  %3979 = vst [vmem:[#allocation6 + $0xb8] sm:$0xff] %v3947
  %3980 = vst [vmem:[#allocation6 + $0xc0] sm:$0xff] %v3948
  %3981 = vst [vmem:[#allocation6 + $0xc8] sm:$0xff] %v3949
  %3982 = vst [vmem:[#allocation6 + $0xd0] sm:$0xff] %v3950
  %3983 = vst [vmem:[#allocation6 + $0xd8] sm:$0xff] %v3951
  %3984 = vst [vmem:[#allocation6 + $0xe0] sm:$0xff] %v3952
  %3985 = vst [vmem:[#allocation6 + $0xe8] sm:$0xff] %v3953
  %3986 = vst [vmem:[#allocation6 + $0xf0] sm:$0xff] %v3954
  %3987 = vst [vmem:[#allocation6 + $0xf8] sm:$0xff] %v3955
  %v3988 = vld [vmem:[#allocation5 + $0x27] sm:$0xff]
  %v3989 = vld [vmem:[#allocation5 + $0x2f] sm:$0xff]
  %v3990 = vld [vmem:[#allocation5 + $0x37] sm:$0xff]
  %v3991 = vld [vmem:[#allocation5 + $0x3f] sm:$0xff]
  %v3992 = vld [vmem:[#allocation5 + $0x47] sm:$0xff]
  %v3993 = vld [vmem:[#allocation5 + $0x4f] sm:$0xff]
  %v3994 = vld [vmem:[#allocation5 + $0x57] sm:$0xff]
  %v3995 = vld [vmem:[#allocation5 + $0x5f] sm:$0xff]
  %v3996 = vld [vmem:[#allocation5 + $0x67] sm:$0xff]
  %v3997 = vld [vmem:[#allocation5 + $0x6f] sm:$0xff]
  %v3998 = vld [vmem:[#allocation5 + $0x77] sm:$0xff]
  %v3999 = vld [vmem:[#allocation5 + $0x7f] sm:$0xff]
  %v4000 = vld [vmem:[#allocation5 + $0x87] sm:$0xff]
  %v4001 = vld [vmem:[#allocation5 + $0x8f] sm:$0xff]
  %v4002 = vld [vmem:[#allocation5 + $0x97] sm:$0xff]
  %v4003 = vld [vmem:[#allocation5 + $0x9f] sm:$0xff]
  %v4004 = vld [vmem:[#allocation5 + $0xa7] sm:$0xff]
  %v4005 = vld [vmem:[#allocation5 + $0xaf] sm:$0xff]
  %v4006 = vld [vmem:[#allocation5 + $0xb7] sm:$0xff]
  %v4007 = vld [vmem:[#allocation5 + $0xbf] sm:$0xff]
  %v4008 = vld [vmem:[#allocation5 + $0xc7] sm:$0xff]
  %v4009 = vld [vmem:[#allocation5 + $0xcf] sm:$0xff]
  %v4010 = vld [vmem:[#allocation5 + $0xd7] sm:$0xff]
  %v4011 = vld [vmem:[#allocation5 + $0xdf] sm:$0xff]
  %v4012 = vld [vmem:[#allocation5 + $0xe7] sm:$0xff]
  %v4013 = vld [vmem:[#allocation5 + $0xef] sm:$0xff]
  %v4014 = vld [vmem:[#allocation5 + $0xf7] sm:$0xff]
  %v4015 = vld [vmem:[#allocation5 + $0xff] sm:$0xff]
  %v4016 = vld [vmem:[#allocation5 + $0x107] sm:$0xff]
  %v4017 = vld [vmem:[#allocation5 + $0x10f] sm:$0xff]
  %v4018 = vld [vmem:[#allocation5 + $0x117] sm:$0xff]
  %v4019 = vld [vmem:[#allocation5 + $0x11f] sm:$0xff]
  %v4020 = vmul.f32 %v3988, %v1308
  %v4021 = vmul.f32 %v3989, %v1309
  %v4022 = vmul.f32 %v3990, %v1310
  %v4023 = vmul.f32 %v3991, %v1311
  %v4024 = vmul.f32 %v3992, %v1312
  %v4025 = vmul.f32 %v3993, %v1313
  %v4026 = vmul.f32 %v3994, %v1314
  %v4027 = vmul.f32 %v3995, %v1315
  %v4028 = vmul.f32 %v3996, %v1316
  %v4029 = vmul.f32 %v3997, %v1317
  %v4030 = vmul.f32 %v3998, %v1318
  %v4031 = vmul.f32 %v3999, %v1319
  %v4032 = vmul.f32 %v4000, %v1320
  %v4033 = vmul.f32 %v4001, %v1321
  %v4034 = vmul.f32 %v4002, %v1322
  %v4035 = vmul.f32 %v4003, %v1323
  %v4036 = vmul.f32 %v4004, %v1324
  %v4037 = vmul.f32 %v4005, %v1325
  %v4038 = vmul.f32 %v4006, %v1326
  %v4039 = vmul.f32 %v4007, %v1327
  %v4040 = vmul.f32 %v4008, %v1328
  %v4041 = vmul.f32 %v4009, %v1329
  %v4042 = vmul.f32 %v4010, %v1330
  %v4043 = vmul.f32 %v4011, %v1331
  %v4044 = vmul.f32 %v4012, %v1332
  %v4045 = vmul.f32 %v4013, %v1333
  %v4046 = vmul.f32 %v4014, %v1334
  %v4047 = vmul.f32 %v4015, %v1335
  %v4048 = vmul.f32 %v4016, %v1336
  %v4049 = vmul.f32 %v4017, %v1337
  %v4050 = vmul.f32 %v4018, %v1338
  %v4051 = vmul.f32 %v4019, %v1339
  %v4052 = vld [vmem:[#allocation6] sm:$0xff]
  %v4053 = vld [vmem:[#allocation6 + $0x8] sm:$0xff]
  %v4054 = vld [vmem:[#allocation6 + $0x10] sm:$0xff]
  %v4055 = vld [vmem:[#allocation6 + $0x18] sm:$0xff]
  %v4056 = vld [vmem:[#allocation6 + $0x20] sm:$0xff]
  %v4057 = vld [vmem:[#allocation6 + $0x28] sm:$0xff]
  %v4058 = vld [vmem:[#allocation6 + $0x30] sm:$0xff]
  %v4059 = vld [vmem:[#allocation6 + $0x38] sm:$0xff]
  %v4060 = vld [vmem:[#allocation6 + $0x40] sm:$0xff]
  %v4061 = vld [vmem:[#allocation6 + $0x48] sm:$0xff]
  %v4062 = vld [vmem:[#allocation6 + $0x50] sm:$0xff]
  %v4063 = vld [vmem:[#allocation6 + $0x58] sm:$0xff]
  %v4064 = vld [vmem:[#allocation6 + $0x60] sm:$0xff]
  %v4065 = vld [vmem:[#allocation6 + $0x68] sm:$0xff]
  %v4066 = vld [vmem:[#allocation6 + $0x70] sm:$0xff]
  %v4067 = vld [vmem:[#allocation6 + $0x78] sm:$0xff]
  %v4068 = vld [vmem:[#allocation6 + $0x80] sm:$0xff]
  %v4069 = vld [vmem:[#allocation6 + $0x88] sm:$0xff]
  %v4070 = vld [vmem:[#allocation6 + $0x90] sm:$0xff]
  %v4071 = vld [vmem:[#allocation6 + $0x98] sm:$0xff]
  %v4072 = vld [vmem:[#allocation6 + $0xa0] sm:$0xff]
  %v4073 = vld [vmem:[#allocation6 + $0xa8] sm:$0xff]
  %v4074 = vld [vmem:[#allocation6 + $0xb0] sm:$0xff]
  %v4075 = vld [vmem:[#allocation6 + $0xb8] sm:$0xff]
  %v4076 = vld [vmem:[#allocation6 + $0xc0] sm:$0xff]
  %v4077 = vld [vmem:[#allocation6 + $0xc8] sm:$0xff]
  %v4078 = vld [vmem:[#allocation6 + $0xd0] sm:$0xff]
  %v4079 = vld [vmem:[#allocation6 + $0xd8] sm:$0xff]
  %v4080 = vld [vmem:[#allocation6 + $0xe0] sm:$0xff]
  %v4081 = vld [vmem:[#allocation6 + $0xe8] sm:$0xff]
  %v4082 = vld [vmem:[#allocation6 + $0xf0] sm:$0xff]
  %v4083 = vld [vmem:[#allocation6 + $0xf8] sm:$0xff]
  %v4084 = vpack.c.bf16 %v4021, %v4020
  %v4085 = vpack.c.bf16 %v4023, %v4022
  %v4086 = vpack.c.bf16 %v4025, %v4024
  %v4087 = vpack.c.bf16 %v4027, %v4026
  %v4088 = vpack.c.bf16 %v4029, %v4028
  %v4089 = vpack.c.bf16 %v4031, %v4030
  %v4090 = vpack.c.bf16 %v4033, %v4032
  %v4091 = vpack.c.bf16 %v4035, %v4034
  %v4092 = vpack.c.bf16 %v4037, %v4036
  %v4093 = vpack.c.bf16 %v4039, %v4038
  %v4094 = vpack.c.bf16 %v4041, %v4040
  %v4095 = vpack.c.bf16 %v4043, %v4042
  %v4096 = vpack.c.bf16 %v4045, %v4044
  %v4097 = vpack.c.bf16 %v4047, %v4046
  %v4098 = vpack.c.bf16 %v4049, %v4048
  %v4099 = vpack.c.bf16 %v4051, %v4050
  %v4100 = vld [vmem:[%s2 + $0x180] sm:$0xf]
  %v4101 = vld [vmem:[%s2 + $0x184] sm:$0xf]
  %v4102 = vld [vmem:[%s2 + $0x188] sm:$0xf]
  %v4103 = vld [vmem:[%s2 + $0x18c] sm:$0xf]
  %v4104 = vld [vmem:[%s2 + $0x190] sm:$0xf]
  %v4105 = vld [vmem:[%s2 + $0x194] sm:$0xf]
  %v4106 = vld [vmem:[%s2 + $0x198] sm:$0xf]
  %v4107 = vld [vmem:[%s2 + $0x19c] sm:$0xf]
  %v4108 = vld [vmem:[%s2 + $0x1a0] sm:$0xf]
  %v4109 = vld [vmem:[%s2 + $0x1a4] sm:$0xf]
  %v4110 = vld [vmem:[%s2 + $0x1a8] sm:$0xf]
  %v4111 = vld [vmem:[%s2 + $0x1ac] sm:$0xf]
  %v4112 = vld [vmem:[%s2 + $0x1b0] sm:$0xf]
  %v4113 = vld [vmem:[%s2 + $0x1b4] sm:$0xf]
  %v4114 = vld [vmem:[%s2 + $0x1b8] sm:$0xf]
  %v4115 = vld [vmem:[%s2 + $0x1bc] sm:$0xf]
  %v4132 = vunpack.c.l.b16 %v4100
  %v4133 = vunpack.c.l.b16 %v4101
  %v4134 = vunpack.c.l.b16 %v4102
  %v4135 = vunpack.c.l.b16 %v4103
  %v4136 = vunpack.c.l.b16 %v4104
  %v4137 = vunpack.c.l.b16 %v4105
  %v4138 = vunpack.c.l.b16 %v4106
  %v4139 = vunpack.c.l.b16 %v4107
  %v4140 = vunpack.c.l.b16 %v4108
  %v4141 = vunpack.c.l.b16 %v4109
  %v4142 = vunpack.c.l.b16 %v4110
  %v4143 = vunpack.c.l.b16 %v4111
  %v4144 = vunpack.c.l.b16 %v4112
  %v4145 = vunpack.c.l.b16 %v4113
  %v4146 = vunpack.c.l.b16 %v4114
  %v4147 = vunpack.c.l.b16 %v4115
  %v4148 = vpack.c.b16 %v4133, %v4132
  %v4149 = vpack.c.b16 %v4135, %v4134
  %v4150 = vpack.c.b16 %v4137, %v4136
  %v4151 = vpack.c.b16 %v4139, %v4138
  %v4152 = vpack.c.b16 %v4141, %v4140
  %v4153 = vpack.c.b16 %v4143, %v4142
  %v4154 = vpack.c.b16 %v4145, %v4144
  %v4155 = vpack.c.b16 %v4147, %v4146
  %4164 = vmatprep.subr.bf16.mxu0 0
  %4165 = vmatpush1.bf16.msra.mxu0 %v4148
  %4166 = vmatprep.subr.bf16.mxu0 0
  %4167 = vmatpush1.bf16.msra.mxu0 %v4149
  %4168 = vmatprep.subr.bf16.mxu0 0
  %4169 = vmatpush1.bf16.msra.mxu0 %v4150
  %4170 = vmatprep.subr.bf16.mxu0 0
  %4171 = vmatpush1.bf16.msra.mxu0 %v4151
  %4172 = vmatprep.subr.bf16.mxu0 0
  %4173 = vmatpush1.bf16.msra.mxu0 %v4152
  %4174 = vmatprep.subr.bf16.mxu0 0
  %4175 = vmatpush1.bf16.msra.mxu0 %v4153
  %4176 = vmatprep.subr.bf16.mxu0 0
  %4177 = vmatpush1.bf16.msra.mxu0 %v4154
  %4178 = vmatprep.subr.bf16.mxu0 0
  %4179 = vmatpush1.bf16.msra.mxu0 %v4155
  %4180 = vmatprep.subr.bf16.mxu0 0
  %4181 = vmatpush1.bf16.msra.mxu0 0
  %4182 = vmatprep.subr.bf16.mxu0 0
  %4183 = vmatpush1.bf16.msra.mxu0 0
  %4184 = vmatprep.subr.bf16.mxu0 0
  %4185 = vmatpush1.bf16.msra.mxu0 0
  %4186 = vmatprep.subr.bf16.mxu0 0
  %4187 = vmatpush1.bf16.msra.mxu0 0
  %4188 = vmatprep.subr.bf16.mxu0 0
  %4189 = vmatpush1.bf16.msra.mxu0 0
  %4190 = vmatprep.subr.bf16.mxu0 0
  %4191 = vmatpush1.bf16.msra.mxu0 0
  %4192 = vmatprep.subr.bf16.mxu0 0
  %4193 = vmatpush1.bf16.msra.mxu0 0
  %4194 = vmatprep.subr.bf16.mxu0 0
  %4195 = vmatpush1.bf16.msra.mxu0 0
  %4196 = vmatprep.mubr.bf16.mxu0 0
  %4197 = vmatmul.mubr.bf16.gmra.mrb[0].mxu0 %v4084
  %v4198 = vpop.f32.mrb[0].mxu0
  %v4199 = vadd.f32 0.0, %v4198
  %v4200 = vpop.f32.mrb[0].mxu0
  %v4201 = vpop.f32.mrb[0].mxu0
  %v4202 = vadd.f32 0.0, %v4201
  %v4203 = vpop.f32.mrb[0].mxu0
  %4204 = vmatprep.mubr.bf16.mxu0 0
  %4205 = vmatmul.mubr.bf16.gmra.mrb[0].mxu0 %v4085
  %v4206 = vpop.f32.mrb[0].mxu0
  %v4207 = vadd.f32 0.0, %v4206
  %v4208 = vpop.f32.mrb[0].mxu0
  %v4209 = vpop.f32.mrb[0].mxu0
  %v4210 = vadd.f32 0.0, %v4209
  %v4211 = vpop.f32.mrb[0].mxu0
  %4212 = vmatprep.mubr.bf16.mxu0 0
  %4213 = vmatmul.mubr.bf16.gmra.mrb[0].mxu0 %v4086
  %v4214 = vpop.f32.mrb[0].mxu0
  %v4215 = vadd.f32 0.0, %v4214
  %v4216 = vpop.f32.mrb[0].mxu0
  %v4217 = vpop.f32.mrb[0].mxu0
  %v4218 = vadd.f32 0.0, %v4217
  %v4219 = vpop.f32.mrb[0].mxu0
  %4220 = vmatprep.mubr.bf16.mxu0 0
  %4221 = vmatmul.mubr.bf16.gmra.mrb[0].mxu0 %v4087
  %v4222 = vpop.f32.mrb[0].mxu0
  %v4223 = vadd.f32 0.0, %v4222
  %v4224 = vpop.f32.mrb[0].mxu0
  %v4225 = vpop.f32.mrb[0].mxu0
  %v4226 = vadd.f32 0.0, %v4225
  %v4227 = vpop.f32.mrb[0].mxu0
  %4228 = vmatprep.mubr.bf16.mxu0 0
  %4229 = vmatmul.mubr.bf16.gmra.mrb[0].mxu0 %v4088
  %v4230 = vpop.f32.mrb[0].mxu0
  %v4231 = vadd.f32 0.0, %v4230
  %v4232 = vpop.f32.mrb[0].mxu0
  %v4233 = vpop.f32.mrb[0].mxu0
  %v4234 = vadd.f32 0.0, %v4233
  %v4235 = vpop.f32.mrb[0].mxu0
  %4236 = vmatprep.mubr.bf16.mxu0 0
  %4237 = vmatmul.mubr.bf16.gmra.mrb[0].mxu0 %v4089
  %v4238 = vpop.f32.mrb[0].mxu0
  %v4239 = vadd.f32 0.0, %v4238
  %v4240 = vpop.f32.mrb[0].mxu0
  %v4241 = vpop.f32.mrb[0].mxu0
  %v4242 = vadd.f32 0.0, %v4241
  %v4243 = vpop.f32.mrb[0].mxu0
  %4244 = vmatprep.mubr.bf16.mxu0 0
  %4245 = vmatmul.mubr.bf16.gmra.mrb[0].mxu0 %v4090
  %v4246 = vpop.f32.mrb[0].mxu0
  %v4247 = vadd.f32 0.0, %v4246
  %v4248 = vpop.f32.mrb[0].mxu0
  %v4249 = vpop.f32.mrb[0].mxu0
  %v4250 = vadd.f32 0.0, %v4249
  %v4251 = vpop.f32.mrb[0].mxu0
  %4252 = vmatprep.mubr.bf16.mxu0 0
  %4253 = vmatmul.mubr.bf16.gmra.mrb[0].mxu0 %v4091
  %v4254 = vpop.f32.mrb[0].mxu0
  %v4255 = vadd.f32 0.0, %v4254
  %v4256 = vpop.f32.mrb[0].mxu0
  %v4257 = vpop.f32.mrb[0].mxu0
  %v4258 = vadd.f32 0.0, %v4257
  %v4259 = vpop.f32.mrb[0].mxu0
  %4260 = vmatprep.mubr.bf16.mxu0 0
  %4261 = vmatmul.mubr.bf16.gmra.mrb[0].mxu0 %v4092
  %v4262 = vpop.f32.mrb[0].mxu0
  %v4263 = vadd.f32 0.0, %v4262
  %v4264 = vpop.f32.mrb[0].mxu0
  %v4265 = vpop.f32.mrb[0].mxu0
  %v4266 = vadd.f32 0.0, %v4265
  %v4267 = vpop.f32.mrb[0].mxu0
  %4268 = vmatprep.mubr.bf16.mxu0 0
  %4269 = vmatmul.mubr.bf16.gmra.mrb[0].mxu0 %v4093
  %v4270 = vpop.f32.mrb[0].mxu0
  %v4271 = vadd.f32 0.0, %v4270
  %v4272 = vpop.f32.mrb[0].mxu0
  %v4273 = vpop.f32.mrb[0].mxu0
  %v4274 = vadd.f32 0.0, %v4273
  %v4275 = vpop.f32.mrb[0].mxu0
  %4276 = vmatprep.mubr.bf16.mxu0 0
  %4277 = vmatmul.mubr.bf16.gmra.mrb[0].mxu0 %v4094
  %v4278 = vpop.f32.mrb[0].mxu0
  %v4279 = vadd.f32 0.0, %v4278
  %v4280 = vpop.f32.mrb[0].mxu0
  %v4281 = vpop.f32.mrb[0].mxu0
  %v4282 = vadd.f32 0.0, %v4281
  %v4283 = vpop.f32.mrb[0].mxu0
  %4284 = vmatprep.mubr.bf16.mxu0 0
  %4285 = vmatmul.mubr.bf16.gmra.mrb[0].mxu0 %v4095
  %v4286 = vpop.f32.mrb[0].mxu0
  %v4287 = vadd.f32 0.0, %v4286
  %v4288 = vpop.f32.mrb[0].mxu0
  %v4289 = vpop.f32.mrb[0].mxu0
  %v4290 = vadd.f32 0.0, %v4289
  %v4291 = vpop.f32.mrb[0].mxu0
  %4292 = vmatprep.mubr.bf16.mxu0 0
  %4293 = vmatmul.mubr.bf16.gmra.mrb[0].mxu0 %v4096
  %v4294 = vpop.f32.mrb[0].mxu0
  %v4295 = vadd.f32 0.0, %v4294
  %v4296 = vpop.f32.mrb[0].mxu0
  %v4297 = vpop.f32.mrb[0].mxu0
  %v4298 = vadd.f32 0.0, %v4297
  %v4299 = vpop.f32.mrb[0].mxu0
  %4300 = vmatprep.mubr.bf16.mxu0 0
  %4301 = vmatmul.mubr.bf16.gmra.mrb[0].mxu0 %v4097
  %v4302 = vpop.f32.mrb[0].mxu0
  %v4303 = vadd.f32 0.0, %v4302
  %v4304 = vpop.f32.mrb[0].mxu0
  %v4305 = vpop.f32.mrb[0].mxu0
  %v4306 = vadd.f32 0.0, %v4305
  %v4307 = vpop.f32.mrb[0].mxu0
  %4308 = vmatprep.mubr.bf16.mxu0 0
  %4309 = vmatmul.mubr.bf16.gmra.mrb[0].mxu0 %v4098
  %v4310 = vpop.f32.mrb[0].mxu0
  %v4311 = vadd.f32 0.0, %v4310
  %v4312 = vpop.f32.mrb[0].mxu0
  %v4313 = vpop.f32.mrb[0].mxu0
  %v4314 = vadd.f32 0.0, %v4313
  %v4315 = vpop.f32.mrb[0].mxu0
  %4316 = vmatprep.mubr.bf16.mxu0 0
  %4317 = vmatmul.mubr.bf16.gmra.mrb[0].mxu0 %v4099
  %v4318 = vpop.f32.mrb[0].mxu0
  %v4319 = vadd.f32 0.0, %v4318
  %v4320 = vpop.f32.mrb[0].mxu0
  %v4321 = vpop.f32.mrb[0].mxu0
  %v4322 = vadd.f32 0.0, %v4321
  %v4323 = vpop.f32.mrb[0].mxu0
  %4324 = vdwg.mxu0
  %v4325 = vadd.f32 %v4052, %v4199
  %v4326 = vadd.f32 %v4053, %v4202
  %v4327 = vadd.f32 %v4054, %v4207
  %v4328 = vadd.f32 %v4055, %v4210
  %v4329 = vadd.f32 %v4056, %v4215
  %v4330 = vadd.f32 %v4057, %v4218
  %v4331 = vadd.f32 %v4058, %v4223
  %v4332 = vadd.f32 %v4059, %v4226
  %v4333 = vadd.f32 %v4060, %v4231
  %v4334 = vadd.f32 %v4061, %v4234
  %v4335 = vadd.f32 %v4062, %v4239
  %v4336 = vadd.f32 %v4063, %v4242
  %v4337 = vadd.f32 %v4064, %v4247
  %v4338 = vadd.f32 %v4065, %v4250
  %v4339 = vadd.f32 %v4066, %v4255
  %v4340 = vadd.f32 %v4067, %v4258
  %v4341 = vadd.f32 %v4068, %v4263
  %v4342 = vadd.f32 %v4069, %v4266
  %v4343 = vadd.f32 %v4070, %v4271
  %v4344 = vadd.f32 %v4071, %v4274
  %v4345 = vadd.f32 %v4072, %v4279
  %v4346 = vadd.f32 %v4073, %v4282
  %v4347 = vadd.f32 %v4074, %v4287
  %v4348 = vadd.f32 %v4075, %v4290
  %v4349 = vadd.f32 %v4076, %v4295
  %v4350 = vadd.f32 %v4077, %v4298
  %v4351 = vadd.f32 %v4078, %v4303
  %v4352 = vadd.f32 %v4079, %v4306
  %v4353 = vadd.f32 %v4080, %v4311
  %v4354 = vadd.f32 %v4081, %v4314
  %v4355 = vadd.f32 %v4082, %v4319
  %v4356 = vadd.f32 %v4083, %v4322
  %4357 = vst [vmem:[#allocation6] sm:$0xff] %v4325
  %4358 = vst [vmem:[#allocation6 + $0x8] sm:$0xff] %v4326
  %4359 = vst [vmem:[#allocation6 + $0x10] sm:$0xff] %v4327
  %4360 = vst [vmem:[#allocation6 + $0x18] sm:$0xff] %v4328
  %4361 = vst [vmem:[#allocation6 + $0x20] sm:$0xff] %v4329
  %4362 = vst [vmem:[#allocation6 + $0x28] sm:$0xff] %v4330
  %4363 = vst [vmem:[#allocation6 + $0x30] sm:$0xff] %v4331
  %4364 = vst [vmem:[#allocation6 + $0x38] sm:$0xff] %v4332
  %4365 = vst [vmem:[#allocation6 + $0x40] sm:$0xff] %v4333
  %4366 = vst [vmem:[#allocation6 + $0x48] sm:$0xff] %v4334
  %4367 = vst [vmem:[#allocation6 + $0x50] sm:$0xff] %v4335
  %4368 = vst [vmem:[#allocation6 + $0x58] sm:$0xff] %v4336
  %4369 = vst [vmem:[#allocation6 + $0x60] sm:$0xff] %v4337
  %4370 = vst [vmem:[#allocation6 + $0x68] sm:$0xff] %v4338
  %4371 = vst [vmem:[#allocation6 + $0x70] sm:$0xff] %v4339
  %4372 = vst [vmem:[#allocation6 + $0x78] sm:$0xff] %v4340
  %4373 = vst [vmem:[#allocation6 + $0x80] sm:$0xff] %v4341
  %4374 = vst [vmem:[#allocation6 + $0x88] sm:$0xff] %v4342
  %4375 = vst [vmem:[#allocation6 + $0x90] sm:$0xff] %v4343
  %4376 = vst [vmem:[#allocation6 + $0x98] sm:$0xff] %v4344
  %4377 = vst [vmem:[#allocation6 + $0xa0] sm:$0xff] %v4345
  %4378 = vst [vmem:[#allocation6 + $0xa8] sm:$0xff] %v4346
  %4379 = vst [vmem:[#allocation6 + $0xb0] sm:$0xff] %v4347
  %4380 = vst [vmem:[#allocation6 + $0xb8] sm:$0xff] %v4348
  %4381 = vst [vmem:[#allocation6 + $0xc0] sm:$0xff] %v4349
  %4382 = vst [vmem:[#allocation6 + $0xc8] sm:$0xff] %v4350
  %4383 = vst [vmem:[#allocation6 + $0xd0] sm:$0xff] %v4351
  %4384 = vst [vmem:[#allocation6 + $0xd8] sm:$0xff] %v4352
  %4385 = vst [vmem:[#allocation6 + $0xe0] sm:$0xff] %v4353
  %4386 = vst [vmem:[#allocation6 + $0xe8] sm:$0xff] %v4354
  %4387 = vst [vmem:[#allocation6 + $0xf0] sm:$0xff] %v4355
  %4388 = vst [vmem:[#allocation6 + $0xf8] sm:$0xff] %v4356
  %v4389 = vld [vmem:[#allocation5 + $0x28] sm:$0xff]
  %v4390 = vld [vmem:[#allocation5 + $0x30] sm:$0xff]
  %v4391 = vld [vmem:[#allocation5 + $0x38] sm:$0xff]
  %v4392 = vld [vmem:[#allocation5 + $0x40] sm:$0xff]
  %v4393 = vld [vmem:[#allocation5 + $0x48] sm:$0xff]
  %v4394 = vld [vmem:[#allocation5 + $0x50] sm:$0xff]
  %v4395 = vld [vmem:[#allocation5 + $0x58] sm:$0xff]
  %v4396 = vld [vmem:[#allocation5 + $0x60] sm:$0xff]
  %v4397 = vld [vmem:[#allocation5 + $0x68] sm:$0xff]
  %v4398 = vld [vmem:[#allocation5 + $0x70] sm:$0xff]
  %v4399 = vld [vmem:[#allocation5 + $0x78] sm:$0xff]
  %v4400 = vld [vmem:[#allocation5 + $0x80] sm:$0xff]
  %v4401 = vld [vmem:[#allocation5 + $0x88] sm:$0xff]
  %v4402 = vld [vmem:[#allocation5 + $0x90] sm:$0xff]
  %v4403 = vld [vmem:[#allocation5 + $0x98] sm:$0xff]
  %v4404 = vld [vmem:[#allocation5 + $0xa0] sm:$0xff]
  %v4405 = vld [vmem:[#allocation5 + $0xa8] sm:$0xff]
  %v4406 = vld [vmem:[#allocation5 + $0xb0] sm:$0xff]
  %v4407 = vld [vmem:[#allocation5 + $0xb8] sm:$0xff]
  %v4408 = vld [vmem:[#allocation5 + $0xc0] sm:$0xff]
  %v4409 = vld [vmem:[#allocation5 + $0xc8] sm:$0xff]
  %v4410 = vld [vmem:[#allocation5 + $0xd0] sm:$0xff]
  %v4411 = vld [vmem:[#allocation5 + $0xd8] sm:$0xff]
  %v4412 = vld [vmem:[#allocation5 + $0xe0] sm:$0xff]
  %v4413 = vld [vmem:[#allocation5 + $0xe8] sm:$0xff]
  %v4414 = vld [vmem:[#allocation5 + $0xf0] sm:$0xff]
  %v4415 = vld [vmem:[#allocation5 + $0xf8] sm:$0xff]
  %v4416 = vld [vmem:[#allocation5 + $0x100] sm:$0xff]
  %v4417 = vld [vmem:[#allocation5 + $0x108] sm:$0xff]
  %v4418 = vld [vmem:[#allocation5 + $0x110] sm:$0xff]
  %v4419 = vld [vmem:[#allocation5 + $0x118] sm:$0xff]
  %v4420 = vld [vmem:[#allocation5 + $0x120] sm:$0xff]
  %v4421 = vld [vmem:[#allocation6] sm:$0xff]
  %v4422 = vld [vmem:[#allocation6 + $0x8] sm:$0xff]
  %v4423 = vld [vmem:[#allocation6 + $0x10] sm:$0xff]
  %v4424 = vld [vmem:[#allocation6 + $0x18] sm:$0xff]
  %v4425 = vld [vmem:[#allocation6 + $0x20] sm:$0xff]
  %v4426 = vld [vmem:[#allocation6 + $0x28] sm:$0xff]
  %v4427 = vld [vmem:[#allocation6 + $0x30] sm:$0xff]
  %v4428 = vld [vmem:[#allocation6 + $0x38] sm:$0xff]
  %v4429 = vld [vmem:[#allocation6 + $0x40] sm:$0xff]
  %v4430 = vld [vmem:[#allocation6 + $0x48] sm:$0xff]
  %v4431 = vld [vmem:[#allocation6 + $0x50] sm:$0xff]
  %v4432 = vld [vmem:[#allocation6 + $0x58] sm:$0xff]
  %v4433 = vld [vmem:[#allocation6 + $0x60] sm:$0xff]
  %v4434 = vld [vmem:[#allocation6 + $0x68] sm:$0xff]
  %v4435 = vld [vmem:[#allocation6 + $0x70] sm:$0xff]
  %v4436 = vld [vmem:[#allocation6 + $0x78] sm:$0xff]
  %v4437 = vld [vmem:[#allocation6 + $0x80] sm:$0xff]
  %v4438 = vld [vmem:[#allocation6 + $0x88] sm:$0xff]
  %v4439 = vld [vmem:[#allocation6 + $0x90] sm:$0xff]
  %v4440 = vld [vmem:[#allocation6 + $0x98] sm:$0xff]
  %v4441 = vld [vmem:[#allocation6 + $0xa0] sm:$0xff]
  %v4442 = vld [vmem:[#allocation6 + $0xa8] sm:$0xff]
  %v4443 = vld [vmem:[#allocation6 + $0xb0] sm:$0xff]
  %v4444 = vld [vmem:[#allocation6 + $0xb8] sm:$0xff]
  %v4445 = vld [vmem:[#allocation6 + $0xc0] sm:$0xff]
  %v4446 = vld [vmem:[#allocation6 + $0xc8] sm:$0xff]
  %v4447 = vld [vmem:[#allocation6 + $0xd0] sm:$0xff]
  %v4448 = vld [vmem:[#allocation6 + $0xd8] sm:$0xff]
  %v4449 = vld [vmem:[#allocation6 + $0xe0] sm:$0xff]
  %v4450 = vld [vmem:[#allocation6 + $0xe8] sm:$0xff]
  %v4451 = vld [vmem:[#allocation6 + $0xf0] sm:$0xff]
  %v4452 = vld [vmem:[#allocation6 + $0xf8] sm:$0xff]
  %v4453 = vpack.c.bf16 %v4390, %v4389
  %v4454 = vpack.c.bf16 %v4392, %v4391
  %v4455 = vpack.c.bf16 %v4394, %v4393
  %v4456 = vpack.c.bf16 %v4396, %v4395
  %v4457 = vpack.c.bf16 %v4398, %v4397
  %v4458 = vpack.c.bf16 %v4400, %v4399
  %v4459 = vpack.c.bf16 %v4402, %v4401
  %v4460 = vpack.c.bf16 %v4404, %v4403
  %v4461 = vpack.c.bf16 %v4406, %v4405
  %v4462 = vpack.c.bf16 %v4408, %v4407
  %v4463 = vpack.c.bf16 %v4410, %v4409
  %v4464 = vpack.c.bf16 %v4412, %v4411
  %v4465 = vpack.c.bf16 %v4414, %v4413
  %v4466 = vpack.c.bf16 %v4416, %v4415
  %v4467 = vpack.c.bf16 %v4418, %v4417
  %v4468 = vpack.c.bf16 %v4420, %v4419
  %v4469 = vld [vmem:[%s2 + $0x1c0] sm:$0xf]
  %v4470 = vld [vmem:[%s2 + $0x1c4] sm:$0xf]
  %v4471 = vld [vmem:[%s2 + $0x1c8] sm:$0xf]
  %v4472 = vld [vmem:[%s2 + $0x1cc] sm:$0xf]
  %v4473 = vld [vmem:[%s2 + $0x1d0] sm:$0xf]
  %v4474 = vld [vmem:[%s2 + $0x1d4] sm:$0xf]
  %v4475 = vld [vmem:[%s2 + $0x1d8] sm:$0xf]
  %v4476 = vld [vmem:[%s2 + $0x1dc] sm:$0xf]
  %v4477 = vld [vmem:[%s2 + $0x1e0] sm:$0xf]
  %v4478 = vld [vmem:[%s2 + $0x1e4] sm:$0xf]
  %v4479 = vld [vmem:[%s2 + $0x1e8] sm:$0xf]
  %v4480 = vld [vmem:[%s2 + $0x1ec] sm:$0xf]
  %v4481 = vld [vmem:[%s2 + $0x1f0] sm:$0xf]
  %v4482 = vld [vmem:[%s2 + $0x1f4] sm:$0xf]
  %v4483 = vld [vmem:[%s2 + $0x1f8] sm:$0xf]
  %v4484 = vld [vmem:[%s2 + $0x1fc] sm:$0xf]
  %v4501 = vunpack.c.l.b16 %v4469
  %v4502 = vunpack.c.l.b16 %v4470
  %v4503 = vunpack.c.l.b16 %v4471
  %v4504 = vunpack.c.l.b16 %v4472
  %v4505 = vunpack.c.l.b16 %v4473
  %v4506 = vunpack.c.l.b16 %v4474
  %v4507 = vunpack.c.l.b16 %v4475
  %v4508 = vunpack.c.l.b16 %v4476
  %v4509 = vunpack.c.l.b16 %v4477
  %v4510 = vunpack.c.l.b16 %v4478
  %v4511 = vunpack.c.l.b16 %v4479
  %v4512 = vunpack.c.l.b16 %v4480
  %v4513 = vunpack.c.l.b16 %v4481
  %v4514 = vunpack.c.l.b16 %v4482
  %v4515 = vunpack.c.l.b16 %v4483
  %v4516 = vunpack.c.l.b16 %v4484
  %v4517 = vpack.c.b16 %v4502, %v4501
  %v4518 = vpack.c.b16 %v4504, %v4503
  %v4519 = vpack.c.b16 %v4506, %v4505
  %v4520 = vpack.c.b16 %v4508, %v4507
  %v4521 = vpack.c.b16 %v4510, %v4509
  %v4522 = vpack.c.b16 %v4512, %v4511
  %v4523 = vpack.c.b16 %v4514, %v4513
  %v4524 = vpack.c.b16 %v4516, %v4515
  %4533 = vmatprep.subr.bf16.mxu0 0
  %4534 = vmatpush1.bf16.msra.mxu0 %v4517
  %4535 = vmatprep.subr.bf16.mxu0 0
  %4536 = vmatpush1.bf16.msra.mxu0 %v4518
  %4537 = vmatprep.subr.bf16.mxu0 0
  %4538 = vmatpush1.bf16.msra.mxu0 %v4519
  %4539 = vmatprep.subr.bf16.mxu0 0
  %4540 = vmatpush1.bf16.msra.mxu0 %v4520
  %4541 = vmatprep.subr.bf16.mxu0 0
  %4542 = vmatpush1.bf16.msra.mxu0 %v4521
  %4543 = vmatprep.subr.bf16.mxu0 0
  %4544 = vmatpush1.bf16.msra.mxu0 %v4522
  %4545 = vmatprep.subr.bf16.mxu0 0
  %4546 = vmatpush1.bf16.msra.mxu0 %v4523
  %4547 = vmatprep.subr.bf16.mxu0 0
  %4548 = vmatpush1.bf16.msra.mxu0 %v4524
  %4549 = vmatprep.subr.bf16.mxu0 0
  %4550 = vmatpush1.bf16.msra.mxu0 0
  %4551 = vmatprep.subr.bf16.mxu0 0
  %4552 = vmatpush1.bf16.msra.mxu0 0
  %4553 = vmatprep.subr.bf16.mxu0 0
  %4554 = vmatpush1.bf16.msra.mxu0 0
  %4555 = vmatprep.subr.bf16.mxu0 0
  %4556 = vmatpush1.bf16.msra.mxu0 0
  %4557 = vmatprep.subr.bf16.mxu0 0
  %4558 = vmatpush1.bf16.msra.mxu0 0
  %4559 = vmatprep.subr.bf16.mxu0 0
  %4560 = vmatpush1.bf16.msra.mxu0 0
  %4561 = vmatprep.subr.bf16.mxu0 0
  %4562 = vmatpush1.bf16.msra.mxu0 0
  %4563 = vmatprep.subr.bf16.mxu0 0
  %4564 = vmatpush1.bf16.msra.mxu0 0
  %4565 = vmatprep.mubr.bf16.mxu0 0
  %4566 = vmatmul.mubr.bf16.gmra.mrb[0].mxu0 %v4453
  %v4567 = vpop.f32.mrb[0].mxu0
  %v4568 = vadd.f32 0.0, %v4567
  %v4569 = vpop.f32.mrb[0].mxu0
  %v4570 = vpop.f32.mrb[0].mxu0
  %v4571 = vadd.f32 0.0, %v4570
  %v4572 = vpop.f32.mrb[0].mxu0
  %4573 = vmatprep.mubr.bf16.mxu0 0
  %4574 = vmatmul.mubr.bf16.gmra.mrb[0].mxu0 %v4454
  %v4575 = vpop.f32.mrb[0].mxu0
  %v4576 = vadd.f32 0.0, %v4575
  %v4577 = vpop.f32.mrb[0].mxu0
  %v4578 = vpop.f32.mrb[0].mxu0
  %v4579 = vadd.f32 0.0, %v4578
  %v4580 = vpop.f32.mrb[0].mxu0
  %4581 = vmatprep.mubr.bf16.mxu0 0
  %4582 = vmatmul.mubr.bf16.gmra.mrb[0].mxu0 %v4455
  %v4583 = vpop.f32.mrb[0].mxu0
  %v4584 = vadd.f32 0.0, %v4583
  %v4585 = vpop.f32.mrb[0].mxu0
  %v4586 = vpop.f32.mrb[0].mxu0
  %v4587 = vadd.f32 0.0, %v4586
  %v4588 = vpop.f32.mrb[0].mxu0
  %4589 = vmatprep.mubr.bf16.mxu0 0
  %4590 = vmatmul.mubr.bf16.gmra.mrb[0].mxu0 %v4456
  %v4591 = vpop.f32.mrb[0].mxu0
  %v4592 = vadd.f32 0.0, %v4591
  %v4593 = vpop.f32.mrb[0].mxu0
  %v4594 = vpop.f32.mrb[0].mxu0
  %v4595 = vadd.f32 0.0, %v4594
  %v4596 = vpop.f32.mrb[0].mxu0
  %4597 = vmatprep.mubr.bf16.mxu0 0
  %4598 = vmatmul.mubr.bf16.gmra.mrb[0].mxu0 %v4457
  %v4599 = vpop.f32.mrb[0].mxu0
  %v4600 = vadd.f32 0.0, %v4599
  %v4601 = vpop.f32.mrb[0].mxu0
  %v4602 = vpop.f32.mrb[0].mxu0
  %v4603 = vadd.f32 0.0, %v4602
  %v4604 = vpop.f32.mrb[0].mxu0
  %4605 = vmatprep.mubr.bf16.mxu0 0
  %4606 = vmatmul.mubr.bf16.gmra.mrb[0].mxu0 %v4458
  %v4607 = vpop.f32.mrb[0].mxu0
  %v4608 = vadd.f32 0.0, %v4607
  %v4609 = vpop.f32.mrb[0].mxu0
  %v4610 = vpop.f32.mrb[0].mxu0
  %v4611 = vadd.f32 0.0, %v4610
  %v4612 = vpop.f32.mrb[0].mxu0
  %4613 = vmatprep.mubr.bf16.mxu0 0
  %4614 = vmatmul.mubr.bf16.gmra.mrb[0].mxu0 %v4459
  %v4615 = vpop.f32.mrb[0].mxu0
  %v4616 = vadd.f32 0.0, %v4615
  %v4617 = vpop.f32.mrb[0].mxu0
  %v4618 = vpop.f32.mrb[0].mxu0
  %v4619 = vadd.f32 0.0, %v4618
  %v4620 = vpop.f32.mrb[0].mxu0
  %4621 = vmatprep.mubr.bf16.mxu0 0
  %4622 = vmatmul.mubr.bf16.gmra.mrb[0].mxu0 %v4460
  %v4623 = vpop.f32.mrb[0].mxu0
  %v4624 = vadd.f32 0.0, %v4623
  %v4625 = vpop.f32.mrb[0].mxu0
  %v4626 = vpop.f32.mrb[0].mxu0
  %v4627 = vadd.f32 0.0, %v4626
  %v4628 = vpop.f32.mrb[0].mxu0
  %4629 = vmatprep.mubr.bf16.mxu0 0
  %4630 = vmatmul.mubr.bf16.gmra.mrb[0].mxu0 %v4461
  %v4631 = vpop.f32.mrb[0].mxu0
  %v4632 = vadd.f32 0.0, %v4631
  %v4633 = vpop.f32.mrb[0].mxu0
  %v4634 = vpop.f32.mrb[0].mxu0
  %v4635 = vadd.f32 0.0, %v4634
  %v4636 = vpop.f32.mrb[0].mxu0
  %4637 = vmatprep.mubr.bf16.mxu0 0
  %4638 = vmatmul.mubr.bf16.gmra.mrb[0].mxu0 %v4462
  %v4639 = vpop.f32.mrb[0].mxu0
  %v4640 = vadd.f32 0.0, %v4639
  %v4641 = vpop.f32.mrb[0].mxu0
  %v4642 = vpop.f32.mrb[0].mxu0
  %v4643 = vadd.f32 0.0, %v4642
  %v4644 = vpop.f32.mrb[0].mxu0
  %4645 = vmatprep.mubr.bf16.mxu0 0
  %4646 = vmatmul.mubr.bf16.gmra.mrb[0].mxu0 %v4463
  %v4647 = vpop.f32.mrb[0].mxu0
  %v4648 = vadd.f32 0.0, %v4647
  %v4649 = vpop.f32.mrb[0].mxu0
  %v4650 = vpop.f32.mrb[0].mxu0
  %v4651 = vadd.f32 0.0, %v4650
  %v4652 = vpop.f32.mrb[0].mxu0
  %4653 = vmatprep.mubr.bf16.mxu0 0
  %4654 = vmatmul.mubr.bf16.gmra.mrb[0].mxu0 %v4464
  %v4655 = vpop.f32.mrb[0].mxu0
  %v4656 = vadd.f32 0.0, %v4655
  %v4657 = vpop.f32.mrb[0].mxu0
  %v4658 = vpop.f32.mrb[0].mxu0
  %v4659 = vadd.f32 0.0, %v4658
  %v4660 = vpop.f32.mrb[0].mxu0
  %4661 = vmatprep.mubr.bf16.mxu0 0
  %4662 = vmatmul.mubr.bf16.gmra.mrb[0].mxu0 %v4465
  %v4663 = vpop.f32.mrb[0].mxu0
  %v4664 = vadd.f32 0.0, %v4663
  %v4665 = vpop.f32.mrb[0].mxu0
  %v4666 = vpop.f32.mrb[0].mxu0
  %v4667 = vadd.f32 0.0, %v4666
  %v4668 = vpop.f32.mrb[0].mxu0
  %4669 = vmatprep.mubr.bf16.mxu0 0
  %4670 = vmatmul.mubr.bf16.gmra.mrb[0].mxu0 %v4466
  %v4671 = vpop.f32.mrb[0].mxu0
  %v4672 = vadd.f32 0.0, %v4671
  %v4673 = vpop.f32.mrb[0].mxu0
  %v4674 = vpop.f32.mrb[0].mxu0
  %v4675 = vadd.f32 0.0, %v4674
  %v4676 = vpop.f32.mrb[0].mxu0
  %4677 = vmatprep.mubr.bf16.mxu0 0
  %4678 = vmatmul.mubr.bf16.gmra.mrb[0].mxu0 %v4467
  %v4679 = vpop.f32.mrb[0].mxu0
  %v4680 = vadd.f32 0.0, %v4679
  %v4681 = vpop.f32.mrb[0].mxu0
  %v4682 = vpop.f32.mrb[0].mxu0
  %v4683 = vadd.f32 0.0, %v4682
  %v4684 = vpop.f32.mrb[0].mxu0
  %4685 = vmatprep.mubr.bf16.mxu0 0
  %4686 = vmatmul.mubr.bf16.gmra.mrb[0].mxu0 %v4468
  %v4687 = vpop.f32.mrb[0].mxu0
  %v4688 = vadd.f32 0.0, %v4687
  %v4689 = vpop.f32.mrb[0].mxu0
  %v4690 = vpop.f32.mrb[0].mxu0
  %v4691 = vadd.f32 0.0, %v4690
  %v4692 = vpop.f32.mrb[0].mxu0
  %4693 = vdwg.mxu0
  %v4694 = vadd.f32 %v4421, %v4568
  %v4695 = vadd.f32 %v4422, %v4571
  %v4696 = vadd.f32 %v4423, %v4576
  %v4697 = vadd.f32 %v4424, %v4579
  %v4698 = vadd.f32 %v4425, %v4584
  %v4699 = vadd.f32 %v4426, %v4587
  %v4700 = vadd.f32 %v4427, %v4592
  %v4701 = vadd.f32 %v4428, %v4595
  %v4702 = vadd.f32 %v4429, %v4600
  %v4703 = vadd.f32 %v4430, %v4603
  %v4704 = vadd.f32 %v4431, %v4608
  %v4705 = vadd.f32 %v4432, %v4611
  %v4706 = vadd.f32 %v4433, %v4616
  %v4707 = vadd.f32 %v4434, %v4619
  %v4708 = vadd.f32 %v4435, %v4624
  %v4709 = vadd.f32 %v4436, %v4627
  %v4710 = vadd.f32 %v4437, %v4632
  %v4711 = vadd.f32 %v4438, %v4635
  %v4712 = vadd.f32 %v4439, %v4640
  %v4713 = vadd.f32 %v4440, %v4643
  %v4714 = vadd.f32 %v4441, %v4648
  %v4715 = vadd.f32 %v4442, %v4651
  %v4716 = vadd.f32 %v4443, %v4656
  %v4717 = vadd.f32 %v4444, %v4659
  %v4718 = vadd.f32 %v4445, %v4664
  %v4719 = vadd.f32 %v4446, %v4667
  %v4720 = vadd.f32 %v4447, %v4672
  %v4721 = vadd.f32 %v4448, %v4675
  %v4722 = vadd.f32 %v4449, %v4680
  %v4723 = vadd.f32 %v4450, %v4683
  %v4724 = vadd.f32 %v4451, %v4688
  %v4725 = vadd.f32 %v4452, %v4691
  %4726 = vst [vmem:[#allocation6] sm:$0xff] %v4694
  %4727 = vst [vmem:[#allocation6 + $0x8] sm:$0xff] %v4695
  %4728 = vst [vmem:[#allocation6 + $0x10] sm:$0xff] %v4696
  %4729 = vst [vmem:[#allocation6 + $0x18] sm:$0xff] %v4697
  %4730 = vst [vmem:[#allocation6 + $0x20] sm:$0xff] %v4698
  %4731 = vst [vmem:[#allocation6 + $0x28] sm:$0xff] %v4699
  %4732 = vst [vmem:[#allocation6 + $0x30] sm:$0xff] %v4700
  %4733 = vst [vmem:[#allocation6 + $0x38] sm:$0xff] %v4701
  %4734 = vst [vmem:[#allocation6 + $0x40] sm:$0xff] %v4702
  %4735 = vst [vmem:[#allocation6 + $0x48] sm:$0xff] %v4703
  %4736 = vst [vmem:[#allocation6 + $0x50] sm:$0xff] %v4704
  %4737 = vst [vmem:[#allocation6 + $0x58] sm:$0xff] %v4705
  %4738 = vst [vmem:[#allocation6 + $0x60] sm:$0xff] %v4706
  %4739 = vst [vmem:[#allocation6 + $0x68] sm:$0xff] %v4707
  %4740 = vst [vmem:[#allocation6 + $0x70] sm:$0xff] %v4708
  %4741 = vst [vmem:[#allocation6 + $0x78] sm:$0xff] %v4709
  %4742 = vst [vmem:[#allocation6 + $0x80] sm:$0xff] %v4710
  %4743 = vst [vmem:[#allocation6 + $0x88] sm:$0xff] %v4711
  %4744 = vst [vmem:[#allocation6 + $0x90] sm:$0xff] %v4712
  %4745 = vst [vmem:[#allocation6 + $0x98] sm:$0xff] %v4713
  %4746 = vst [vmem:[#allocation6 + $0xa0] sm:$0xff] %v4714
  %4747 = vst [vmem:[#allocation6 + $0xa8] sm:$0xff] %v4715
  %4748 = vst [vmem:[#allocation6 + $0xb0] sm:$0xff] %v4716
  %4749 = vst [vmem:[#allocation6 + $0xb8] sm:$0xff] %v4717
  %4750 = vst [vmem:[#allocation6 + $0xc0] sm:$0xff] %v4718
  %4751 = vst [vmem:[#allocation6 + $0xc8] sm:$0xff] %v4719
  %4752 = vst [vmem:[#allocation6 + $0xd0] sm:$0xff] %v4720
  %4753 = vst [vmem:[#allocation6 + $0xd8] sm:$0xff] %v4721
  %4754 = vst [vmem:[#allocation6 + $0xe0] sm:$0xff] %v4722
  %4755 = vst [vmem:[#allocation6 + $0xe8] sm:$0xff] %v4723
  %4756 = vst [vmem:[#allocation6 + $0xf0] sm:$0xff] %v4724
  %4757 = vst [vmem:[#allocation6 + $0xf8] sm:$0xff] %v4725
  %v4758 = vld [vmem:[#allocation5 + $0x29] sm:$0xff]
  %v4759 = vld [vmem:[#allocation5 + $0x31] sm:$0xff]
  %v4760 = vld [vmem:[#allocation5 + $0x39] sm:$0xff]
  %v4761 = vld [vmem:[#allocation5 + $0x41] sm:$0xff]
  %v4762 = vld [vmem:[#allocation5 + $0x49] sm:$0xff]
  %v4763 = vld [vmem:[#allocation5 + $0x51] sm:$0xff]
  %v4764 = vld [vmem:[#allocation5 + $0x59] sm:$0xff]
  %v4765 = vld [vmem:[#allocation5 + $0x61] sm:$0xff]
  %v4766 = vld [vmem:[#allocation5 + $0x69] sm:$0xff]
  %v4767 = vld [vmem:[#allocation5 + $0x71] sm:$0xff]
  %v4768 = vld [vmem:[#allocation5 + $0x79] sm:$0xff]
  %v4769 = vld [vmem:[#allocation5 + $0x81] sm:$0xff]
  %v4770 = vld [vmem:[#allocation5 + $0x89] sm:$0xff]
  %v4771 = vld [vmem:[#allocation5 + $0x91] sm:$0xff]
  %v4772 = vld [vmem:[#allocation5 + $0x99] sm:$0xff]
  %v4773 = vld [vmem:[#allocation5 + $0xa1] sm:$0xff]
  %v4774 = vld [vmem:[#allocation5 + $0xa9] sm:$0xff]
  %v4775 = vld [vmem:[#allocation5 + $0xb1] sm:$0xff]
  %v4776 = vld [vmem:[#allocation5 + $0xb9] sm:$0xff]
  %v4777 = vld [vmem:[#allocation5 + $0xc1] sm:$0xff]
  %v4778 = vld [vmem:[#allocation5 + $0xc9] sm:$0xff]
  %v4779 = vld [vmem:[#allocation5 + $0xd1] sm:$0xff]
  %v4780 = vld [vmem:[#allocation5 + $0xd9] sm:$0xff]
  %v4781 = vld [vmem:[#allocation5 + $0xe1] sm:$0xff]
  %v4782 = vld [vmem:[#allocation5 + $0xe9] sm:$0xff]
  %v4783 = vld [vmem:[#allocation5 + $0xf1] sm:$0xff]
  %v4784 = vld [vmem:[#allocation5 + $0xf9] sm:$0xff]
  %v4785 = vld [vmem:[#allocation5 + $0x101] sm:$0xff]
  %v4786 = vld [vmem:[#allocation5 + $0x109] sm:$0xff]
  %v4787 = vld [vmem:[#allocation5 + $0x111] sm:$0xff]
  %v4788 = vld [vmem:[#allocation5 + $0x119] sm:$0xff]
  %v4789 = vld [vmem:[#allocation5 + $0x121] sm:$0xff]
  %v4790 = vmul.f32 %v4758, %v1404
  %v4791 = vmul.f32 %v4759, %v1405
  %v4792 = vmul.f32 %v4760, %v1406
  %v4793 = vmul.f32 %v4761, %v1407
  %v4794 = vmul.f32 %v4762, %v1408
  %v4795 = vmul.f32 %v4763, %v1409
  %v4796 = vmul.f32 %v4764, %v1410
  %v4797 = vmul.f32 %v4765, %v1411
  %v4798 = vmul.f32 %v4766, %v1412
  %v4799 = vmul.f32 %v4767, %v1413
  %v4800 = vmul.f32 %v4768, %v1414
  %v4801 = vmul.f32 %v4769, %v1415
  %v4802 = vmul.f32 %v4770, %v1416
  %v4803 = vmul.f32 %v4771, %v1417
  %v4804 = vmul.f32 %v4772, %v1418
  %v4805 = vmul.f32 %v4773, %v1419
  %v4806 = vmul.f32 %v4774, %v1420
  %v4807 = vmul.f32 %v4775, %v1421
  %v4808 = vmul.f32 %v4776, %v1422
  %v4809 = vmul.f32 %v4777, %v1423
  %v4810 = vmul.f32 %v4778, %v1424
  %v4811 = vmul.f32 %v4779, %v1425
  %v4812 = vmul.f32 %v4780, %v1426
  %v4813 = vmul.f32 %v4781, %v1427
  %v4814 = vmul.f32 %v4782, %v1428
  %v4815 = vmul.f32 %v4783, %v1429
  %v4816 = vmul.f32 %v4784, %v1430
  %v4817 = vmul.f32 %v4785, %v1431
  %v4818 = vmul.f32 %v4786, %v1432
  %v4819 = vmul.f32 %v4787, %v1433
  %v4820 = vmul.f32 %v4788, %v1434
  %v4821 = vmul.f32 %v4789, %v1435
  %v4822 = vld [vmem:[#allocation6] sm:$0xff]
  %v4823 = vld [vmem:[#allocation6 + $0x8] sm:$0xff]
  %v4824 = vld [vmem:[#allocation6 + $0x10] sm:$0xff]
  %v4825 = vld [vmem:[#allocation6 + $0x18] sm:$0xff]
  %v4826 = vld [vmem:[#allocation6 + $0x20] sm:$0xff]
  %v4827 = vld [vmem:[#allocation6 + $0x28] sm:$0xff]
  %v4828 = vld [vmem:[#allocation6 + $0x30] sm:$0xff]
  %v4829 = vld [vmem:[#allocation6 + $0x38] sm:$0xff]
  %v4830 = vld [vmem:[#allocation6 + $0x40] sm:$0xff]
  %v4831 = vld [vmem:[#allocation6 + $0x48] sm:$0xff]
  %v4832 = vld [vmem:[#allocation6 + $0x50] sm:$0xff]
  %v4833 = vld [vmem:[#allocation6 + $0x58] sm:$0xff]
  %v4834 = vld [vmem:[#allocation6 + $0x60] sm:$0xff]
  %v4835 = vld [vmem:[#allocation6 + $0x68] sm:$0xff]
  %v4836 = vld [vmem:[#allocation6 + $0x70] sm:$0xff]
  %v4837 = vld [vmem:[#allocation6 + $0x78] sm:$0xff]
  %v4838 = vld [vmem:[#allocation6 + $0x80] sm:$0xff]
  %v4839 = vld [vmem:[#allocation6 + $0x88] sm:$0xff]
  %v4840 = vld [vmem:[#allocation6 + $0x90] sm:$0xff]
  %v4841 = vld [vmem:[#allocation6 + $0x98] sm:$0xff]
  %v4842 = vld [vmem:[#allocation6 + $0xa0] sm:$0xff]
  %v4843 = vld [vmem:[#allocation6 + $0xa8] sm:$0xff]
  %v4844 = vld [vmem:[#allocation6 + $0xb0] sm:$0xff]
  %v4845 = vld [vmem:[#allocation6 + $0xb8] sm:$0xff]
  %v4846 = vld [vmem:[#allocation6 + $0xc0] sm:$0xff]
  %v4847 = vld [vmem:[#allocation6 + $0xc8] sm:$0xff]
  %v4848 = vld [vmem:[#allocation6 + $0xd0] sm:$0xff]
  %v4849 = vld [vmem:[#allocation6 + $0xd8] sm:$0xff]
  %v4850 = vld [vmem:[#allocation6 + $0xe0] sm:$0xff]
  %v4851 = vld [vmem:[#allocation6 + $0xe8] sm:$0xff]
  %v4852 = vld [vmem:[#allocation6 + $0xf0] sm:$0xff]
  %v4853 = vld [vmem:[#allocation6 + $0xf8] sm:$0xff]
  %v4854 = vpack.c.bf16 %v4791, %v4790
  %v4855 = vpack.c.bf16 %v4793, %v4792
  %v4856 = vpack.c.bf16 %v4795, %v4794
  %v4857 = vpack.c.bf16 %v4797, %v4796
  %v4858 = vpack.c.bf16 %v4799, %v4798
  %v4859 = vpack.c.bf16 %v4801, %v4800
  %v4860 = vpack.c.bf16 %v4803, %v4802
  %v4861 = vpack.c.bf16 %v4805, %v4804
  %v4862 = vpack.c.bf16 %v4807, %v4806
  %v4863 = vpack.c.bf16 %v4809, %v4808
  %v4864 = vpack.c.bf16 %v4811, %v4810
  %v4865 = vpack.c.bf16 %v4813, %v4812
  %v4866 = vpack.c.bf16 %v4815, %v4814
  %v4867 = vpack.c.bf16 %v4817, %v4816
  %v4868 = vpack.c.bf16 %v4819, %v4818
  %v4869 = vpack.c.bf16 %v4821, %v4820
  %v4870 = vld [vmem:[%s2 + $0x200] sm:$0xf]
  %v4871 = vld [vmem:[%s2 + $0x204] sm:$0xf]
  %v4872 = vld [vmem:[%s2 + $0x208] sm:$0xf]
  %v4873 = vld [vmem:[%s2 + $0x20c] sm:$0xf]
  %v4874 = vld [vmem:[%s2 + $0x210] sm:$0xf]
  %v4875 = vld [vmem:[%s2 + $0x214] sm:$0xf]
  %v4876 = vld [vmem:[%s2 + $0x218] sm:$0xf]
  %v4877 = vld [vmem:[%s2 + $0x21c] sm:$0xf]
  %v4878 = vld [vmem:[%s2 + $0x220] sm:$0xf]
  %v4879 = vld [vmem:[%s2 + $0x224] sm:$0xf]
  %v4880 = vld [vmem:[%s2 + $0x228] sm:$0xf]
  %v4881 = vld [vmem:[%s2 + $0x22c] sm:$0xf]
  %v4882 = vld [vmem:[%s2 + $0x230] sm:$0xf]
  %v4883 = vld [vmem:[%s2 + $0x234] sm:$0xf]
  %v4884 = vld [vmem:[%s2 + $0x238] sm:$0xf]
  %v4885 = vld [vmem:[%s2 + $0x23c] sm:$0xf]
  %v4902 = vunpack.c.l.b16 %v4870
  %v4903 = vunpack.c.l.b16 %v4871
  %v4904 = vunpack.c.l.b16 %v4872
  %v4905 = vunpack.c.l.b16 %v4873
  %v4906 = vunpack.c.l.b16 %v4874
  %v4907 = vunpack.c.l.b16 %v4875
  %v4908 = vunpack.c.l.b16 %v4876
  %v4909 = vunpack.c.l.b16 %v4877
  %v4910 = vunpack.c.l.b16 %v4878
  %v4911 = vunpack.c.l.b16 %v4879
  %v4912 = vunpack.c.l.b16 %v4880
  %v4913 = vunpack.c.l.b16 %v4881
  %v4914 = vunpack.c.l.b16 %v4882
  %v4915 = vunpack.c.l.b16 %v4883
  %v4916 = vunpack.c.l.b16 %v4884
  %v4917 = vunpack.c.l.b16 %v4885
  %v4918 = vpack.c.b16 %v4903, %v4902
  %v4919 = vpack.c.b16 %v4905, %v4904
  %v4920 = vpack.c.b16 %v4907, %v4906
  %v4921 = vpack.c.b16 %v4909, %v4908
  %v4922 = vpack.c.b16 %v4911, %v4910
  %v4923 = vpack.c.b16 %v4913, %v4912
  %v4924 = vpack.c.b16 %v4915, %v4914
  %v4925 = vpack.c.b16 %v4917, %v4916
  %4934 = vmatprep.subr.bf16.mxu0 0
  %4935 = vmatpush1.bf16.msra.mxu0 %v4918
  %4936 = vmatprep.subr.bf16.mxu0 0
  %4937 = vmatpush1.bf16.msra.mxu0 %v4919
  %4938 = vmatprep.subr.bf16.mxu0 0
  %4939 = vmatpush1.bf16.msra.mxu0 %v4920
  %4940 = vmatprep.subr.bf16.mxu0 0
  %4941 = vmatpush1.bf16.msra.mxu0 %v4921
  %4942 = vmatprep.subr.bf16.mxu0 0
  %4943 = vmatpush1.bf16.msra.mxu0 %v4922
  %4944 = vmatprep.subr.bf16.mxu0 0
  %4945 = vmatpush1.bf16.msra.mxu0 %v4923
  %4946 = vmatprep.subr.bf16.mxu0 0
  %4947 = vmatpush1.bf16.msra.mxu0 %v4924
  %4948 = vmatprep.subr.bf16.mxu0 0
  %4949 = vmatpush1.bf16.msra.mxu0 %v4925
  %4950 = vmatprep.subr.bf16.mxu0 0
  %4951 = vmatpush1.bf16.msra.mxu0 0
  %4952 = vmatprep.subr.bf16.mxu0 0
  %4953 = vmatpush1.bf16.msra.mxu0 0
  %4954 = vmatprep.subr.bf16.mxu0 0
  %4955 = vmatpush1.bf16.msra.mxu0 0
  %4956 = vmatprep.subr.bf16.mxu0 0
  %4957 = vmatpush1.bf16.msra.mxu0 0
  %4958 = vmatprep.subr.bf16.mxu0 0
  %4959 = vmatpush1.bf16.msra.mxu0 0
  %4960 = vmatprep.subr.bf16.mxu0 0
  %4961 = vmatpush1.bf16.msra.mxu0 0
  %4962 = vmatprep.subr.bf16.mxu0 0
  %4963 = vmatpush1.bf16.msra.mxu0 0
  %4964 = vmatprep.subr.bf16.mxu0 0
  %4965 = vmatpush1.bf16.msra.mxu0 0
  %4966 = vmatprep.mubr.bf16.mxu0 0
  %4967 = vmatmul.mubr.bf16.gmra.mrb[0].mxu0 %v4854
  %v4968 = vpop.f32.mrb[0].mxu0
  %v4969 = vadd.f32 0.0, %v4968
  %v4970 = vpop.f32.mrb[0].mxu0
  %v4971 = vpop.f32.mrb[0].mxu0
  %v4972 = vadd.f32 0.0, %v4971
  %v4973 = vpop.f32.mrb[0].mxu0
  %4974 = vmatprep.mubr.bf16.mxu0 0
  %4975 = vmatmul.mubr.bf16.gmra.mrb[0].mxu0 %v4855
  %v4976 = vpop.f32.mrb[0].mxu0
  %v4977 = vadd.f32 0.0, %v4976
  %v4978 = vpop.f32.mrb[0].mxu0
  %v4979 = vpop.f32.mrb[0].mxu0
  %v4980 = vadd.f32 0.0, %v4979
  %v4981 = vpop.f32.mrb[0].mxu0
  %4982 = vmatprep.mubr.bf16.mxu0 0
  %4983 = vmatmul.mubr.bf16.gmra.mrb[0].mxu0 %v4856
  %v4984 = vpop.f32.mrb[0].mxu0
  %v4985 = vadd.f32 0.0, %v4984
  %v4986 = vpop.f32.mrb[0].mxu0
  %v4987 = vpop.f32.mrb[0].mxu0
  %v4988 = vadd.f32 0.0, %v4987
  %v4989 = vpop.f32.mrb[0].mxu0
  %4990 = vmatprep.mubr.bf16.mxu0 0
  %4991 = vmatmul.mubr.bf16.gmra.mrb[0].mxu0 %v4857
  %v4992 = vpop.f32.mrb[0].mxu0
  %v4993 = vadd.f32 0.0, %v4992
  %v4994 = vpop.f32.mrb[0].mxu0
  %v4995 = vpop.f32.mrb[0].mxu0
  %v4996 = vadd.f32 0.0, %v4995
  %v4997 = vpop.f32.mrb[0].mxu0
  %4998 = vmatprep.mubr.bf16.mxu0 0
  %4999 = vmatmul.mubr.bf16.gmra.mrb[0].mxu0 %v4858
  %v5000 = vpop.f32.mrb[0].mxu0
  %v5001 = vadd.f32 0.0, %v5000
  %v5002 = vpop.f32.mrb[0].mxu0
  %v5003 = vpop.f32.mrb[0].mxu0
  %v5004 = vadd.f32 0.0, %v5003
  %v5005 = vpop.f32.mrb[0].mxu0
  %5006 = vmatprep.mubr.bf16.mxu0 0
  %5007 = vmatmul.mubr.bf16.gmra.mrb[0].mxu0 %v4859
  %v5008 = vpop.f32.mrb[0].mxu0
  %v5009 = vadd.f32 0.0, %v5008
  %v5010 = vpop.f32.mrb[0].mxu0
  %v5011 = vpop.f32.mrb[0].mxu0
  %v5012 = vadd.f32 0.0, %v5011
  %v5013 = vpop.f32.mrb[0].mxu0
  %5014 = vmatprep.mubr.bf16.mxu0 0
  %5015 = vmatmul.mubr.bf16.gmra.mrb[0].mxu0 %v4860
  %v5016 = vpop.f32.mrb[0].mxu0
  %v5017 = vadd.f32 0.0, %v5016
  %v5018 = vpop.f32.mrb[0].mxu0
  %v5019 = vpop.f32.mrb[0].mxu0
  %v5020 = vadd.f32 0.0, %v5019
  %v5021 = vpop.f32.mrb[0].mxu0
  %5022 = vmatprep.mubr.bf16.mxu0 0
  %5023 = vmatmul.mubr.bf16.gmra.mrb[0].mxu0 %v4861
  %v5024 = vpop.f32.mrb[0].mxu0
  %v5025 = vadd.f32 0.0, %v5024
  %v5026 = vpop.f32.mrb[0].mxu0
  %v5027 = vpop.f32.mrb[0].mxu0
  %v5028 = vadd.f32 0.0, %v5027
  %v5029 = vpop.f32.mrb[0].mxu0
  %5030 = vmatprep.mubr.bf16.mxu0 0
  %5031 = vmatmul.mubr.bf16.gmra.mrb[0].mxu0 %v4862
  %v5032 = vpop.f32.mrb[0].mxu0
  %v5033 = vadd.f32 0.0, %v5032
  %v5034 = vpop.f32.mrb[0].mxu0
  %v5035 = vpop.f32.mrb[0].mxu0
  %v5036 = vadd.f32 0.0, %v5035
  %v5037 = vpop.f32.mrb[0].mxu0
  %5038 = vmatprep.mubr.bf16.mxu0 0
  %5039 = vmatmul.mubr.bf16.gmra.mrb[0].mxu0 %v4863
  %v5040 = vpop.f32.mrb[0].mxu0
  %v5041 = vadd.f32 0.0, %v5040
  %v5042 = vpop.f32.mrb[0].mxu0
  %v5043 = vpop.f32.mrb[0].mxu0
  %v5044 = vadd.f32 0.0, %v5043
  %v5045 = vpop.f32.mrb[0].mxu0
  %5046 = vmatprep.mubr.bf16.mxu0 0
  %5047 = vmatmul.mubr.bf16.gmra.mrb[0].mxu0 %v4864
  %v5048 = vpop.f32.mrb[0].mxu0
  %v5049 = vadd.f32 0.0, %v5048
  %v5050 = vpop.f32.mrb[0].mxu0
  %v5051 = vpop.f32.mrb[0].mxu0
  %v5052 = vadd.f32 0.0, %v5051
  %v5053 = vpop.f32.mrb[0].mxu0
  %5054 = vmatprep.mubr.bf16.mxu0 0
  %5055 = vmatmul.mubr.bf16.gmra.mrb[0].mxu0 %v4865
  %v5056 = vpop.f32.mrb[0].mxu0
  %v5057 = vadd.f32 0.0, %v5056
  %v5058 = vpop.f32.mrb[0].mxu0
  %v5059 = vpop.f32.mrb[0].mxu0
  %v5060 = vadd.f32 0.0, %v5059
  %v5061 = vpop.f32.mrb[0].mxu0
  %5062 = vmatprep.mubr.bf16.mxu0 0
  %5063 = vmatmul.mubr.bf16.gmra.mrb[0].mxu0 %v4866
  %v5064 = vpop.f32.mrb[0].mxu0
  %v5065 = vadd.f32 0.0, %v5064
  %v5066 = vpop.f32.mrb[0].mxu0
  %v5067 = vpop.f32.mrb[0].mxu0
  %v5068 = vadd.f32 0.0, %v5067
  %v5069 = vpop.f32.mrb[0].mxu0
  %5070 = vmatprep.mubr.bf16.mxu0 0
  %5071 = vmatmul.mubr.bf16.gmra.mrb[0].mxu0 %v4867
  %v5072 = vpop.f32.mrb[0].mxu0
  %v5073 = vadd.f32 0.0, %v5072
  %v5074 = vpop.f32.mrb[0].mxu0
  %v5075 = vpop.f32.mrb[0].mxu0
  %v5076 = vadd.f32 0.0, %v5075
  %v5077 = vpop.f32.mrb[0].mxu0
  %5078 = vmatprep.mubr.bf16.mxu0 0
  %5079 = vmatmul.mubr.bf16.gmra.mrb[0].mxu0 %v4868
  %v5080 = vpop.f32.mrb[0].mxu0
  %v5081 = vadd.f32 0.0, %v5080
  %v5082 = vpop.f32.mrb[0].mxu0
  %v5083 = vpop.f32.mrb[0].mxu0
  %v5084 = vadd.f32 0.0, %v5083
  %v5085 = vpop.f32.mrb[0].mxu0
  %5086 = vmatprep.mubr.bf16.mxu0 0
  %5087 = vmatmul.mubr.bf16.gmra.mrb[0].mxu0 %v4869
  %v5088 = vpop.f32.mrb[0].mxu0
  %v5089 = vadd.f32 0.0, %v5088
  %v5090 = vpop.f32.mrb[0].mxu0
  %v5091 = vpop.f32.mrb[0].mxu0
  %v5092 = vadd.f32 0.0, %v5091
  %v5093 = vpop.f32.mrb[0].mxu0
  %5094 = vdwg.mxu0
  %v5095 = vadd.f32 %v4822, %v4969
  %v5096 = vadd.f32 %v4823, %v4972
  %v5097 = vadd.f32 %v4824, %v4977
  %v5098 = vadd.f32 %v4825, %v4980
  %v5099 = vadd.f32 %v4826, %v4985
  %v5100 = vadd.f32 %v4827, %v4988
  %v5101 = vadd.f32 %v4828, %v4993
  %v5102 = vadd.f32 %v4829, %v4996
  %v5103 = vadd.f32 %v4830, %v5001
  %v5104 = vadd.f32 %v4831, %v5004
  %v5105 = vadd.f32 %v4832, %v5009
  %v5106 = vadd.f32 %v4833, %v5012
  %v5107 = vadd.f32 %v4834, %v5017
  %v5108 = vadd.f32 %v4835, %v5020
  %v5109 = vadd.f32 %v4836, %v5025
  %v5110 = vadd.f32 %v4837, %v5028
  %v5111 = vadd.f32 %v4838, %v5033
  %v5112 = vadd.f32 %v4839, %v5036
  %v5113 = vadd.f32 %v4840, %v5041
  %v5114 = vadd.f32 %v4841, %v5044
  %v5115 = vadd.f32 %v4842, %v5049
  %v5116 = vadd.f32 %v4843, %v5052
  %v5117 = vadd.f32 %v4844, %v5057
  %v5118 = vadd.f32 %v4845, %v5060
  %v5119 = vadd.f32 %v4846, %v5065
  %v5120 = vadd.f32 %v4847, %v5068
  %v5121 = vadd.f32 %v4848, %v5073
  %v5122 = vadd.f32 %v4849, %v5076
  %v5123 = vadd.f32 %v4850, %v5081
  %v5124 = vadd.f32 %v4851, %v5084
  %v5125 = vadd.f32 %v4852, %v5089
  %v5126 = vadd.f32 %v4853, %v5092
  %5127 = vst [vmem:[#allocation6] sm:$0xff] %v5095
  %5128 = vst [vmem:[#allocation6 + $0x8] sm:$0xff] %v5096
  %5129 = vst [vmem:[#allocation6 + $0x10] sm:$0xff] %v5097
  %5130 = vst [vmem:[#allocation6 + $0x18] sm:$0xff] %v5098
  %5131 = vst [vmem:[#allocation6 + $0x20] sm:$0xff] %v5099
  %5132 = vst [vmem:[#allocation6 + $0x28] sm:$0xff] %v5100
  %5133 = vst [vmem:[#allocation6 + $0x30] sm:$0xff] %v5101
  %5134 = vst [vmem:[#allocation6 + $0x38] sm:$0xff] %v5102
  %5135 = vst [vmem:[#allocation6 + $0x40] sm:$0xff] %v5103
  %5136 = vst [vmem:[#allocation6 + $0x48] sm:$0xff] %v5104
  %5137 = vst [vmem:[#allocation6 + $0x50] sm:$0xff] %v5105
  %5138 = vst [vmem:[#allocation6 + $0x58] sm:$0xff] %v5106
  %5139 = vst [vmem:[#allocation6 + $0x60] sm:$0xff] %v5107
  %5140 = vst [vmem:[#allocation6 + $0x68] sm:$0xff] %v5108
  %5141 = vst [vmem:[#allocation6 + $0x70] sm:$0xff] %v5109
  %5142 = vst [vmem:[#allocation6 + $0x78] sm:$0xff] %v5110
  %5143 = vst [vmem:[#allocation6 + $0x80] sm:$0xff] %v5111
  %5144 = vst [vmem:[#allocation6 + $0x88] sm:$0xff] %v5112
  %5145 = vst [vmem:[#allocation6 + $0x90] sm:$0xff] %v5113
  %5146 = vst [vmem:[#allocation6 + $0x98] sm:$0xff] %v5114
  %5147 = vst [vmem:[#allocation6 + $0xa0] sm:$0xff] %v5115
  %5148 = vst [vmem:[#allocation6 + $0xa8] sm:$0xff] %v5116
  %5149 = vst [vmem:[#allocation6 + $0xb0] sm:$0xff] %v5117
  %5150 = vst [vmem:[#allocation6 + $0xb8] sm:$0xff] %v5118
  %5151 = vst [vmem:[#allocation6 + $0xc0] sm:$0xff] %v5119
  %5152 = vst [vmem:[#allocation6 + $0xc8] sm:$0xff] %v5120
  %5153 = vst [vmem:[#allocation6 + $0xd0] sm:$0xff] %v5121
  %5154 = vst [vmem:[#allocation6 + $0xd8] sm:$0xff] %v5122
  %5155 = vst [vmem:[#allocation6 + $0xe0] sm:$0xff] %v5123
  %5156 = vst [vmem:[#allocation6 + $0xe8] sm:$0xff] %v5124
  %5157 = vst [vmem:[#allocation6 + $0xf0] sm:$0xff] %v5125
  %5158 = vst [vmem:[#allocation6 + $0xf8] sm:$0xff] %v5126
  %v5159 = vld [vmem:[#allocation6] sm:$0xff]
  %v5160 = vld [vmem:[#allocation6 + $0x8] sm:$0xff]
  %v5161 = vld [vmem:[#allocation6 + $0x10] sm:$0xff]
  %v5162 = vld [vmem:[#allocation6 + $0x18] sm:$0xff]
  %v5163 = vld [vmem:[#allocation6 + $0x20] sm:$0xff]
  %v5164 = vld [vmem:[#allocation6 + $0x28] sm:$0xff]
  %v5165 = vld [vmem:[#allocation6 + $0x30] sm:$0xff]
  %v5166 = vld [vmem:[#allocation6 + $0x38] sm:$0xff]
  %v5167 = vld [vmem:[#allocation6 + $0x40] sm:$0xff]
  %v5168 = vld [vmem:[#allocation6 + $0x48] sm:$0xff]
  %v5169 = vld [vmem:[#allocation6 + $0x50] sm:$0xff]
  %v5170 = vld [vmem:[#allocation6 + $0x58] sm:$0xff]
  %v5171 = vld [vmem:[#allocation6 + $0x60] sm:$0xff]
  %v5172 = vld [vmem:[#allocation6 + $0x68] sm:$0xff]
  %v5173 = vld [vmem:[#allocation6 + $0x70] sm:$0xff]
  %v5174 = vld [vmem:[#allocation6 + $0x78] sm:$0xff]
  %v5175 = vld [vmem:[#allocation6 + $0x80] sm:$0xff]
  %v5176 = vld [vmem:[#allocation6 + $0x88] sm:$0xff]
  %v5177 = vld [vmem:[#allocation6 + $0x90] sm:$0xff]
  %v5178 = vld [vmem:[#allocation6 + $0x98] sm:$0xff]
  %v5179 = vld [vmem:[#allocation6 + $0xa0] sm:$0xff]
  %v5180 = vld [vmem:[#allocation6 + $0xa8] sm:$0xff]
  %v5181 = vld [vmem:[#allocation6 + $0xb0] sm:$0xff]
  %v5182 = vld [vmem:[#allocation6 + $0xb8] sm:$0xff]
  %v5183 = vld [vmem:[#allocation6 + $0xc0] sm:$0xff]
  %v5184 = vld [vmem:[#allocation6 + $0xc8] sm:$0xff]
  %v5185 = vld [vmem:[#allocation6 + $0xd0] sm:$0xff]
  %v5186 = vld [vmem:[#allocation6 + $0xd8] sm:$0xff]
  %v5187 = vld [vmem:[#allocation6 + $0xe0] sm:$0xff]
  %v5188 = vld [vmem:[#allocation6 + $0xe8] sm:$0xff]
  %v5189 = vld [vmem:[#allocation6 + $0xf0] sm:$0xff]
  %v5190 = vld [vmem:[#allocation6 + $0xf8] sm:$0xff]
  %5191 = vst [vmem:[#allocation3] sm:$0xff] %v5159
  %5192 = vst [vmem:[#allocation3 + $0x8] sm:$0xff] %v5160
  %5193 = vst [vmem:[#allocation3 + $0x10] sm:$0xff] %v5161
  %5194 = vst [vmem:[#allocation3 + $0x18] sm:$0xff] %v5162
  %5195 = vst [vmem:[#allocation3 + $0x20] sm:$0xff] %v5163
  %5196 = vst [vmem:[#allocation3 + $0x28] sm:$0xff] %v5164
  %5197 = vst [vmem:[#allocation3 + $0x30] sm:$0xff] %v5165
  %5198 = vst [vmem:[#allocation3 + $0x38] sm:$0xff] %v5166
  %5199 = vst [vmem:[#allocation3 + $0x40] sm:$0xff] %v5167
  %5200 = vst [vmem:[#allocation3 + $0x48] sm:$0xff] %v5168
  %5201 = vst [vmem:[#allocation3 + $0x50] sm:$0xff] %v5169
  %5202 = vst [vmem:[#allocation3 + $0x58] sm:$0xff] %v5170
  %5203 = vst [vmem:[#allocation3 + $0x60] sm:$0xff] %v5171
  %5204 = vst [vmem:[#allocation3 + $0x68] sm:$0xff] %v5172
  %5205 = vst [vmem:[#allocation3 + $0x70] sm:$0xff] %v5173
  %5206 = vst [vmem:[#allocation3 + $0x78] sm:$0xff] %v5174
  %5207 = vst [vmem:[#allocation3 + $0x80] sm:$0xff] %v5175
  %5208 = vst [vmem:[#allocation3 + $0x88] sm:$0xff] %v5176
  %5209 = vst [vmem:[#allocation3 + $0x90] sm:$0xff] %v5177
  %5210 = vst [vmem:[#allocation3 + $0x98] sm:$0xff] %v5178
  %5211 = vst [vmem:[#allocation3 + $0xa0] sm:$0xff] %v5179
  %5212 = vst [vmem:[#allocation3 + $0xa8] sm:$0xff] %v5180
  %5213 = vst [vmem:[#allocation3 + $0xb0] sm:$0xff] %v5181
  %5214 = vst [vmem:[#allocation3 + $0xb8] sm:$0xff] %v5182
  %5215 = vst [vmem:[#allocation3 + $0xc0] sm:$0xff] %v5183
  %5216 = vst [vmem:[#allocation3 + $0xc8] sm:$0xff] %v5184
  %5217 = vst [vmem:[#allocation3 + $0xd0] sm:$0xff] %v5185
  %5218 = vst [vmem:[#allocation3 + $0xd8] sm:$0xff] %v5186
  %5219 = vst [vmem:[#allocation3 + $0xe0] sm:$0xff] %v5187
  %5220 = vst [vmem:[#allocation3 + $0xe8] sm:$0xff] %v5188
  %5221 = vst [vmem:[#allocation3 + $0xf0] sm:$0xff] %v5189
  %5222 = vst [vmem:[#allocation3 + $0xf8] sm:$0xff] %v5190
  %v5223 = vld [vmem:[#allocation2 + $0x100] sm:$0xff]
  %v5224 = vld [vmem:[#allocation2 + $0x108] sm:$0xff]
  %v5225 = vld [vmem:[#allocation2 + $0x110] sm:$0xff]
  %v5226 = vld [vmem:[#allocation2 + $0x118] sm:$0xff]
  %v5227 = vld [vmem:[#allocation2 + $0x120] sm:$0xff]
  %v5228 = vld [vmem:[#allocation2 + $0x128] sm:$0xff]
  %v5229 = vld [vmem:[#allocation2 + $0x130] sm:$0xff]
  %v5230 = vld [vmem:[#allocation2 + $0x138] sm:$0xff]
  %v5231 = vld [vmem:[#allocation2 + $0x140] sm:$0xff]
  %v5232 = vld [vmem:[#allocation2 + $0x148] sm:$0xff]
  %v5233 = vld [vmem:[#allocation2 + $0x150] sm:$0xff]
  %v5234 = vld [vmem:[#allocation2 + $0x158] sm:$0xff]
  %v5235 = vld [vmem:[#allocation2 + $0x160] sm:$0xff]
  %v5236 = vld [vmem:[#allocation2 + $0x168] sm:$0xff]
  %v5237 = vld [vmem:[#allocation2 + $0x170] sm:$0xff]
  %v5238 = vld [vmem:[#allocation2 + $0x178] sm:$0xff]
  %v5239 = vld [vmem:[#allocation2 + $0x180] sm:$0xff]
  %v5240 = vld [vmem:[#allocation2 + $0x188] sm:$0xff]
  %v5241 = vld [vmem:[#allocation2 + $0x190] sm:$0xff]
  %v5242 = vld [vmem:[#allocation2 + $0x198] sm:$0xff]
  %v5243 = vld [vmem:[#allocation2 + $0x1a0] sm:$0xff]
  %v5244 = vld [vmem:[#allocation2 + $0x1a8] sm:$0xff]
  %v5245 = vld [vmem:[#allocation2 + $0x1b0] sm:$0xff]
  %v5246 = vld [vmem:[#allocation2 + $0x1b8] sm:$0xff]
  %v5247 = vld [vmem:[#allocation2 + $0x1c0] sm:$0xff]
  %v5248 = vld [vmem:[#allocation2 + $0x1c8] sm:$0xff]
  %v5249 = vld [vmem:[#allocation2 + $0x1d0] sm:$0xff]
  %v5250 = vld [vmem:[#allocation2 + $0x1d8] sm:$0xff]
  %v5251 = vld [vmem:[#allocation2 + $0x1e0] sm:$0xff]
  %v5252 = vld [vmem:[#allocation2 + $0x1e8] sm:$0xff]
  %v5253 = vld [vmem:[#allocation2 + $0x1f0] sm:$0xff]
  %v5254 = vld [vmem:[#allocation2 + $0x1f8] sm:$0xff]
  %v5255 = vmul.f32 %v5223, %v1478
  %v5256 = vmul.f32 %v5224, %v1478
  %v5257 = vmul.f32 %v5225, %v1478
  %v5258 = vmul.f32 %v5226, %v1478
  %v5259 = vmul.f32 %v5227, %v1478
  %v5260 = vmul.f32 %v5228, %v1478
  %v5261 = vmul.f32 %v5229, %v1478
  %v5262 = vmul.f32 %v5230, %v1478
  %v5263 = vmul.f32 %v5231, %v1478
  %v5264 = vmul.f32 %v5232, %v1478
  %v5265 = vmul.f32 %v5233, %v1478
  %v5266 = vmul.f32 %v5234, %v1478
  %v5267 = vmul.f32 %v5235, %v1478
  %v5268 = vmul.f32 %v5236, %v1478
  %v5269 = vmul.f32 %v5237, %v1478
  %v5270 = vmul.f32 %v5238, %v1478
  %v5271 = vmul.f32 %v5239, %v1478
  %v5272 = vmul.f32 %v5240, %v1478
  %v5273 = vmul.f32 %v5241, %v1478
  %v5274 = vmul.f32 %v5242, %v1478
  %v5275 = vmul.f32 %v5243, %v1478
  %v5276 = vmul.f32 %v5244, %v1478
  %v5277 = vmul.f32 %v5245, %v1478
  %v5278 = vmul.f32 %v5246, %v1478
  %v5279 = vmul.f32 %v5247, %v1478
  %v5280 = vmul.f32 %v5248, %v1478
  %v5281 = vmul.f32 %v5249, %v1478
  %v5282 = vmul.f32 %v5250, %v1478
  %v5283 = vmul.f32 %v5251, %v1478
  %v5284 = vmul.f32 %v5252, %v1478
  %v5285 = vmul.f32 %v5253, %v1478
  %v5286 = vmul.f32 %v5254, %v1478
  %v5287 = vadd.f32 %v5255, %v1516
  %v5288 = vadd.f32 %v5256, %v1516
  %v5289 = vadd.f32 %v5257, %v1516
  %v5290 = vadd.f32 %v5258, %v1516
  %v5291 = vadd.f32 %v5259, %v1516
  %v5292 = vadd.f32 %v5260, %v1516
  %v5293 = vadd.f32 %v5261, %v1516
  %v5294 = vadd.f32 %v5262, %v1516
  %v5295 = vadd.f32 %v5263, %v1516
  %v5296 = vadd.f32 %v5264, %v1516
  %v5297 = vadd.f32 %v5265, %v1516
  %v5298 = vadd.f32 %v5266, %v1516
  %v5299 = vadd.f32 %v5267, %v1516
  %v5300 = vadd.f32 %v5268, %v1516
  %v5301 = vadd.f32 %v5269, %v1516
  %v5302 = vadd.f32 %v5270, %v1516
  %v5303 = vadd.f32 %v5271, %v1516
  %v5304 = vadd.f32 %v5272, %v1516
  %v5305 = vadd.f32 %v5273, %v1516
  %v5306 = vadd.f32 %v5274, %v1516
  %v5307 = vadd.f32 %v5275, %v1516
  %v5308 = vadd.f32 %v5276, %v1516
  %v5309 = vadd.f32 %v5277, %v1516
  %v5310 = vadd.f32 %v5278, %v1516
  %v5311 = vadd.f32 %v5279, %v1516
  %v5312 = vadd.f32 %v5280, %v1516
  %v5313 = vadd.f32 %v5281, %v1516
  %v5314 = vadd.f32 %v5282, %v1516
  %v5315 = vadd.f32 %v5283, %v1516
  %v5316 = vadd.f32 %v5284, %v1516
  %v5317 = vadd.f32 %v5285, %v1516
  %v5318 = vadd.f32 %v5286, %v1516
  %v5319 = vmax.f32 %v5287, 0.0
  %v5320 = vmax.f32 %v5288, 0.0
  %v5321 = vmax.f32 %v5289, 0.0
  %v5322 = vmax.f32 %v5290, 0.0
  %v5323 = vmax.f32 %v5291, 0.0
  %v5324 = vmax.f32 %v5292, 0.0
  %v5325 = vmax.f32 %v5293, 0.0
  %v5326 = vmax.f32 %v5294, 0.0
  %v5327 = vmax.f32 %v5295, 0.0
  %v5328 = vmax.f32 %v5296, 0.0
  %v5329 = vmax.f32 %v5297, 0.0
  %v5330 = vmax.f32 %v5298, 0.0
  %v5331 = vmax.f32 %v5299, 0.0
  %v5332 = vmax.f32 %v5300, 0.0
  %v5333 = vmax.f32 %v5301, 0.0
  %v5334 = vmax.f32 %v5302, 0.0
  %v5335 = vmax.f32 %v5303, 0.0
  %v5336 = vmax.f32 %v5304, 0.0
  %v5337 = vmax.f32 %v5305, 0.0
  %v5338 = vmax.f32 %v5306, 0.0
  %v5339 = vmax.f32 %v5307, 0.0
  %v5340 = vmax.f32 %v5308, 0.0
  %v5341 = vmax.f32 %v5309, 0.0
  %v5342 = vmax.f32 %v5310, 0.0
  %v5343 = vmax.f32 %v5311, 0.0
  %v5344 = vmax.f32 %v5312, 0.0
  %v5345 = vmax.f32 %v5313, 0.0
  %v5346 = vmax.f32 %v5314, 0.0
  %v5347 = vmax.f32 %v5315, 0.0
  %v5348 = vmax.f32 %v5316, 0.0
  %v5349 = vmax.f32 %v5317, 0.0
  %v5350 = vmax.f32 %v5318, 0.0
  %5351 = vst [vmem:[#allocation5 + $0x18] sm:$0xff] %v5319
  %5352 = vst [vmem:[#allocation5 + $0x20] sm:$0xff] %v5320
  %5353 = vst [vmem:[#allocation5 + $0x28] sm:$0xff] %v5321
  %5354 = vst [vmem:[#allocation5 + $0x30] sm:$0xff] %v5322
  %5355 = vst [vmem:[#allocation5 + $0x38] sm:$0xff] %v5323
  %5356 = vst [vmem:[#allocation5 + $0x40] sm:$0xff] %v5324
  %5357 = vst [vmem:[#allocation5 + $0x48] sm:$0xff] %v5325
  %5358 = vst [vmem:[#allocation5 + $0x50] sm:$0xff] %v5326
  %5359 = vst [vmem:[#allocation5 + $0x58] sm:$0xff] %v5327
  %5360 = vst [vmem:[#allocation5 + $0x60] sm:$0xff] %v5328
  %5361 = vst [vmem:[#allocation5 + $0x68] sm:$0xff] %v5329
  %5362 = vst [vmem:[#allocation5 + $0x70] sm:$0xff] %v5330
  %5363 = vst [vmem:[#allocation5 + $0x78] sm:$0xff] %v5331
  %5364 = vst [vmem:[#allocation5 + $0x80] sm:$0xff] %v5332
  %5365 = vst [vmem:[#allocation5 + $0x88] sm:$0xff] %v5333
  %5366 = vst [vmem:[#allocation5 + $0x90] sm:$0xff] %v5334
  %5367 = vst [vmem:[#allocation5 + $0x98] sm:$0xff] %v5335
  %5368 = vst [vmem:[#allocation5 + $0xa0] sm:$0xff] %v5336
  %5369 = vst [vmem:[#allocation5 + $0xa8] sm:$0xff] %v5337
  %5370 = vst [vmem:[#allocation5 + $0xb0] sm:$0xff] %v5338
  %5371 = vst [vmem:[#allocation5 + $0xb8] sm:$0xff] %v5339
  %5372 = vst [vmem:[#allocation5 + $0xc0] sm:$0xff] %v5340
  %5373 = vst [vmem:[#allocation5 + $0xc8] sm:$0xff] %v5341
  %5374 = vst [vmem:[#allocation5 + $0xd0] sm:$0xff] %v5342
  %5375 = vst [vmem:[#allocation5 + $0xd8] sm:$0xff] %v5343
  %5376 = vst [vmem:[#allocation5 + $0xe0] sm:$0xff] %v5344
  %5377 = vst [vmem:[#allocation5 + $0xe8] sm:$0xff] %v5345
  %5378 = vst [vmem:[#allocation5 + $0xf0] sm:$0xff] %v5346
  %5379 = vst [vmem:[#allocation5 + $0xf8] sm:$0xff] %v5347
  %5380 = vst [vmem:[#allocation5 + $0x100] sm:$0xff] %v5348
  %5381 = vst [vmem:[#allocation5 + $0x108] sm:$0xff] %v5349
  %5382 = vst [vmem:[#allocation5 + $0x110] sm:$0xff] %v5350
  %5383 = vst [vmem:[#allocation6] sm:$0xff] 0.0
  %5384 = vst [vmem:[#allocation6 + $0x8] sm:$0xff] 0.0
  %5385 = vst [vmem:[#allocation6 + $0x10] sm:$0xff] 0.0
  %5386 = vst [vmem:[#allocation6 + $0x18] sm:$0xff] 0.0
  %5387 = vst [vmem:[#allocation6 + $0x20] sm:$0xff] 0.0
  %5388 = vst [vmem:[#allocation6 + $0x28] sm:$0xff] 0.0
  %5389 = vst [vmem:[#allocation6 + $0x30] sm:$0xff] 0.0
  %5390 = vst [vmem:[#allocation6 + $0x38] sm:$0xff] 0.0
  %5391 = vst [vmem:[#allocation6 + $0x40] sm:$0xff] 0.0
  %5392 = vst [vmem:[#allocation6 + $0x48] sm:$0xff] 0.0
  %5393 = vst [vmem:[#allocation6 + $0x50] sm:$0xff] 0.0
  %5394 = vst [vmem:[#allocation6 + $0x58] sm:$0xff] 0.0
  %5395 = vst [vmem:[#allocation6 + $0x60] sm:$0xff] 0.0
  %5396 = vst [vmem:[#allocation6 + $0x68] sm:$0xff] 0.0
  %5397 = vst [vmem:[#allocation6 + $0x70] sm:$0xff] 0.0
  %5398 = vst [vmem:[#allocation6 + $0x78] sm:$0xff] 0.0
  %5399 = vst [vmem:[#allocation6 + $0x80] sm:$0xff] 0.0
  %5400 = vst [vmem:[#allocation6 + $0x88] sm:$0xff] 0.0
  %5401 = vst [vmem:[#allocation6 + $0x90] sm:$0xff] 0.0
  %5402 = vst [vmem:[#allocation6 + $0x98] sm:$0xff] 0.0
  %5403 = vst [vmem:[#allocation6 + $0xa0] sm:$0xff] 0.0
  %5404 = vst [vmem:[#allocation6 + $0xa8] sm:$0xff] 0.0
  %5405 = vst [vmem:[#allocation6 + $0xb0] sm:$0xff] 0.0
  %5406 = vst [vmem:[#allocation6 + $0xb8] sm:$0xff] 0.0
  %5407 = vst [vmem:[#allocation6 + $0xc0] sm:$0xff] 0.0
  %5408 = vst [vmem:[#allocation6 + $0xc8] sm:$0xff] 0.0
  %5409 = vst [vmem:[#allocation6 + $0xd0] sm:$0xff] 0.0
  %5410 = vst [vmem:[#allocation6 + $0xd8] sm:$0xff] 0.0
  %5411 = vst [vmem:[#allocation6 + $0xe0] sm:$0xff] 0.0
  %5412 = vst [vmem:[#allocation6 + $0xe8] sm:$0xff] 0.0
  %5413 = vst [vmem:[#allocation6 + $0xf0] sm:$0xff] 0.0
  %5414 = vst [vmem:[#allocation6 + $0xf8] sm:$0xff] 0.0
  %v5415 = vld [vmem:[#allocation5 + $0x7] sm:$0xff]
  %v5416 = vld [vmem:[#allocation5 + $0xf] sm:$0xff]
  %v5417 = vld [vmem:[#allocation5 + $0x17] sm:$0xff]
  %v5418 = vld [vmem:[#allocation5 + $0x1f] sm:$0xff]
  %v5419 = vld [vmem:[#allocation5 + $0x27] sm:$0xff]
  %v5420 = vld [vmem:[#allocation5 + $0x2f] sm:$0xff]
  %v5421 = vld [vmem:[#allocation5 + $0x37] sm:$0xff]
  %v5422 = vld [vmem:[#allocation5 + $0x3f] sm:$0xff]
  %v5423 = vld [vmem:[#allocation5 + $0x47] sm:$0xff]
  %v5424 = vld [vmem:[#allocation5 + $0x4f] sm:$0xff]
  %v5425 = vld [vmem:[#allocation5 + $0x57] sm:$0xff]
  %v5426 = vld [vmem:[#allocation5 + $0x5f] sm:$0xff]
  %v5427 = vld [vmem:[#allocation5 + $0x67] sm:$0xff]
  %v5428 = vld [vmem:[#allocation5 + $0x6f] sm:$0xff]
  %v5429 = vld [vmem:[#allocation5 + $0x77] sm:$0xff]
  %v5430 = vld [vmem:[#allocation5 + $0x7f] sm:$0xff]
  %v5431 = vld [vmem:[#allocation5 + $0x87] sm:$0xff]
  %v5432 = vld [vmem:[#allocation5 + $0x8f] sm:$0xff]
  %v5433 = vld [vmem:[#allocation5 + $0x97] sm:$0xff]
  %v5434 = vld [vmem:[#allocation5 + $0x9f] sm:$0xff]
  %v5435 = vld [vmem:[#allocation5 + $0xa7] sm:$0xff]
  %v5436 = vld [vmem:[#allocation5 + $0xaf] sm:$0xff]
  %v5437 = vld [vmem:[#allocation5 + $0xb7] sm:$0xff]
  %v5438 = vld [vmem:[#allocation5 + $0xbf] sm:$0xff]
  %v5439 = vld [vmem:[#allocation5 + $0xc7] sm:$0xff]
  %v5440 = vld [vmem:[#allocation5 + $0xcf] sm:$0xff]
  %v5441 = vld [vmem:[#allocation5 + $0xd7] sm:$0xff]
  %v5442 = vld [vmem:[#allocation5 + $0xdf] sm:$0xff]
  %v5443 = vld [vmem:[#allocation5 + $0xe7] sm:$0xff]
  %v5444 = vld [vmem:[#allocation5 + $0xef] sm:$0xff]
  %v5445 = vld [vmem:[#allocation5 + $0xf7] sm:$0xff]
  %v5446 = vld [vmem:[#allocation5 + $0xff] sm:$0xff]
  %v5447 = vmul.f32 %v5415, %v1308
  %v5448 = vmul.f32 %v5416, %v1309
  %v5449 = vmul.f32 %v5417, %v1310
  %v5450 = vmul.f32 %v5418, %v1311
  %v5451 = vmul.f32 %v5419, %v1312
  %v5452 = vmul.f32 %v5420, %v1313
  %v5453 = vmul.f32 %v5421, %v1314
  %v5454 = vmul.f32 %v5422, %v1315
  %v5455 = vmul.f32 %v5423, %v1316
  %v5456 = vmul.f32 %v5424, %v1317
  %v5457 = vmul.f32 %v5425, %v1318
  %v5458 = vmul.f32 %v5426, %v1319
  %v5459 = vmul.f32 %v5427, %v1320
  %v5460 = vmul.f32 %v5428, %v1321
  %v5461 = vmul.f32 %v5429, %v1322
  %v5462 = vmul.f32 %v5430, %v1323
  %v5463 = vmul.f32 %v5431, %v1324
  %v5464 = vmul.f32 %v5432, %v1325
  %v5465 = vmul.f32 %v5433, %v1326
  %v5466 = vmul.f32 %v5434, %v1327
  %v5467 = vmul.f32 %v5435, %v1328
  %v5468 = vmul.f32 %v5436, %v1329
  %v5469 = vmul.f32 %v5437, %v1330
  %v5470 = vmul.f32 %v5438, %v1331
  %v5471 = vmul.f32 %v5439, %v1332
  %v5472 = vmul.f32 %v5440, %v1333
  %v5473 = vmul.f32 %v5441, %v1334
  %v5474 = vmul.f32 %v5442, %v1335
  %v5475 = vmul.f32 %v5443, %v1336
  %v5476 = vmul.f32 %v5444, %v1337
  %v5477 = vmul.f32 %v5445, %v1338
  %v5478 = vmul.f32 %v5446, %v1339
  %v5479 = vld [vmem:[#allocation6] sm:$0xff]
  %v5480 = vld [vmem:[#allocation6 + $0x8] sm:$0xff]
  %v5481 = vld [vmem:[#allocation6 + $0x10] sm:$0xff]
  %v5482 = vld [vmem:[#allocation6 + $0x18] sm:$0xff]
  %v5483 = vld [vmem:[#allocation6 + $0x20] sm:$0xff]
  %v5484 = vld [vmem:[#allocation6 + $0x28] sm:$0xff]
  %v5485 = vld [vmem:[#allocation6 + $0x30] sm:$0xff]
  %v5486 = vld [vmem:[#allocation6 + $0x38] sm:$0xff]
  %v5487 = vld [vmem:[#allocation6 + $0x40] sm:$0xff]
  %v5488 = vld [vmem:[#allocation6 + $0x48] sm:$0xff]
  %v5489 = vld [vmem:[#allocation6 + $0x50] sm:$0xff]
  %v5490 = vld [vmem:[#allocation6 + $0x58] sm:$0xff]
  %v5491 = vld [vmem:[#allocation6 + $0x60] sm:$0xff]
  %v5492 = vld [vmem:[#allocation6 + $0x68] sm:$0xff]
  %v5493 = vld [vmem:[#allocation6 + $0x70] sm:$0xff]
  %v5494 = vld [vmem:[#allocation6 + $0x78] sm:$0xff]
  %v5495 = vld [vmem:[#allocation6 + $0x80] sm:$0xff]
  %v5496 = vld [vmem:[#allocation6 + $0x88] sm:$0xff]
  %v5497 = vld [vmem:[#allocation6 + $0x90] sm:$0xff]
  %v5498 = vld [vmem:[#allocation6 + $0x98] sm:$0xff]
  %v5499 = vld [vmem:[#allocation6 + $0xa0] sm:$0xff]
  %v5500 = vld [vmem:[#allocation6 + $0xa8] sm:$0xff]
  %v5501 = vld [vmem:[#allocation6 + $0xb0] sm:$0xff]
  %v5502 = vld [vmem:[#allocation6 + $0xb8] sm:$0xff]
  %v5503 = vld [vmem:[#allocation6 + $0xc0] sm:$0xff]
  %v5504 = vld [vmem:[#allocation6 + $0xc8] sm:$0xff]
  %v5505 = vld [vmem:[#allocation6 + $0xd0] sm:$0xff]
  %v5506 = vld [vmem:[#allocation6 + $0xd8] sm:$0xff]
  %v5507 = vld [vmem:[#allocation6 + $0xe0] sm:$0xff]
  %v5508 = vld [vmem:[#allocation6 + $0xe8] sm:$0xff]
  %v5509 = vld [vmem:[#allocation6 + $0xf0] sm:$0xff]
  %v5510 = vld [vmem:[#allocation6 + $0xf8] sm:$0xff]
  %v5511 = vpack.c.bf16 %v5448, %v5447
  %v5512 = vpack.c.bf16 %v5450, %v5449
  %v5513 = vpack.c.bf16 %v5452, %v5451
  %v5514 = vpack.c.bf16 %v5454, %v5453
  %v5515 = vpack.c.bf16 %v5456, %v5455
  %v5516 = vpack.c.bf16 %v5458, %v5457
  %v5517 = vpack.c.bf16 %v5460, %v5459
  %v5518 = vpack.c.bf16 %v5462, %v5461
  %v5519 = vpack.c.bf16 %v5464, %v5463
  %v5520 = vpack.c.bf16 %v5466, %v5465
  %v5521 = vpack.c.bf16 %v5468, %v5467
  %v5522 = vpack.c.bf16 %v5470, %v5469
  %v5523 = vpack.c.bf16 %v5472, %v5471
  %v5524 = vpack.c.bf16 %v5474, %v5473
  %v5525 = vpack.c.bf16 %v5476, %v5475
  %v5526 = vpack.c.bf16 %v5478, %v5477
  %v5527 = vld [vmem:[%s2] sm:$0xf]
  %v5528 = vld [vmem:[%s2 + $0x4] sm:$0xf]
  %v5529 = vld [vmem:[%s2 + $0x8] sm:$0xf]
  %v5530 = vld [vmem:[%s2 + $0xc] sm:$0xf]
  %v5531 = vld [vmem:[%s2 + $0x10] sm:$0xf]
  %v5532 = vld [vmem:[%s2 + $0x14] sm:$0xf]
  %v5533 = vld [vmem:[%s2 + $0x18] sm:$0xf]
  %v5534 = vld [vmem:[%s2 + $0x1c] sm:$0xf]
  %v5535 = vld [vmem:[%s2 + $0x20] sm:$0xf]
  %v5536 = vld [vmem:[%s2 + $0x24] sm:$0xf]
  %v5537 = vld [vmem:[%s2 + $0x28] sm:$0xf]
  %v5538 = vld [vmem:[%s2 + $0x2c] sm:$0xf]
  %v5539 = vld [vmem:[%s2 + $0x30] sm:$0xf]
  %v5540 = vld [vmem:[%s2 + $0x34] sm:$0xf]
  %v5541 = vld [vmem:[%s2 + $0x38] sm:$0xf]
  %v5542 = vld [vmem:[%s2 + $0x3c] sm:$0xf]
  %v5559 = vunpack.c.l.b16 %v5527
  %v5560 = vunpack.c.l.b16 %v5528
  %v5561 = vunpack.c.l.b16 %v5529
  %v5562 = vunpack.c.l.b16 %v5530
  %v5563 = vunpack.c.l.b16 %v5531
  %v5564 = vunpack.c.l.b16 %v5532
  %v5565 = vunpack.c.l.b16 %v5533
  %v5566 = vunpack.c.l.b16 %v5534
  %v5567 = vunpack.c.l.b16 %v5535
  %v5568 = vunpack.c.l.b16 %v5536
  %v5569 = vunpack.c.l.b16 %v5537
  %v5570 = vunpack.c.l.b16 %v5538
  %v5571 = vunpack.c.l.b16 %v5539
  %v5572 = vunpack.c.l.b16 %v5540
  %v5573 = vunpack.c.l.b16 %v5541
  %v5574 = vunpack.c.l.b16 %v5542
  %v5575 = vpack.c.b16 %v5560, %v5559
  %v5576 = vpack.c.b16 %v5562, %v5561
  %v5577 = vpack.c.b16 %v5564, %v5563
  %v5578 = vpack.c.b16 %v5566, %v5565
  %v5579 = vpack.c.b16 %v5568, %v5567
  %v5580 = vpack.c.b16 %v5570, %v5569
  %v5581 = vpack.c.b16 %v5572, %v5571
  %v5582 = vpack.c.b16 %v5574, %v5573
  %5591 = vmatprep.subr.bf16.mxu0 0
  %5592 = vmatpush1.bf16.msra.mxu0 %v5575
  %5593 = vmatprep.subr.bf16.mxu0 0
  %5594 = vmatpush1.bf16.msra.mxu0 %v5576
  %5595 = vmatprep.subr.bf16.mxu0 0
  %5596 = vmatpush1.bf16.msra.mxu0 %v5577
  %5597 = vmatprep.subr.bf16.mxu0 0
  %5598 = vmatpush1.bf16.msra.mxu0 %v5578
  %5599 = vmatprep.subr.bf16.mxu0 0
  %5600 = vmatpush1.bf16.msra.mxu0 %v5579
  %5601 = vmatprep.subr.bf16.mxu0 0
  %5602 = vmatpush1.bf16.msra.mxu0 %v5580
  %5603 = vmatprep.subr.bf16.mxu0 0
  %5604 = vmatpush1.bf16.msra.mxu0 %v5581
  %5605 = vmatprep.subr.bf16.mxu0 0
  %5606 = vmatpush1.bf16.msra.mxu0 %v5582
  %5607 = vmatprep.subr.bf16.mxu0 0
  %5608 = vmatpush1.bf16.msra.mxu0 0
  %5609 = vmatprep.subr.bf16.mxu0 0
  %5610 = vmatpush1.bf16.msra.mxu0 0
  %5611 = vmatprep.subr.bf16.mxu0 0
  %5612 = vmatpush1.bf16.msra.mxu0 0
  %5613 = vmatprep.subr.bf16.mxu0 0
  %5614 = vmatpush1.bf16.msra.mxu0 0
  %5615 = vmatprep.subr.bf16.mxu0 0
  %5616 = vmatpush1.bf16.msra.mxu0 0
  %5617 = vmatprep.subr.bf16.mxu0 0
  %5618 = vmatpush1.bf16.msra.mxu0 0
  %5619 = vmatprep.subr.bf16.mxu0 0
  %5620 = vmatpush1.bf16.msra.mxu0 0
  %5621 = vmatprep.subr.bf16.mxu0 0
  %5622 = vmatpush1.bf16.msra.mxu0 0
  %5623 = vmatprep.mubr.bf16.mxu0 0
  %5624 = vmatmul.mubr.bf16.gmra.mrb[0].mxu0 %v5511
  %v5625 = vpop.f32.mrb[0].mxu0
  %v5626 = vadd.f32 0.0, %v5625
  %v5627 = vpop.f32.mrb[0].mxu0
  %v5628 = vpop.f32.mrb[0].mxu0
  %v5629 = vadd.f32 0.0, %v5628
  %v5630 = vpop.f32.mrb[0].mxu0
  %5631 = vmatprep.mubr.bf16.mxu0 0
  %5632 = vmatmul.mubr.bf16.gmra.mrb[0].mxu0 %v5512
  %v5633 = vpop.f32.mrb[0].mxu0
  %v5634 = vadd.f32 0.0, %v5633
  %v5635 = vpop.f32.mrb[0].mxu0
  %v5636 = vpop.f32.mrb[0].mxu0
  %v5637 = vadd.f32 0.0, %v5636
  %v5638 = vpop.f32.mrb[0].mxu0
  %5639 = vmatprep.mubr.bf16.mxu0 0
  %5640 = vmatmul.mubr.bf16.gmra.mrb[0].mxu0 %v5513
  %v5641 = vpop.f32.mrb[0].mxu0
  %v5642 = vadd.f32 0.0, %v5641
  %v5643 = vpop.f32.mrb[0].mxu0
  %v5644 = vpop.f32.mrb[0].mxu0
  %v5645 = vadd.f32 0.0, %v5644
  %v5646 = vpop.f32.mrb[0].mxu0
  %5647 = vmatprep.mubr.bf16.mxu0 0
  %5648 = vmatmul.mubr.bf16.gmra.mrb[0].mxu0 %v5514
  %v5649 = vpop.f32.mrb[0].mxu0
  %v5650 = vadd.f32 0.0, %v5649
  %v5651 = vpop.f32.mrb[0].mxu0
  %v5652 = vpop.f32.mrb[0].mxu0
  %v5653 = vadd.f32 0.0, %v5652
  %v5654 = vpop.f32.mrb[0].mxu0
  %5655 = vmatprep.mubr.bf16.mxu0 0
  %5656 = vmatmul.mubr.bf16.gmra.mrb[0].mxu0 %v5515
  %v5657 = vpop.f32.mrb[0].mxu0
  %v5658 = vadd.f32 0.0, %v5657
  %v5659 = vpop.f32.mrb[0].mxu0
  %v5660 = vpop.f32.mrb[0].mxu0
  %v5661 = vadd.f32 0.0, %v5660
  %v5662 = vpop.f32.mrb[0].mxu0
  %5663 = vmatprep.mubr.bf16.mxu0 0
  %5664 = vmatmul.mubr.bf16.gmra.mrb[0].mxu0 %v5516
  %v5665 = vpop.f32.mrb[0].mxu0
  %v5666 = vadd.f32 0.0, %v5665
  %v5667 = vpop.f32.mrb[0].mxu0
  %v5668 = vpop.f32.mrb[0].mxu0
  %v5669 = vadd.f32 0.0, %v5668
  %v5670 = vpop.f32.mrb[0].mxu0
  %5671 = vmatprep.mubr.bf16.mxu0 0
  %5672 = vmatmul.mubr.bf16.gmra.mrb[0].mxu0 %v5517
  %v5673 = vpop.f32.mrb[0].mxu0
  %v5674 = vadd.f32 0.0, %v5673
  %v5675 = vpop.f32.mrb[0].mxu0
  %v5676 = vpop.f32.mrb[0].mxu0
  %v5677 = vadd.f32 0.0, %v5676
  %v5678 = vpop.f32.mrb[0].mxu0
  %5679 = vmatprep.mubr.bf16.mxu0 0
  %5680 = vmatmul.mubr.bf16.gmra.mrb[0].mxu0 %v5518
  %v5681 = vpop.f32.mrb[0].mxu0
  %v5682 = vadd.f32 0.0, %v5681
  %v5683 = vpop.f32.mrb[0].mxu0
  %v5684 = vpop.f32.mrb[0].mxu0
  %v5685 = vadd.f32 0.0, %v5684
  %v5686 = vpop.f32.mrb[0].mxu0
  %5687 = vmatprep.mubr.bf16.mxu0 0
  %5688 = vmatmul.mubr.bf16.gmra.mrb[0].mxu0 %v5519
  %v5689 = vpop.f32.mrb[0].mxu0
  %v5690 = vadd.f32 0.0, %v5689
  %v5691 = vpop.f32.mrb[0].mxu0
  %v5692 = vpop.f32.mrb[0].mxu0
  %v5693 = vadd.f32 0.0, %v5692
  %v5694 = vpop.f32.mrb[0].mxu0
  %5695 = vmatprep.mubr.bf16.mxu0 0
  %5696 = vmatmul.mubr.bf16.gmra.mrb[0].mxu0 %v5520
  %v5697 = vpop.f32.mrb[0].mxu0
  %v5698 = vadd.f32 0.0, %v5697
  %v5699 = vpop.f32.mrb[0].mxu0
  %v5700 = vpop.f32.mrb[0].mxu0
  %v5701 = vadd.f32 0.0, %v5700
  %v5702 = vpop.f32.mrb[0].mxu0
  %5703 = vmatprep.mubr.bf16.mxu0 0
  %5704 = vmatmul.mubr.bf16.gmra.mrb[0].mxu0 %v5521
  %v5705 = vpop.f32.mrb[0].mxu0
  %v5706 = vadd.f32 0.0, %v5705
  %v5707 = vpop.f32.mrb[0].mxu0
  %v5708 = vpop.f32.mrb[0].mxu0
  %v5709 = vadd.f32 0.0, %v5708
  %v5710 = vpop.f32.mrb[0].mxu0
  %5711 = vmatprep.mubr.bf16.mxu0 0
  %5712 = vmatmul.mubr.bf16.gmra.mrb[0].mxu0 %v5522
  %v5713 = vpop.f32.mrb[0].mxu0
  %v5714 = vadd.f32 0.0, %v5713
  %v5715 = vpop.f32.mrb[0].mxu0
  %v5716 = vpop.f32.mrb[0].mxu0
  %v5717 = vadd.f32 0.0, %v5716
  %v5718 = vpop.f32.mrb[0].mxu0
  %5719 = vmatprep.mubr.bf16.mxu0 0
  %5720 = vmatmul.mubr.bf16.gmra.mrb[0].mxu0 %v5523
  %v5721 = vpop.f32.mrb[0].mxu0
  %v5722 = vadd.f32 0.0, %v5721
  %v5723 = vpop.f32.mrb[0].mxu0
  %v5724 = vpop.f32.mrb[0].mxu0
  %v5725 = vadd.f32 0.0, %v5724
  %v5726 = vpop.f32.mrb[0].mxu0
  %5727 = vmatprep.mubr.bf16.mxu0 0
  %5728 = vmatmul.mubr.bf16.gmra.mrb[0].mxu0 %v5524
  %v5729 = vpop.f32.mrb[0].mxu0
  %v5730 = vadd.f32 0.0, %v5729
  %v5731 = vpop.f32.mrb[0].mxu0
  %v5732 = vpop.f32.mrb[0].mxu0
  %v5733 = vadd.f32 0.0, %v5732
  %v5734 = vpop.f32.mrb[0].mxu0
  %5735 = vmatprep.mubr.bf16.mxu0 0
  %5736 = vmatmul.mubr.bf16.gmra.mrb[0].mxu0 %v5525
  %v5737 = vpop.f32.mrb[0].mxu0
  %v5738 = vadd.f32 0.0, %v5737
  %v5739 = vpop.f32.mrb[0].mxu0
  %v5740 = vpop.f32.mrb[0].mxu0
  %v5741 = vadd.f32 0.0, %v5740
  %v5742 = vpop.f32.mrb[0].mxu0
  %5743 = vmatprep.mubr.bf16.mxu0 0
  %5744 = vmatmul.mubr.bf16.gmra.mrb[0].mxu0 %v5526
  %v5745 = vpop.f32.mrb[0].mxu0
  %v5746 = vadd.f32 0.0, %v5745
  %v5747 = vpop.f32.mrb[0].mxu0
  %v5748 = vpop.f32.mrb[0].mxu0
  %v5749 = vadd.f32 0.0, %v5748
  %v5750 = vpop.f32.mrb[0].mxu0
  %5751 = vdwg.mxu0
  %v5752 = vadd.f32 %v5479, %v5626
  %v5753 = vadd.f32 %v5480, %v5629
  %v5754 = vadd.f32 %v5481, %v5634
  %v5755 = vadd.f32 %v5482, %v5637
  %v5756 = vadd.f32 %v5483, %v5642
  %v5757 = vadd.f32 %v5484, %v5645
  %v5758 = vadd.f32 %v5485, %v5650
  %v5759 = vadd.f32 %v5486, %v5653
  %v5760 = vadd.f32 %v5487, %v5658
  %v5761 = vadd.f32 %v5488, %v5661
  %v5762 = vadd.f32 %v5489, %v5666
  %v5763 = vadd.f32 %v5490, %v5669
  %v5764 = vadd.f32 %v5491, %v5674
  %v5765 = vadd.f32 %v5492, %v5677
  %v5766 = vadd.f32 %v5493, %v5682
  %v5767 = vadd.f32 %v5494, %v5685
  %v5768 = vadd.f32 %v5495, %v5690
  %v5769 = vadd.f32 %v5496, %v5693
  %v5770 = vadd.f32 %v5497, %v5698
  %v5771 = vadd.f32 %v5498, %v5701
  %v5772 = vadd.f32 %v5499, %v5706
  %v5773 = vadd.f32 %v5500, %v5709
  %v5774 = vadd.f32 %v5501, %v5714
  %v5775 = vadd.f32 %v5502, %v5717
  %v5776 = vadd.f32 %v5503, %v5722
  %v5777 = vadd.f32 %v5504, %v5725
  %v5778 = vadd.f32 %v5505, %v5730
  %v5779 = vadd.f32 %v5506, %v5733
  %v5780 = vadd.f32 %v5507, %v5738
  %v5781 = vadd.f32 %v5508, %v5741
  %v5782 = vadd.f32 %v5509, %v5746
  %v5783 = vadd.f32 %v5510, %v5749
  %5784 = vst [vmem:[#allocation6] sm:$0xff] %v5752
  %5785 = vst [vmem:[#allocation6 + $0x8] sm:$0xff] %v5753
  %5786 = vst [vmem:[#allocation6 + $0x10] sm:$0xff] %v5754
  %5787 = vst [vmem:[#allocation6 + $0x18] sm:$0xff] %v5755
  %5788 = vst [vmem:[#allocation6 + $0x20] sm:$0xff] %v5756
  %5789 = vst [vmem:[#allocation6 + $0x28] sm:$0xff] %v5757
  %5790 = vst [vmem:[#allocation6 + $0x30] sm:$0xff] %v5758
  %5791 = vst [vmem:[#allocation6 + $0x38] sm:$0xff] %v5759
  %5792 = vst [vmem:[#allocation6 + $0x40] sm:$0xff] %v5760
  %5793 = vst [vmem:[#allocation6 + $0x48] sm:$0xff] %v5761
  %5794 = vst [vmem:[#allocation6 + $0x50] sm:$0xff] %v5762
  %5795 = vst [vmem:[#allocation6 + $0x58] sm:$0xff] %v5763
  %5796 = vst [vmem:[#allocation6 + $0x60] sm:$0xff] %v5764
  %5797 = vst [vmem:[#allocation6 + $0x68] sm:$0xff] %v5765
  %5798 = vst [vmem:[#allocation6 + $0x70] sm:$0xff] %v5766
  %5799 = vst [vmem:[#allocation6 + $0x78] sm:$0xff] %v5767
  %5800 = vst [vmem:[#allocation6 + $0x80] sm:$0xff] %v5768
  %5801 = vst [vmem:[#allocation6 + $0x88] sm:$0xff] %v5769
  %5802 = vst [vmem:[#allocation6 + $0x90] sm:$0xff] %v5770
  %5803 = vst [vmem:[#allocation6 + $0x98] sm:$0xff] %v5771
  %5804 = vst [vmem:[#allocation6 + $0xa0] sm:$0xff] %v5772
  %5805 = vst [vmem:[#allocation6 + $0xa8] sm:$0xff] %v5773
  %5806 = vst [vmem:[#allocation6 + $0xb0] sm:$0xff] %v5774
  %5807 = vst [vmem:[#allocation6 + $0xb8] sm:$0xff] %v5775
  %5808 = vst [vmem:[#allocation6 + $0xc0] sm:$0xff] %v5776
  %5809 = vst [vmem:[#allocation6 + $0xc8] sm:$0xff] %v5777
  %5810 = vst [vmem:[#allocation6 + $0xd0] sm:$0xff] %v5778
  %5811 = vst [vmem:[#allocation6 + $0xd8] sm:$0xff] %v5779
  %5812 = vst [vmem:[#allocation6 + $0xe0] sm:$0xff] %v5780
  %5813 = vst [vmem:[#allocation6 + $0xe8] sm:$0xff] %v5781
  %5814 = vst [vmem:[#allocation6 + $0xf0] sm:$0xff] %v5782
  %5815 = vst [vmem:[#allocation6 + $0xf8] sm:$0xff] %v5783
  %v5816 = vld [vmem:[#allocation5 + $0x8] sm:$0xff]
  %v5817 = vld [vmem:[#allocation5 + $0x10] sm:$0xff]
  %v5818 = vld [vmem:[#allocation5 + $0x18] sm:$0xff]
  %v5819 = vld [vmem:[#allocation5 + $0x20] sm:$0xff]
  %v5820 = vld [vmem:[#allocation5 + $0x28] sm:$0xff]
  %v5821 = vld [vmem:[#allocation5 + $0x30] sm:$0xff]
  %v5822 = vld [vmem:[#allocation5 + $0x38] sm:$0xff]
  %v5823 = vld [vmem:[#allocation5 + $0x40] sm:$0xff]
  %v5824 = vld [vmem:[#allocation5 + $0x48] sm:$0xff]
  %v5825 = vld [vmem:[#allocation5 + $0x50] sm:$0xff]
  %v5826 = vld [vmem:[#allocation5 + $0x58] sm:$0xff]
  %v5827 = vld [vmem:[#allocation5 + $0x60] sm:$0xff]
  %v5828 = vld [vmem:[#allocation5 + $0x68] sm:$0xff]
  %v5829 = vld [vmem:[#allocation5 + $0x70] sm:$0xff]
  %v5830 = vld [vmem:[#allocation5 + $0x78] sm:$0xff]
  %v5831 = vld [vmem:[#allocation5 + $0x80] sm:$0xff]
  %v5832 = vld [vmem:[#allocation5 + $0x88] sm:$0xff]
  %v5833 = vld [vmem:[#allocation5 + $0x90] sm:$0xff]
  %v5834 = vld [vmem:[#allocation5 + $0x98] sm:$0xff]
  %v5835 = vld [vmem:[#allocation5 + $0xa0] sm:$0xff]
  %v5836 = vld [vmem:[#allocation5 + $0xa8] sm:$0xff]
  %v5837 = vld [vmem:[#allocation5 + $0xb0] sm:$0xff]
  %v5838 = vld [vmem:[#allocation5 + $0xb8] sm:$0xff]
  %v5839 = vld [vmem:[#allocation5 + $0xc0] sm:$0xff]
  %v5840 = vld [vmem:[#allocation5 + $0xc8] sm:$0xff]
  %v5841 = vld [vmem:[#allocation5 + $0xd0] sm:$0xff]
  %v5842 = vld [vmem:[#allocation5 + $0xd8] sm:$0xff]
  %v5843 = vld [vmem:[#allocation5 + $0xe0] sm:$0xff]
  %v5844 = vld [vmem:[#allocation5 + $0xe8] sm:$0xff]
  %v5845 = vld [vmem:[#allocation5 + $0xf0] sm:$0xff]
  %v5846 = vld [vmem:[#allocation5 + $0xf8] sm:$0xff]
  %v5847 = vld [vmem:[#allocation5 + $0x100] sm:$0xff]
  %v5848 = vld [vmem:[#allocation6] sm:$0xff]
  %v5849 = vld [vmem:[#allocation6 + $0x8] sm:$0xff]
  %v5850 = vld [vmem:[#allocation6 + $0x10] sm:$0xff]
  %v5851 = vld [vmem:[#allocation6 + $0x18] sm:$0xff]
  %v5852 = vld [vmem:[#allocation6 + $0x20] sm:$0xff]
  %v5853 = vld [vmem:[#allocation6 + $0x28] sm:$0xff]
  %v5854 = vld [vmem:[#allocation6 + $0x30] sm:$0xff]
  %v5855 = vld [vmem:[#allocation6 + $0x38] sm:$0xff]
  %v5856 = vld [vmem:[#allocation6 + $0x40] sm:$0xff]
  %v5857 = vld [vmem:[#allocation6 + $0x48] sm:$0xff]
  %v5858 = vld [vmem:[#allocation6 + $0x50] sm:$0xff]
  %v5859 = vld [vmem:[#allocation6 + $0x58] sm:$0xff]
  %v5860 = vld [vmem:[#allocation6 + $0x60] sm:$0xff]
  %v5861 = vld [vmem:[#allocation6 + $0x68] sm:$0xff]
  %v5862 = vld [vmem:[#allocation6 + $0x70] sm:$0xff]
  %v5863 = vld [vmem:[#allocation6 + $0x78] sm:$0xff]
  %v5864 = vld [vmem:[#allocation6 + $0x80] sm:$0xff]
  %v5865 = vld [vmem:[#allocation6 + $0x88] sm:$0xff]
  %v5866 = vld [vmem:[#allocation6 + $0x90] sm:$0xff]
  %v5867 = vld [vmem:[#allocation6 + $0x98] sm:$0xff]
  %v5868 = vld [vmem:[#allocation6 + $0xa0] sm:$0xff]
  %v5869 = vld [vmem:[#allocation6 + $0xa8] sm:$0xff]
  %v5870 = vld [vmem:[#allocation6 + $0xb0] sm:$0xff]
  %v5871 = vld [vmem:[#allocation6 + $0xb8] sm:$0xff]
  %v5872 = vld [vmem:[#allocation6 + $0xc0] sm:$0xff]
  %v5873 = vld [vmem:[#allocation6 + $0xc8] sm:$0xff]
  %v5874 = vld [vmem:[#allocation6 + $0xd0] sm:$0xff]
  %v5875 = vld [vmem:[#allocation6 + $0xd8] sm:$0xff]
  %v5876 = vld [vmem:[#allocation6 + $0xe0] sm:$0xff]
  %v5877 = vld [vmem:[#allocation6 + $0xe8] sm:$0xff]
  %v5878 = vld [vmem:[#allocation6 + $0xf0] sm:$0xff]
  %v5879 = vld [vmem:[#allocation6 + $0xf8] sm:$0xff]
  %v5880 = vpack.c.bf16 %v5817, %v5816
  %v5881 = vpack.c.bf16 %v5819, %v5818
  %v5882 = vpack.c.bf16 %v5821, %v5820
  %v5883 = vpack.c.bf16 %v5823, %v5822
  %v5884 = vpack.c.bf16 %v5825, %v5824
  %v5885 = vpack.c.bf16 %v5827, %v5826
  %v5886 = vpack.c.bf16 %v5829, %v5828
  %v5887 = vpack.c.bf16 %v5831, %v5830
  %v5888 = vpack.c.bf16 %v5833, %v5832
  %v5889 = vpack.c.bf16 %v5835, %v5834
  %v5890 = vpack.c.bf16 %v5837, %v5836
  %v5891 = vpack.c.bf16 %v5839, %v5838
  %v5892 = vpack.c.bf16 %v5841, %v5840
  %v5893 = vpack.c.bf16 %v5843, %v5842
  %v5894 = vpack.c.bf16 %v5845, %v5844
  %v5895 = vpack.c.bf16 %v5847, %v5846
  %v5896 = vld [vmem:[%s2 + $0x40] sm:$0xf]
  %v5897 = vld [vmem:[%s2 + $0x44] sm:$0xf]
  %v5898 = vld [vmem:[%s2 + $0x48] sm:$0xf]
  %v5899 = vld [vmem:[%s2 + $0x4c] sm:$0xf]
  %v5900 = vld [vmem:[%s2 + $0x50] sm:$0xf]
  %v5901 = vld [vmem:[%s2 + $0x54] sm:$0xf]
  %v5902 = vld [vmem:[%s2 + $0x58] sm:$0xf]
  %v5903 = vld [vmem:[%s2 + $0x5c] sm:$0xf]
  %v5904 = vld [vmem:[%s2 + $0x60] sm:$0xf]
  %v5905 = vld [vmem:[%s2 + $0x64] sm:$0xf]
  %v5906 = vld [vmem:[%s2 + $0x68] sm:$0xf]
  %v5907 = vld [vmem:[%s2 + $0x6c] sm:$0xf]
  %v5908 = vld [vmem:[%s2 + $0x70] sm:$0xf]
  %v5909 = vld [vmem:[%s2 + $0x74] sm:$0xf]
  %v5910 = vld [vmem:[%s2 + $0x78] sm:$0xf]
  %v5911 = vld [vmem:[%s2 + $0x7c] sm:$0xf]
  %v5928 = vunpack.c.l.b16 %v5896
  %v5929 = vunpack.c.l.b16 %v5897
  %v5930 = vunpack.c.l.b16 %v5898
  %v5931 = vunpack.c.l.b16 %v5899
  %v5932 = vunpack.c.l.b16 %v5900
  %v5933 = vunpack.c.l.b16 %v5901
  %v5934 = vunpack.c.l.b16 %v5902
  %v5935 = vunpack.c.l.b16 %v5903
  %v5936 = vunpack.c.l.b16 %v5904
  %v5937 = vunpack.c.l.b16 %v5905
  %v5938 = vunpack.c.l.b16 %v5906
  %v5939 = vunpack.c.l.b16 %v5907
  %v5940 = vunpack.c.l.b16 %v5908
  %v5941 = vunpack.c.l.b16 %v5909
  %v5942 = vunpack.c.l.b16 %v5910
  %v5943 = vunpack.c.l.b16 %v5911
  %v5944 = vpack.c.b16 %v5929, %v5928
  %v5945 = vpack.c.b16 %v5931, %v5930
  %v5946 = vpack.c.b16 %v5933, %v5932
  %v5947 = vpack.c.b16 %v5935, %v5934
  %v5948 = vpack.c.b16 %v5937, %v5936
  %v5949 = vpack.c.b16 %v5939, %v5938
  %v5950 = vpack.c.b16 %v5941, %v5940
  %v5951 = vpack.c.b16 %v5943, %v5942
  %5960 = vmatprep.subr.bf16.mxu0 0
  %5961 = vmatpush1.bf16.msra.mxu0 %v5944
  %5962 = vmatprep.subr.bf16.mxu0 0
  %5963 = vmatpush1.bf16.msra.mxu0 %v5945
  %5964 = vmatprep.subr.bf16.mxu0 0
  %5965 = vmatpush1.bf16.msra.mxu0 %v5946
  %5966 = vmatprep.subr.bf16.mxu0 0
  %5967 = vmatpush1.bf16.msra.mxu0 %v5947
  %5968 = vmatprep.subr.bf16.mxu0 0
  %5969 = vmatpush1.bf16.msra.mxu0 %v5948
  %5970 = vmatprep.subr.bf16.mxu0 0
  %5971 = vmatpush1.bf16.msra.mxu0 %v5949
  %5972 = vmatprep.subr.bf16.mxu0 0
  %5973 = vmatpush1.bf16.msra.mxu0 %v5950
  %5974 = vmatprep.subr.bf16.mxu0 0
  %5975 = vmatpush1.bf16.msra.mxu0 %v5951
  %5976 = vmatprep.subr.bf16.mxu0 0
  %5977 = vmatpush1.bf16.msra.mxu0 0
  %5978 = vmatprep.subr.bf16.mxu0 0
  %5979 = vmatpush1.bf16.msra.mxu0 0
  %5980 = vmatprep.subr.bf16.mxu0 0
  %5981 = vmatpush1.bf16.msra.mxu0 0
  %5982 = vmatprep.subr.bf16.mxu0 0
  %5983 = vmatpush1.bf16.msra.mxu0 0
  %5984 = vmatprep.subr.bf16.mxu0 0
  %5985 = vmatpush1.bf16.msra.mxu0 0
  %5986 = vmatprep.subr.bf16.mxu0 0
  %5987 = vmatpush1.bf16.msra.mxu0 0
  %5988 = vmatprep.subr.bf16.mxu0 0
  %5989 = vmatpush1.bf16.msra.mxu0 0
  %5990 = vmatprep.subr.bf16.mxu0 0
  %5991 = vmatpush1.bf16.msra.mxu0 0
  %5992 = vmatprep.mubr.bf16.mxu0 0
  %5993 = vmatmul.mubr.bf16.gmra.mrb[0].mxu0 %v5880
  %v5994 = vpop.f32.mrb[0].mxu0
  %v5995 = vadd.f32 0.0, %v5994
  %v5996 = vpop.f32.mrb[0].mxu0
  %v5997 = vpop.f32.mrb[0].mxu0
  %v5998 = vadd.f32 0.0, %v5997
  %v5999 = vpop.f32.mrb[0].mxu0
  %6000 = vmatprep.mubr.bf16.mxu0 0
  %6001 = vmatmul.mubr.bf16.gmra.mrb[0].mxu0 %v5881
  %v6002 = vpop.f32.mrb[0].mxu0
  %v6003 = vadd.f32 0.0, %v6002
  %v6004 = vpop.f32.mrb[0].mxu0
  %v6005 = vpop.f32.mrb[0].mxu0
  %v6006 = vadd.f32 0.0, %v6005
  %v6007 = vpop.f32.mrb[0].mxu0
  %6008 = vmatprep.mubr.bf16.mxu0 0
  %6009 = vmatmul.mubr.bf16.gmra.mrb[0].mxu0 %v5882
  %v6010 = vpop.f32.mrb[0].mxu0
  %v6011 = vadd.f32 0.0, %v6010
  %v6012 = vpop.f32.mrb[0].mxu0
  %v6013 = vpop.f32.mrb[0].mxu0
  %v6014 = vadd.f32 0.0, %v6013
  %v6015 = vpop.f32.mrb[0].mxu0
  %6016 = vmatprep.mubr.bf16.mxu0 0
  %6017 = vmatmul.mubr.bf16.gmra.mrb[0].mxu0 %v5883
  %v6018 = vpop.f32.mrb[0].mxu0
  %v6019 = vadd.f32 0.0, %v6018
  %v6020 = vpop.f32.mrb[0].mxu0
  %v6021 = vpop.f32.mrb[0].mxu0
  %v6022 = vadd.f32 0.0, %v6021
  %v6023 = vpop.f32.mrb[0].mxu0
  %6024 = vmatprep.mubr.bf16.mxu0 0
  %6025 = vmatmul.mubr.bf16.gmra.mrb[0].mxu0 %v5884
  %v6026 = vpop.f32.mrb[0].mxu0
  %v6027 = vadd.f32 0.0, %v6026
  %v6028 = vpop.f32.mrb[0].mxu0
  %v6029 = vpop.f32.mrb[0].mxu0
  %v6030 = vadd.f32 0.0, %v6029
  %v6031 = vpop.f32.mrb[0].mxu0
  %6032 = vmatprep.mubr.bf16.mxu0 0
  %6033 = vmatmul.mubr.bf16.gmra.mrb[0].mxu0 %v5885
  %v6034 = vpop.f32.mrb[0].mxu0
  %v6035 = vadd.f32 0.0, %v6034
  %v6036 = vpop.f32.mrb[0].mxu0
  %v6037 = vpop.f32.mrb[0].mxu0
  %v6038 = vadd.f32 0.0, %v6037
  %v6039 = vpop.f32.mrb[0].mxu0
  %6040 = vmatprep.mubr.bf16.mxu0 0
  %6041 = vmatmul.mubr.bf16.gmra.mrb[0].mxu0 %v5886
  %v6042 = vpop.f32.mrb[0].mxu0
  %v6043 = vadd.f32 0.0, %v6042
  %v6044 = vpop.f32.mrb[0].mxu0
  %v6045 = vpop.f32.mrb[0].mxu0
  %v6046 = vadd.f32 0.0, %v6045
  %v6047 = vpop.f32.mrb[0].mxu0
  %6048 = vmatprep.mubr.bf16.mxu0 0
  %6049 = vmatmul.mubr.bf16.gmra.mrb[0].mxu0 %v5887
  %v6050 = vpop.f32.mrb[0].mxu0
  %v6051 = vadd.f32 0.0, %v6050
  %v6052 = vpop.f32.mrb[0].mxu0
  %v6053 = vpop.f32.mrb[0].mxu0
  %v6054 = vadd.f32 0.0, %v6053
  %v6055 = vpop.f32.mrb[0].mxu0
  %6056 = vmatprep.mubr.bf16.mxu0 0
  %6057 = vmatmul.mubr.bf16.gmra.mrb[0].mxu0 %v5888
  %v6058 = vpop.f32.mrb[0].mxu0
  %v6059 = vadd.f32 0.0, %v6058
  %v6060 = vpop.f32.mrb[0].mxu0
  %v6061 = vpop.f32.mrb[0].mxu0
  %v6062 = vadd.f32 0.0, %v6061
  %v6063 = vpop.f32.mrb[0].mxu0
  %6064 = vmatprep.mubr.bf16.mxu0 0
  %6065 = vmatmul.mubr.bf16.gmra.mrb[0].mxu0 %v5889
  %v6066 = vpop.f32.mrb[0].mxu0
  %v6067 = vadd.f32 0.0, %v6066
  %v6068 = vpop.f32.mrb[0].mxu0
  %v6069 = vpop.f32.mrb[0].mxu0
  %v6070 = vadd.f32 0.0, %v6069
  %v6071 = vpop.f32.mrb[0].mxu0
  %6072 = vmatprep.mubr.bf16.mxu0 0
  %6073 = vmatmul.mubr.bf16.gmra.mrb[0].mxu0 %v5890
  %v6074 = vpop.f32.mrb[0].mxu0
  %v6075 = vadd.f32 0.0, %v6074
  %v6076 = vpop.f32.mrb[0].mxu0
  %v6077 = vpop.f32.mrb[0].mxu0
  %v6078 = vadd.f32 0.0, %v6077
  %v6079 = vpop.f32.mrb[0].mxu0
  %6080 = vmatprep.mubr.bf16.mxu0 0
  %6081 = vmatmul.mubr.bf16.gmra.mrb[0].mxu0 %v5891
  %v6082 = vpop.f32.mrb[0].mxu0
  %v6083 = vadd.f32 0.0, %v6082
  %v6084 = vpop.f32.mrb[0].mxu0
  %v6085 = vpop.f32.mrb[0].mxu0
  %v6086 = vadd.f32 0.0, %v6085
  %v6087 = vpop.f32.mrb[0].mxu0
  %6088 = vmatprep.mubr.bf16.mxu0 0
  %6089 = vmatmul.mubr.bf16.gmra.mrb[0].mxu0 %v5892
  %v6090 = vpop.f32.mrb[0].mxu0
  %v6091 = vadd.f32 0.0, %v6090
  %v6092 = vpop.f32.mrb[0].mxu0
  %v6093 = vpop.f32.mrb[0].mxu0
  %v6094 = vadd.f32 0.0, %v6093
  %v6095 = vpop.f32.mrb[0].mxu0
  %6096 = vmatprep.mubr.bf16.mxu0 0
  %6097 = vmatmul.mubr.bf16.gmra.mrb[0].mxu0 %v5893
  %v6098 = vpop.f32.mrb[0].mxu0
  %v6099 = vadd.f32 0.0, %v6098
  %v6100 = vpop.f32.mrb[0].mxu0
  %v6101 = vpop.f32.mrb[0].mxu0
  %v6102 = vadd.f32 0.0, %v6101
  %v6103 = vpop.f32.mrb[0].mxu0
  %6104 = vmatprep.mubr.bf16.mxu0 0
  %6105 = vmatmul.mubr.bf16.gmra.mrb[0].mxu0 %v5894
  %v6106 = vpop.f32.mrb[0].mxu0
  %v6107 = vadd.f32 0.0, %v6106
  %v6108 = vpop.f32.mrb[0].mxu0
  %v6109 = vpop.f32.mrb[0].mxu0
  %v6110 = vadd.f32 0.0, %v6109
  %v6111 = vpop.f32.mrb[0].mxu0
  %6112 = vmatprep.mubr.bf16.mxu0 0
  %6113 = vmatmul.mubr.bf16.gmra.mrb[0].mxu0 %v5895
  %v6114 = vpop.f32.mrb[0].mxu0
  %v6115 = vadd.f32 0.0, %v6114
  %v6116 = vpop.f32.mrb[0].mxu0
  %v6117 = vpop.f32.mrb[0].mxu0
  %v6118 = vadd.f32 0.0, %v6117
  %v6119 = vpop.f32.mrb[0].mxu0
  %6120 = vdwg.mxu0
  %v6121 = vadd.f32 %v5848, %v5995
  %v6122 = vadd.f32 %v5849, %v5998
  %v6123 = vadd.f32 %v5850, %v6003
  %v6124 = vadd.f32 %v5851, %v6006
  %v6125 = vadd.f32 %v5852, %v6011
  %v6126 = vadd.f32 %v5853, %v6014
  %v6127 = vadd.f32 %v5854, %v6019
  %v6128 = vadd.f32 %v5855, %v6022
  %v6129 = vadd.f32 %v5856, %v6027
  %v6130 = vadd.f32 %v5857, %v6030
  %v6131 = vadd.f32 %v5858, %v6035
  %v6132 = vadd.f32 %v5859, %v6038
  %v6133 = vadd.f32 %v5860, %v6043
  %v6134 = vadd.f32 %v5861, %v6046
  %v6135 = vadd.f32 %v5862, %v6051
  %v6136 = vadd.f32 %v5863, %v6054
  %v6137 = vadd.f32 %v5864, %v6059
  %v6138 = vadd.f32 %v5865, %v6062
  %v6139 = vadd.f32 %v5866, %v6067
  %v6140 = vadd.f32 %v5867, %v6070
  %v6141 = vadd.f32 %v5868, %v6075
  %v6142 = vadd.f32 %v5869, %v6078
  %v6143 = vadd.f32 %v5870, %v6083
  %v6144 = vadd.f32 %v5871, %v6086
  %v6145 = vadd.f32 %v5872, %v6091
  %v6146 = vadd.f32 %v5873, %v6094
  %v6147 = vadd.f32 %v5874, %v6099
  %v6148 = vadd.f32 %v5875, %v6102
  %v6149 = vadd.f32 %v5876, %v6107
  %v6150 = vadd.f32 %v5877, %v6110
  %v6151 = vadd.f32 %v5878, %v6115
  %v6152 = vadd.f32 %v5879, %v6118
  %6153 = vst [vmem:[#allocation6] sm:$0xff] %v6121
  %6154 = vst [vmem:[#allocation6 + $0x8] sm:$0xff] %v6122
  %6155 = vst [vmem:[#allocation6 + $0x10] sm:$0xff] %v6123
  %6156 = vst [vmem:[#allocation6 + $0x18] sm:$0xff] %v6124
  %6157 = vst [vmem:[#allocation6 + $0x20] sm:$0xff] %v6125
  %6158 = vst [vmem:[#allocation6 + $0x28] sm:$0xff] %v6126
  %6159 = vst [vmem:[#allocation6 + $0x30] sm:$0xff] %v6127
  %6160 = vst [vmem:[#allocation6 + $0x38] sm:$0xff] %v6128
  %6161 = vst [vmem:[#allocation6 + $0x40] sm:$0xff] %v6129
  %6162 = vst [vmem:[#allocation6 + $0x48] sm:$0xff] %v6130
  %6163 = vst [vmem:[#allocation6 + $0x50] sm:$0xff] %v6131
  %6164 = vst [vmem:[#allocation6 + $0x58] sm:$0xff] %v6132
  %6165 = vst [vmem:[#allocation6 + $0x60] sm:$0xff] %v6133
  %6166 = vst [vmem:[#allocation6 + $0x68] sm:$0xff] %v6134
  %6167 = vst [vmem:[#allocation6 + $0x70] sm:$0xff] %v6135
  %6168 = vst [vmem:[#allocation6 + $0x78] sm:$0xff] %v6136
  %6169 = vst [vmem:[#allocation6 + $0x80] sm:$0xff] %v6137
  %6170 = vst [vmem:[#allocation6 + $0x88] sm:$0xff] %v6138
  %6171 = vst [vmem:[#allocation6 + $0x90] sm:$0xff] %v6139
  %6172 = vst [vmem:[#allocation6 + $0x98] sm:$0xff] %v6140
  %6173 = vst [vmem:[#allocation6 + $0xa0] sm:$0xff] %v6141
  %6174 = vst [vmem:[#allocation6 + $0xa8] sm:$0xff] %v6142
  %6175 = vst [vmem:[#allocation6 + $0xb0] sm:$0xff] %v6143
  %6176 = vst [vmem:[#allocation6 + $0xb8] sm:$0xff] %v6144
  %6177 = vst [vmem:[#allocation6 + $0xc0] sm:$0xff] %v6145
  %6178 = vst [vmem:[#allocation6 + $0xc8] sm:$0xff] %v6146
  %6179 = vst [vmem:[#allocation6 + $0xd0] sm:$0xff] %v6147
  %6180 = vst [vmem:[#allocation6 + $0xd8] sm:$0xff] %v6148
  %6181 = vst [vmem:[#allocation6 + $0xe0] sm:$0xff] %v6149
  %6182 = vst [vmem:[#allocation6 + $0xe8] sm:$0xff] %v6150
  %6183 = vst [vmem:[#allocation6 + $0xf0] sm:$0xff] %v6151
  %6184 = vst [vmem:[#allocation6 + $0xf8] sm:$0xff] %v6152
  %v6185 = vld [vmem:[#allocation5 + $0x9] sm:$0xff]
  %v6186 = vld [vmem:[#allocation5 + $0x11] sm:$0xff]
  %v6187 = vld [vmem:[#allocation5 + $0x19] sm:$0xff]
  %v6188 = vld [vmem:[#allocation5 + $0x21] sm:$0xff]
  %v6189 = vld [vmem:[#allocation5 + $0x29] sm:$0xff]
  %v6190 = vld [vmem:[#allocation5 + $0x31] sm:$0xff]
  %v6191 = vld [vmem:[#allocation5 + $0x39] sm:$0xff]
  %v6192 = vld [vmem:[#allocation5 + $0x41] sm:$0xff]
  %v6193 = vld [vmem:[#allocation5 + $0x49] sm:$0xff]
  %v6194 = vld [vmem:[#allocation5 + $0x51] sm:$0xff]
  %v6195 = vld [vmem:[#allocation5 + $0x59] sm:$0xff]
  %v6196 = vld [vmem:[#allocation5 + $0x61] sm:$0xff]
  %v6197 = vld [vmem:[#allocation5 + $0x69] sm:$0xff]
  %v6198 = vld [vmem:[#allocation5 + $0x71] sm:$0xff]
  %v6199 = vld [vmem:[#allocation5 + $0x79] sm:$0xff]
  %v6200 = vld [vmem:[#allocation5 + $0x81] sm:$0xff]
  %v6201 = vld [vmem:[#allocation5 + $0x89] sm:$0xff]
  %v6202 = vld [vmem:[#allocation5 + $0x91] sm:$0xff]
  %v6203 = vld [vmem:[#allocation5 + $0x99] sm:$0xff]
  %v6204 = vld [vmem:[#allocation5 + $0xa1] sm:$0xff]
  %v6205 = vld [vmem:[#allocation5 + $0xa9] sm:$0xff]
  %v6206 = vld [vmem:[#allocation5 + $0xb1] sm:$0xff]
  %v6207 = vld [vmem:[#allocation5 + $0xb9] sm:$0xff]
  %v6208 = vld [vmem:[#allocation5 + $0xc1] sm:$0xff]
  %v6209 = vld [vmem:[#allocation5 + $0xc9] sm:$0xff]
  %v6210 = vld [vmem:[#allocation5 + $0xd1] sm:$0xff]
  %v6211 = vld [vmem:[#allocation5 + $0xd9] sm:$0xff]
  %v6212 = vld [vmem:[#allocation5 + $0xe1] sm:$0xff]
  %v6213 = vld [vmem:[#allocation5 + $0xe9] sm:$0xff]
  %v6214 = vld [vmem:[#allocation5 + $0xf1] sm:$0xff]
  %v6215 = vld [vmem:[#allocation5 + $0xf9] sm:$0xff]
  %v6216 = vld [vmem:[#allocation5 + $0x101] sm:$0xff]
  %v6217 = vmul.f32 %v6185, %v1404
  %v6218 = vmul.f32 %v6186, %v1405
  %v6219 = vmul.f32 %v6187, %v1406
  %v6220 = vmul.f32 %v6188, %v1407
  %v6221 = vmul.f32 %v6189, %v1408
  %v6222 = vmul.f32 %v6190, %v1409
  %v6223 = vmul.f32 %v6191, %v1410
  %v6224 = vmul.f32 %v6192, %v1411
  %v6225 = vmul.f32 %v6193, %v1412
  %v6226 = vmul.f32 %v6194, %v1413
  %v6227 = vmul.f32 %v6195, %v1414
  %v6228 = vmul.f32 %v6196, %v1415
  %v6229 = vmul.f32 %v6197, %v1416
  %v6230 = vmul.f32 %v6198, %v1417
  %v6231 = vmul.f32 %v6199, %v1418
  %v6232 = vmul.f32 %v6200, %v1419
  %v6233 = vmul.f32 %v6201, %v1420
  %v6234 = vmul.f32 %v6202, %v1421
  %v6235 = vmul.f32 %v6203, %v1422
  %v6236 = vmul.f32 %v6204, %v1423
  %v6237 = vmul.f32 %v6205, %v1424
  %v6238 = vmul.f32 %v6206, %v1425
  %v6239 = vmul.f32 %v6207, %v1426
  %v6240 = vmul.f32 %v6208, %v1427
  %v6241 = vmul.f32 %v6209, %v1428
  %v6242 = vmul.f32 %v6210, %v1429
  %v6243 = vmul.f32 %v6211, %v1430
  %v6244 = vmul.f32 %v6212, %v1431
  %v6245 = vmul.f32 %v6213, %v1432
  %v6246 = vmul.f32 %v6214, %v1433
  %v6247 = vmul.f32 %v6215, %v1434
  %v6248 = vmul.f32 %v6216, %v1435
  %v6249 = vld [vmem:[#allocation6] sm:$0xff]
  %v6250 = vld [vmem:[#allocation6 + $0x8] sm:$0xff]
  %v6251 = vld [vmem:[#allocation6 + $0x10] sm:$0xff]
  %v6252 = vld [vmem:[#allocation6 + $0x18] sm:$0xff]
  %v6253 = vld [vmem:[#allocation6 + $0x20] sm:$0xff]
  %v6254 = vld [vmem:[#allocation6 + $0x28] sm:$0xff]
  %v6255 = vld [vmem:[#allocation6 + $0x30] sm:$0xff]
  %v6256 = vld [vmem:[#allocation6 + $0x38] sm:$0xff]
  %v6257 = vld [vmem:[#allocation6 + $0x40] sm:$0xff]
  %v6258 = vld [vmem:[#allocation6 + $0x48] sm:$0xff]
  %v6259 = vld [vmem:[#allocation6 + $0x50] sm:$0xff]
  %v6260 = vld [vmem:[#allocation6 + $0x58] sm:$0xff]
  %v6261 = vld [vmem:[#allocation6 + $0x60] sm:$0xff]
  %v6262 = vld [vmem:[#allocation6 + $0x68] sm:$0xff]
  %v6263 = vld [vmem:[#allocation6 + $0x70] sm:$0xff]
  %v6264 = vld [vmem:[#allocation6 + $0x78] sm:$0xff]
  %v6265 = vld [vmem:[#allocation6 + $0x80] sm:$0xff]
  %v6266 = vld [vmem:[#allocation6 + $0x88] sm:$0xff]
  %v6267 = vld [vmem:[#allocation6 + $0x90] sm:$0xff]
  %v6268 = vld [vmem:[#allocation6 + $0x98] sm:$0xff]
  %v6269 = vld [vmem:[#allocation6 + $0xa0] sm:$0xff]
  %v6270 = vld [vmem:[#allocation6 + $0xa8] sm:$0xff]
  %v6271 = vld [vmem:[#allocation6 + $0xb0] sm:$0xff]
  %v6272 = vld [vmem:[#allocation6 + $0xb8] sm:$0xff]
  %v6273 = vld [vmem:[#allocation6 + $0xc0] sm:$0xff]
  %v6274 = vld [vmem:[#allocation6 + $0xc8] sm:$0xff]
  %v6275 = vld [vmem:[#allocation6 + $0xd0] sm:$0xff]
  %v6276 = vld [vmem:[#allocation6 + $0xd8] sm:$0xff]
  %v6277 = vld [vmem:[#allocation6 + $0xe0] sm:$0xff]
  %v6278 = vld [vmem:[#allocation6 + $0xe8] sm:$0xff]
  %v6279 = vld [vmem:[#allocation6 + $0xf0] sm:$0xff]
  %v6280 = vld [vmem:[#allocation6 + $0xf8] sm:$0xff]
  %v6281 = vpack.c.bf16 %v6218, %v6217
  %v6282 = vpack.c.bf16 %v6220, %v6219
  %v6283 = vpack.c.bf16 %v6222, %v6221
  %v6284 = vpack.c.bf16 %v6224, %v6223
  %v6285 = vpack.c.bf16 %v6226, %v6225
  %v6286 = vpack.c.bf16 %v6228, %v6227
  %v6287 = vpack.c.bf16 %v6230, %v6229
  %v6288 = vpack.c.bf16 %v6232, %v6231
  %v6289 = vpack.c.bf16 %v6234, %v6233
  %v6290 = vpack.c.bf16 %v6236, %v6235
  %v6291 = vpack.c.bf16 %v6238, %v6237
  %v6292 = vpack.c.bf16 %v6240, %v6239
  %v6293 = vpack.c.bf16 %v6242, %v6241
  %v6294 = vpack.c.bf16 %v6244, %v6243
  %v6295 = vpack.c.bf16 %v6246, %v6245
  %v6296 = vpack.c.bf16 %v6248, %v6247
  %v6297 = vld [vmem:[%s2 + $0x80] sm:$0xf]
  %v6298 = vld [vmem:[%s2 + $0x84] sm:$0xf]
  %v6299 = vld [vmem:[%s2 + $0x88] sm:$0xf]
  %v6300 = vld [vmem:[%s2 + $0x8c] sm:$0xf]
  %v6301 = vld [vmem:[%s2 + $0x90] sm:$0xf]
  %v6302 = vld [vmem:[%s2 + $0x94] sm:$0xf]
  %v6303 = vld [vmem:[%s2 + $0x98] sm:$0xf]
  %v6304 = vld [vmem:[%s2 + $0x9c] sm:$0xf]
  %v6305 = vld [vmem:[%s2 + $0xa0] sm:$0xf]
  %v6306 = vld [vmem:[%s2 + $0xa4] sm:$0xf]
  %v6307 = vld [vmem:[%s2 + $0xa8] sm:$0xf]
  %v6308 = vld [vmem:[%s2 + $0xac] sm:$0xf]
  %v6309 = vld [vmem:[%s2 + $0xb0] sm:$0xf]
  %v6310 = vld [vmem:[%s2 + $0xb4] sm:$0xf]
  %v6311 = vld [vmem:[%s2 + $0xb8] sm:$0xf]
  %v6312 = vld [vmem:[%s2 + $0xbc] sm:$0xf]
  %v6329 = vunpack.c.l.b16 %v6297
  %v6330 = vunpack.c.l.b16 %v6298
  %v6331 = vunpack.c.l.b16 %v6299
  %v6332 = vunpack.c.l.b16 %v6300
  %v6333 = vunpack.c.l.b16 %v6301
  %v6334 = vunpack.c.l.b16 %v6302
  %v6335 = vunpack.c.l.b16 %v6303
  %v6336 = vunpack.c.l.b16 %v6304
  %v6337 = vunpack.c.l.b16 %v6305
  %v6338 = vunpack.c.l.b16 %v6306
  %v6339 = vunpack.c.l.b16 %v6307
  %v6340 = vunpack.c.l.b16 %v6308
  %v6341 = vunpack.c.l.b16 %v6309
  %v6342 = vunpack.c.l.b16 %v6310
  %v6343 = vunpack.c.l.b16 %v6311
  %v6344 = vunpack.c.l.b16 %v6312
  %v6345 = vpack.c.b16 %v6330, %v6329
  %v6346 = vpack.c.b16 %v6332, %v6331
  %v6347 = vpack.c.b16 %v6334, %v6333
  %v6348 = vpack.c.b16 %v6336, %v6335
  %v6349 = vpack.c.b16 %v6338, %v6337
  %v6350 = vpack.c.b16 %v6340, %v6339
  %v6351 = vpack.c.b16 %v6342, %v6341
  %v6352 = vpack.c.b16 %v6344, %v6343
  %6361 = vmatprep.subr.bf16.mxu0 0
  %6362 = vmatpush1.bf16.msra.mxu0 %v6345
  %6363 = vmatprep.subr.bf16.mxu0 0
  %6364 = vmatpush1.bf16.msra.mxu0 %v6346
  %6365 = vmatprep.subr.bf16.mxu0 0
  %6366 = vmatpush1.bf16.msra.mxu0 %v6347
  %6367 = vmatprep.subr.bf16.mxu0 0
  %6368 = vmatpush1.bf16.msra.mxu0 %v6348
  %6369 = vmatprep.subr.bf16.mxu0 0
  %6370 = vmatpush1.bf16.msra.mxu0 %v6349
  %6371 = vmatprep.subr.bf16.mxu0 0
  %6372 = vmatpush1.bf16.msra.mxu0 %v6350
  %6373 = vmatprep.subr.bf16.mxu0 0
  %6374 = vmatpush1.bf16.msra.mxu0 %v6351
  %6375 = vmatprep.subr.bf16.mxu0 0
  %6376 = vmatpush1.bf16.msra.mxu0 %v6352
  %6377 = vmatprep.subr.bf16.mxu0 0
  %6378 = vmatpush1.bf16.msra.mxu0 0
  %6379 = vmatprep.subr.bf16.mxu0 0
  %6380 = vmatpush1.bf16.msra.mxu0 0
  %6381 = vmatprep.subr.bf16.mxu0 0
  %6382 = vmatpush1.bf16.msra.mxu0 0
  %6383 = vmatprep.subr.bf16.mxu0 0
  %6384 = vmatpush1.bf16.msra.mxu0 0
  %6385 = vmatprep.subr.bf16.mxu0 0
  %6386 = vmatpush1.bf16.msra.mxu0 0
  %6387 = vmatprep.subr.bf16.mxu0 0
  %6388 = vmatpush1.bf16.msra.mxu0 0
  %6389 = vmatprep.subr.bf16.mxu0 0
  %6390 = vmatpush1.bf16.msra.mxu0 0
  %6391 = vmatprep.subr.bf16.mxu0 0
  %6392 = vmatpush1.bf16.msra.mxu0 0
  %6393 = vmatprep.mubr.bf16.mxu0 0
  %6394 = vmatmul.mubr.bf16.gmra.mrb[0].mxu0 %v6281
  %v6395 = vpop.f32.mrb[0].mxu0
  %v6396 = vadd.f32 0.0, %v6395
  %v6397 = vpop.f32.mrb[0].mxu0
  %v6398 = vpop.f32.mrb[0].mxu0
  %v6399 = vadd.f32 0.0, %v6398
  %v6400 = vpop.f32.mrb[0].mxu0
  %6401 = vmatprep.mubr.bf16.mxu0 0
  %6402 = vmatmul.mubr.bf16.gmra.mrb[0].mxu0 %v6282
  %v6403 = vpop.f32.mrb[0].mxu0
  %v6404 = vadd.f32 0.0, %v6403
  %v6405 = vpop.f32.mrb[0].mxu0
  %v6406 = vpop.f32.mrb[0].mxu0
  %v6407 = vadd.f32 0.0, %v6406
  %v6408 = vpop.f32.mrb[0].mxu0
  %6409 = vmatprep.mubr.bf16.mxu0 0
  %6410 = vmatmul.mubr.bf16.gmra.mrb[0].mxu0 %v6283
  %v6411 = vpop.f32.mrb[0].mxu0
  %v6412 = vadd.f32 0.0, %v6411
  %v6413 = vpop.f32.mrb[0].mxu0
  %v6414 = vpop.f32.mrb[0].mxu0
  %v6415 = vadd.f32 0.0, %v6414
  %v6416 = vpop.f32.mrb[0].mxu0
  %6417 = vmatprep.mubr.bf16.mxu0 0
  %6418 = vmatmul.mubr.bf16.gmra.mrb[0].mxu0 %v6284
  %v6419 = vpop.f32.mrb[0].mxu0
  %v6420 = vadd.f32 0.0, %v6419
  %v6421 = vpop.f32.mrb[0].mxu0
  %v6422 = vpop.f32.mrb[0].mxu0
  %v6423 = vadd.f32 0.0, %v6422
  %v6424 = vpop.f32.mrb[0].mxu0
  %6425 = vmatprep.mubr.bf16.mxu0 0
  %6426 = vmatmul.mubr.bf16.gmra.mrb[0].mxu0 %v6285
  %v6427 = vpop.f32.mrb[0].mxu0
  %v6428 = vadd.f32 0.0, %v6427
  %v6429 = vpop.f32.mrb[0].mxu0
  %v6430 = vpop.f32.mrb[0].mxu0
  %v6431 = vadd.f32 0.0, %v6430
  %v6432 = vpop.f32.mrb[0].mxu0
  %6433 = vmatprep.mubr.bf16.mxu0 0
  %6434 = vmatmul.mubr.bf16.gmra.mrb[0].mxu0 %v6286
  %v6435 = vpop.f32.mrb[0].mxu0
  %v6436 = vadd.f32 0.0, %v6435
  %v6437 = vpop.f32.mrb[0].mxu0
  %v6438 = vpop.f32.mrb[0].mxu0
  %v6439 = vadd.f32 0.0, %v6438
  %v6440 = vpop.f32.mrb[0].mxu0
  %6441 = vmatprep.mubr.bf16.mxu0 0
  %6442 = vmatmul.mubr.bf16.gmra.mrb[0].mxu0 %v6287
  %v6443 = vpop.f32.mrb[0].mxu0
  %v6444 = vadd.f32 0.0, %v6443
  %v6445 = vpop.f32.mrb[0].mxu0
  %v6446 = vpop.f32.mrb[0].mxu0
  %v6447 = vadd.f32 0.0, %v6446
  %v6448 = vpop.f32.mrb[0].mxu0
  %6449 = vmatprep.mubr.bf16.mxu0 0
  %6450 = vmatmul.mubr.bf16.gmra.mrb[0].mxu0 %v6288
  %v6451 = vpop.f32.mrb[0].mxu0
  %v6452 = vadd.f32 0.0, %v6451
  %v6453 = vpop.f32.mrb[0].mxu0
  %v6454 = vpop.f32.mrb[0].mxu0
  %v6455 = vadd.f32 0.0, %v6454
  %v6456 = vpop.f32.mrb[0].mxu0
  %6457 = vmatprep.mubr.bf16.mxu0 0
  %6458 = vmatmul.mubr.bf16.gmra.mrb[0].mxu0 %v6289
  %v6459 = vpop.f32.mrb[0].mxu0
  %v6460 = vadd.f32 0.0, %v6459
  %v6461 = vpop.f32.mrb[0].mxu0
  %v6462 = vpop.f32.mrb[0].mxu0
  %v6463 = vadd.f32 0.0, %v6462
  %v6464 = vpop.f32.mrb[0].mxu0
  %6465 = vmatprep.mubr.bf16.mxu0 0
  %6466 = vmatmul.mubr.bf16.gmra.mrb[0].mxu0 %v6290
  %v6467 = vpop.f32.mrb[0].mxu0
  %v6468 = vadd.f32 0.0, %v6467
  %v6469 = vpop.f32.mrb[0].mxu0
  %v6470 = vpop.f32.mrb[0].mxu0
  %v6471 = vadd.f32 0.0, %v6470
  %v6472 = vpop.f32.mrb[0].mxu0
  %6473 = vmatprep.mubr.bf16.mxu0 0
  %6474 = vmatmul.mubr.bf16.gmra.mrb[0].mxu0 %v6291
  %v6475 = vpop.f32.mrb[0].mxu0
  %v6476 = vadd.f32 0.0, %v6475
  %v6477 = vpop.f32.mrb[0].mxu0
  %v6478 = vpop.f32.mrb[0].mxu0
  %v6479 = vadd.f32 0.0, %v6478
  %v6480 = vpop.f32.mrb[0].mxu0
  %6481 = vmatprep.mubr.bf16.mxu0 0
  %6482 = vmatmul.mubr.bf16.gmra.mrb[0].mxu0 %v6292
  %v6483 = vpop.f32.mrb[0].mxu0
  %v6484 = vadd.f32 0.0, %v6483
  %v6485 = vpop.f32.mrb[0].mxu0
  %v6486 = vpop.f32.mrb[0].mxu0
  %v6487 = vadd.f32 0.0, %v6486
  %v6488 = vpop.f32.mrb[0].mxu0
  %6489 = vmatprep.mubr.bf16.mxu0 0
  %6490 = vmatmul.mubr.bf16.gmra.mrb[0].mxu0 %v6293
  %v6491 = vpop.f32.mrb[0].mxu0
  %v6492 = vadd.f32 0.0, %v6491
  %v6493 = vpop.f32.mrb[0].mxu0
  %v6494 = vpop.f32.mrb[0].mxu0
  %v6495 = vadd.f32 0.0, %v6494
  %v6496 = vpop.f32.mrb[0].mxu0
  %6497 = vmatprep.mubr.bf16.mxu0 0
  %6498 = vmatmul.mubr.bf16.gmra.mrb[0].mxu0 %v6294
  %v6499 = vpop.f32.mrb[0].mxu0
  %v6500 = vadd.f32 0.0, %v6499
  %v6501 = vpop.f32.mrb[0].mxu0
  %v6502 = vpop.f32.mrb[0].mxu0
  %v6503 = vadd.f32 0.0, %v6502
  %v6504 = vpop.f32.mrb[0].mxu0
  %6505 = vmatprep.mubr.bf16.mxu0 0
  %6506 = vmatmul.mubr.bf16.gmra.mrb[0].mxu0 %v6295
  %v6507 = vpop.f32.mrb[0].mxu0
  %v6508 = vadd.f32 0.0, %v6507
  %v6509 = vpop.f32.mrb[0].mxu0
  %v6510 = vpop.f32.mrb[0].mxu0
  %v6511 = vadd.f32 0.0, %v6510
  %v6512 = vpop.f32.mrb[0].mxu0
  %6513 = vmatprep.mubr.bf16.mxu0 0
  %6514 = vmatmul.mubr.bf16.gmra.mrb[0].mxu0 %v6296
  %v6515 = vpop.f32.mrb[0].mxu0
  %v6516 = vadd.f32 0.0, %v6515
  %v6517 = vpop.f32.mrb[0].mxu0
  %v6518 = vpop.f32.mrb[0].mxu0
  %v6519 = vadd.f32 0.0, %v6518
  %v6520 = vpop.f32.mrb[0].mxu0
  %6521 = vdwg.mxu0
  %v6522 = vadd.f32 %v6249, %v6396
  %v6523 = vadd.f32 %v6250, %v6399
  %v6524 = vadd.f32 %v6251, %v6404
  %v6525 = vadd.f32 %v6252, %v6407
  %v6526 = vadd.f32 %v6253, %v6412
  %v6527 = vadd.f32 %v6254, %v6415
  %v6528 = vadd.f32 %v6255, %v6420
  %v6529 = vadd.f32 %v6256, %v6423
  %v6530 = vadd.f32 %v6257, %v6428
  %v6531 = vadd.f32 %v6258, %v6431
  %v6532 = vadd.f32 %v6259, %v6436
  %v6533 = vadd.f32 %v6260, %v6439
  %v6534 = vadd.f32 %v6261, %v6444
  %v6535 = vadd.f32 %v6262, %v6447
  %v6536 = vadd.f32 %v6263, %v6452
  %v6537 = vadd.f32 %v6264, %v6455
  %v6538 = vadd.f32 %v6265, %v6460
  %v6539 = vadd.f32 %v6266, %v6463
  %v6540 = vadd.f32 %v6267, %v6468
  %v6541 = vadd.f32 %v6268, %v6471
  %v6542 = vadd.f32 %v6269, %v6476
  %v6543 = vadd.f32 %v6270, %v6479
  %v6544 = vadd.f32 %v6271, %v6484
  %v6545 = vadd.f32 %v6272, %v6487
  %v6546 = vadd.f32 %v6273, %v6492
  %v6547 = vadd.f32 %v6274, %v6495
  %v6548 = vadd.f32 %v6275, %v6500
  %v6549 = vadd.f32 %v6276, %v6503
  %v6550 = vadd.f32 %v6277, %v6508
  %v6551 = vadd.f32 %v6278, %v6511
  %v6552 = vadd.f32 %v6279, %v6516
  %v6553 = vadd.f32 %v6280, %v6519
  %6554 = vst [vmem:[#allocation6] sm:$0xff] %v6522
  %6555 = vst [vmem:[#allocation6 + $0x8] sm:$0xff] %v6523
  %6556 = vst [vmem:[#allocation6 + $0x10] sm:$0xff] %v6524
  %6557 = vst [vmem:[#allocation6 + $0x18] sm:$0xff] %v6525
  %6558 = vst [vmem:[#allocation6 + $0x20] sm:$0xff] %v6526
  %6559 = vst [vmem:[#allocation6 + $0x28] sm:$0xff] %v6527
  %6560 = vst [vmem:[#allocation6 + $0x30] sm:$0xff] %v6528
  %6561 = vst [vmem:[#allocation6 + $0x38] sm:$0xff] %v6529
  %6562 = vst [vmem:[#allocation6 + $0x40] sm:$0xff] %v6530
  %6563 = vst [vmem:[#allocation6 + $0x48] sm:$0xff] %v6531
  %6564 = vst [vmem:[#allocation6 + $0x50] sm:$0xff] %v6532
  %6565 = vst [vmem:[#allocation6 + $0x58] sm:$0xff] %v6533
  %6566 = vst [vmem:[#allocation6 + $0x60] sm:$0xff] %v6534
  %6567 = vst [vmem:[#allocation6 + $0x68] sm:$0xff] %v6535
  %6568 = vst [vmem:[#allocation6 + $0x70] sm:$0xff] %v6536
  %6569 = vst [vmem:[#allocation6 + $0x78] sm:$0xff] %v6537
  %6570 = vst [vmem:[#allocation6 + $0x80] sm:$0xff] %v6538
  %6571 = vst [vmem:[#allocation6 + $0x88] sm:$0xff] %v6539
  %6572 = vst [vmem:[#allocation6 + $0x90] sm:$0xff] %v6540
  %6573 = vst [vmem:[#allocation6 + $0x98] sm:$0xff] %v6541
  %6574 = vst [vmem:[#allocation6 + $0xa0] sm:$0xff] %v6542
  %6575 = vst [vmem:[#allocation6 + $0xa8] sm:$0xff] %v6543
  %6576 = vst [vmem:[#allocation6 + $0xb0] sm:$0xff] %v6544
  %6577 = vst [vmem:[#allocation6 + $0xb8] sm:$0xff] %v6545
  %6578 = vst [vmem:[#allocation6 + $0xc0] sm:$0xff] %v6546
  %6579 = vst [vmem:[#allocation6 + $0xc8] sm:$0xff] %v6547
  %6580 = vst [vmem:[#allocation6 + $0xd0] sm:$0xff] %v6548
  %6581 = vst [vmem:[#allocation6 + $0xd8] sm:$0xff] %v6549
  %6582 = vst [vmem:[#allocation6 + $0xe0] sm:$0xff] %v6550
  %6583 = vst [vmem:[#allocation6 + $0xe8] sm:$0xff] %v6551
  %6584 = vst [vmem:[#allocation6 + $0xf0] sm:$0xff] %v6552
  %6585 = vst [vmem:[#allocation6 + $0xf8] sm:$0xff] %v6553
  %v6586 = vld [vmem:[#allocation5 + $0x17] sm:$0xff]
  %v6587 = vld [vmem:[#allocation5 + $0x1f] sm:$0xff]
  %v6588 = vld [vmem:[#allocation5 + $0x27] sm:$0xff]
  %v6589 = vld [vmem:[#allocation5 + $0x2f] sm:$0xff]
  %v6590 = vld [vmem:[#allocation5 + $0x37] sm:$0xff]
  %v6591 = vld [vmem:[#allocation5 + $0x3f] sm:$0xff]
  %v6592 = vld [vmem:[#allocation5 + $0x47] sm:$0xff]
  %v6593 = vld [vmem:[#allocation5 + $0x4f] sm:$0xff]
  %v6594 = vld [vmem:[#allocation5 + $0x57] sm:$0xff]
  %v6595 = vld [vmem:[#allocation5 + $0x5f] sm:$0xff]
  %v6596 = vld [vmem:[#allocation5 + $0x67] sm:$0xff]
  %v6597 = vld [vmem:[#allocation5 + $0x6f] sm:$0xff]
  %v6598 = vld [vmem:[#allocation5 + $0x77] sm:$0xff]
  %v6599 = vld [vmem:[#allocation5 + $0x7f] sm:$0xff]
  %v6600 = vld [vmem:[#allocation5 + $0x87] sm:$0xff]
  %v6601 = vld [vmem:[#allocation5 + $0x8f] sm:$0xff]
  %v6602 = vld [vmem:[#allocation5 + $0x97] sm:$0xff]
  %v6603 = vld [vmem:[#allocation5 + $0x9f] sm:$0xff]
  %v6604 = vld [vmem:[#allocation5 + $0xa7] sm:$0xff]
  %v6605 = vld [vmem:[#allocation5 + $0xaf] sm:$0xff]
  %v6606 = vld [vmem:[#allocation5 + $0xb7] sm:$0xff]
  %v6607 = vld [vmem:[#allocation5 + $0xbf] sm:$0xff]
  %v6608 = vld [vmem:[#allocation5 + $0xc7] sm:$0xff]
  %v6609 = vld [vmem:[#allocation5 + $0xcf] sm:$0xff]
  %v6610 = vld [vmem:[#allocation5 + $0xd7] sm:$0xff]
  %v6611 = vld [vmem:[#allocation5 + $0xdf] sm:$0xff]
  %v6612 = vld [vmem:[#allocation5 + $0xe7] sm:$0xff]
  %v6613 = vld [vmem:[#allocation5 + $0xef] sm:$0xff]
  %v6614 = vld [vmem:[#allocation5 + $0xf7] sm:$0xff]
  %v6615 = vld [vmem:[#allocation5 + $0xff] sm:$0xff]
  %v6616 = vld [vmem:[#allocation5 + $0x107] sm:$0xff]
  %v6617 = vld [vmem:[#allocation5 + $0x10f] sm:$0xff]
  %v6618 = vmul.f32 %v6586, %v1308
  %v6619 = vmul.f32 %v6587, %v1309
  %v6620 = vmul.f32 %v6588, %v1310
  %v6621 = vmul.f32 %v6589, %v1311
  %v6622 = vmul.f32 %v6590, %v1312
  %v6623 = vmul.f32 %v6591, %v1313
  %v6624 = vmul.f32 %v6592, %v1314
  %v6625 = vmul.f32 %v6593, %v1315
  %v6626 = vmul.f32 %v6594, %v1316
  %v6627 = vmul.f32 %v6595, %v1317
  %v6628 = vmul.f32 %v6596, %v1318
  %v6629 = vmul.f32 %v6597, %v1319
  %v6630 = vmul.f32 %v6598, %v1320
  %v6631 = vmul.f32 %v6599, %v1321
  %v6632 = vmul.f32 %v6600, %v1322
  %v6633 = vmul.f32 %v6601, %v1323
  %v6634 = vmul.f32 %v6602, %v1324
  %v6635 = vmul.f32 %v6603, %v1325
  %v6636 = vmul.f32 %v6604, %v1326
  %v6637 = vmul.f32 %v6605, %v1327
  %v6638 = vmul.f32 %v6606, %v1328
  %v6639 = vmul.f32 %v6607, %v1329
  %v6640 = vmul.f32 %v6608, %v1330
  %v6641 = vmul.f32 %v6609, %v1331
  %v6642 = vmul.f32 %v6610, %v1332
  %v6643 = vmul.f32 %v6611, %v1333
  %v6644 = vmul.f32 %v6612, %v1334
  %v6645 = vmul.f32 %v6613, %v1335
  %v6646 = vmul.f32 %v6614, %v1336
  %v6647 = vmul.f32 %v6615, %v1337
  %v6648 = vmul.f32 %v6616, %v1338
  %v6649 = vmul.f32 %v6617, %v1339
  %v6650 = vld [vmem:[#allocation6] sm:$0xff]
  %v6651 = vld [vmem:[#allocation6 + $0x8] sm:$0xff]
  %v6652 = vld [vmem:[#allocation6 + $0x10] sm:$0xff]
  %v6653 = vld [vmem:[#allocation6 + $0x18] sm:$0xff]
  %v6654 = vld [vmem:[#allocation6 + $0x20] sm:$0xff]
  %v6655 = vld [vmem:[#allocation6 + $0x28] sm:$0xff]
  %v6656 = vld [vmem:[#allocation6 + $0x30] sm:$0xff]
  %v6657 = vld [vmem:[#allocation6 + $0x38] sm:$0xff]
  %v6658 = vld [vmem:[#allocation6 + $0x40] sm:$0xff]
  %v6659 = vld [vmem:[#allocation6 + $0x48] sm:$0xff]
  %v6660 = vld [vmem:[#allocation6 + $0x50] sm:$0xff]
  %v6661 = vld [vmem:[#allocation6 + $0x58] sm:$0xff]
  %v6662 = vld [vmem:[#allocation6 + $0x60] sm:$0xff]
  %v6663 = vld [vmem:[#allocation6 + $0x68] sm:$0xff]
  %v6664 = vld [vmem:[#allocation6 + $0x70] sm:$0xff]
  %v6665 = vld [vmem:[#allocation6 + $0x78] sm:$0xff]
  %v6666 = vld [vmem:[#allocation6 + $0x80] sm:$0xff]
  %v6667 = vld [vmem:[#allocation6 + $0x88] sm:$0xff]
  %v6668 = vld [vmem:[#allocation6 + $0x90] sm:$0xff]
  %v6669 = vld [vmem:[#allocation6 + $0x98] sm:$0xff]
  %v6670 = vld [vmem:[#allocation6 + $0xa0] sm:$0xff]
  %v6671 = vld [vmem:[#allocation6 + $0xa8] sm:$0xff]
  %v6672 = vld [vmem:[#allocation6 + $0xb0] sm:$0xff]
  %v6673 = vld [vmem:[#allocation6 + $0xb8] sm:$0xff]
  %v6674 = vld [vmem:[#allocation6 + $0xc0] sm:$0xff]
  %v6675 = vld [vmem:[#allocation6 + $0xc8] sm:$0xff]
  %v6676 = vld [vmem:[#allocation6 + $0xd0] sm:$0xff]
  %v6677 = vld [vmem:[#allocation6 + $0xd8] sm:$0xff]
  %v6678 = vld [vmem:[#allocation6 + $0xe0] sm:$0xff]
  %v6679 = vld [vmem:[#allocation6 + $0xe8] sm:$0xff]
  %v6680 = vld [vmem:[#allocation6 + $0xf0] sm:$0xff]
  %v6681 = vld [vmem:[#allocation6 + $0xf8] sm:$0xff]
  %v6682 = vpack.c.bf16 %v6619, %v6618
  %v6683 = vpack.c.bf16 %v6621, %v6620
  %v6684 = vpack.c.bf16 %v6623, %v6622
  %v6685 = vpack.c.bf16 %v6625, %v6624
  %v6686 = vpack.c.bf16 %v6627, %v6626
  %v6687 = vpack.c.bf16 %v6629, %v6628
  %v6688 = vpack.c.bf16 %v6631, %v6630
  %v6689 = vpack.c.bf16 %v6633, %v6632
  %v6690 = vpack.c.bf16 %v6635, %v6634
  %v6691 = vpack.c.bf16 %v6637, %v6636
  %v6692 = vpack.c.bf16 %v6639, %v6638
  %v6693 = vpack.c.bf16 %v6641, %v6640
  %v6694 = vpack.c.bf16 %v6643, %v6642
  %v6695 = vpack.c.bf16 %v6645, %v6644
  %v6696 = vpack.c.bf16 %v6647, %v6646
  %v6697 = vpack.c.bf16 %v6649, %v6648
  %v6698 = vld [vmem:[%s2 + $0xc0] sm:$0xf]
  %v6699 = vld [vmem:[%s2 + $0xc4] sm:$0xf]
  %v6700 = vld [vmem:[%s2 + $0xc8] sm:$0xf]
  %v6701 = vld [vmem:[%s2 + $0xcc] sm:$0xf]
  %v6702 = vld [vmem:[%s2 + $0xd0] sm:$0xf]
  %v6703 = vld [vmem:[%s2 + $0xd4] sm:$0xf]
  %v6704 = vld [vmem:[%s2 + $0xd8] sm:$0xf]
  %v6705 = vld [vmem:[%s2 + $0xdc] sm:$0xf]
  %v6706 = vld [vmem:[%s2 + $0xe0] sm:$0xf]
  %v6707 = vld [vmem:[%s2 + $0xe4] sm:$0xf]
  %v6708 = vld [vmem:[%s2 + $0xe8] sm:$0xf]
  %v6709 = vld [vmem:[%s2 + $0xec] sm:$0xf]
  %v6710 = vld [vmem:[%s2 + $0xf0] sm:$0xf]
  %v6711 = vld [vmem:[%s2 + $0xf4] sm:$0xf]
  %v6712 = vld [vmem:[%s2 + $0xf8] sm:$0xf]
  %v6713 = vld [vmem:[%s2 + $0xfc] sm:$0xf]
  %v6730 = vunpack.c.l.b16 %v6698
  %v6731 = vunpack.c.l.b16 %v6699
  %v6732 = vunpack.c.l.b16 %v6700
  %v6733 = vunpack.c.l.b16 %v6701
  %v6734 = vunpack.c.l.b16 %v6702
  %v6735 = vunpack.c.l.b16 %v6703
  %v6736 = vunpack.c.l.b16 %v6704
  %v6737 = vunpack.c.l.b16 %v6705
  %v6738 = vunpack.c.l.b16 %v6706
  %v6739 = vunpack.c.l.b16 %v6707
  %v6740 = vunpack.c.l.b16 %v6708
  %v6741 = vunpack.c.l.b16 %v6709
  %v6742 = vunpack.c.l.b16 %v6710
  %v6743 = vunpack.c.l.b16 %v6711
  %v6744 = vunpack.c.l.b16 %v6712
  %v6745 = vunpack.c.l.b16 %v6713
  %v6746 = vpack.c.b16 %v6731, %v6730
  %v6747 = vpack.c.b16 %v6733, %v6732
  %v6748 = vpack.c.b16 %v6735, %v6734
  %v6749 = vpack.c.b16 %v6737, %v6736
  %v6750 = vpack.c.b16 %v6739, %v6738
  %v6751 = vpack.c.b16 %v6741, %v6740
  %v6752 = vpack.c.b16 %v6743, %v6742
  %v6753 = vpack.c.b16 %v6745, %v6744
  %6762 = vmatprep.subr.bf16.mxu0 0
  %6763 = vmatpush1.bf16.msra.mxu0 %v6746
  %6764 = vmatprep.subr.bf16.mxu0 0
  %6765 = vmatpush1.bf16.msra.mxu0 %v6747
  %6766 = vmatprep.subr.bf16.mxu0 0
  %6767 = vmatpush1.bf16.msra.mxu0 %v6748
  %6768 = vmatprep.subr.bf16.mxu0 0
  %6769 = vmatpush1.bf16.msra.mxu0 %v6749
  %6770 = vmatprep.subr.bf16.mxu0 0
  %6771 = vmatpush1.bf16.msra.mxu0 %v6750
  %6772 = vmatprep.subr.bf16.mxu0 0
  %6773 = vmatpush1.bf16.msra.mxu0 %v6751
  %6774 = vmatprep.subr.bf16.mxu0 0
  %6775 = vmatpush1.bf16.msra.mxu0 %v6752
  %6776 = vmatprep.subr.bf16.mxu0 0
  %6777 = vmatpush1.bf16.msra.mxu0 %v6753
  %6778 = vmatprep.subr.bf16.mxu0 0
  %6779 = vmatpush1.bf16.msra.mxu0 0
  %6780 = vmatprep.subr.bf16.mxu0 0
  %6781 = vmatpush1.bf16.msra.mxu0 0
  %6782 = vmatprep.subr.bf16.mxu0 0
  %6783 = vmatpush1.bf16.msra.mxu0 0
  %6784 = vmatprep.subr.bf16.mxu0 0
  %6785 = vmatpush1.bf16.msra.mxu0 0
  %6786 = vmatprep.subr.bf16.mxu0 0
  %6787 = vmatpush1.bf16.msra.mxu0 0
  %6788 = vmatprep.subr.bf16.mxu0 0
  %6789 = vmatpush1.bf16.msra.mxu0 0
  %6790 = vmatprep.subr.bf16.mxu0 0
  %6791 = vmatpush1.bf16.msra.mxu0 0
  %6792 = vmatprep.subr.bf16.mxu0 0
  %6793 = vmatpush1.bf16.msra.mxu0 0
  %6794 = vmatprep.mubr.bf16.mxu0 0
  %6795 = vmatmul.mubr.bf16.gmra.mrb[0].mxu0 %v6682
  %v6796 = vpop.f32.mrb[0].mxu0
  %v6797 = vadd.f32 0.0, %v6796
  %v6798 = vpop.f32.mrb[0].mxu0
  %v6799 = vpop.f32.mrb[0].mxu0
  %v6800 = vadd.f32 0.0, %v6799
  %v6801 = vpop.f32.mrb[0].mxu0
  %6802 = vmatprep.mubr.bf16.mxu0 0
  %6803 = vmatmul.mubr.bf16.gmra.mrb[0].mxu0 %v6683
  %v6804 = vpop.f32.mrb[0].mxu0
  %v6805 = vadd.f32 0.0, %v6804
  %v6806 = vpop.f32.mrb[0].mxu0
  %v6807 = vpop.f32.mrb[0].mxu0
  %v6808 = vadd.f32 0.0, %v6807
  %v6809 = vpop.f32.mrb[0].mxu0
  %6810 = vmatprep.mubr.bf16.mxu0 0
  %6811 = vmatmul.mubr.bf16.gmra.mrb[0].mxu0 %v6684
  %v6812 = vpop.f32.mrb[0].mxu0
  %v6813 = vadd.f32 0.0, %v6812
  %v6814 = vpop.f32.mrb[0].mxu0
  %v6815 = vpop.f32.mrb[0].mxu0
  %v6816 = vadd.f32 0.0, %v6815
  %v6817 = vpop.f32.mrb[0].mxu0
  %6818 = vmatprep.mubr.bf16.mxu0 0
  %6819 = vmatmul.mubr.bf16.gmra.mrb[0].mxu0 %v6685
  %v6820 = vpop.f32.mrb[0].mxu0
  %v6821 = vadd.f32 0.0, %v6820
  %v6822 = vpop.f32.mrb[0].mxu0
  %v6823 = vpop.f32.mrb[0].mxu0
  %v6824 = vadd.f32 0.0, %v6823
  %v6825 = vpop.f32.mrb[0].mxu0
  %6826 = vmatprep.mubr.bf16.mxu0 0
  %6827 = vmatmul.mubr.bf16.gmra.mrb[0].mxu0 %v6686
  %v6828 = vpop.f32.mrb[0].mxu0
  %v6829 = vadd.f32 0.0, %v6828
  %v6830 = vpop.f32.mrb[0].mxu0
  %v6831 = vpop.f32.mrb[0].mxu0
  %v6832 = vadd.f32 0.0, %v6831
  %v6833 = vpop.f32.mrb[0].mxu0
  %6834 = vmatprep.mubr.bf16.mxu0 0
  %6835 = vmatmul.mubr.bf16.gmra.mrb[0].mxu0 %v6687
  %v6836 = vpop.f32.mrb[0].mxu0
  %v6837 = vadd.f32 0.0, %v6836
  %v6838 = vpop.f32.mrb[0].mxu0
  %v6839 = vpop.f32.mrb[0].mxu0
  %v6840 = vadd.f32 0.0, %v6839
  %v6841 = vpop.f32.mrb[0].mxu0
  %6842 = vmatprep.mubr.bf16.mxu0 0
  %6843 = vmatmul.mubr.bf16.gmra.mrb[0].mxu0 %v6688
  %v6844 = vpop.f32.mrb[0].mxu0
  %v6845 = vadd.f32 0.0, %v6844
  %v6846 = vpop.f32.mrb[0].mxu0
  %v6847 = vpop.f32.mrb[0].mxu0
  %v6848 = vadd.f32 0.0, %v6847
  %v6849 = vpop.f32.mrb[0].mxu0
  %6850 = vmatprep.mubr.bf16.mxu0 0
  %6851 = vmatmul.mubr.bf16.gmra.mrb[0].mxu0 %v6689
  %v6852 = vpop.f32.mrb[0].mxu0
  %v6853 = vadd.f32 0.0, %v6852
  %v6854 = vpop.f32.mrb[0].mxu0
  %v6855 = vpop.f32.mrb[0].mxu0
  %v6856 = vadd.f32 0.0, %v6855
  %v6857 = vpop.f32.mrb[0].mxu0
  %6858 = vmatprep.mubr.bf16.mxu0 0
  %6859 = vmatmul.mubr.bf16.gmra.mrb[0].mxu0 %v6690
  %v6860 = vpop.f32.mrb[0].mxu0
  %v6861 = vadd.f32 0.0, %v6860
  %v6862 = vpop.f32.mrb[0].mxu0
  %v6863 = vpop.f32.mrb[0].mxu0
  %v6864 = vadd.f32 0.0, %v6863
  %v6865 = vpop.f32.mrb[0].mxu0
  %6866 = vmatprep.mubr.bf16.mxu0 0
  %6867 = vmatmul.mubr.bf16.gmra.mrb[0].mxu0 %v6691
  %v6868 = vpop.f32.mrb[0].mxu0
  %v6869 = vadd.f32 0.0, %v6868
  %v6870 = vpop.f32.mrb[0].mxu0
  %v6871 = vpop.f32.mrb[0].mxu0
  %v6872 = vadd.f32 0.0, %v6871
  %v6873 = vpop.f32.mrb[0].mxu0
  %6874 = vmatprep.mubr.bf16.mxu0 0
  %6875 = vmatmul.mubr.bf16.gmra.mrb[0].mxu0 %v6692
  %v6876 = vpop.f32.mrb[0].mxu0
  %v6877 = vadd.f32 0.0, %v6876
  %v6878 = vpop.f32.mrb[0].mxu0
  %v6879 = vpop.f32.mrb[0].mxu0
  %v6880 = vadd.f32 0.0, %v6879
  %v6881 = vpop.f32.mrb[0].mxu0
  %6882 = vmatprep.mubr.bf16.mxu0 0
  %6883 = vmatmul.mubr.bf16.gmra.mrb[0].mxu0 %v6693
  %v6884 = vpop.f32.mrb[0].mxu0
  %v6885 = vadd.f32 0.0, %v6884
  %v6886 = vpop.f32.mrb[0].mxu0
  %v6887 = vpop.f32.mrb[0].mxu0
  %v6888 = vadd.f32 0.0, %v6887
  %v6889 = vpop.f32.mrb[0].mxu0
  %6890 = vmatprep.mubr.bf16.mxu0 0
  %6891 = vmatmul.mubr.bf16.gmra.mrb[0].mxu0 %v6694
  %v6892 = vpop.f32.mrb[0].mxu0
  %v6893 = vadd.f32 0.0, %v6892
  %v6894 = vpop.f32.mrb[0].mxu0
  %v6895 = vpop.f32.mrb[0].mxu0
  %v6896 = vadd.f32 0.0, %v6895
  %v6897 = vpop.f32.mrb[0].mxu0
  %6898 = vmatprep.mubr.bf16.mxu0 0
  %6899 = vmatmul.mubr.bf16.gmra.mrb[0].mxu0 %v6695
  %v6900 = vpop.f32.mrb[0].mxu0
  %v6901 = vadd.f32 0.0, %v6900
  %v6902 = vpop.f32.mrb[0].mxu0
  %v6903 = vpop.f32.mrb[0].mxu0
  %v6904 = vadd.f32 0.0, %v6903
  %v6905 = vpop.f32.mrb[0].mxu0
  %6906 = vmatprep.mubr.bf16.mxu0 0
  %6907 = vmatmul.mubr.bf16.gmra.mrb[0].mxu0 %v6696
  %v6908 = vpop.f32.mrb[0].mxu0
  %v6909 = vadd.f32 0.0, %v6908
  %v6910 = vpop.f32.mrb[0].mxu0
  %v6911 = vpop.f32.mrb[0].mxu0
  %v6912 = vadd.f32 0.0, %v6911
  %v6913 = vpop.f32.mrb[0].mxu0
  %6914 = vmatprep.mubr.bf16.mxu0 0
  %6915 = vmatmul.mubr.bf16.gmra.mrb[0].mxu0 %v6697
  %v6916 = vpop.f32.mrb[0].mxu0
  %v6917 = vadd.f32 0.0, %v6916
  %v6918 = vpop.f32.mrb[0].mxu0
  %v6919 = vpop.f32.mrb[0].mxu0
  %v6920 = vadd.f32 0.0, %v6919
  %v6921 = vpop.f32.mrb[0].mxu0
  %6922 = vdwg.mxu0
  %v6923 = vadd.f32 %v6650, %v6797
  %v6924 = vadd.f32 %v6651, %v6800
  %v6925 = vadd.f32 %v6652, %v6805
  %v6926 = vadd.f32 %v6653, %v6808
  %v6927 = vadd.f32 %v6654, %v6813
  %v6928 = vadd.f32 %v6655, %v6816
  %v6929 = vadd.f32 %v6656, %v6821
  %v6930 = vadd.f32 %v6657, %v6824
  %v6931 = vadd.f32 %v6658, %v6829
  %v6932 = vadd.f32 %v6659, %v6832
  %v6933 = vadd.f32 %v6660, %v6837
  %v6934 = vadd.f32 %v6661, %v6840
  %v6935 = vadd.f32 %v6662, %v6845
  %v6936 = vadd.f32 %v6663, %v6848
  %v6937 = vadd.f32 %v6664, %v6853
  %v6938 = vadd.f32 %v6665, %v6856
  %v6939 = vadd.f32 %v6666, %v6861
  %v6940 = vadd.f32 %v6667, %v6864
  %v6941 = vadd.f32 %v6668, %v6869
  %v6942 = vadd.f32 %v6669, %v6872
  %v6943 = vadd.f32 %v6670, %v6877
  %v6944 = vadd.f32 %v6671, %v6880
  %v6945 = vadd.f32 %v6672, %v6885
  %v6946 = vadd.f32 %v6673, %v6888
  %v6947 = vadd.f32 %v6674, %v6893
  %v6948 = vadd.f32 %v6675, %v6896
  %v6949 = vadd.f32 %v6676, %v6901
  %v6950 = vadd.f32 %v6677, %v6904
  %v6951 = vadd.f32 %v6678, %v6909
  %v6952 = vadd.f32 %v6679, %v6912
  %v6953 = vadd.f32 %v6680, %v6917
  %v6954 = vadd.f32 %v6681, %v6920
  %6955 = vst [vmem:[#allocation6] sm:$0xff] %v6923
  %6956 = vst [vmem:[#allocation6 + $0x8] sm:$0xff] %v6924
  %6957 = vst [vmem:[#allocation6 + $0x10] sm:$0xff] %v6925
  %6958 = vst [vmem:[#allocation6 + $0x18] sm:$0xff] %v6926
  %6959 = vst [vmem:[#allocation6 + $0x20] sm:$0xff] %v6927
  %6960 = vst [vmem:[#allocation6 + $0x28] sm:$0xff] %v6928
  %6961 = vst [vmem:[#allocation6 + $0x30] sm:$0xff] %v6929
  %6962 = vst [vmem:[#allocation6 + $0x38] sm:$0xff] %v6930
  %6963 = vst [vmem:[#allocation6 + $0x40] sm:$0xff] %v6931
  %6964 = vst [vmem:[#allocation6 + $0x48] sm:$0xff] %v6932
  %6965 = vst [vmem:[#allocation6 + $0x50] sm:$0xff] %v6933
  %6966 = vst [vmem:[#allocation6 + $0x58] sm:$0xff] %v6934
  %6967 = vst [vmem:[#allocation6 + $0x60] sm:$0xff] %v6935
  %6968 = vst [vmem:[#allocation6 + $0x68] sm:$0xff] %v6936
  %6969 = vst [vmem:[#allocation6 + $0x70] sm:$0xff] %v6937
  %6970 = vst [vmem:[#allocation6 + $0x78] sm:$0xff] %v6938
  %6971 = vst [vmem:[#allocation6 + $0x80] sm:$0xff] %v6939
  %6972 = vst [vmem:[#allocation6 + $0x88] sm:$0xff] %v6940
  %6973 = vst [vmem:[#allocation6 + $0x90] sm:$0xff] %v6941
  %6974 = vst [vmem:[#allocation6 + $0x98] sm:$0xff] %v6942
  %6975 = vst [vmem:[#allocation6 + $0xa0] sm:$0xff] %v6943
  %6976 = vst [vmem:[#allocation6 + $0xa8] sm:$0xff] %v6944
  %6977 = vst [vmem:[#allocation6 + $0xb0] sm:$0xff] %v6945
  %6978 = vst [vmem:[#allocation6 + $0xb8] sm:$0xff] %v6946
  %6979 = vst [vmem:[#allocation6 + $0xc0] sm:$0xff] %v6947
  %6980 = vst [vmem:[#allocation6 + $0xc8] sm:$0xff] %v6948
  %6981 = vst [vmem:[#allocation6 + $0xd0] sm:$0xff] %v6949
  %6982 = vst [vmem:[#allocation6 + $0xd8] sm:$0xff] %v6950
  %6983 = vst [vmem:[#allocation6 + $0xe0] sm:$0xff] %v6951
  %6984 = vst [vmem:[#allocation6 + $0xe8] sm:$0xff] %v6952
  %6985 = vst [vmem:[#allocation6 + $0xf0] sm:$0xff] %v6953
  %6986 = vst [vmem:[#allocation6 + $0xf8] sm:$0xff] %v6954
  %v6987 = vld [vmem:[#allocation5 + $0x18] sm:$0xff]
  %v6988 = vld [vmem:[#allocation5 + $0x20] sm:$0xff]
  %v6989 = vld [vmem:[#allocation5 + $0x28] sm:$0xff]
  %v6990 = vld [vmem:[#allocation5 + $0x30] sm:$0xff]
  %v6991 = vld [vmem:[#allocation5 + $0x38] sm:$0xff]
  %v6992 = vld [vmem:[#allocation5 + $0x40] sm:$0xff]
  %v6993 = vld [vmem:[#allocation5 + $0x48] sm:$0xff]
  %v6994 = vld [vmem:[#allocation5 + $0x50] sm:$0xff]
  %v6995 = vld [vmem:[#allocation5 + $0x58] sm:$0xff]
  %v6996 = vld [vmem:[#allocation5 + $0x60] sm:$0xff]
  %v6997 = vld [vmem:[#allocation5 + $0x68] sm:$0xff]
  %v6998 = vld [vmem:[#allocation5 + $0x70] sm:$0xff]
  %v6999 = vld [vmem:[#allocation5 + $0x78] sm:$0xff]
  %v7000 = vld [vmem:[#allocation5 + $0x80] sm:$0xff]
  %v7001 = vld [vmem:[#allocation5 + $0x88] sm:$0xff]
  %v7002 = vld [vmem:[#allocation5 + $0x90] sm:$0xff]
  %v7003 = vld [vmem:[#allocation5 + $0x98] sm:$0xff]
  %v7004 = vld [vmem:[#allocation5 + $0xa0] sm:$0xff]
  %v7005 = vld [vmem:[#allocation5 + $0xa8] sm:$0xff]
  %v7006 = vld [vmem:[#allocation5 + $0xb0] sm:$0xff]
  %v7007 = vld [vmem:[#allocation5 + $0xb8] sm:$0xff]
  %v7008 = vld [vmem:[#allocation5 + $0xc0] sm:$0xff]
  %v7009 = vld [vmem:[#allocation5 + $0xc8] sm:$0xff]
  %v7010 = vld [vmem:[#allocation5 + $0xd0] sm:$0xff]
  %v7011 = vld [vmem:[#allocation5 + $0xd8] sm:$0xff]
  %v7012 = vld [vmem:[#allocation5 + $0xe0] sm:$0xff]
  %v7013 = vld [vmem:[#allocation5 + $0xe8] sm:$0xff]
  %v7014 = vld [vmem:[#allocation5 + $0xf0] sm:$0xff]
  %v7015 = vld [vmem:[#allocation5 + $0xf8] sm:$0xff]
  %v7016 = vld [vmem:[#allocation5 + $0x100] sm:$0xff]
  %v7017 = vld [vmem:[#allocation5 + $0x108] sm:$0xff]
  %v7018 = vld [vmem:[#allocation5 + $0x110] sm:$0xff]
  %v7019 = vld [vmem:[#allocation6] sm:$0xff]
  %v7020 = vld [vmem:[#allocation6 + $0x8] sm:$0xff]
  %v7021 = vld [vmem:[#allocation6 + $0x10] sm:$0xff]
  %v7022 = vld [vmem:[#allocation6 + $0x18] sm:$0xff]
  %v7023 = vld [vmem:[#allocation6 + $0x20] sm:$0xff]
  %v7024 = vld [vmem:[#allocation6 + $0x28] sm:$0xff]
  %v7025 = vld [vmem:[#allocation6 + $0x30] sm:$0xff]
  %v7026 = vld [vmem:[#allocation6 + $0x38] sm:$0xff]
  %v7027 = vld [vmem:[#allocation6 + $0x40] sm:$0xff]
  %v7028 = vld [vmem:[#allocation6 + $0x48] sm:$0xff]
  %v7029 = vld [vmem:[#allocation6 + $0x50] sm:$0xff]
  %v7030 = vld [vmem:[#allocation6 + $0x58] sm:$0xff]
  %v7031 = vld [vmem:[#allocation6 + $0x60] sm:$0xff]
  %v7032 = vld [vmem:[#allocation6 + $0x68] sm:$0xff]
  %v7033 = vld [vmem:[#allocation6 + $0x70] sm:$0xff]
  %v7034 = vld [vmem:[#allocation6 + $0x78] sm:$0xff]
  %v7035 = vld [vmem:[#allocation6 + $0x80] sm:$0xff]
  %v7036 = vld [vmem:[#allocation6 + $0x88] sm:$0xff]
  %v7037 = vld [vmem:[#allocation6 + $0x90] sm:$0xff]
  %v7038 = vld [vmem:[#allocation6 + $0x98] sm:$0xff]
  %v7039 = vld [vmem:[#allocation6 + $0xa0] sm:$0xff]
  %v7040 = vld [vmem:[#allocation6 + $0xa8] sm:$0xff]
  %v7041 = vld [vmem:[#allocation6 + $0xb0] sm:$0xff]
  %v7042 = vld [vmem:[#allocation6 + $0xb8] sm:$0xff]
  %v7043 = vld [vmem:[#allocation6 + $0xc0] sm:$0xff]
  %v7044 = vld [vmem:[#allocation6 + $0xc8] sm:$0xff]
  %v7045 = vld [vmem:[#allocation6 + $0xd0] sm:$0xff]
  %v7046 = vld [vmem:[#allocation6 + $0xd8] sm:$0xff]
  %v7047 = vld [vmem:[#allocation6 + $0xe0] sm:$0xff]
  %v7048 = vld [vmem:[#allocation6 + $0xe8] sm:$0xff]
  %v7049 = vld [vmem:[#allocation6 + $0xf0] sm:$0xff]
  %v7050 = vld [vmem:[#allocation6 + $0xf8] sm:$0xff]
  %v7051 = vpack.c.bf16 %v6988, %v6987
  %v7052 = vpack.c.bf16 %v6990, %v6989
  %v7053 = vpack.c.bf16 %v6992, %v6991
  %v7054 = vpack.c.bf16 %v6994, %v6993
  %v7055 = vpack.c.bf16 %v6996, %v6995
  %v7056 = vpack.c.bf16 %v6998, %v6997
  %v7057 = vpack.c.bf16 %v7000, %v6999
  %v7058 = vpack.c.bf16 %v7002, %v7001
  %v7059 = vpack.c.bf16 %v7004, %v7003
  %v7060 = vpack.c.bf16 %v7006, %v7005
  %v7061 = vpack.c.bf16 %v7008, %v7007
  %v7062 = vpack.c.bf16 %v7010, %v7009
  %v7063 = vpack.c.bf16 %v7012, %v7011
  %v7064 = vpack.c.bf16 %v7014, %v7013
  %v7065 = vpack.c.bf16 %v7016, %v7015
  %v7066 = vpack.c.bf16 %v7018, %v7017
  %v7067 = vld [vmem:[%s2 + $0x100] sm:$0xf]
  %v7068 = vld [vmem:[%s2 + $0x104] sm:$0xf]
  %v7069 = vld [vmem:[%s2 + $0x108] sm:$0xf]
  %v7070 = vld [vmem:[%s2 + $0x10c] sm:$0xf]
  %v7071 = vld [vmem:[%s2 + $0x110] sm:$0xf]
  %v7072 = vld [vmem:[%s2 + $0x114] sm:$0xf]
  %v7073 = vld [vmem:[%s2 + $0x118] sm:$0xf]
  %v7074 = vld [vmem:[%s2 + $0x11c] sm:$0xf]
  %v7075 = vld [vmem:[%s2 + $0x120] sm:$0xf]
  %v7076 = vld [vmem:[%s2 + $0x124] sm:$0xf]
  %v7077 = vld [vmem:[%s2 + $0x128] sm:$0xf]
  %v7078 = vld [vmem:[%s2 + $0x12c] sm:$0xf]
  %v7079 = vld [vmem:[%s2 + $0x130] sm:$0xf]
  %v7080 = vld [vmem:[%s2 + $0x134] sm:$0xf]
  %v7081 = vld [vmem:[%s2 + $0x138] sm:$0xf]
  %v7082 = vld [vmem:[%s2 + $0x13c] sm:$0xf]
  %v7099 = vunpack.c.l.b16 %v7067
  %v7100 = vunpack.c.l.b16 %v7068
  %v7101 = vunpack.c.l.b16 %v7069
  %v7102 = vunpack.c.l.b16 %v7070
  %v7103 = vunpack.c.l.b16 %v7071
  %v7104 = vunpack.c.l.b16 %v7072
  %v7105 = vunpack.c.l.b16 %v7073
  %v7106 = vunpack.c.l.b16 %v7074
  %v7107 = vunpack.c.l.b16 %v7075
  %v7108 = vunpack.c.l.b16 %v7076
  %v7109 = vunpack.c.l.b16 %v7077
  %v7110 = vunpack.c.l.b16 %v7078
  %v7111 = vunpack.c.l.b16 %v7079
  %v7112 = vunpack.c.l.b16 %v7080
  %v7113 = vunpack.c.l.b16 %v7081
  %v7114 = vunpack.c.l.b16 %v7082
  %v7115 = vpack.c.b16 %v7100, %v7099
  %v7116 = vpack.c.b16 %v7102, %v7101
  %v7117 = vpack.c.b16 %v7104, %v7103
  %v7118 = vpack.c.b16 %v7106, %v7105
  %v7119 = vpack.c.b16 %v7108, %v7107
  %v7120 = vpack.c.b16 %v7110, %v7109
  %v7121 = vpack.c.b16 %v7112, %v7111
  %v7122 = vpack.c.b16 %v7114, %v7113
  %7131 = vmatprep.subr.bf16.mxu0 0
  %7132 = vmatpush1.bf16.msra.mxu0 %v7115
  %7133 = vmatprep.subr.bf16.mxu0 0
  %7134 = vmatpush1.bf16.msra.mxu0 %v7116
  %7135 = vmatprep.subr.bf16.mxu0 0
  %7136 = vmatpush1.bf16.msra.mxu0 %v7117
  %7137 = vmatprep.subr.bf16.mxu0 0
  %7138 = vmatpush1.bf16.msra.mxu0 %v7118
  %7139 = vmatprep.subr.bf16.mxu0 0
  %7140 = vmatpush1.bf16.msra.mxu0 %v7119
  %7141 = vmatprep.subr.bf16.mxu0 0
  %7142 = vmatpush1.bf16.msra.mxu0 %v7120
  %7143 = vmatprep.subr.bf16.mxu0 0
  %7144 = vmatpush1.bf16.msra.mxu0 %v7121
  %7145 = vmatprep.subr.bf16.mxu0 0
  %7146 = vmatpush1.bf16.msra.mxu0 %v7122
  %7147 = vmatprep.subr.bf16.mxu0 0
  %7148 = vmatpush1.bf16.msra.mxu0 0
  %7149 = vmatprep.subr.bf16.mxu0 0
  %7150 = vmatpush1.bf16.msra.mxu0 0
  %7151 = vmatprep.subr.bf16.mxu0 0
  %7152 = vmatpush1.bf16.msra.mxu0 0
  %7153 = vmatprep.subr.bf16.mxu0 0
  %7154 = vmatpush1.bf16.msra.mxu0 0
  %7155 = vmatprep.subr.bf16.mxu0 0
  %7156 = vmatpush1.bf16.msra.mxu0 0
  %7157 = vmatprep.subr.bf16.mxu0 0
  %7158 = vmatpush1.bf16.msra.mxu0 0
  %7159 = vmatprep.subr.bf16.mxu0 0
  %7160 = vmatpush1.bf16.msra.mxu0 0
  %7161 = vmatprep.subr.bf16.mxu0 0
  %7162 = vmatpush1.bf16.msra.mxu0 0
  %7163 = vmatprep.mubr.bf16.mxu0 0
  %7164 = vmatmul.mubr.bf16.gmra.mrb[0].mxu0 %v7051
  %v7165 = vpop.f32.mrb[0].mxu0
  %v7166 = vadd.f32 0.0, %v7165
  %v7167 = vpop.f32.mrb[0].mxu0
  %v7168 = vpop.f32.mrb[0].mxu0
  %v7169 = vadd.f32 0.0, %v7168
  %v7170 = vpop.f32.mrb[0].mxu0
  %7171 = vmatprep.mubr.bf16.mxu0 0
  %7172 = vmatmul.mubr.bf16.gmra.mrb[0].mxu0 %v7052
  %v7173 = vpop.f32.mrb[0].mxu0
  %v7174 = vadd.f32 0.0, %v7173
  %v7175 = vpop.f32.mrb[0].mxu0
  %v7176 = vpop.f32.mrb[0].mxu0
  %v7177 = vadd.f32 0.0, %v7176
  %v7178 = vpop.f32.mrb[0].mxu0
  %7179 = vmatprep.mubr.bf16.mxu0 0
  %7180 = vmatmul.mubr.bf16.gmra.mrb[0].mxu0 %v7053
  %v7181 = vpop.f32.mrb[0].mxu0
  %v7182 = vadd.f32 0.0, %v7181
  %v7183 = vpop.f32.mrb[0].mxu0
  %v7184 = vpop.f32.mrb[0].mxu0
  %v7185 = vadd.f32 0.0, %v7184
  %v7186 = vpop.f32.mrb[0].mxu0
  %7187 = vmatprep.mubr.bf16.mxu0 0
  %7188 = vmatmul.mubr.bf16.gmra.mrb[0].mxu0 %v7054
  %v7189 = vpop.f32.mrb[0].mxu0
  %v7190 = vadd.f32 0.0, %v7189
  %v7191 = vpop.f32.mrb[0].mxu0
  %v7192 = vpop.f32.mrb[0].mxu0
  %v7193 = vadd.f32 0.0, %v7192
  %v7194 = vpop.f32.mrb[0].mxu0
  %7195 = vmatprep.mubr.bf16.mxu0 0
  %7196 = vmatmul.mubr.bf16.gmra.mrb[0].mxu0 %v7055
  %v7197 = vpop.f32.mrb[0].mxu0
  %v7198 = vadd.f32 0.0, %v7197
  %v7199 = vpop.f32.mrb[0].mxu0
  %v7200 = vpop.f32.mrb[0].mxu0
  %v7201 = vadd.f32 0.0, %v7200
  %v7202 = vpop.f32.mrb[0].mxu0
  %7203 = vmatprep.mubr.bf16.mxu0 0
  %7204 = vmatmul.mubr.bf16.gmra.mrb[0].mxu0 %v7056
  %v7205 = vpop.f32.mrb[0].mxu0
  %v7206 = vadd.f32 0.0, %v7205
  %v7207 = vpop.f32.mrb[0].mxu0
  %v7208 = vpop.f32.mrb[0].mxu0
  %v7209 = vadd.f32 0.0, %v7208
  %v7210 = vpop.f32.mrb[0].mxu0
  %7211 = vmatprep.mubr.bf16.mxu0 0
  %7212 = vmatmul.mubr.bf16.gmra.mrb[0].mxu0 %v7057
  %v7213 = vpop.f32.mrb[0].mxu0
  %v7214 = vadd.f32 0.0, %v7213
  %v7215 = vpop.f32.mrb[0].mxu0
  %v7216 = vpop.f32.mrb[0].mxu0
  %v7217 = vadd.f32 0.0, %v7216
  %v7218 = vpop.f32.mrb[0].mxu0
  %7219 = vmatprep.mubr.bf16.mxu0 0
  %7220 = vmatmul.mubr.bf16.gmra.mrb[0].mxu0 %v7058
  %v7221 = vpop.f32.mrb[0].mxu0
  %v7222 = vadd.f32 0.0, %v7221
  %v7223 = vpop.f32.mrb[0].mxu0
  %v7224 = vpop.f32.mrb[0].mxu0
  %v7225 = vadd.f32 0.0, %v7224
  %v7226 = vpop.f32.mrb[0].mxu0
  %7227 = vmatprep.mubr.bf16.mxu0 0
  %7228 = vmatmul.mubr.bf16.gmra.mrb[0].mxu0 %v7059
  %v7229 = vpop.f32.mrb[0].mxu0
  %v7230 = vadd.f32 0.0, %v7229
  %v7231 = vpop.f32.mrb[0].mxu0
  %v7232 = vpop.f32.mrb[0].mxu0
  %v7233 = vadd.f32 0.0, %v7232
  %v7234 = vpop.f32.mrb[0].mxu0
  %7235 = vmatprep.mubr.bf16.mxu0 0
  %7236 = vmatmul.mubr.bf16.gmra.mrb[0].mxu0 %v7060
  %v7237 = vpop.f32.mrb[0].mxu0
  %v7238 = vadd.f32 0.0, %v7237
  %v7239 = vpop.f32.mrb[0].mxu0
  %v7240 = vpop.f32.mrb[0].mxu0
  %v7241 = vadd.f32 0.0, %v7240
  %v7242 = vpop.f32.mrb[0].mxu0
  %7243 = vmatprep.mubr.bf16.mxu0 0
  %7244 = vmatmul.mubr.bf16.gmra.mrb[0].mxu0 %v7061
  %v7245 = vpop.f32.mrb[0].mxu0
  %v7246 = vadd.f32 0.0, %v7245
  %v7247 = vpop.f32.mrb[0].mxu0
  %v7248 = vpop.f32.mrb[0].mxu0
  %v7249 = vadd.f32 0.0, %v7248
  %v7250 = vpop.f32.mrb[0].mxu0
  %7251 = vmatprep.mubr.bf16.mxu0 0
  %7252 = vmatmul.mubr.bf16.gmra.mrb[0].mxu0 %v7062
  %v7253 = vpop.f32.mrb[0].mxu0
  %v7254 = vadd.f32 0.0, %v7253
  %v7255 = vpop.f32.mrb[0].mxu0
  %v7256 = vpop.f32.mrb[0].mxu0
  %v7257 = vadd.f32 0.0, %v7256
  %v7258 = vpop.f32.mrb[0].mxu0
  %7259 = vmatprep.mubr.bf16.mxu0 0
  %7260 = vmatmul.mubr.bf16.gmra.mrb[0].mxu0 %v7063
  %v7261 = vpop.f32.mrb[0].mxu0
  %v7262 = vadd.f32 0.0, %v7261
  %v7263 = vpop.f32.mrb[0].mxu0
  %v7264 = vpop.f32.mrb[0].mxu0
  %v7265 = vadd.f32 0.0, %v7264
  %v7266 = vpop.f32.mrb[0].mxu0
  %7267 = vmatprep.mubr.bf16.mxu0 0
  %7268 = vmatmul.mubr.bf16.gmra.mrb[0].mxu0 %v7064
  %v7269 = vpop.f32.mrb[0].mxu0
  %v7270 = vadd.f32 0.0, %v7269
  %v7271 = vpop.f32.mrb[0].mxu0
  %v7272 = vpop.f32.mrb[0].mxu0
  %v7273 = vadd.f32 0.0, %v7272
  %v7274 = vpop.f32.mrb[0].mxu0
  %7275 = vmatprep.mubr.bf16.mxu0 0
  %7276 = vmatmul.mubr.bf16.gmra.mrb[0].mxu0 %v7065
  %v7277 = vpop.f32.mrb[0].mxu0
  %v7278 = vadd.f32 0.0, %v7277
  %v7279 = vpop.f32.mrb[0].mxu0
  %v7280 = vpop.f32.mrb[0].mxu0
  %v7281 = vadd.f32 0.0, %v7280
  %v7282 = vpop.f32.mrb[0].mxu0
  %7283 = vmatprep.mubr.bf16.mxu0 0
  %7284 = vmatmul.mubr.bf16.gmra.mrb[0].mxu0 %v7066
  %v7285 = vpop.f32.mrb[0].mxu0
  %v7286 = vadd.f32 0.0, %v7285
  %v7287 = vpop.f32.mrb[0].mxu0
  %v7288 = vpop.f32.mrb[0].mxu0
  %v7289 = vadd.f32 0.0, %v7288
  %v7290 = vpop.f32.mrb[0].mxu0
  %7291 = vdwg.mxu0
  %v7292 = vadd.f32 %v7019, %v7166
  %v7293 = vadd.f32 %v7020, %v7169
  %v7294 = vadd.f32 %v7021, %v7174
  %v7295 = vadd.f32 %v7022, %v7177
  %v7296 = vadd.f32 %v7023, %v7182
  %v7297 = vadd.f32 %v7024, %v7185
  %v7298 = vadd.f32 %v7025, %v7190
  %v7299 = vadd.f32 %v7026, %v7193
  %v7300 = vadd.f32 %v7027, %v7198
  %v7301 = vadd.f32 %v7028, %v7201
  %v7302 = vadd.f32 %v7029, %v7206
  %v7303 = vadd.f32 %v7030, %v7209
  %v7304 = vadd.f32 %v7031, %v7214
  %v7305 = vadd.f32 %v7032, %v7217
  %v7306 = vadd.f32 %v7033, %v7222
  %v7307 = vadd.f32 %v7034, %v7225
  %v7308 = vadd.f32 %v7035, %v7230
  %v7309 = vadd.f32 %v7036, %v7233
  %v7310 = vadd.f32 %v7037, %v7238
  %v7311 = vadd.f32 %v7038, %v7241
  %v7312 = vadd.f32 %v7039, %v7246
  %v7313 = vadd.f32 %v7040, %v7249
  %v7314 = vadd.f32 %v7041, %v7254
  %v7315 = vadd.f32 %v7042, %v7257
  %v7316 = vadd.f32 %v7043, %v7262
  %v7317 = vadd.f32 %v7044, %v7265
  %v7318 = vadd.f32 %v7045, %v7270
  %v7319 = vadd.f32 %v7046, %v7273
  %v7320 = vadd.f32 %v7047, %v7278
  %v7321 = vadd.f32 %v7048, %v7281
  %v7322 = vadd.f32 %v7049, %v7286
  %v7323 = vadd.f32 %v7050, %v7289
  %7324 = vst [vmem:[#allocation6] sm:$0xff] %v7292
  %7325 = vst [vmem:[#allocation6 + $0x8] sm:$0xff] %v7293
  %7326 = vst [vmem:[#allocation6 + $0x10] sm:$0xff] %v7294
  %7327 = vst [vmem:[#allocation6 + $0x18] sm:$0xff] %v7295
  %7328 = vst [vmem:[#allocation6 + $0x20] sm:$0xff] %v7296
  %7329 = vst [vmem:[#allocation6 + $0x28] sm:$0xff] %v7297
  %7330 = vst [vmem:[#allocation6 + $0x30] sm:$0xff] %v7298
  %7331 = vst [vmem:[#allocation6 + $0x38] sm:$0xff] %v7299
  %7332 = vst [vmem:[#allocation6 + $0x40] sm:$0xff] %v7300
  %7333 = vst [vmem:[#allocation6 + $0x48] sm:$0xff] %v7301
  %7334 = vst [vmem:[#allocation6 + $0x50] sm:$0xff] %v7302
  %7335 = vst [vmem:[#allocation6 + $0x58] sm:$0xff] %v7303
  %7336 = vst [vmem:[#allocation6 + $0x60] sm:$0xff] %v7304
  %7337 = vst [vmem:[#allocation6 + $0x68] sm:$0xff] %v7305
  %7338 = vst [vmem:[#allocation6 + $0x70] sm:$0xff] %v7306
  %7339 = vst [vmem:[#allocation6 + $0x78] sm:$0xff] %v7307
  %7340 = vst [vmem:[#allocation6 + $0x80] sm:$0xff] %v7308
  %7341 = vst [vmem:[#allocation6 + $0x88] sm:$0xff] %v7309
  %7342 = vst [vmem:[#allocation6 + $0x90] sm:$0xff] %v7310
  %7343 = vst [vmem:[#allocation6 + $0x98] sm:$0xff] %v7311
  %7344 = vst [vmem:[#allocation6 + $0xa0] sm:$0xff] %v7312
  %7345 = vst [vmem:[#allocation6 + $0xa8] sm:$0xff] %v7313
  %7346 = vst [vmem:[#allocation6 + $0xb0] sm:$0xff] %v7314
  %7347 = vst [vmem:[#allocation6 + $0xb8] sm:$0xff] %v7315
  %7348 = vst [vmem:[#allocation6 + $0xc0] sm:$0xff] %v7316
  %7349 = vst [vmem:[#allocation6 + $0xc8] sm:$0xff] %v7317
  %7350 = vst [vmem:[#allocation6 + $0xd0] sm:$0xff] %v7318
  %7351 = vst [vmem:[#allocation6 + $0xd8] sm:$0xff] %v7319
  %7352 = vst [vmem:[#allocation6 + $0xe0] sm:$0xff] %v7320
  %7353 = vst [vmem:[#allocation6 + $0xe8] sm:$0xff] %v7321
  %7354 = vst [vmem:[#allocation6 + $0xf0] sm:$0xff] %v7322
  %7355 = vst [vmem:[#allocation6 + $0xf8] sm:$0xff] %v7323
  %v7356 = vld [vmem:[#allocation5 + $0x19] sm:$0xff]
  %v7357 = vld [vmem:[#allocation5 + $0x21] sm:$0xff]
  %v7358 = vld [vmem:[#allocation5 + $0x29] sm:$0xff]
  %v7359 = vld [vmem:[#allocation5 + $0x31] sm:$0xff]
  %v7360 = vld [vmem:[#allocation5 + $0x39] sm:$0xff]
  %v7361 = vld [vmem:[#allocation5 + $0x41] sm:$0xff]
  %v7362 = vld [vmem:[#allocation5 + $0x49] sm:$0xff]
  %v7363 = vld [vmem:[#allocation5 + $0x51] sm:$0xff]
  %v7364 = vld [vmem:[#allocation5 + $0x59] sm:$0xff]
  %v7365 = vld [vmem:[#allocation5 + $0x61] sm:$0xff]
  %v7366 = vld [vmem:[#allocation5 + $0x69] sm:$0xff]
  %v7367 = vld [vmem:[#allocation5 + $0x71] sm:$0xff]
  %v7368 = vld [vmem:[#allocation5 + $0x79] sm:$0xff]
  %v7369 = vld [vmem:[#allocation5 + $0x81] sm:$0xff]
  %v7370 = vld [vmem:[#allocation5 + $0x89] sm:$0xff]
  %v7371 = vld [vmem:[#allocation5 + $0x91] sm:$0xff]
  %v7372 = vld [vmem:[#allocation5 + $0x99] sm:$0xff]
  %v7373 = vld [vmem:[#allocation5 + $0xa1] sm:$0xff]
  %v7374 = vld [vmem:[#allocation5 + $0xa9] sm:$0xff]
  %v7375 = vld [vmem:[#allocation5 + $0xb1] sm:$0xff]
  %v7376 = vld [vmem:[#allocation5 + $0xb9] sm:$0xff]
  %v7377 = vld [vmem:[#allocation5 + $0xc1] sm:$0xff]
  %v7378 = vld [vmem:[#allocation5 + $0xc9] sm:$0xff]
  %v7379 = vld [vmem:[#allocation5 + $0xd1] sm:$0xff]
  %v7380 = vld [vmem:[#allocation5 + $0xd9] sm:$0xff]
  %v7381 = vld [vmem:[#allocation5 + $0xe1] sm:$0xff]
  %v7382 = vld [vmem:[#allocation5 + $0xe9] sm:$0xff]
  %v7383 = vld [vmem:[#allocation5 + $0xf1] sm:$0xff]
  %v7384 = vld [vmem:[#allocation5 + $0xf9] sm:$0xff]
  %v7385 = vld [vmem:[#allocation5 + $0x101] sm:$0xff]
  %v7386 = vld [vmem:[#allocation5 + $0x109] sm:$0xff]
  %v7387 = vld [vmem:[#allocation5 + $0x111] sm:$0xff]
  %v7388 = vmul.f32 %v7356, %v1404
  %v7389 = vmul.f32 %v7357, %v1405
  %v7390 = vmul.f32 %v7358, %v1406
  %v7391 = vmul.f32 %v7359, %v1407
  %v7392 = vmul.f32 %v7360, %v1408
  %v7393 = vmul.f32 %v7361, %v1409
  %v7394 = vmul.f32 %v7362, %v1410
  %v7395 = vmul.f32 %v7363, %v1411
  %v7396 = vmul.f32 %v7364, %v1412
  %v7397 = vmul.f32 %v7365, %v1413
  %v7398 = vmul.f32 %v7366, %v1414
  %v7399 = vmul.f32 %v7367, %v1415
  %v7400 = vmul.f32 %v7368, %v1416
  %v7401 = vmul.f32 %v7369, %v1417
  %v7402 = vmul.f32 %v7370, %v1418
  %v7403 = vmul.f32 %v7371, %v1419
  %v7404 = vmul.f32 %v7372, %v1420
  %v7405 = vmul.f32 %v7373, %v1421
  %v7406 = vmul.f32 %v7374, %v1422
  %v7407 = vmul.f32 %v7375, %v1423
  %v7408 = vmul.f32 %v7376, %v1424
  %v7409 = vmul.f32 %v7377, %v1425
  %v7410 = vmul.f32 %v7378, %v1426
  %v7411 = vmul.f32 %v7379, %v1427
  %v7412 = vmul.f32 %v7380, %v1428
  %v7413 = vmul.f32 %v7381, %v1429
  %v7414 = vmul.f32 %v7382, %v1430
  %v7415 = vmul.f32 %v7383, %v1431
  %v7416 = vmul.f32 %v7384, %v1432
  %v7417 = vmul.f32 %v7385, %v1433
  %v7418 = vmul.f32 %v7386, %v1434
  %v7419 = vmul.f32 %v7387, %v1435
  %v7420 = vld [vmem:[#allocation6] sm:$0xff]
  %v7421 = vld [vmem:[#allocation6 + $0x8] sm:$0xff]
  %v7422 = vld [vmem:[#allocation6 + $0x10] sm:$0xff]
  %v7423 = vld [vmem:[#allocation6 + $0x18] sm:$0xff]
  %v7424 = vld [vmem:[#allocation6 + $0x20] sm:$0xff]
  %v7425 = vld [vmem:[#allocation6 + $0x28] sm:$0xff]
  %v7426 = vld [vmem:[#allocation6 + $0x30] sm:$0xff]
  %v7427 = vld [vmem:[#allocation6 + $0x38] sm:$0xff]
  %v7428 = vld [vmem:[#allocation6 + $0x40] sm:$0xff]
  %v7429 = vld [vmem:[#allocation6 + $0x48] sm:$0xff]
  %v7430 = vld [vmem:[#allocation6 + $0x50] sm:$0xff]
  %v7431 = vld [vmem:[#allocation6 + $0x58] sm:$0xff]
  %v7432 = vld [vmem:[#allocation6 + $0x60] sm:$0xff]
  %v7433 = vld [vmem:[#allocation6 + $0x68] sm:$0xff]
  %v7434 = vld [vmem:[#allocation6 + $0x70] sm:$0xff]
  %v7435 = vld [vmem:[#allocation6 + $0x78] sm:$0xff]
  %v7436 = vld [vmem:[#allocation6 + $0x80] sm:$0xff]
  %v7437 = vld [vmem:[#allocation6 + $0x88] sm:$0xff]
  %v7438 = vld [vmem:[#allocation6 + $0x90] sm:$0xff]
  %v7439 = vld [vmem:[#allocation6 + $0x98] sm:$0xff]
  %v7440 = vld [vmem:[#allocation6 + $0xa0] sm:$0xff]
  %v7441 = vld [vmem:[#allocation6 + $0xa8] sm:$0xff]
  %v7442 = vld [vmem:[#allocation6 + $0xb0] sm:$0xff]
  %v7443 = vld [vmem:[#allocation6 + $0xb8] sm:$0xff]
  %v7444 = vld [vmem:[#allocation6 + $0xc0] sm:$0xff]
  %v7445 = vld [vmem:[#allocation6 + $0xc8] sm:$0xff]
  %v7446 = vld [vmem:[#allocation6 + $0xd0] sm:$0xff]
  %v7447 = vld [vmem:[#allocation6 + $0xd8] sm:$0xff]
  %v7448 = vld [vmem:[#allocation6 + $0xe0] sm:$0xff]
  %v7449 = vld [vmem:[#allocation6 + $0xe8] sm:$0xff]
  %v7450 = vld [vmem:[#allocation6 + $0xf0] sm:$0xff]
  %v7451 = vld [vmem:[#allocation6 + $0xf8] sm:$0xff]
  %v7452 = vpack.c.bf16 %v7389, %v7388
  %v7453 = vpack.c.bf16 %v7391, %v7390
  %v7454 = vpack.c.bf16 %v7393, %v7392
  %v7455 = vpack.c.bf16 %v7395, %v7394
  %v7456 = vpack.c.bf16 %v7397, %v7396
  %v7457 = vpack.c.bf16 %v7399, %v7398
  %v7458 = vpack.c.bf16 %v7401, %v7400
  %v7459 = vpack.c.bf16 %v7403, %v7402
  %v7460 = vpack.c.bf16 %v7405, %v7404
  %v7461 = vpack.c.bf16 %v7407, %v7406
  %v7462 = vpack.c.bf16 %v7409, %v7408
  %v7463 = vpack.c.bf16 %v7411, %v7410
  %v7464 = vpack.c.bf16 %v7413, %v7412
  %v7465 = vpack.c.bf16 %v7415, %v7414
  %v7466 = vpack.c.bf16 %v7417, %v7416
  %v7467 = vpack.c.bf16 %v7419, %v7418
  %v7468 = vld [vmem:[%s2 + $0x140] sm:$0xf]
  %v7469 = vld [vmem:[%s2 + $0x144] sm:$0xf]
  %v7470 = vld [vmem:[%s2 + $0x148] sm:$0xf]
  %v7471 = vld [vmem:[%s2 + $0x14c] sm:$0xf]
  %v7472 = vld [vmem:[%s2 + $0x150] sm:$0xf]
  %v7473 = vld [vmem:[%s2 + $0x154] sm:$0xf]
  %v7474 = vld [vmem:[%s2 + $0x158] sm:$0xf]
  %v7475 = vld [vmem:[%s2 + $0x15c] sm:$0xf]
  %v7476 = vld [vmem:[%s2 + $0x160] sm:$0xf]
  %v7477 = vld [vmem:[%s2 + $0x164] sm:$0xf]
  %v7478 = vld [vmem:[%s2 + $0x168] sm:$0xf]
  %v7479 = vld [vmem:[%s2 + $0x16c] sm:$0xf]
  %v7480 = vld [vmem:[%s2 + $0x170] sm:$0xf]
  %v7481 = vld [vmem:[%s2 + $0x174] sm:$0xf]
  %v7482 = vld [vmem:[%s2 + $0x178] sm:$0xf]
  %v7483 = vld [vmem:[%s2 + $0x17c] sm:$0xf]
  %v7500 = vunpack.c.l.b16 %v7468
  %v7501 = vunpack.c.l.b16 %v7469
  %v7502 = vunpack.c.l.b16 %v7470
  %v7503 = vunpack.c.l.b16 %v7471
  %v7504 = vunpack.c.l.b16 %v7472
  %v7505 = vunpack.c.l.b16 %v7473
  %v7506 = vunpack.c.l.b16 %v7474
  %v7507 = vunpack.c.l.b16 %v7475
  %v7508 = vunpack.c.l.b16 %v7476
  %v7509 = vunpack.c.l.b16 %v7477
  %v7510 = vunpack.c.l.b16 %v7478
  %v7511 = vunpack.c.l.b16 %v7479
  %v7512 = vunpack.c.l.b16 %v7480
  %v7513 = vunpack.c.l.b16 %v7481
  %v7514 = vunpack.c.l.b16 %v7482
  %v7515 = vunpack.c.l.b16 %v7483
  %v7516 = vpack.c.b16 %v7501, %v7500
  %v7517 = vpack.c.b16 %v7503, %v7502
  %v7518 = vpack.c.b16 %v7505, %v7504
  %v7519 = vpack.c.b16 %v7507, %v7506
  %v7520 = vpack.c.b16 %v7509, %v7508
  %v7521 = vpack.c.b16 %v7511, %v7510
  %v7522 = vpack.c.b16 %v7513, %v7512
  %v7523 = vpack.c.b16 %v7515, %v7514
  %7532 = vmatprep.subr.bf16.mxu0 0
  %7533 = vmatpush1.bf16.msra.mxu0 %v7516
  %7534 = vmatprep.subr.bf16.mxu0 0
  %7535 = vmatpush1.bf16.msra.mxu0 %v7517
  %7536 = vmatprep.subr.bf16.mxu0 0
  %7537 = vmatpush1.bf16.msra.mxu0 %v7518
  %7538 = vmatprep.subr.bf16.mxu0 0
  %7539 = vmatpush1.bf16.msra.mxu0 %v7519
  %7540 = vmatprep.subr.bf16.mxu0 0
  %7541 = vmatpush1.bf16.msra.mxu0 %v7520
  %7542 = vmatprep.subr.bf16.mxu0 0
  %7543 = vmatpush1.bf16.msra.mxu0 %v7521
  %7544 = vmatprep.subr.bf16.mxu0 0
  %7545 = vmatpush1.bf16.msra.mxu0 %v7522
  %7546 = vmatprep.subr.bf16.mxu0 0
  %7547 = vmatpush1.bf16.msra.mxu0 %v7523
  %7548 = vmatprep.subr.bf16.mxu0 0
  %7549 = vmatpush1.bf16.msra.mxu0 0
  %7550 = vmatprep.subr.bf16.mxu0 0
  %7551 = vmatpush1.bf16.msra.mxu0 0
  %7552 = vmatprep.subr.bf16.mxu0 0
  %7553 = vmatpush1.bf16.msra.mxu0 0
  %7554 = vmatprep.subr.bf16.mxu0 0
  %7555 = vmatpush1.bf16.msra.mxu0 0
  %7556 = vmatprep.subr.bf16.mxu0 0
  %7557 = vmatpush1.bf16.msra.mxu0 0
  %7558 = vmatprep.subr.bf16.mxu0 0
  %7559 = vmatpush1.bf16.msra.mxu0 0
  %7560 = vmatprep.subr.bf16.mxu0 0
  %7561 = vmatpush1.bf16.msra.mxu0 0
  %7562 = vmatprep.subr.bf16.mxu0 0
  %7563 = vmatpush1.bf16.msra.mxu0 0
  %7564 = vmatprep.mubr.bf16.mxu0 0
  %7565 = vmatmul.mubr.bf16.gmra.mrb[0].mxu0 %v7452
  %v7566 = vpop.f32.mrb[0].mxu0
  %v7567 = vadd.f32 0.0, %v7566
  %v7568 = vpop.f32.mrb[0].mxu0
  %v7569 = vpop.f32.mrb[0].mxu0
  %v7570 = vadd.f32 0.0, %v7569
  %v7571 = vpop.f32.mrb[0].mxu0
  %7572 = vmatprep.mubr.bf16.mxu0 0
  %7573 = vmatmul.mubr.bf16.gmra.mrb[0].mxu0 %v7453
  %v7574 = vpop.f32.mrb[0].mxu0
  %v7575 = vadd.f32 0.0, %v7574
  %v7576 = vpop.f32.mrb[0].mxu0
  %v7577 = vpop.f32.mrb[0].mxu0
  %v7578 = vadd.f32 0.0, %v7577
  %v7579 = vpop.f32.mrb[0].mxu0
  %7580 = vmatprep.mubr.bf16.mxu0 0
  %7581 = vmatmul.mubr.bf16.gmra.mrb[0].mxu0 %v7454
  %v7582 = vpop.f32.mrb[0].mxu0
  %v7583 = vadd.f32 0.0, %v7582
  %v7584 = vpop.f32.mrb[0].mxu0
  %v7585 = vpop.f32.mrb[0].mxu0
  %v7586 = vadd.f32 0.0, %v7585
  %v7587 = vpop.f32.mrb[0].mxu0
  %7588 = vmatprep.mubr.bf16.mxu0 0
  %7589 = vmatmul.mubr.bf16.gmra.mrb[0].mxu0 %v7455
  %v7590 = vpop.f32.mrb[0].mxu0
  %v7591 = vadd.f32 0.0, %v7590
  %v7592 = vpop.f32.mrb[0].mxu0
  %v7593 = vpop.f32.mrb[0].mxu0
  %v7594 = vadd.f32 0.0, %v7593
  %v7595 = vpop.f32.mrb[0].mxu0
  %7596 = vmatprep.mubr.bf16.mxu0 0
  %7597 = vmatmul.mubr.bf16.gmra.mrb[0].mxu0 %v7456
  %v7598 = vpop.f32.mrb[0].mxu0
  %v7599 = vadd.f32 0.0, %v7598
  %v7600 = vpop.f32.mrb[0].mxu0
  %v7601 = vpop.f32.mrb[0].mxu0
  %v7602 = vadd.f32 0.0, %v7601
  %v7603 = vpop.f32.mrb[0].mxu0
  %7604 = vmatprep.mubr.bf16.mxu0 0
  %7605 = vmatmul.mubr.bf16.gmra.mrb[0].mxu0 %v7457
  %v7606 = vpop.f32.mrb[0].mxu0
  %v7607 = vadd.f32 0.0, %v7606
  %v7608 = vpop.f32.mrb[0].mxu0
  %v7609 = vpop.f32.mrb[0].mxu0
  %v7610 = vadd.f32 0.0, %v7609
  %v7611 = vpop.f32.mrb[0].mxu0
  %7612 = vmatprep.mubr.bf16.mxu0 0
  %7613 = vmatmul.mubr.bf16.gmra.mrb[0].mxu0 %v7458
  %v7614 = vpop.f32.mrb[0].mxu0
  %v7615 = vadd.f32 0.0, %v7614
  %v7616 = vpop.f32.mrb[0].mxu0
  %v7617 = vpop.f32.mrb[0].mxu0
  %v7618 = vadd.f32 0.0, %v7617
  %v7619 = vpop.f32.mrb[0].mxu0
  %7620 = vmatprep.mubr.bf16.mxu0 0
  %7621 = vmatmul.mubr.bf16.gmra.mrb[0].mxu0 %v7459
  %v7622 = vpop.f32.mrb[0].mxu0
  %v7623 = vadd.f32 0.0, %v7622
  %v7624 = vpop.f32.mrb[0].mxu0
  %v7625 = vpop.f32.mrb[0].mxu0
  %v7626 = vadd.f32 0.0, %v7625
  %v7627 = vpop.f32.mrb[0].mxu0
  %7628 = vmatprep.mubr.bf16.mxu0 0
  %7629 = vmatmul.mubr.bf16.gmra.mrb[0].mxu0 %v7460
  %v7630 = vpop.f32.mrb[0].mxu0
  %v7631 = vadd.f32 0.0, %v7630
  %v7632 = vpop.f32.mrb[0].mxu0
  %v7633 = vpop.f32.mrb[0].mxu0
  %v7634 = vadd.f32 0.0, %v7633
  %v7635 = vpop.f32.mrb[0].mxu0
  %7636 = vmatprep.mubr.bf16.mxu0 0
  %7637 = vmatmul.mubr.bf16.gmra.mrb[0].mxu0 %v7461
  %v7638 = vpop.f32.mrb[0].mxu0
  %v7639 = vadd.f32 0.0, %v7638
  %v7640 = vpop.f32.mrb[0].mxu0
  %v7641 = vpop.f32.mrb[0].mxu0
  %v7642 = vadd.f32 0.0, %v7641
  %v7643 = vpop.f32.mrb[0].mxu0
  %7644 = vmatprep.mubr.bf16.mxu0 0
  %7645 = vmatmul.mubr.bf16.gmra.mrb[0].mxu0 %v7462
  %v7646 = vpop.f32.mrb[0].mxu0
  %v7647 = vadd.f32 0.0, %v7646
  %v7648 = vpop.f32.mrb[0].mxu0
  %v7649 = vpop.f32.mrb[0].mxu0
  %v7650 = vadd.f32 0.0, %v7649
  %v7651 = vpop.f32.mrb[0].mxu0
  %7652 = vmatprep.mubr.bf16.mxu0 0
  %7653 = vmatmul.mubr.bf16.gmra.mrb[0].mxu0 %v7463
  %v7654 = vpop.f32.mrb[0].mxu0
  %v7655 = vadd.f32 0.0, %v7654
  %v7656 = vpop.f32.mrb[0].mxu0
  %v7657 = vpop.f32.mrb[0].mxu0
  %v7658 = vadd.f32 0.0, %v7657
  %v7659 = vpop.f32.mrb[0].mxu0
  %7660 = vmatprep.mubr.bf16.mxu0 0
  %7661 = vmatmul.mubr.bf16.gmra.mrb[0].mxu0 %v7464
  %v7662 = vpop.f32.mrb[0].mxu0
  %v7663 = vadd.f32 0.0, %v7662
  %v7664 = vpop.f32.mrb[0].mxu0
  %v7665 = vpop.f32.mrb[0].mxu0
  %v7666 = vadd.f32 0.0, %v7665
  %v7667 = vpop.f32.mrb[0].mxu0
  %7668 = vmatprep.mubr.bf16.mxu0 0
  %7669 = vmatmul.mubr.bf16.gmra.mrb[0].mxu0 %v7465
  %v7670 = vpop.f32.mrb[0].mxu0
  %v7671 = vadd.f32 0.0, %v7670
  %v7672 = vpop.f32.mrb[0].mxu0
  %v7673 = vpop.f32.mrb[0].mxu0
  %v7674 = vadd.f32 0.0, %v7673
  %v7675 = vpop.f32.mrb[0].mxu0
  %7676 = vmatprep.mubr.bf16.mxu0 0
  %7677 = vmatmul.mubr.bf16.gmra.mrb[0].mxu0 %v7466
  %v7678 = vpop.f32.mrb[0].mxu0
  %v7679 = vadd.f32 0.0, %v7678
  %v7680 = vpop.f32.mrb[0].mxu0
  %v7681 = vpop.f32.mrb[0].mxu0
  %v7682 = vadd.f32 0.0, %v7681
  %v7683 = vpop.f32.mrb[0].mxu0
  %7684 = vmatprep.mubr.bf16.mxu0 0
  %7685 = vmatmul.mubr.bf16.gmra.mrb[0].mxu0 %v7467
  %v7686 = vpop.f32.mrb[0].mxu0
  %v7687 = vadd.f32 0.0, %v7686
  %v7688 = vpop.f32.mrb[0].mxu0
  %v7689 = vpop.f32.mrb[0].mxu0
  %v7690 = vadd.f32 0.0, %v7689
  %v7691 = vpop.f32.mrb[0].mxu0
  %7692 = vdwg.mxu0
  %v7693 = vadd.f32 %v7420, %v7567
  %v7694 = vadd.f32 %v7421, %v7570
  %v7695 = vadd.f32 %v7422, %v7575
  %v7696 = vadd.f32 %v7423, %v7578
  %v7697 = vadd.f32 %v7424, %v7583
  %v7698 = vadd.f32 %v7425, %v7586
  %v7699 = vadd.f32 %v7426, %v7591
  %v7700 = vadd.f32 %v7427, %v7594
  %v7701 = vadd.f32 %v7428, %v7599
  %v7702 = vadd.f32 %v7429, %v7602
  %v7703 = vadd.f32 %v7430, %v7607
  %v7704 = vadd.f32 %v7431, %v7610
  %v7705 = vadd.f32 %v7432, %v7615
  %v7706 = vadd.f32 %v7433, %v7618
  %v7707 = vadd.f32 %v7434, %v7623
  %v7708 = vadd.f32 %v7435, %v7626
  %v7709 = vadd.f32 %v7436, %v7631
  %v7710 = vadd.f32 %v7437, %v7634
  %v7711 = vadd.f32 %v7438, %v7639
  %v7712 = vadd.f32 %v7439, %v7642
  %v7713 = vadd.f32 %v7440, %v7647
  %v7714 = vadd.f32 %v7441, %v7650
  %v7715 = vadd.f32 %v7442, %v7655
  %v7716 = vadd.f32 %v7443, %v7658
  %v7717 = vadd.f32 %v7444, %v7663
  %v7718 = vadd.f32 %v7445, %v7666
  %v7719 = vadd.f32 %v7446, %v7671
  %v7720 = vadd.f32 %v7447, %v7674
  %v7721 = vadd.f32 %v7448, %v7679
  %v7722 = vadd.f32 %v7449, %v7682
  %v7723 = vadd.f32 %v7450, %v7687
  %v7724 = vadd.f32 %v7451, %v7690
  %7725 = vst [vmem:[#allocation6] sm:$0xff] %v7693
  %7726 = vst [vmem:[#allocation6 + $0x8] sm:$0xff] %v7694
  %7727 = vst [vmem:[#allocation6 + $0x10] sm:$0xff] %v7695
  %7728 = vst [vmem:[#allocation6 + $0x18] sm:$0xff] %v7696
  %7729 = vst [vmem:[#allocation6 + $0x20] sm:$0xff] %v7697
  %7730 = vst [vmem:[#allocation6 + $0x28] sm:$0xff] %v7698
  %7731 = vst [vmem:[#allocation6 + $0x30] sm:$0xff] %v7699
  %7732 = vst [vmem:[#allocation6 + $0x38] sm:$0xff] %v7700
  %7733 = vst [vmem:[#allocation6 + $0x40] sm:$0xff] %v7701
  %7734 = vst [vmem:[#allocation6 + $0x48] sm:$0xff] %v7702
  %7735 = vst [vmem:[#allocation6 + $0x50] sm:$0xff] %v7703
  %7736 = vst [vmem:[#allocation6 + $0x58] sm:$0xff] %v7704
  %7737 = vst [vmem:[#allocation6 + $0x60] sm:$0xff] %v7705
  %7738 = vst [vmem:[#allocation6 + $0x68] sm:$0xff] %v7706
  %7739 = vst [vmem:[#allocation6 + $0x70] sm:$0xff] %v7707
  %7740 = vst [vmem:[#allocation6 + $0x78] sm:$0xff] %v7708
  %7741 = vst [vmem:[#allocation6 + $0x80] sm:$0xff] %v7709
  %7742 = vst [vmem:[#allocation6 + $0x88] sm:$0xff] %v7710
  %7743 = vst [vmem:[#allocation6 + $0x90] sm:$0xff] %v7711
  %7744 = vst [vmem:[#allocation6 + $0x98] sm:$0xff] %v7712
  %7745 = vst [vmem:[#allocation6 + $0xa0] sm:$0xff] %v7713
  %7746 = vst [vmem:[#allocation6 + $0xa8] sm:$0xff] %v7714
  %7747 = vst [vmem:[#allocation6 + $0xb0] sm:$0xff] %v7715
  %7748 = vst [vmem:[#allocation6 + $0xb8] sm:$0xff] %v7716
  %7749 = vst [vmem:[#allocation6 + $0xc0] sm:$0xff] %v7717
  %7750 = vst [vmem:[#allocation6 + $0xc8] sm:$0xff] %v7718
  %7751 = vst [vmem:[#allocation6 + $0xd0] sm:$0xff] %v7719
  %7752 = vst [vmem:[#allocation6 + $0xd8] sm:$0xff] %v7720
  %7753 = vst [vmem:[#allocation6 + $0xe0] sm:$0xff] %v7721
  %7754 = vst [vmem:[#allocation6 + $0xe8] sm:$0xff] %v7722
  %7755 = vst [vmem:[#allocation6 + $0xf0] sm:$0xff] %v7723
  %7756 = vst [vmem:[#allocation6 + $0xf8] sm:$0xff] %v7724
  %v7757 = vld [vmem:[#allocation5 + $0x27] sm:$0xff]
  %v7758 = vld [vmem:[#allocation5 + $0x2f] sm:$0xff]
  %v7759 = vld [vmem:[#allocation5 + $0x37] sm:$0xff]
  %v7760 = vld [vmem:[#allocation5 + $0x3f] sm:$0xff]
  %v7761 = vld [vmem:[#allocation5 + $0x47] sm:$0xff]
  %v7762 = vld [vmem:[#allocation5 + $0x4f] sm:$0xff]
  %v7763 = vld [vmem:[#allocation5 + $0x57] sm:$0xff]
  %v7764 = vld [vmem:[#allocation5 + $0x5f] sm:$0xff]
  %v7765 = vld [vmem:[#allocation5 + $0x67] sm:$0xff]
  %v7766 = vld [vmem:[#allocation5 + $0x6f] sm:$0xff]
  %v7767 = vld [vmem:[#allocation5 + $0x77] sm:$0xff]
  %v7768 = vld [vmem:[#allocation5 + $0x7f] sm:$0xff]
  %v7769 = vld [vmem:[#allocation5 + $0x87] sm:$0xff]
  %v7770 = vld [vmem:[#allocation5 + $0x8f] sm:$0xff]
  %v7771 = vld [vmem:[#allocation5 + $0x97] sm:$0xff]
  %v7772 = vld [vmem:[#allocation5 + $0x9f] sm:$0xff]
  %v7773 = vld [vmem:[#allocation5 + $0xa7] sm:$0xff]
  %v7774 = vld [vmem:[#allocation5 + $0xaf] sm:$0xff]
  %v7775 = vld [vmem:[#allocation5 + $0xb7] sm:$0xff]
  %v7776 = vld [vmem:[#allocation5 + $0xbf] sm:$0xff]
  %v7777 = vld [vmem:[#allocation5 + $0xc7] sm:$0xff]
  %v7778 = vld [vmem:[#allocation5 + $0xcf] sm:$0xff]
  %v7779 = vld [vmem:[#allocation5 + $0xd7] sm:$0xff]
  %v7780 = vld [vmem:[#allocation5 + $0xdf] sm:$0xff]
  %v7781 = vld [vmem:[#allocation5 + $0xe7] sm:$0xff]
  %v7782 = vld [vmem:[#allocation5 + $0xef] sm:$0xff]
  %v7783 = vld [vmem:[#allocation5 + $0xf7] sm:$0xff]
  %v7784 = vld [vmem:[#allocation5 + $0xff] sm:$0xff]
  %v7785 = vld [vmem:[#allocation5 + $0x107] sm:$0xff]
  %v7786 = vld [vmem:[#allocation5 + $0x10f] sm:$0xff]
  %v7787 = vld [vmem:[#allocation5 + $0x117] sm:$0xff]
  %v7788 = vld [vmem:[#allocation5 + $0x11f] sm:$0xff]
  %v7789 = vmul.f32 %v7757, %v1308
  %v7790 = vmul.f32 %v7758, %v1309
  %v7791 = vmul.f32 %v7759, %v1310
  %v7792 = vmul.f32 %v7760, %v1311
  %v7793 = vmul.f32 %v7761, %v1312
  %v7794 = vmul.f32 %v7762, %v1313
  %v7795 = vmul.f32 %v7763, %v1314
  %v7796 = vmul.f32 %v7764, %v1315
  %v7797 = vmul.f32 %v7765, %v1316
  %v7798 = vmul.f32 %v7766, %v1317
  %v7799 = vmul.f32 %v7767, %v1318
  %v7800 = vmul.f32 %v7768, %v1319
  %v7801 = vmul.f32 %v7769, %v1320
  %v7802 = vmul.f32 %v7770, %v1321
  %v7803 = vmul.f32 %v7771, %v1322
  %v7804 = vmul.f32 %v7772, %v1323
  %v7805 = vmul.f32 %v7773, %v1324
  %v7806 = vmul.f32 %v7774, %v1325
  %v7807 = vmul.f32 %v7775, %v1326
  %v7808 = vmul.f32 %v7776, %v1327
  %v7809 = vmul.f32 %v7777, %v1328
  %v7810 = vmul.f32 %v7778, %v1329
  %v7811 = vmul.f32 %v7779, %v1330
  %v7812 = vmul.f32 %v7780, %v1331
  %v7813 = vmul.f32 %v7781, %v1332
  %v7814 = vmul.f32 %v7782, %v1333
  %v7815 = vmul.f32 %v7783, %v1334
  %v7816 = vmul.f32 %v7784, %v1335
  %v7817 = vmul.f32 %v7785, %v1336
  %v7818 = vmul.f32 %v7786, %v1337
  %v7819 = vmul.f32 %v7787, %v1338
  %v7820 = vmul.f32 %v7788, %v1339
  %v7821 = vld [vmem:[#allocation6] sm:$0xff]
  %v7822 = vld [vmem:[#allocation6 + $0x8] sm:$0xff]
  %v7823 = vld [vmem:[#allocation6 + $0x10] sm:$0xff]
  %v7824 = vld [vmem:[#allocation6 + $0x18] sm:$0xff]
  %v7825 = vld [vmem:[#allocation6 + $0x20] sm:$0xff]
  %v7826 = vld [vmem:[#allocation6 + $0x28] sm:$0xff]
  %v7827 = vld [vmem:[#allocation6 + $0x30] sm:$0xff]
  %v7828 = vld [vmem:[#allocation6 + $0x38] sm:$0xff]
  %v7829 = vld [vmem:[#allocation6 + $0x40] sm:$0xff]
  %v7830 = vld [vmem:[#allocation6 + $0x48] sm:$0xff]
  %v7831 = vld [vmem:[#allocation6 + $0x50] sm:$0xff]
  %v7832 = vld [vmem:[#allocation6 + $0x58] sm:$0xff]
  %v7833 = vld [vmem:[#allocation6 + $0x60] sm:$0xff]
  %v7834 = vld [vmem:[#allocation6 + $0x68] sm:$0xff]
  %v7835 = vld [vmem:[#allocation6 + $0x70] sm:$0xff]
  %v7836 = vld [vmem:[#allocation6 + $0x78] sm:$0xff]
  %v7837 = vld [vmem:[#allocation6 + $0x80] sm:$0xff]
  %v7838 = vld [vmem:[#allocation6 + $0x88] sm:$0xff]
  %v7839 = vld [vmem:[#allocation6 + $0x90] sm:$0xff]
  %v7840 = vld [vmem:[#allocation6 + $0x98] sm:$0xff]
  %v7841 = vld [vmem:[#allocation6 + $0xa0] sm:$0xff]
  %v7842 = vld [vmem:[#allocation6 + $0xa8] sm:$0xff]
  %v7843 = vld [vmem:[#allocation6 + $0xb0] sm:$0xff]
  %v7844 = vld [vmem:[#allocation6 + $0xb8] sm:$0xff]
  %v7845 = vld [vmem:[#allocation6 + $0xc0] sm:$0xff]
  %v7846 = vld [vmem:[#allocation6 + $0xc8] sm:$0xff]
  %v7847 = vld [vmem:[#allocation6 + $0xd0] sm:$0xff]
  %v7848 = vld [vmem:[#allocation6 + $0xd8] sm:$0xff]
  %v7849 = vld [vmem:[#allocation6 + $0xe0] sm:$0xff]
  %v7850 = vld [vmem:[#allocation6 + $0xe8] sm:$0xff]
  %v7851 = vld [vmem:[#allocation6 + $0xf0] sm:$0xff]
  %v7852 = vld [vmem:[#allocation6 + $0xf8] sm:$0xff]
  %v7853 = vpack.c.bf16 %v7790, %v7789
  %v7854 = vpack.c.bf16 %v7792, %v7791
  %v7855 = vpack.c.bf16 %v7794, %v7793
  %v7856 = vpack.c.bf16 %v7796, %v7795
  %v7857 = vpack.c.bf16 %v7798, %v7797
  %v7858 = vpack.c.bf16 %v7800, %v7799
  %v7859 = vpack.c.bf16 %v7802, %v7801
  %v7860 = vpack.c.bf16 %v7804, %v7803
  %v7861 = vpack.c.bf16 %v7806, %v7805
  %v7862 = vpack.c.bf16 %v7808, %v7807
  %v7863 = vpack.c.bf16 %v7810, %v7809
  %v7864 = vpack.c.bf16 %v7812, %v7811
  %v7865 = vpack.c.bf16 %v7814, %v7813
  %v7866 = vpack.c.bf16 %v7816, %v7815
  %v7867 = vpack.c.bf16 %v7818, %v7817
  %v7868 = vpack.c.bf16 %v7820, %v7819
  %v7869 = vld [vmem:[%s2 + $0x180] sm:$0xf]
  %v7870 = vld [vmem:[%s2 + $0x184] sm:$0xf]
  %v7871 = vld [vmem:[%s2 + $0x188] sm:$0xf]
  %v7872 = vld [vmem:[%s2 + $0x18c] sm:$0xf]
  %v7873 = vld [vmem:[%s2 + $0x190] sm:$0xf]
  %v7874 = vld [vmem:[%s2 + $0x194] sm:$0xf]
  %v7875 = vld [vmem:[%s2 + $0x198] sm:$0xf]
  %v7876 = vld [vmem:[%s2 + $0x19c] sm:$0xf]
  %v7877 = vld [vmem:[%s2 + $0x1a0] sm:$0xf]
  %v7878 = vld [vmem:[%s2 + $0x1a4] sm:$0xf]
  %v7879 = vld [vmem:[%s2 + $0x1a8] sm:$0xf]
  %v7880 = vld [vmem:[%s2 + $0x1ac] sm:$0xf]
  %v7881 = vld [vmem:[%s2 + $0x1b0] sm:$0xf]
  %v7882 = vld [vmem:[%s2 + $0x1b4] sm:$0xf]
  %v7883 = vld [vmem:[%s2 + $0x1b8] sm:$0xf]
  %v7884 = vld [vmem:[%s2 + $0x1bc] sm:$0xf]
  %v7901 = vunpack.c.l.b16 %v7869
  %v7902 = vunpack.c.l.b16 %v7870
  %v7903 = vunpack.c.l.b16 %v7871
  %v7904 = vunpack.c.l.b16 %v7872
  %v7905 = vunpack.c.l.b16 %v7873
  %v7906 = vunpack.c.l.b16 %v7874
  %v7907 = vunpack.c.l.b16 %v7875
  %v7908 = vunpack.c.l.b16 %v7876
  %v7909 = vunpack.c.l.b16 %v7877
  %v7910 = vunpack.c.l.b16 %v7878
  %v7911 = vunpack.c.l.b16 %v7879
  %v7912 = vunpack.c.l.b16 %v7880
  %v7913 = vunpack.c.l.b16 %v7881
  %v7914 = vunpack.c.l.b16 %v7882
  %v7915 = vunpack.c.l.b16 %v7883
  %v7916 = vunpack.c.l.b16 %v7884
  %v7917 = vpack.c.b16 %v7902, %v7901
  %v7918 = vpack.c.b16 %v7904, %v7903
  %v7919 = vpack.c.b16 %v7906, %v7905
  %v7920 = vpack.c.b16 %v7908, %v7907
  %v7921 = vpack.c.b16 %v7910, %v7909
  %v7922 = vpack.c.b16 %v7912, %v7911
  %v7923 = vpack.c.b16 %v7914, %v7913
  %v7924 = vpack.c.b16 %v7916, %v7915
  %7933 = vmatprep.subr.bf16.mxu0 0
  %7934 = vmatpush1.bf16.msra.mxu0 %v7917
  %7935 = vmatprep.subr.bf16.mxu0 0
  %7936 = vmatpush1.bf16.msra.mxu0 %v7918
  %7937 = vmatprep.subr.bf16.mxu0 0
  %7938 = vmatpush1.bf16.msra.mxu0 %v7919
  %7939 = vmatprep.subr.bf16.mxu0 0
  %7940 = vmatpush1.bf16.msra.mxu0 %v7920
  %7941 = vmatprep.subr.bf16.mxu0 0
  %7942 = vmatpush1.bf16.msra.mxu0 %v7921
  %7943 = vmatprep.subr.bf16.mxu0 0
  %7944 = vmatpush1.bf16.msra.mxu0 %v7922
  %7945 = vmatprep.subr.bf16.mxu0 0
  %7946 = vmatpush1.bf16.msra.mxu0 %v7923
  %7947 = vmatprep.subr.bf16.mxu0 0
  %7948 = vmatpush1.bf16.msra.mxu0 %v7924
  %7949 = vmatprep.subr.bf16.mxu0 0
  %7950 = vmatpush1.bf16.msra.mxu0 0
  %7951 = vmatprep.subr.bf16.mxu0 0
  %7952 = vmatpush1.bf16.msra.mxu0 0
  %7953 = vmatprep.subr.bf16.mxu0 0
  %7954 = vmatpush1.bf16.msra.mxu0 0
  %7955 = vmatprep.subr.bf16.mxu0 0
  %7956 = vmatpush1.bf16.msra.mxu0 0
  %7957 = vmatprep.subr.bf16.mxu0 0
  %7958 = vmatpush1.bf16.msra.mxu0 0
  %7959 = vmatprep.subr.bf16.mxu0 0
  %7960 = vmatpush1.bf16.msra.mxu0 0
  %7961 = vmatprep.subr.bf16.mxu0 0
  %7962 = vmatpush1.bf16.msra.mxu0 0
  %7963 = vmatprep.subr.bf16.mxu0 0
  %7964 = vmatpush1.bf16.msra.mxu0 0
  %7965 = vmatprep.mubr.bf16.mxu0 0
  %7966 = vmatmul.mubr.bf16.gmra.mrb[0].mxu0 %v7853
  %v7967 = vpop.f32.mrb[0].mxu0
  %v7968 = vadd.f32 0.0, %v7967
  %v7969 = vpop.f32.mrb[0].mxu0
  %v7970 = vpop.f32.mrb[0].mxu0
  %v7971 = vadd.f32 0.0, %v7970
  %v7972 = vpop.f32.mrb[0].mxu0
  %7973 = vmatprep.mubr.bf16.mxu0 0
  %7974 = vmatmul.mubr.bf16.gmra.mrb[0].mxu0 %v7854
  %v7975 = vpop.f32.mrb[0].mxu0
  %v7976 = vadd.f32 0.0, %v7975
  %v7977 = vpop.f32.mrb[0].mxu0
  %v7978 = vpop.f32.mrb[0].mxu0
  %v7979 = vadd.f32 0.0, %v7978
  %v7980 = vpop.f32.mrb[0].mxu0
  %7981 = vmatprep.mubr.bf16.mxu0 0
  %7982 = vmatmul.mubr.bf16.gmra.mrb[0].mxu0 %v7855
  %v7983 = vpop.f32.mrb[0].mxu0
  %v7984 = vadd.f32 0.0, %v7983
  %v7985 = vpop.f32.mrb[0].mxu0
  %v7986 = vpop.f32.mrb[0].mxu0
  %v7987 = vadd.f32 0.0, %v7986
  %v7988 = vpop.f32.mrb[0].mxu0
  %7989 = vmatprep.mubr.bf16.mxu0 0
  %7990 = vmatmul.mubr.bf16.gmra.mrb[0].mxu0 %v7856
  %v7991 = vpop.f32.mrb[0].mxu0
  %v7992 = vadd.f32 0.0, %v7991
  %v7993 = vpop.f32.mrb[0].mxu0
  %v7994 = vpop.f32.mrb[0].mxu0
  %v7995 = vadd.f32 0.0, %v7994
  %v7996 = vpop.f32.mrb[0].mxu0
  %7997 = vmatprep.mubr.bf16.mxu0 0
  %7998 = vmatmul.mubr.bf16.gmra.mrb[0].mxu0 %v7857
  %v7999 = vpop.f32.mrb[0].mxu0
  %v8000 = vadd.f32 0.0, %v7999
  %v8001 = vpop.f32.mrb[0].mxu0
  %v8002 = vpop.f32.mrb[0].mxu0
  %v8003 = vadd.f32 0.0, %v8002
  %v8004 = vpop.f32.mrb[0].mxu0
  %8005 = vmatprep.mubr.bf16.mxu0 0
  %8006 = vmatmul.mubr.bf16.gmra.mrb[0].mxu0 %v7858
  %v8007 = vpop.f32.mrb[0].mxu0
  %v8008 = vadd.f32 0.0, %v8007
  %v8009 = vpop.f32.mrb[0].mxu0
  %v8010 = vpop.f32.mrb[0].mxu0
  %v8011 = vadd.f32 0.0, %v8010
  %v8012 = vpop.f32.mrb[0].mxu0
  %8013 = vmatprep.mubr.bf16.mxu0 0
  %8014 = vmatmul.mubr.bf16.gmra.mrb[0].mxu0 %v7859
  %v8015 = vpop.f32.mrb[0].mxu0
  %v8016 = vadd.f32 0.0, %v8015
  %v8017 = vpop.f32.mrb[0].mxu0
  %v8018 = vpop.f32.mrb[0].mxu0
  %v8019 = vadd.f32 0.0, %v8018
  %v8020 = vpop.f32.mrb[0].mxu0
  %8021 = vmatprep.mubr.bf16.mxu0 0
  %8022 = vmatmul.mubr.bf16.gmra.mrb[0].mxu0 %v7860
  %v8023 = vpop.f32.mrb[0].mxu0
  %v8024 = vadd.f32 0.0, %v8023
  %v8025 = vpop.f32.mrb[0].mxu0
  %v8026 = vpop.f32.mrb[0].mxu0
  %v8027 = vadd.f32 0.0, %v8026
  %v8028 = vpop.f32.mrb[0].mxu0
  %8029 = vmatprep.mubr.bf16.mxu0 0
  %8030 = vmatmul.mubr.bf16.gmra.mrb[0].mxu0 %v7861
  %v8031 = vpop.f32.mrb[0].mxu0
  %v8032 = vadd.f32 0.0, %v8031
  %v8033 = vpop.f32.mrb[0].mxu0
  %v8034 = vpop.f32.mrb[0].mxu0
  %v8035 = vadd.f32 0.0, %v8034
  %v8036 = vpop.f32.mrb[0].mxu0
  %8037 = vmatprep.mubr.bf16.mxu0 0
  %8038 = vmatmul.mubr.bf16.gmra.mrb[0].mxu0 %v7862
  %v8039 = vpop.f32.mrb[0].mxu0
  %v8040 = vadd.f32 0.0, %v8039
  %v8041 = vpop.f32.mrb[0].mxu0
  %v8042 = vpop.f32.mrb[0].mxu0
  %v8043 = vadd.f32 0.0, %v8042
  %v8044 = vpop.f32.mrb[0].mxu0
  %8045 = vmatprep.mubr.bf16.mxu0 0
  %8046 = vmatmul.mubr.bf16.gmra.mrb[0].mxu0 %v7863
  %v8047 = vpop.f32.mrb[0].mxu0
  %v8048 = vadd.f32 0.0, %v8047
  %v8049 = vpop.f32.mrb[0].mxu0
  %v8050 = vpop.f32.mrb[0].mxu0
  %v8051 = vadd.f32 0.0, %v8050
  %v8052 = vpop.f32.mrb[0].mxu0
  %8053 = vmatprep.mubr.bf16.mxu0 0
  %8054 = vmatmul.mubr.bf16.gmra.mrb[0].mxu0 %v7864
  %v8055 = vpop.f32.mrb[0].mxu0
  %v8056 = vadd.f32 0.0, %v8055
  %v8057 = vpop.f32.mrb[0].mxu0
  %v8058 = vpop.f32.mrb[0].mxu0
  %v8059 = vadd.f32 0.0, %v8058
  %v8060 = vpop.f32.mrb[0].mxu0
  %8061 = vmatprep.mubr.bf16.mxu0 0
  %8062 = vmatmul.mubr.bf16.gmra.mrb[0].mxu0 %v7865
  %v8063 = vpop.f32.mrb[0].mxu0
  %v8064 = vadd.f32 0.0, %v8063
  %v8065 = vpop.f32.mrb[0].mxu0
  %v8066 = vpop.f32.mrb[0].mxu0
  %v8067 = vadd.f32 0.0, %v8066
  %v8068 = vpop.f32.mrb[0].mxu0
  %8069 = vmatprep.mubr.bf16.mxu0 0
  %8070 = vmatmul.mubr.bf16.gmra.mrb[0].mxu0 %v7866
  %v8071 = vpop.f32.mrb[0].mxu0
  %v8072 = vadd.f32 0.0, %v8071
  %v8073 = vpop.f32.mrb[0].mxu0
  %v8074 = vpop.f32.mrb[0].mxu0
  %v8075 = vadd.f32 0.0, %v8074
  %v8076 = vpop.f32.mrb[0].mxu0
  %8077 = vmatprep.mubr.bf16.mxu0 0
  %8078 = vmatmul.mubr.bf16.gmra.mrb[0].mxu0 %v7867
  %v8079 = vpop.f32.mrb[0].mxu0
  %v8080 = vadd.f32 0.0, %v8079
  %v8081 = vpop.f32.mrb[0].mxu0
  %v8082 = vpop.f32.mrb[0].mxu0
  %v8083 = vadd.f32 0.0, %v8082
  %v8084 = vpop.f32.mrb[0].mxu0
  %8085 = vmatprep.mubr.bf16.mxu0 0
  %8086 = vmatmul.mubr.bf16.gmra.mrb[0].mxu0 %v7868
  %v8087 = vpop.f32.mrb[0].mxu0
  %v8088 = vadd.f32 0.0, %v8087
  %v8089 = vpop.f32.mrb[0].mxu0
  %v8090 = vpop.f32.mrb[0].mxu0
  %v8091 = vadd.f32 0.0, %v8090
  %v8092 = vpop.f32.mrb[0].mxu0
  %8093 = vdwg.mxu0
  %v8094 = vadd.f32 %v7821, %v7968
  %v8095 = vadd.f32 %v7822, %v7971
  %v8096 = vadd.f32 %v7823, %v7976
  %v8097 = vadd.f32 %v7824, %v7979
  %v8098 = vadd.f32 %v7825, %v7984
  %v8099 = vadd.f32 %v7826, %v7987
  %v8100 = vadd.f32 %v7827, %v7992
  %v8101 = vadd.f32 %v7828, %v7995
  %v8102 = vadd.f32 %v7829, %v8000
  %v8103 = vadd.f32 %v7830, %v8003
  %v8104 = vadd.f32 %v7831, %v8008
  %v8105 = vadd.f32 %v7832, %v8011
  %v8106 = vadd.f32 %v7833, %v8016
  %v8107 = vadd.f32 %v7834, %v8019
  %v8108 = vadd.f32 %v7835, %v8024
  %v8109 = vadd.f32 %v7836, %v8027
  %v8110 = vadd.f32 %v7837, %v8032
  %v8111 = vadd.f32 %v7838, %v8035
  %v8112 = vadd.f32 %v7839, %v8040
  %v8113 = vadd.f32 %v7840, %v8043
  %v8114 = vadd.f32 %v7841, %v8048
  %v8115 = vadd.f32 %v7842, %v8051
  %v8116 = vadd.f32 %v7843, %v8056
  %v8117 = vadd.f32 %v7844, %v8059
  %v8118 = vadd.f32 %v7845, %v8064
  %v8119 = vadd.f32 %v7846, %v8067
  %v8120 = vadd.f32 %v7847, %v8072
  %v8121 = vadd.f32 %v7848, %v8075
  %v8122 = vadd.f32 %v7849, %v8080
  %v8123 = vadd.f32 %v7850, %v8083
  %v8124 = vadd.f32 %v7851, %v8088
  %v8125 = vadd.f32 %v7852, %v8091
  %8126 = vst [vmem:[#allocation6] sm:$0xff] %v8094
  %8127 = vst [vmem:[#allocation6 + $0x8] sm:$0xff] %v8095
  %8128 = vst [vmem:[#allocation6 + $0x10] sm:$0xff] %v8096
  %8129 = vst [vmem:[#allocation6 + $0x18] sm:$0xff] %v8097
  %8130 = vst [vmem:[#allocation6 + $0x20] sm:$0xff] %v8098
  %8131 = vst [vmem:[#allocation6 + $0x28] sm:$0xff] %v8099
  %8132 = vst [vmem:[#allocation6 + $0x30] sm:$0xff] %v8100
  %8133 = vst [vmem:[#allocation6 + $0x38] sm:$0xff] %v8101
  %8134 = vst [vmem:[#allocation6 + $0x40] sm:$0xff] %v8102
  %8135 = vst [vmem:[#allocation6 + $0x48] sm:$0xff] %v8103
  %8136 = vst [vmem:[#allocation6 + $0x50] sm:$0xff] %v8104
  %8137 = vst [vmem:[#allocation6 + $0x58] sm:$0xff] %v8105
  %8138 = vst [vmem:[#allocation6 + $0x60] sm:$0xff] %v8106
  %8139 = vst [vmem:[#allocation6 + $0x68] sm:$0xff] %v8107
  %8140 = vst [vmem:[#allocation6 + $0x70] sm:$0xff] %v8108
  %8141 = vst [vmem:[#allocation6 + $0x78] sm:$0xff] %v8109
  %8142 = vst [vmem:[#allocation6 + $0x80] sm:$0xff] %v8110
  %8143 = vst [vmem:[#allocation6 + $0x88] sm:$0xff] %v8111
  %8144 = vst [vmem:[#allocation6 + $0x90] sm:$0xff] %v8112
  %8145 = vst [vmem:[#allocation6 + $0x98] sm:$0xff] %v8113
  %8146 = vst [vmem:[#allocation6 + $0xa0] sm:$0xff] %v8114
  %8147 = vst [vmem:[#allocation6 + $0xa8] sm:$0xff] %v8115
  %8148 = vst [vmem:[#allocation6 + $0xb0] sm:$0xff] %v8116
  %8149 = vst [vmem:[#allocation6 + $0xb8] sm:$0xff] %v8117
  %8150 = vst [vmem:[#allocation6 + $0xc0] sm:$0xff] %v8118
  %8151 = vst [vmem:[#allocation6 + $0xc8] sm:$0xff] %v8119
  %8152 = vst [vmem:[#allocation6 + $0xd0] sm:$0xff] %v8120
  %8153 = vst [vmem:[#allocation6 + $0xd8] sm:$0xff] %v8121
  %8154 = vst [vmem:[#allocation6 + $0xe0] sm:$0xff] %v8122
  %8155 = vst [vmem:[#allocation6 + $0xe8] sm:$0xff] %v8123
  %8156 = vst [vmem:[#allocation6 + $0xf0] sm:$0xff] %v8124
  %8157 = vst [vmem:[#allocation6 + $0xf8] sm:$0xff] %v8125
  %v8158 = vld [vmem:[#allocation5 + $0x28] sm:$0xff]
  %v8159 = vld [vmem:[#allocation5 + $0x30] sm:$0xff]
  %v8160 = vld [vmem:[#allocation5 + $0x38] sm:$0xff]
  %v8161 = vld [vmem:[#allocation5 + $0x40] sm:$0xff]
  %v8162 = vld [vmem:[#allocation5 + $0x48] sm:$0xff]
  %v8163 = vld [vmem:[#allocation5 + $0x50] sm:$0xff]
  %v8164 = vld [vmem:[#allocation5 + $0x58] sm:$0xff]
  %v8165 = vld [vmem:[#allocation5 + $0x60] sm:$0xff]
  %v8166 = vld [vmem:[#allocation5 + $0x68] sm:$0xff]
  %v8167 = vld [vmem:[#allocation5 + $0x70] sm:$0xff]
  %v8168 = vld [vmem:[#allocation5 + $0x78] sm:$0xff]
  %v8169 = vld [vmem:[#allocation5 + $0x80] sm:$0xff]
  %v8170 = vld [vmem:[#allocation5 + $0x88] sm:$0xff]
  %v8171 = vld [vmem:[#allocation5 + $0x90] sm:$0xff]
  %v8172 = vld [vmem:[#allocation5 + $0x98] sm:$0xff]
  %v8173 = vld [vmem:[#allocation5 + $0xa0] sm:$0xff]
  %v8174 = vld [vmem:[#allocation5 + $0xa8] sm:$0xff]
  %v8175 = vld [vmem:[#allocation5 + $0xb0] sm:$0xff]
  %v8176 = vld [vmem:[#allocation5 + $0xb8] sm:$0xff]
  %v8177 = vld [vmem:[#allocation5 + $0xc0] sm:$0xff]
  %v8178 = vld [vmem:[#allocation5 + $0xc8] sm:$0xff]
  %v8179 = vld [vmem:[#allocation5 + $0xd0] sm:$0xff]
  %v8180 = vld [vmem:[#allocation5 + $0xd8] sm:$0xff]
  %v8181 = vld [vmem:[#allocation5 + $0xe0] sm:$0xff]
  %v8182 = vld [vmem:[#allocation5 + $0xe8] sm:$0xff]
  %v8183 = vld [vmem:[#allocation5 + $0xf0] sm:$0xff]
  %v8184 = vld [vmem:[#allocation5 + $0xf8] sm:$0xff]
  %v8185 = vld [vmem:[#allocation5 + $0x100] sm:$0xff]
  %v8186 = vld [vmem:[#allocation5 + $0x108] sm:$0xff]
  %v8187 = vld [vmem:[#allocation5 + $0x110] sm:$0xff]
  %v8188 = vld [vmem:[#allocation5 + $0x118] sm:$0xff]
  %v8189 = vld [vmem:[#allocation5 + $0x120] sm:$0xff]
  %v8190 = vld [vmem:[#allocation6] sm:$0xff]
  %v8191 = vld [vmem:[#allocation6 + $0x8] sm:$0xff]
  %v8192 = vld [vmem:[#allocation6 + $0x10] sm:$0xff]
  %v8193 = vld [vmem:[#allocation6 + $0x18] sm:$0xff]
  %v8194 = vld [vmem:[#allocation6 + $0x20] sm:$0xff]
  %v8195 = vld [vmem:[#allocation6 + $0x28] sm:$0xff]
  %v8196 = vld [vmem:[#allocation6 + $0x30] sm:$0xff]
  %v8197 = vld [vmem:[#allocation6 + $0x38] sm:$0xff]
  %v8198 = vld [vmem:[#allocation6 + $0x40] sm:$0xff]
  %v8199 = vld [vmem:[#allocation6 + $0x48] sm:$0xff]
  %v8200 = vld [vmem:[#allocation6 + $0x50] sm:$0xff]
  %v8201 = vld [vmem:[#allocation6 + $0x58] sm:$0xff]
  %v8202 = vld [vmem:[#allocation6 + $0x60] sm:$0xff]
  %v8203 = vld [vmem:[#allocation6 + $0x68] sm:$0xff]
  %v8204 = vld [vmem:[#allocation6 + $0x70] sm:$0xff]
  %v8205 = vld [vmem:[#allocation6 + $0x78] sm:$0xff]
  %v8206 = vld [vmem:[#allocation6 + $0x80] sm:$0xff]
  %v8207 = vld [vmem:[#allocation6 + $0x88] sm:$0xff]
  %v8208 = vld [vmem:[#allocation6 + $0x90] sm:$0xff]
  %v8209 = vld [vmem:[#allocation6 + $0x98] sm:$0xff]
  %v8210 = vld [vmem:[#allocation6 + $0xa0] sm:$0xff]
  %v8211 = vld [vmem:[#allocation6 + $0xa8] sm:$0xff]
  %v8212 = vld [vmem:[#allocation6 + $0xb0] sm:$0xff]
  %v8213 = vld [vmem:[#allocation6 + $0xb8] sm:$0xff]
  %v8214 = vld [vmem:[#allocation6 + $0xc0] sm:$0xff]
  %v8215 = vld [vmem:[#allocation6 + $0xc8] sm:$0xff]
  %v8216 = vld [vmem:[#allocation6 + $0xd0] sm:$0xff]
  %v8217 = vld [vmem:[#allocation6 + $0xd8] sm:$0xff]
  %v8218 = vld [vmem:[#allocation6 + $0xe0] sm:$0xff]
  %v8219 = vld [vmem:[#allocation6 + $0xe8] sm:$0xff]
  %v8220 = vld [vmem:[#allocation6 + $0xf0] sm:$0xff]
  %v8221 = vld [vmem:[#allocation6 + $0xf8] sm:$0xff]
  %v8222 = vpack.c.bf16 %v8159, %v8158
  %v8223 = vpack.c.bf16 %v8161, %v8160
  %v8224 = vpack.c.bf16 %v8163, %v8162
  %v8225 = vpack.c.bf16 %v8165, %v8164
  %v8226 = vpack.c.bf16 %v8167, %v8166
  %v8227 = vpack.c.bf16 %v8169, %v8168
  %v8228 = vpack.c.bf16 %v8171, %v8170
  %v8229 = vpack.c.bf16 %v8173, %v8172
  %v8230 = vpack.c.bf16 %v8175, %v8174
  %v8231 = vpack.c.bf16 %v8177, %v8176
  %v8232 = vpack.c.bf16 %v8179, %v8178
  %v8233 = vpack.c.bf16 %v8181, %v8180
  %v8234 = vpack.c.bf16 %v8183, %v8182
  %v8235 = vpack.c.bf16 %v8185, %v8184
  %v8236 = vpack.c.bf16 %v8187, %v8186
  %v8237 = vpack.c.bf16 %v8189, %v8188
  %v8238 = vld [vmem:[%s2 + $0x1c0] sm:$0xf]
  %v8239 = vld [vmem:[%s2 + $0x1c4] sm:$0xf]
  %v8240 = vld [vmem:[%s2 + $0x1c8] sm:$0xf]
  %v8241 = vld [vmem:[%s2 + $0x1cc] sm:$0xf]
  %v8242 = vld [vmem:[%s2 + $0x1d0] sm:$0xf]
  %v8243 = vld [vmem:[%s2 + $0x1d4] sm:$0xf]
  %v8244 = vld [vmem:[%s2 + $0x1d8] sm:$0xf]
  %v8245 = vld [vmem:[%s2 + $0x1dc] sm:$0xf]
  %v8246 = vld [vmem:[%s2 + $0x1e0] sm:$0xf]
  %v8247 = vld [vmem:[%s2 + $0x1e4] sm:$0xf]
  %v8248 = vld [vmem:[%s2 + $0x1e8] sm:$0xf]
  %v8249 = vld [vmem:[%s2 + $0x1ec] sm:$0xf]
  %v8250 = vld [vmem:[%s2 + $0x1f0] sm:$0xf]
  %v8251 = vld [vmem:[%s2 + $0x1f4] sm:$0xf]
  %v8252 = vld [vmem:[%s2 + $0x1f8] sm:$0xf]
  %v8253 = vld [vmem:[%s2 + $0x1fc] sm:$0xf]
  %v8270 = vunpack.c.l.b16 %v8238
  %v8271 = vunpack.c.l.b16 %v8239
  %v8272 = vunpack.c.l.b16 %v8240
  %v8273 = vunpack.c.l.b16 %v8241
  %v8274 = vunpack.c.l.b16 %v8242
  %v8275 = vunpack.c.l.b16 %v8243
  %v8276 = vunpack.c.l.b16 %v8244
  %v8277 = vunpack.c.l.b16 %v8245
  %v8278 = vunpack.c.l.b16 %v8246
  %v8279 = vunpack.c.l.b16 %v8247
  %v8280 = vunpack.c.l.b16 %v8248
  %v8281 = vunpack.c.l.b16 %v8249
  %v8282 = vunpack.c.l.b16 %v8250
  %v8283 = vunpack.c.l.b16 %v8251
  %v8284 = vunpack.c.l.b16 %v8252
  %v8285 = vunpack.c.l.b16 %v8253
  %v8286 = vpack.c.b16 %v8271, %v8270
  %v8287 = vpack.c.b16 %v8273, %v8272
  %v8288 = vpack.c.b16 %v8275, %v8274
  %v8289 = vpack.c.b16 %v8277, %v8276
  %v8290 = vpack.c.b16 %v8279, %v8278
  %v8291 = vpack.c.b16 %v8281, %v8280
  %v8292 = vpack.c.b16 %v8283, %v8282
  %v8293 = vpack.c.b16 %v8285, %v8284
  %8302 = vmatprep.subr.bf16.mxu0 0
  %8303 = vmatpush1.bf16.msra.mxu0 %v8286
  %8304 = vmatprep.subr.bf16.mxu0 0
  %8305 = vmatpush1.bf16.msra.mxu0 %v8287
  %8306 = vmatprep.subr.bf16.mxu0 0
  %8307 = vmatpush1.bf16.msra.mxu0 %v8288
  %8308 = vmatprep.subr.bf16.mxu0 0
  %8309 = vmatpush1.bf16.msra.mxu0 %v8289
  %8310 = vmatprep.subr.bf16.mxu0 0
  %8311 = vmatpush1.bf16.msra.mxu0 %v8290
  %8312 = vmatprep.subr.bf16.mxu0 0
  %8313 = vmatpush1.bf16.msra.mxu0 %v8291
  %8314 = vmatprep.subr.bf16.mxu0 0
  %8315 = vmatpush1.bf16.msra.mxu0 %v8292
  %8316 = vmatprep.subr.bf16.mxu0 0
  %8317 = vmatpush1.bf16.msra.mxu0 %v8293
  %8318 = vmatprep.subr.bf16.mxu0 0
  %8319 = vmatpush1.bf16.msra.mxu0 0
  %8320 = vmatprep.subr.bf16.mxu0 0
  %8321 = vmatpush1.bf16.msra.mxu0 0
  %8322 = vmatprep.subr.bf16.mxu0 0
  %8323 = vmatpush1.bf16.msra.mxu0 0
  %8324 = vmatprep.subr.bf16.mxu0 0
  %8325 = vmatpush1.bf16.msra.mxu0 0
  %8326 = vmatprep.subr.bf16.mxu0 0
  %8327 = vmatpush1.bf16.msra.mxu0 0
  %8328 = vmatprep.subr.bf16.mxu0 0
  %8329 = vmatpush1.bf16.msra.mxu0 0
  %8330 = vmatprep.subr.bf16.mxu0 0
  %8331 = vmatpush1.bf16.msra.mxu0 0
  %8332 = vmatprep.subr.bf16.mxu0 0
  %8333 = vmatpush1.bf16.msra.mxu0 0
  %8334 = vmatprep.mubr.bf16.mxu0 0
  %8335 = vmatmul.mubr.bf16.gmra.mrb[0].mxu0 %v8222
  %v8336 = vpop.f32.mrb[0].mxu0
  %v8337 = vadd.f32 0.0, %v8336
  %v8338 = vpop.f32.mrb[0].mxu0
  %v8339 = vpop.f32.mrb[0].mxu0
  %v8340 = vadd.f32 0.0, %v8339
  %v8341 = vpop.f32.mrb[0].mxu0
  %8342 = vmatprep.mubr.bf16.mxu0 0
  %8343 = vmatmul.mubr.bf16.gmra.mrb[0].mxu0 %v8223
  %v8344 = vpop.f32.mrb[0].mxu0
  %v8345 = vadd.f32 0.0, %v8344
  %v8346 = vpop.f32.mrb[0].mxu0
  %v8347 = vpop.f32.mrb[0].mxu0
  %v8348 = vadd.f32 0.0, %v8347
  %v8349 = vpop.f32.mrb[0].mxu0
  %8350 = vmatprep.mubr.bf16.mxu0 0
  %8351 = vmatmul.mubr.bf16.gmra.mrb[0].mxu0 %v8224
  %v8352 = vpop.f32.mrb[0].mxu0
  %v8353 = vadd.f32 0.0, %v8352
  %v8354 = vpop.f32.mrb[0].mxu0
  %v8355 = vpop.f32.mrb[0].mxu0
  %v8356 = vadd.f32 0.0, %v8355
  %v8357 = vpop.f32.mrb[0].mxu0
  %8358 = vmatprep.mubr.bf16.mxu0 0
  %8359 = vmatmul.mubr.bf16.gmra.mrb[0].mxu0 %v8225
  %v8360 = vpop.f32.mrb[0].mxu0
  %v8361 = vadd.f32 0.0, %v8360
  %v8362 = vpop.f32.mrb[0].mxu0
  %v8363 = vpop.f32.mrb[0].mxu0
  %v8364 = vadd.f32 0.0, %v8363
  %v8365 = vpop.f32.mrb[0].mxu0
  %8366 = vmatprep.mubr.bf16.mxu0 0
  %8367 = vmatmul.mubr.bf16.gmra.mrb[0].mxu0 %v8226
  %v8368 = vpop.f32.mrb[0].mxu0
  %v8369 = vadd.f32 0.0, %v8368
  %v8370 = vpop.f32.mrb[0].mxu0
  %v8371 = vpop.f32.mrb[0].mxu0
  %v8372 = vadd.f32 0.0, %v8371
  %v8373 = vpop.f32.mrb[0].mxu0
  %8374 = vmatprep.mubr.bf16.mxu0 0
  %8375 = vmatmul.mubr.bf16.gmra.mrb[0].mxu0 %v8227
  %v8376 = vpop.f32.mrb[0].mxu0
  %v8377 = vadd.f32 0.0, %v8376
  %v8378 = vpop.f32.mrb[0].mxu0
  %v8379 = vpop.f32.mrb[0].mxu0
  %v8380 = vadd.f32 0.0, %v8379
  %v8381 = vpop.f32.mrb[0].mxu0
  %8382 = vmatprep.mubr.bf16.mxu0 0
  %8383 = vmatmul.mubr.bf16.gmra.mrb[0].mxu0 %v8228
  %v8384 = vpop.f32.mrb[0].mxu0
  %v8385 = vadd.f32 0.0, %v8384
  %v8386 = vpop.f32.mrb[0].mxu0
  %v8387 = vpop.f32.mrb[0].mxu0
  %v8388 = vadd.f32 0.0, %v8387
  %v8389 = vpop.f32.mrb[0].mxu0
  %8390 = vmatprep.mubr.bf16.mxu0 0
  %8391 = vmatmul.mubr.bf16.gmra.mrb[0].mxu0 %v8229
  %v8392 = vpop.f32.mrb[0].mxu0
  %v8393 = vadd.f32 0.0, %v8392
  %v8394 = vpop.f32.mrb[0].mxu0
  %v8395 = vpop.f32.mrb[0].mxu0
  %v8396 = vadd.f32 0.0, %v8395
  %v8397 = vpop.f32.mrb[0].mxu0
  %8398 = vmatprep.mubr.bf16.mxu0 0
  %8399 = vmatmul.mubr.bf16.gmra.mrb[0].mxu0 %v8230
  %v8400 = vpop.f32.mrb[0].mxu0
  %v8401 = vadd.f32 0.0, %v8400
  %v8402 = vpop.f32.mrb[0].mxu0
  %v8403 = vpop.f32.mrb[0].mxu0
  %v8404 = vadd.f32 0.0, %v8403
  %v8405 = vpop.f32.mrb[0].mxu0
  %8406 = vmatprep.mubr.bf16.mxu0 0
  %8407 = vmatmul.mubr.bf16.gmra.mrb[0].mxu0 %v8231
  %v8408 = vpop.f32.mrb[0].mxu0
  %v8409 = vadd.f32 0.0, %v8408
  %v8410 = vpop.f32.mrb[0].mxu0
  %v8411 = vpop.f32.mrb[0].mxu0
  %v8412 = vadd.f32 0.0, %v8411
  %v8413 = vpop.f32.mrb[0].mxu0
  %8414 = vmatprep.mubr.bf16.mxu0 0
  %8415 = vmatmul.mubr.bf16.gmra.mrb[0].mxu0 %v8232
  %v8416 = vpop.f32.mrb[0].mxu0
  %v8417 = vadd.f32 0.0, %v8416
  %v8418 = vpop.f32.mrb[0].mxu0
  %v8419 = vpop.f32.mrb[0].mxu0
  %v8420 = vadd.f32 0.0, %v8419
  %v8421 = vpop.f32.mrb[0].mxu0
  %8422 = vmatprep.mubr.bf16.mxu0 0
  %8423 = vmatmul.mubr.bf16.gmra.mrb[0].mxu0 %v8233
  %v8424 = vpop.f32.mrb[0].mxu0
  %v8425 = vadd.f32 0.0, %v8424
  %v8426 = vpop.f32.mrb[0].mxu0
  %v8427 = vpop.f32.mrb[0].mxu0
  %v8428 = vadd.f32 0.0, %v8427
  %v8429 = vpop.f32.mrb[0].mxu0
  %8430 = vmatprep.mubr.bf16.mxu0 0
  %8431 = vmatmul.mubr.bf16.gmra.mrb[0].mxu0 %v8234
  %v8432 = vpop.f32.mrb[0].mxu0
  %v8433 = vadd.f32 0.0, %v8432
  %v8434 = vpop.f32.mrb[0].mxu0
  %v8435 = vpop.f32.mrb[0].mxu0
  %v8436 = vadd.f32 0.0, %v8435
  %v8437 = vpop.f32.mrb[0].mxu0
  %8438 = vmatprep.mubr.bf16.mxu0 0
  %8439 = vmatmul.mubr.bf16.gmra.mrb[0].mxu0 %v8235
  %v8440 = vpop.f32.mrb[0].mxu0
  %v8441 = vadd.f32 0.0, %v8440
  %v8442 = vpop.f32.mrb[0].mxu0
  %v8443 = vpop.f32.mrb[0].mxu0
  %v8444 = vadd.f32 0.0, %v8443
  %v8445 = vpop.f32.mrb[0].mxu0
  %8446 = vmatprep.mubr.bf16.mxu0 0
  %8447 = vmatmul.mubr.bf16.gmra.mrb[0].mxu0 %v8236
  %v8448 = vpop.f32.mrb[0].mxu0
  %v8449 = vadd.f32 0.0, %v8448
  %v8450 = vpop.f32.mrb[0].mxu0
  %v8451 = vpop.f32.mrb[0].mxu0
  %v8452 = vadd.f32 0.0, %v8451
  %v8453 = vpop.f32.mrb[0].mxu0
  %8454 = vmatprep.mubr.bf16.mxu0 0
  %8455 = vmatmul.mubr.bf16.gmra.mrb[0].mxu0 %v8237
  %v8456 = vpop.f32.mrb[0].mxu0
  %v8457 = vadd.f32 0.0, %v8456
  %v8458 = vpop.f32.mrb[0].mxu0
  %v8459 = vpop.f32.mrb[0].mxu0
  %v8460 = vadd.f32 0.0, %v8459
  %v8461 = vpop.f32.mrb[0].mxu0
  %8462 = vdwg.mxu0
  %v8463 = vadd.f32 %v8190, %v8337
  %v8464 = vadd.f32 %v8191, %v8340
  %v8465 = vadd.f32 %v8192, %v8345
  %v8466 = vadd.f32 %v8193, %v8348
  %v8467 = vadd.f32 %v8194, %v8353
  %v8468 = vadd.f32 %v8195, %v8356
  %v8469 = vadd.f32 %v8196, %v8361
  %v8470 = vadd.f32 %v8197, %v8364
  %v8471 = vadd.f32 %v8198, %v8369
  %v8472 = vadd.f32 %v8199, %v8372
  %v8473 = vadd.f32 %v8200, %v8377
  %v8474 = vadd.f32 %v8201, %v8380
  %v8475 = vadd.f32 %v8202, %v8385
  %v8476 = vadd.f32 %v8203, %v8388
  %v8477 = vadd.f32 %v8204, %v8393
  %v8478 = vadd.f32 %v8205, %v8396
  %v8479 = vadd.f32 %v8206, %v8401
  %v8480 = vadd.f32 %v8207, %v8404
  %v8481 = vadd.f32 %v8208, %v8409
  %v8482 = vadd.f32 %v8209, %v8412
  %v8483 = vadd.f32 %v8210, %v8417
  %v8484 = vadd.f32 %v8211, %v8420
  %v8485 = vadd.f32 %v8212, %v8425
  %v8486 = vadd.f32 %v8213, %v8428
  %v8487 = vadd.f32 %v8214, %v8433
  %v8488 = vadd.f32 %v8215, %v8436
  %v8489 = vadd.f32 %v8216, %v8441
  %v8490 = vadd.f32 %v8217, %v8444
  %v8491 = vadd.f32 %v8218, %v8449
  %v8492 = vadd.f32 %v8219, %v8452
  %v8493 = vadd.f32 %v8220, %v8457
  %v8494 = vadd.f32 %v8221, %v8460
  %8495 = vst [vmem:[#allocation6] sm:$0xff] %v8463
  %8496 = vst [vmem:[#allocation6 + $0x8] sm:$0xff] %v8464
  %8497 = vst [vmem:[#allocation6 + $0x10] sm:$0xff] %v8465
  %8498 = vst [vmem:[#allocation6 + $0x18] sm:$0xff] %v8466
  %8499 = vst [vmem:[#allocation6 + $0x20] sm:$0xff] %v8467
  %8500 = vst [vmem:[#allocation6 + $0x28] sm:$0xff] %v8468
  %8501 = vst [vmem:[#allocation6 + $0x30] sm:$0xff] %v8469
  %8502 = vst [vmem:[#allocation6 + $0x38] sm:$0xff] %v8470
  %8503 = vst [vmem:[#allocation6 + $0x40] sm:$0xff] %v8471
  %8504 = vst [vmem:[#allocation6 + $0x48] sm:$0xff] %v8472
  %8505 = vst [vmem:[#allocation6 + $0x50] sm:$0xff] %v8473
  %8506 = vst [vmem:[#allocation6 + $0x58] sm:$0xff] %v8474
  %8507 = vst [vmem:[#allocation6 + $0x60] sm:$0xff] %v8475
  %8508 = vst [vmem:[#allocation6 + $0x68] sm:$0xff] %v8476
  %8509 = vst [vmem:[#allocation6 + $0x70] sm:$0xff] %v8477
  %8510 = vst [vmem:[#allocation6 + $0x78] sm:$0xff] %v8478
  %8511 = vst [vmem:[#allocation6 + $0x80] sm:$0xff] %v8479
  %8512 = vst [vmem:[#allocation6 + $0x88] sm:$0xff] %v8480
  %8513 = vst [vmem:[#allocation6 + $0x90] sm:$0xff] %v8481
  %8514 = vst [vmem:[#allocation6 + $0x98] sm:$0xff] %v8482
  %8515 = vst [vmem:[#allocation6 + $0xa0] sm:$0xff] %v8483
  %8516 = vst [vmem:[#allocation6 + $0xa8] sm:$0xff] %v8484
  %8517 = vst [vmem:[#allocation6 + $0xb0] sm:$0xff] %v8485
  %8518 = vst [vmem:[#allocation6 + $0xb8] sm:$0xff] %v8486
  %8519 = vst [vmem:[#allocation6 + $0xc0] sm:$0xff] %v8487
  %8520 = vst [vmem:[#allocation6 + $0xc8] sm:$0xff] %v8488
  %8521 = vst [vmem:[#allocation6 + $0xd0] sm:$0xff] %v8489
  %8522 = vst [vmem:[#allocation6 + $0xd8] sm:$0xff] %v8490
  %8523 = vst [vmem:[#allocation6 + $0xe0] sm:$0xff] %v8491
  %8524 = vst [vmem:[#allocation6 + $0xe8] sm:$0xff] %v8492
  %8525 = vst [vmem:[#allocation6 + $0xf0] sm:$0xff] %v8493
  %8526 = vst [vmem:[#allocation6 + $0xf8] sm:$0xff] %v8494
  %v8527 = vld [vmem:[#allocation5 + $0x29] sm:$0xff]
  %v8528 = vld [vmem:[#allocation5 + $0x31] sm:$0xff]
  %v8529 = vld [vmem:[#allocation5 + $0x39] sm:$0xff]
  %v8530 = vld [vmem:[#allocation5 + $0x41] sm:$0xff]
  %v8531 = vld [vmem:[#allocation5 + $0x49] sm:$0xff]
  %v8532 = vld [vmem:[#allocation5 + $0x51] sm:$0xff]
  %v8533 = vld [vmem:[#allocation5 + $0x59] sm:$0xff]
  %v8534 = vld [vmem:[#allocation5 + $0x61] sm:$0xff]
  %v8535 = vld [vmem:[#allocation5 + $0x69] sm:$0xff]
  %v8536 = vld [vmem:[#allocation5 + $0x71] sm:$0xff]
  %v8537 = vld [vmem:[#allocation5 + $0x79] sm:$0xff]
  %v8538 = vld [vmem:[#allocation5 + $0x81] sm:$0xff]
  %v8539 = vld [vmem:[#allocation5 + $0x89] sm:$0xff]
  %v8540 = vld [vmem:[#allocation5 + $0x91] sm:$0xff]
  %v8541 = vld [vmem:[#allocation5 + $0x99] sm:$0xff]
  %v8542 = vld [vmem:[#allocation5 + $0xa1] sm:$0xff]
  %v8543 = vld [vmem:[#allocation5 + $0xa9] sm:$0xff]
  %v8544 = vld [vmem:[#allocation5 + $0xb1] sm:$0xff]
  %v8545 = vld [vmem:[#allocation5 + $0xb9] sm:$0xff]
  %v8546 = vld [vmem:[#allocation5 + $0xc1] sm:$0xff]
  %v8547 = vld [vmem:[#allocation5 + $0xc9] sm:$0xff]
  %v8548 = vld [vmem:[#allocation5 + $0xd1] sm:$0xff]
  %v8549 = vld [vmem:[#allocation5 + $0xd9] sm:$0xff]
  %v8550 = vld [vmem:[#allocation5 + $0xe1] sm:$0xff]
  %v8551 = vld [vmem:[#allocation5 + $0xe9] sm:$0xff]
  %v8552 = vld [vmem:[#allocation5 + $0xf1] sm:$0xff]
  %v8553 = vld [vmem:[#allocation5 + $0xf9] sm:$0xff]
  %v8554 = vld [vmem:[#allocation5 + $0x101] sm:$0xff]
  %v8555 = vld [vmem:[#allocation5 + $0x109] sm:$0xff]
  %v8556 = vld [vmem:[#allocation5 + $0x111] sm:$0xff]
  %v8557 = vld [vmem:[#allocation5 + $0x119] sm:$0xff]
  %v8558 = vld [vmem:[#allocation5 + $0x121] sm:$0xff]
  %v8559 = vmul.f32 %v8527, %v1404
  %v8560 = vmul.f32 %v8528, %v1405
  %v8561 = vmul.f32 %v8529, %v1406
  %v8562 = vmul.f32 %v8530, %v1407
  %v8563 = vmul.f32 %v8531, %v1408
  %v8564 = vmul.f32 %v8532, %v1409
  %v8565 = vmul.f32 %v8533, %v1410
  %v8566 = vmul.f32 %v8534, %v1411
  %v8567 = vmul.f32 %v8535, %v1412
  %v8568 = vmul.f32 %v8536, %v1413
  %v8569 = vmul.f32 %v8537, %v1414
  %v8570 = vmul.f32 %v8538, %v1415
  %v8571 = vmul.f32 %v8539, %v1416
  %v8572 = vmul.f32 %v8540, %v1417
  %v8573 = vmul.f32 %v8541, %v1418
  %v8574 = vmul.f32 %v8542, %v1419
  %v8575 = vmul.f32 %v8543, %v1420
  %v8576 = vmul.f32 %v8544, %v1421
  %v8577 = vmul.f32 %v8545, %v1422
  %v8578 = vmul.f32 %v8546, %v1423
  %v8579 = vmul.f32 %v8547, %v1424
  %v8580 = vmul.f32 %v8548, %v1425
  %v8581 = vmul.f32 %v8549, %v1426
  %v8582 = vmul.f32 %v8550, %v1427
  %v8583 = vmul.f32 %v8551, %v1428
  %v8584 = vmul.f32 %v8552, %v1429
  %v8585 = vmul.f32 %v8553, %v1430
  %v8586 = vmul.f32 %v8554, %v1431
  %v8587 = vmul.f32 %v8555, %v1432
  %v8588 = vmul.f32 %v8556, %v1433
  %v8589 = vmul.f32 %v8557, %v1434
  %v8590 = vmul.f32 %v8558, %v1435
  %v8591 = vld [vmem:[#allocation6] sm:$0xff]
  %v8592 = vld [vmem:[#allocation6 + $0x8] sm:$0xff]
  %v8593 = vld [vmem:[#allocation6 + $0x10] sm:$0xff]
  %v8594 = vld [vmem:[#allocation6 + $0x18] sm:$0xff]
  %v8595 = vld [vmem:[#allocation6 + $0x20] sm:$0xff]
  %v8596 = vld [vmem:[#allocation6 + $0x28] sm:$0xff]
  %v8597 = vld [vmem:[#allocation6 + $0x30] sm:$0xff]
  %v8598 = vld [vmem:[#allocation6 + $0x38] sm:$0xff]
  %v8599 = vld [vmem:[#allocation6 + $0x40] sm:$0xff]
  %v8600 = vld [vmem:[#allocation6 + $0x48] sm:$0xff]
  %v8601 = vld [vmem:[#allocation6 + $0x50] sm:$0xff]
  %v8602 = vld [vmem:[#allocation6 + $0x58] sm:$0xff]
  %v8603 = vld [vmem:[#allocation6 + $0x60] sm:$0xff]
  %v8604 = vld [vmem:[#allocation6 + $0x68] sm:$0xff]
  %v8605 = vld [vmem:[#allocation6 + $0x70] sm:$0xff]
  %v8606 = vld [vmem:[#allocation6 + $0x78] sm:$0xff]
  %v8607 = vld [vmem:[#allocation6 + $0x80] sm:$0xff]
  %v8608 = vld [vmem:[#allocation6 + $0x88] sm:$0xff]
  %v8609 = vld [vmem:[#allocation6 + $0x90] sm:$0xff]
  %v8610 = vld [vmem:[#allocation6 + $0x98] sm:$0xff]
  %v8611 = vld [vmem:[#allocation6 + $0xa0] sm:$0xff]
  %v8612 = vld [vmem:[#allocation6 + $0xa8] sm:$0xff]
  %v8613 = vld [vmem:[#allocation6 + $0xb0] sm:$0xff]
  %v8614 = vld [vmem:[#allocation6 + $0xb8] sm:$0xff]
  %v8615 = vld [vmem:[#allocation6 + $0xc0] sm:$0xff]
  %v8616 = vld [vmem:[#allocation6 + $0xc8] sm:$0xff]
  %v8617 = vld [vmem:[#allocation6 + $0xd0] sm:$0xff]
  %v8618 = vld [vmem:[#allocation6 + $0xd8] sm:$0xff]
  %v8619 = vld [vmem:[#allocation6 + $0xe0] sm:$0xff]
  %v8620 = vld [vmem:[#allocation6 + $0xe8] sm:$0xff]
  %v8621 = vld [vmem:[#allocation6 + $0xf0] sm:$0xff]
  %v8622 = vld [vmem:[#allocation6 + $0xf8] sm:$0xff]
  %v8623 = vpack.c.bf16 %v8560, %v8559
  %v8624 = vpack.c.bf16 %v8562, %v8561
  %v8625 = vpack.c.bf16 %v8564, %v8563
  %v8626 = vpack.c.bf16 %v8566, %v8565
  %v8627 = vpack.c.bf16 %v8568, %v8567
  %v8628 = vpack.c.bf16 %v8570, %v8569
  %v8629 = vpack.c.bf16 %v8572, %v8571
  %v8630 = vpack.c.bf16 %v8574, %v8573
  %v8631 = vpack.c.bf16 %v8576, %v8575
  %v8632 = vpack.c.bf16 %v8578, %v8577
  %v8633 = vpack.c.bf16 %v8580, %v8579
  %v8634 = vpack.c.bf16 %v8582, %v8581
  %v8635 = vpack.c.bf16 %v8584, %v8583
  %v8636 = vpack.c.bf16 %v8586, %v8585
  %v8637 = vpack.c.bf16 %v8588, %v8587
  %v8638 = vpack.c.bf16 %v8590, %v8589
  %v8639 = vld [vmem:[%s2 + $0x200] sm:$0xf]
  %v8640 = vld [vmem:[%s2 + $0x204] sm:$0xf]
  %v8641 = vld [vmem:[%s2 + $0x208] sm:$0xf]
  %v8642 = vld [vmem:[%s2 + $0x20c] sm:$0xf]
  %v8643 = vld [vmem:[%s2 + $0x210] sm:$0xf]
  %v8644 = vld [vmem:[%s2 + $0x214] sm:$0xf]
  %v8645 = vld [vmem:[%s2 + $0x218] sm:$0xf]
  %v8646 = vld [vmem:[%s2 + $0x21c] sm:$0xf]
  %v8647 = vld [vmem:[%s2 + $0x220] sm:$0xf]
  %v8648 = vld [vmem:[%s2 + $0x224] sm:$0xf]
  %v8649 = vld [vmem:[%s2 + $0x228] sm:$0xf]
  %v8650 = vld [vmem:[%s2 + $0x22c] sm:$0xf]
  %v8651 = vld [vmem:[%s2 + $0x230] sm:$0xf]
  %v8652 = vld [vmem:[%s2 + $0x234] sm:$0xf]
  %v8653 = vld [vmem:[%s2 + $0x238] sm:$0xf]
  %v8654 = vld [vmem:[%s2 + $0x23c] sm:$0xf]
  %v8671 = vunpack.c.l.b16 %v8639
  %v8672 = vunpack.c.l.b16 %v8640
  %v8673 = vunpack.c.l.b16 %v8641
  %v8674 = vunpack.c.l.b16 %v8642
  %v8675 = vunpack.c.l.b16 %v8643
  %v8676 = vunpack.c.l.b16 %v8644
  %v8677 = vunpack.c.l.b16 %v8645
  %v8678 = vunpack.c.l.b16 %v8646
  %v8679 = vunpack.c.l.b16 %v8647
  %v8680 = vunpack.c.l.b16 %v8648
  %v8681 = vunpack.c.l.b16 %v8649
  %v8682 = vunpack.c.l.b16 %v8650
  %v8683 = vunpack.c.l.b16 %v8651
  %v8684 = vunpack.c.l.b16 %v8652
  %v8685 = vunpack.c.l.b16 %v8653
  %v8686 = vunpack.c.l.b16 %v8654
  %v8687 = vpack.c.b16 %v8672, %v8671
  %v8688 = vpack.c.b16 %v8674, %v8673
  %v8689 = vpack.c.b16 %v8676, %v8675
  %v8690 = vpack.c.b16 %v8678, %v8677
  %v8691 = vpack.c.b16 %v8680, %v8679
  %v8692 = vpack.c.b16 %v8682, %v8681
  %v8693 = vpack.c.b16 %v8684, %v8683
  %v8694 = vpack.c.b16 %v8686, %v8685
  %8703 = vmatprep.subr.bf16.mxu0 0
  %8704 = vmatpush1.bf16.msra.mxu0 %v8687
  %8705 = vmatprep.subr.bf16.mxu0 0
  %8706 = vmatpush1.bf16.msra.mxu0 %v8688
  %8707 = vmatprep.subr.bf16.mxu0 0
  %8708 = vmatpush1.bf16.msra.mxu0 %v8689
  %8709 = vmatprep.subr.bf16.mxu0 0
  %8710 = vmatpush1.bf16.msra.mxu0 %v8690
  %8711 = vmatprep.subr.bf16.mxu0 0
  %8712 = vmatpush1.bf16.msra.mxu0 %v8691
  %8713 = vmatprep.subr.bf16.mxu0 0
  %8714 = vmatpush1.bf16.msra.mxu0 %v8692
  %8715 = vmatprep.subr.bf16.mxu0 0
  %8716 = vmatpush1.bf16.msra.mxu0 %v8693
  %8717 = vmatprep.subr.bf16.mxu0 0
  %8718 = vmatpush1.bf16.msra.mxu0 %v8694
  %8719 = vmatprep.subr.bf16.mxu0 0
  %8720 = vmatpush1.bf16.msra.mxu0 0
  %8721 = vmatprep.subr.bf16.mxu0 0
  %8722 = vmatpush1.bf16.msra.mxu0 0
  %8723 = vmatprep.subr.bf16.mxu0 0
  %8724 = vmatpush1.bf16.msra.mxu0 0
  %8725 = vmatprep.subr.bf16.mxu0 0
  %8726 = vmatpush1.bf16.msra.mxu0 0
  %8727 = vmatprep.subr.bf16.mxu0 0
  %8728 = vmatpush1.bf16.msra.mxu0 0
  %8729 = vmatprep.subr.bf16.mxu0 0
  %8730 = vmatpush1.bf16.msra.mxu0 0
  %8731 = vmatprep.subr.bf16.mxu0 0
  %8732 = vmatpush1.bf16.msra.mxu0 0
  %8733 = vmatprep.subr.bf16.mxu0 0
  %8734 = vmatpush1.bf16.msra.mxu0 0
  %8735 = vmatprep.mubr.bf16.mxu0 0
  %8736 = vmatmul.mubr.bf16.gmra.mrb[0].mxu0 %v8623
  %v8737 = vpop.f32.mrb[0].mxu0
  %v8738 = vadd.f32 0.0, %v8737
  %v8739 = vpop.f32.mrb[0].mxu0
  %v8740 = vpop.f32.mrb[0].mxu0
  %v8741 = vadd.f32 0.0, %v8740
  %v8742 = vpop.f32.mrb[0].mxu0
  %8743 = vmatprep.mubr.bf16.mxu0 0
  %8744 = vmatmul.mubr.bf16.gmra.mrb[0].mxu0 %v8624
  %v8745 = vpop.f32.mrb[0].mxu0
  %v8746 = vadd.f32 0.0, %v8745
  %v8747 = vpop.f32.mrb[0].mxu0
  %v8748 = vpop.f32.mrb[0].mxu0
  %v8749 = vadd.f32 0.0, %v8748
  %v8750 = vpop.f32.mrb[0].mxu0
  %8751 = vmatprep.mubr.bf16.mxu0 0
  %8752 = vmatmul.mubr.bf16.gmra.mrb[0].mxu0 %v8625
  %v8753 = vpop.f32.mrb[0].mxu0
  %v8754 = vadd.f32 0.0, %v8753
  %v8755 = vpop.f32.mrb[0].mxu0
  %v8756 = vpop.f32.mrb[0].mxu0
  %v8757 = vadd.f32 0.0, %v8756
  %v8758 = vpop.f32.mrb[0].mxu0
  %8759 = vmatprep.mubr.bf16.mxu0 0
  %8760 = vmatmul.mubr.bf16.gmra.mrb[0].mxu0 %v8626
  %v8761 = vpop.f32.mrb[0].mxu0
  %v8762 = vadd.f32 0.0, %v8761
  %v8763 = vpop.f32.mrb[0].mxu0
  %v8764 = vpop.f32.mrb[0].mxu0
  %v8765 = vadd.f32 0.0, %v8764
  %v8766 = vpop.f32.mrb[0].mxu0
  %8767 = vmatprep.mubr.bf16.mxu0 0
  %8768 = vmatmul.mubr.bf16.gmra.mrb[0].mxu0 %v8627
  %v8769 = vpop.f32.mrb[0].mxu0
  %v8770 = vadd.f32 0.0, %v8769
  %v8771 = vpop.f32.mrb[0].mxu0
  %v8772 = vpop.f32.mrb[0].mxu0
  %v8773 = vadd.f32 0.0, %v8772
  %v8774 = vpop.f32.mrb[0].mxu0
  %8775 = vmatprep.mubr.bf16.mxu0 0
  %8776 = vmatmul.mubr.bf16.gmra.mrb[0].mxu0 %v8628
  %v8777 = vpop.f32.mrb[0].mxu0
  %v8778 = vadd.f32 0.0, %v8777
  %v8779 = vpop.f32.mrb[0].mxu0
  %v8780 = vpop.f32.mrb[0].mxu0
  %v8781 = vadd.f32 0.0, %v8780
  %v8782 = vpop.f32.mrb[0].mxu0
  %8783 = vmatprep.mubr.bf16.mxu0 0
  %8784 = vmatmul.mubr.bf16.gmra.mrb[0].mxu0 %v8629
  %v8785 = vpop.f32.mrb[0].mxu0
  %v8786 = vadd.f32 0.0, %v8785
  %v8787 = vpop.f32.mrb[0].mxu0
  %v8788 = vpop.f32.mrb[0].mxu0
  %v8789 = vadd.f32 0.0, %v8788
  %v8790 = vpop.f32.mrb[0].mxu0
  %8791 = vmatprep.mubr.bf16.mxu0 0
  %8792 = vmatmul.mubr.bf16.gmra.mrb[0].mxu0 %v8630
  %v8793 = vpop.f32.mrb[0].mxu0
  %v8794 = vadd.f32 0.0, %v8793
  %v8795 = vpop.f32.mrb[0].mxu0
  %v8796 = vpop.f32.mrb[0].mxu0
  %v8797 = vadd.f32 0.0, %v8796
  %v8798 = vpop.f32.mrb[0].mxu0
  %8799 = vmatprep.mubr.bf16.mxu0 0
  %8800 = vmatmul.mubr.bf16.gmra.mrb[0].mxu0 %v8631
  %v8801 = vpop.f32.mrb[0].mxu0
  %v8802 = vadd.f32 0.0, %v8801
  %v8803 = vpop.f32.mrb[0].mxu0
  %v8804 = vpop.f32.mrb[0].mxu0
  %v8805 = vadd.f32 0.0, %v8804
  %v8806 = vpop.f32.mrb[0].mxu0
  %8807 = vmatprep.mubr.bf16.mxu0 0
  %8808 = vmatmul.mubr.bf16.gmra.mrb[0].mxu0 %v8632
  %v8809 = vpop.f32.mrb[0].mxu0
  %v8810 = vadd.f32 0.0, %v8809
  %v8811 = vpop.f32.mrb[0].mxu0
  %v8812 = vpop.f32.mrb[0].mxu0
  %v8813 = vadd.f32 0.0, %v8812
  %v8814 = vpop.f32.mrb[0].mxu0
  %8815 = vmatprep.mubr.bf16.mxu0 0
  %8816 = vmatmul.mubr.bf16.gmra.mrb[0].mxu0 %v8633
  %v8817 = vpop.f32.mrb[0].mxu0
  %v8818 = vadd.f32 0.0, %v8817
  %v8819 = vpop.f32.mrb[0].mxu0
  %v8820 = vpop.f32.mrb[0].mxu0
  %v8821 = vadd.f32 0.0, %v8820
  %v8822 = vpop.f32.mrb[0].mxu0
  %8823 = vmatprep.mubr.bf16.mxu0 0
  %8824 = vmatmul.mubr.bf16.gmra.mrb[0].mxu0 %v8634
  %v8825 = vpop.f32.mrb[0].mxu0
  %v8826 = vadd.f32 0.0, %v8825
  %v8827 = vpop.f32.mrb[0].mxu0
  %v8828 = vpop.f32.mrb[0].mxu0
  %v8829 = vadd.f32 0.0, %v8828
  %v8830 = vpop.f32.mrb[0].mxu0
  %8831 = vmatprep.mubr.bf16.mxu0 0
  %8832 = vmatmul.mubr.bf16.gmra.mrb[0].mxu0 %v8635
  %v8833 = vpop.f32.mrb[0].mxu0
  %v8834 = vadd.f32 0.0, %v8833
  %v8835 = vpop.f32.mrb[0].mxu0
  %v8836 = vpop.f32.mrb[0].mxu0
  %v8837 = vadd.f32 0.0, %v8836
  %v8838 = vpop.f32.mrb[0].mxu0
  %8839 = vmatprep.mubr.bf16.mxu0 0
  %8840 = vmatmul.mubr.bf16.gmra.mrb[0].mxu0 %v8636
  %v8841 = vpop.f32.mrb[0].mxu0
  %v8842 = vadd.f32 0.0, %v8841
  %v8843 = vpop.f32.mrb[0].mxu0
  %v8844 = vpop.f32.mrb[0].mxu0
  %v8845 = vadd.f32 0.0, %v8844
  %v8846 = vpop.f32.mrb[0].mxu0
  %8847 = vmatprep.mubr.bf16.mxu0 0
  %8848 = vmatmul.mubr.bf16.gmra.mrb[0].mxu0 %v8637
  %v8849 = vpop.f32.mrb[0].mxu0
  %v8850 = vadd.f32 0.0, %v8849
  %v8851 = vpop.f32.mrb[0].mxu0
  %v8852 = vpop.f32.mrb[0].mxu0
  %v8853 = vadd.f32 0.0, %v8852
  %v8854 = vpop.f32.mrb[0].mxu0
  %8855 = vmatprep.mubr.bf16.mxu0 0
  %8856 = vmatmul.mubr.bf16.gmra.mrb[0].mxu0 %v8638
  %v8857 = vpop.f32.mrb[0].mxu0
  %v8858 = vadd.f32 0.0, %v8857
  %v8859 = vpop.f32.mrb[0].mxu0
  %v8860 = vpop.f32.mrb[0].mxu0
  %v8861 = vadd.f32 0.0, %v8860
  %v8862 = vpop.f32.mrb[0].mxu0
  %8863 = vdwg.mxu0
  %v8864 = vadd.f32 %v8591, %v8738
  %v8865 = vadd.f32 %v8592, %v8741
  %v8866 = vadd.f32 %v8593, %v8746
  %v8867 = vadd.f32 %v8594, %v8749
  %v8868 = vadd.f32 %v8595, %v8754
  %v8869 = vadd.f32 %v8596, %v8757
  %v8870 = vadd.f32 %v8597, %v8762
  %v8871 = vadd.f32 %v8598, %v8765
  %v8872 = vadd.f32 %v8599, %v8770
  %v8873 = vadd.f32 %v8600, %v8773
  %v8874 = vadd.f32 %v8601, %v8778
  %v8875 = vadd.f32 %v8602, %v8781
  %v8876 = vadd.f32 %v8603, %v8786
  %v8877 = vadd.f32 %v8604, %v8789
  %v8878 = vadd.f32 %v8605, %v8794
  %v8879 = vadd.f32 %v8606, %v8797
  %v8880 = vadd.f32 %v8607, %v8802
  %v8881 = vadd.f32 %v8608, %v8805
  %v8882 = vadd.f32 %v8609, %v8810
  %v8883 = vadd.f32 %v8610, %v8813
  %v8884 = vadd.f32 %v8611, %v8818
  %v8885 = vadd.f32 %v8612, %v8821
  %v8886 = vadd.f32 %v8613, %v8826
  %v8887 = vadd.f32 %v8614, %v8829
  %v8888 = vadd.f32 %v8615, %v8834
  %v8889 = vadd.f32 %v8616, %v8837
  %v8890 = vadd.f32 %v8617, %v8842
  %v8891 = vadd.f32 %v8618, %v8845
  %v8892 = vadd.f32 %v8619, %v8850
  %v8893 = vadd.f32 %v8620, %v8853
  %v8894 = vadd.f32 %v8621, %v8858
  %v8895 = vadd.f32 %v8622, %v8861
  %8896 = vst [vmem:[#allocation6] sm:$0xff] %v8864
  %8897 = vst [vmem:[#allocation6 + $0x8] sm:$0xff] %v8865
  %8898 = vst [vmem:[#allocation6 + $0x10] sm:$0xff] %v8866
  %8899 = vst [vmem:[#allocation6 + $0x18] sm:$0xff] %v8867
  %8900 = vst [vmem:[#allocation6 + $0x20] sm:$0xff] %v8868
  %8901 = vst [vmem:[#allocation6 + $0x28] sm:$0xff] %v8869
  %8902 = vst [vmem:[#allocation6 + $0x30] sm:$0xff] %v8870
  %8903 = vst [vmem:[#allocation6 + $0x38] sm:$0xff] %v8871
  %8904 = vst [vmem:[#allocation6 + $0x40] sm:$0xff] %v8872
  %8905 = vst [vmem:[#allocation6 + $0x48] sm:$0xff] %v8873
  %8906 = vst [vmem:[#allocation6 + $0x50] sm:$0xff] %v8874
  %8907 = vst [vmem:[#allocation6 + $0x58] sm:$0xff] %v8875
  %8908 = vst [vmem:[#allocation6 + $0x60] sm:$0xff] %v8876
  %8909 = vst [vmem:[#allocation6 + $0x68] sm:$0xff] %v8877
  %8910 = vst [vmem:[#allocation6 + $0x70] sm:$0xff] %v8878
  %8911 = vst [vmem:[#allocation6 + $0x78] sm:$0xff] %v8879
  %8912 = vst [vmem:[#allocation6 + $0x80] sm:$0xff] %v8880
  %8913 = vst [vmem:[#allocation6 + $0x88] sm:$0xff] %v8881
  %8914 = vst [vmem:[#allocation6 + $0x90] sm:$0xff] %v8882
  %8915 = vst [vmem:[#allocation6 + $0x98] sm:$0xff] %v8883
  %8916 = vst [vmem:[#allocation6 + $0xa0] sm:$0xff] %v8884
  %8917 = vst [vmem:[#allocation6 + $0xa8] sm:$0xff] %v8885
  %8918 = vst [vmem:[#allocation6 + $0xb0] sm:$0xff] %v8886
  %8919 = vst [vmem:[#allocation6 + $0xb8] sm:$0xff] %v8887
  %8920 = vst [vmem:[#allocation6 + $0xc0] sm:$0xff] %v8888
  %8921 = vst [vmem:[#allocation6 + $0xc8] sm:$0xff] %v8889
  %8922 = vst [vmem:[#allocation6 + $0xd0] sm:$0xff] %v8890
  %8923 = vst [vmem:[#allocation6 + $0xd8] sm:$0xff] %v8891
  %8924 = vst [vmem:[#allocation6 + $0xe0] sm:$0xff] %v8892
  %8925 = vst [vmem:[#allocation6 + $0xe8] sm:$0xff] %v8893
  %8926 = vst [vmem:[#allocation6 + $0xf0] sm:$0xff] %v8894
  %8927 = vst [vmem:[#allocation6 + $0xf8] sm:$0xff] %v8895
  %v8928 = vld [vmem:[#allocation6] sm:$0xff]
  %v8929 = vld [vmem:[#allocation6 + $0x8] sm:$0xff]
  %v8930 = vld [vmem:[#allocation6 + $0x10] sm:$0xff]
  %v8931 = vld [vmem:[#allocation6 + $0x18] sm:$0xff]
  %v8932 = vld [vmem:[#allocation6 + $0x20] sm:$0xff]
  %v8933 = vld [vmem:[#allocation6 + $0x28] sm:$0xff]
  %v8934 = vld [vmem:[#allocation6 + $0x30] sm:$0xff]
  %v8935 = vld [vmem:[#allocation6 + $0x38] sm:$0xff]
  %v8936 = vld [vmem:[#allocation6 + $0x40] sm:$0xff]
  %v8937 = vld [vmem:[#allocation6 + $0x48] sm:$0xff]
  %v8938 = vld [vmem:[#allocation6 + $0x50] sm:$0xff]
  %v8939 = vld [vmem:[#allocation6 + $0x58] sm:$0xff]
  %v8940 = vld [vmem:[#allocation6 + $0x60] sm:$0xff]
  %v8941 = vld [vmem:[#allocation6 + $0x68] sm:$0xff]
  %v8942 = vld [vmem:[#allocation6 + $0x70] sm:$0xff]
  %v8943 = vld [vmem:[#allocation6 + $0x78] sm:$0xff]
  %v8944 = vld [vmem:[#allocation6 + $0x80] sm:$0xff]
  %v8945 = vld [vmem:[#allocation6 + $0x88] sm:$0xff]
  %v8946 = vld [vmem:[#allocation6 + $0x90] sm:$0xff]
  %v8947 = vld [vmem:[#allocation6 + $0x98] sm:$0xff]
  %v8948 = vld [vmem:[#allocation6 + $0xa0] sm:$0xff]
  %v8949 = vld [vmem:[#allocation6 + $0xa8] sm:$0xff]
  %v8950 = vld [vmem:[#allocation6 + $0xb0] sm:$0xff]
  %v8951 = vld [vmem:[#allocation6 + $0xb8] sm:$0xff]
  %v8952 = vld [vmem:[#allocation6 + $0xc0] sm:$0xff]
  %v8953 = vld [vmem:[#allocation6 + $0xc8] sm:$0xff]
  %v8954 = vld [vmem:[#allocation6 + $0xd0] sm:$0xff]
  %v8955 = vld [vmem:[#allocation6 + $0xd8] sm:$0xff]
  %v8956 = vld [vmem:[#allocation6 + $0xe0] sm:$0xff]
  %v8957 = vld [vmem:[#allocation6 + $0xe8] sm:$0xff]
  %v8958 = vld [vmem:[#allocation6 + $0xf0] sm:$0xff]
  %v8959 = vld [vmem:[#allocation6 + $0xf8] sm:$0xff]
  %8960 = vst [vmem:[#allocation3 + $0x100] sm:$0xff] %v8928
  %8961 = vst [vmem:[#allocation3 + $0x108] sm:$0xff] %v8929
  %8962 = vst [vmem:[#allocation3 + $0x110] sm:$0xff] %v8930
  %8963 = vst [vmem:[#allocation3 + $0x118] sm:$0xff] %v8931
  %8964 = vst [vmem:[#allocation3 + $0x120] sm:$0xff] %v8932
  %8965 = vst [vmem:[#allocation3 + $0x128] sm:$0xff] %v8933
  %8966 = vst [vmem:[#allocation3 + $0x130] sm:$0xff] %v8934
  %8967 = vst [vmem:[#allocation3 + $0x138] sm:$0xff] %v8935
  %8968 = vst [vmem:[#allocation3 + $0x140] sm:$0xff] %v8936
  %8969 = vst [vmem:[#allocation3 + $0x148] sm:$0xff] %v8937
  %8970 = vst [vmem:[#allocation3 + $0x150] sm:$0xff] %v8938
  %8971 = vst [vmem:[#allocation3 + $0x158] sm:$0xff] %v8939
  %8972 = vst [vmem:[#allocation3 + $0x160] sm:$0xff] %v8940
  %8973 = vst [vmem:[#allocation3 + $0x168] sm:$0xff] %v8941
  %8974 = vst [vmem:[#allocation3 + $0x170] sm:$0xff] %v8942
  %8975 = vst [vmem:[#allocation3 + $0x178] sm:$0xff] %v8943
  %8976 = vst [vmem:[#allocation3 + $0x180] sm:$0xff] %v8944
  %8977 = vst [vmem:[#allocation3 + $0x188] sm:$0xff] %v8945
  %8978 = vst [vmem:[#allocation3 + $0x190] sm:$0xff] %v8946
  %8979 = vst [vmem:[#allocation3 + $0x198] sm:$0xff] %v8947
  %8980 = vst [vmem:[#allocation3 + $0x1a0] sm:$0xff] %v8948
  %8981 = vst [vmem:[#allocation3 + $0x1a8] sm:$0xff] %v8949
  %8982 = vst [vmem:[#allocation3 + $0x1b0] sm:$0xff] %v8950
  %8983 = vst [vmem:[#allocation3 + $0x1b8] sm:$0xff] %v8951
  %8984 = vst [vmem:[#allocation3 + $0x1c0] sm:$0xff] %v8952
  %8985 = vst [vmem:[#allocation3 + $0x1c8] sm:$0xff] %v8953
  %8986 = vst [vmem:[#allocation3 + $0x1d0] sm:$0xff] %v8954
  %8987 = vst [vmem:[#allocation3 + $0x1d8] sm:$0xff] %v8955
  %8988 = vst [vmem:[#allocation3 + $0x1e0] sm:$0xff] %v8956
  %8989 = vst [vmem:[#allocation3 + $0x1e8] sm:$0xff] %v8957
  %8990 = vst [vmem:[#allocation3 + $0x1f0] sm:$0xff] %v8958
  %8991 = vst [vmem:[#allocation3 + $0x1f8] sm:$0xff] %v8959
  %v8992 = vld [vmem:[#allocation3] sm:$0xff]
  %v8993 = vld [vmem:[#allocation3 + $0x8] sm:$0xff]
  %v8994 = vld [vmem:[#allocation3 + $0x10] sm:$0xff]
  %v8995 = vld [vmem:[#allocation3 + $0x18] sm:$0xff]
  %v8996 = vld [vmem:[#allocation3 + $0x20] sm:$0xff]
  %v8997 = vld [vmem:[#allocation3 + $0x28] sm:$0xff]
  %v8998 = vld [vmem:[#allocation3 + $0x30] sm:$0xff]
  %v8999 = vld [vmem:[#allocation3 + $0x38] sm:$0xff]
  %v9000 = vld [vmem:[#allocation3 + $0x40] sm:$0xff]
  %v9001 = vld [vmem:[#allocation3 + $0x48] sm:$0xff]
  %v9002 = vld [vmem:[#allocation3 + $0x50] sm:$0xff]
  %v9003 = vld [vmem:[#allocation3 + $0x58] sm:$0xff]
  %v9004 = vld [vmem:[#allocation3 + $0x60] sm:$0xff]
  %v9005 = vld [vmem:[#allocation3 + $0x68] sm:$0xff]
  %v9006 = vld [vmem:[#allocation3 + $0x70] sm:$0xff]
  %v9007 = vld [vmem:[#allocation3 + $0x78] sm:$0xff]
  %v9008 = vld [vmem:[#allocation3 + $0x80] sm:$0xff]
  %v9009 = vld [vmem:[#allocation3 + $0x88] sm:$0xff]
  %v9010 = vld [vmem:[#allocation3 + $0x90] sm:$0xff]
  %v9011 = vld [vmem:[#allocation3 + $0x98] sm:$0xff]
  %v9012 = vld [vmem:[#allocation3 + $0xa0] sm:$0xff]
  %v9013 = vld [vmem:[#allocation3 + $0xa8] sm:$0xff]
  %v9014 = vld [vmem:[#allocation3 + $0xb0] sm:$0xff]
  %v9015 = vld [vmem:[#allocation3 + $0xb8] sm:$0xff]
  %v9016 = vld [vmem:[#allocation3 + $0xc0] sm:$0xff]
  %v9017 = vld [vmem:[#allocation3 + $0xc8] sm:$0xff]
  %v9018 = vld [vmem:[#allocation3 + $0xd0] sm:$0xff]
  %v9019 = vld [vmem:[#allocation3 + $0xd8] sm:$0xff]
  %v9020 = vld [vmem:[#allocation3 + $0xe0] sm:$0xff]
  %v9021 = vld [vmem:[#allocation3 + $0xe8] sm:$0xff]
  %v9022 = vld [vmem:[#allocation3 + $0xf0] sm:$0xff]
  %v9023 = vld [vmem:[#allocation3 + $0xf8] sm:$0xff]
  %v9024 = vld [vmem:[#allocation3 + $0x100] sm:$0xff]
  %v9025 = vld [vmem:[#allocation3 + $0x108] sm:$0xff]
  %v9026 = vld [vmem:[#allocation3 + $0x110] sm:$0xff]
  %v9027 = vld [vmem:[#allocation3 + $0x118] sm:$0xff]
  %v9028 = vld [vmem:[#allocation3 + $0x120] sm:$0xff]
  %v9029 = vld [vmem:[#allocation3 + $0x128] sm:$0xff]
  %v9030 = vld [vmem:[#allocation3 + $0x130] sm:$0xff]
  %v9031 = vld [vmem:[#allocation3 + $0x138] sm:$0xff]
  %v9032 = vld [vmem:[#allocation3 + $0x140] sm:$0xff]
  %v9033 = vld [vmem:[#allocation3 + $0x148] sm:$0xff]
  %v9034 = vld [vmem:[#allocation3 + $0x150] sm:$0xff]
  %v9035 = vld [vmem:[#allocation3 + $0x158] sm:$0xff]
  %v9036 = vld [vmem:[#allocation3 + $0x160] sm:$0xff]
  %v9037 = vld [vmem:[#allocation3 + $0x168] sm:$0xff]
  %v9038 = vld [vmem:[#allocation3 + $0x170] sm:$0xff]
  %v9039 = vld [vmem:[#allocation3 + $0x178] sm:$0xff]
  %v9040 = vld [vmem:[#allocation3 + $0x180] sm:$0xff]
  %v9041 = vld [vmem:[#allocation3 + $0x188] sm:$0xff]
  %v9042 = vld [vmem:[#allocation3 + $0x190] sm:$0xff]
  %v9043 = vld [vmem:[#allocation3 + $0x198] sm:$0xff]
  %v9044 = vld [vmem:[#allocation3 + $0x1a0] sm:$0xff]
  %v9045 = vld [vmem:[#allocation3 + $0x1a8] sm:$0xff]
  %v9046 = vld [vmem:[#allocation3 + $0x1b0] sm:$0xff]
  %v9047 = vld [vmem:[#allocation3 + $0x1b8] sm:$0xff]
  %v9048 = vld [vmem:[#allocation3 + $0x1c0] sm:$0xff]
  %v9049 = vld [vmem:[#allocation3 + $0x1c8] sm:$0xff]
  %v9050 = vld [vmem:[#allocation3 + $0x1d0] sm:$0xff]
  %v9051 = vld [vmem:[#allocation3 + $0x1d8] sm:$0xff]
  %v9052 = vld [vmem:[#allocation3 + $0x1e0] sm:$0xff]
  %v9053 = vld [vmem:[#allocation3 + $0x1e8] sm:$0xff]
  %v9054 = vld [vmem:[#allocation3 + $0x1f0] sm:$0xff]
  %v9055 = vld [vmem:[#allocation3 + $0x1f8] sm:$0xff]
  %v9056 = vld [vmem:[%s6] sm:$0x1]
  %v9057 = vld [vmem:[%s7] sm:$0x1]
  %v9058 = vadd.f32 %v8992, %v8993
  %v9059 = vadd.f32 %v9058, %v8994
  %v9060 = vadd.f32 %v9059, %v8995
  %v9061 = vadd.f32 %v9060, %v8996
  %v9062 = vadd.f32 %v9061, %v8997
  %v9063 = vadd.f32 %v9062, %v8998
  %v9064 = vadd.f32 %v9063, %v8999
  %v9065 = vadd.f32 %v9064, %v9000
  %v9066 = vadd.f32 %v9065, %v9001
  %v9067 = vadd.f32 %v9066, %v9002
  %v9068 = vadd.f32 %v9067, %v9003
  %v9069 = vadd.f32 %v9068, %v9004
  %v9070 = vadd.f32 %v9069, %v9005
  %v9071 = vadd.f32 %v9070, %v9006
  %v9072 = vadd.f32 %v9071, %v9007
  %v9073 = vadd.f32 %v9072, %v9008
  %v9074 = vadd.f32 %v9073, %v9009
  %v9075 = vadd.f32 %v9074, %v9010
  %v9076 = vadd.f32 %v9075, %v9011
  %v9077 = vadd.f32 %v9076, %v9012
  %v9078 = vadd.f32 %v9077, %v9013
  %v9079 = vadd.f32 %v9078, %v9014
  %v9080 = vadd.f32 %v9079, %v9015
  %v9081 = vadd.f32 %v9080, %v9016
  %v9082 = vadd.f32 %v9081, %v9017
  %v9083 = vadd.f32 %v9082, %v9018
  %v9084 = vadd.f32 %v9083, %v9019
  %v9085 = vadd.f32 %v9084, %v9020
  %v9086 = vadd.f32 %v9085, %v9021
  %v9087 = vadd.f32 %v9086, %v9022
  %v9088 = vadd.f32 %v9087, %v9023
  %v9089 = vadd.f32 %v9088, %v9024
  %v9090 = vadd.f32 %v9089, %v9025
  %v9091 = vadd.f32 %v9090, %v9026
  %v9092 = vadd.f32 %v9091, %v9027
  %v9093 = vadd.f32 %v9092, %v9028
  %v9094 = vadd.f32 %v9093, %v9029
  %v9095 = vadd.f32 %v9094, %v9030
  %v9096 = vadd.f32 %v9095, %v9031
  %v9097 = vadd.f32 %v9096, %v9032
  %v9098 = vadd.f32 %v9097, %v9033
  %v9099 = vadd.f32 %v9098, %v9034
  %v9100 = vadd.f32 %v9099, %v9035
  %v9101 = vadd.f32 %v9100, %v9036
  %v9102 = vadd.f32 %v9101, %v9037
  %v9103 = vadd.f32 %v9102, %v9038
  %v9104 = vadd.f32 %v9103, %v9039
  %v9105 = vadd.f32 %v9104, %v9040
  %v9106 = vadd.f32 %v9105, %v9041
  %v9107 = vadd.f32 %v9106, %v9042
  %v9108 = vadd.f32 %v9107, %v9043
  %v9109 = vadd.f32 %v9108, %v9044
  %v9110 = vadd.f32 %v9109, %v9045
  %v9111 = vadd.f32 %v9110, %v9046
  %v9112 = vadd.f32 %v9111, %v9047
  %v9113 = vadd.f32 %v9112, %v9048
  %v9114 = vadd.f32 %v9113, %v9049
  %v9115 = vadd.f32 %v9114, %v9050
  %v9116 = vadd.f32 %v9115, %v9051
  %v9117 = vadd.f32 %v9116, %v9052
  %v9118 = vadd.f32 %v9117, %v9053
  %v9119 = vadd.f32 %v9118, %v9054
  %v9120 = vadd.f32 %v9119, %v9055
  %v9121 = vrot.slane %v9120, 4
  %v9122 = vadd.f32 %v9120, %v9121
  %v9123 = vrot.slane %v9122, 2
  %v9124 = vadd.f32 %v9122, %v9123
  %v9125 = vrot.slane %v9124, 1
  %v9126 = vadd.f32 %v9124, %v9125
  %v9127 = vmul.f32 %v9126, 0.001953125
  %v9128 = vmul.f32 %v8992, %v8992
  %v9129 = vmul.f32 %v8993, %v8993
  %v9130 = vmul.f32 %v8994, %v8994
  %v9131 = vmul.f32 %v8995, %v8995
  %v9132 = vmul.f32 %v8996, %v8996
  %v9133 = vmul.f32 %v8997, %v8997
  %v9134 = vmul.f32 %v8998, %v8998
  %v9135 = vmul.f32 %v8999, %v8999
  %v9136 = vmul.f32 %v9000, %v9000
  %v9137 = vmul.f32 %v9001, %v9001
  %v9138 = vmul.f32 %v9002, %v9002
  %v9139 = vmul.f32 %v9003, %v9003
  %v9140 = vmul.f32 %v9004, %v9004
  %v9141 = vmul.f32 %v9005, %v9005
  %v9142 = vmul.f32 %v9006, %v9006
  %v9143 = vmul.f32 %v9007, %v9007
  %v9144 = vmul.f32 %v9008, %v9008
  %v9145 = vmul.f32 %v9009, %v9009
  %v9146 = vmul.f32 %v9010, %v9010
  %v9147 = vmul.f32 %v9011, %v9011
  %v9148 = vmul.f32 %v9012, %v9012
  %v9149 = vmul.f32 %v9013, %v9013
  %v9150 = vmul.f32 %v9014, %v9014
  %v9151 = vmul.f32 %v9015, %v9015
  %v9152 = vmul.f32 %v9016, %v9016
  %v9153 = vmul.f32 %v9017, %v9017
  %v9154 = vmul.f32 %v9018, %v9018
  %v9155 = vmul.f32 %v9019, %v9019
  %v9156 = vmul.f32 %v9020, %v9020
  %v9157 = vmul.f32 %v9021, %v9021
  %v9158 = vmul.f32 %v9022, %v9022
  %v9159 = vmul.f32 %v9023, %v9023
  %v9160 = vmul.f32 %v9024, %v9024
  %v9161 = vmul.f32 %v9025, %v9025
  %v9162 = vmul.f32 %v9026, %v9026
  %v9163 = vmul.f32 %v9027, %v9027
  %v9164 = vmul.f32 %v9028, %v9028
  %v9165 = vmul.f32 %v9029, %v9029
  %v9166 = vmul.f32 %v9030, %v9030
  %v9167 = vmul.f32 %v9031, %v9031
  %v9168 = vmul.f32 %v9032, %v9032
  %v9169 = vmul.f32 %v9033, %v9033
  %v9170 = vmul.f32 %v9034, %v9034
  %v9171 = vmul.f32 %v9035, %v9035
  %v9172 = vmul.f32 %v9036, %v9036
  %v9173 = vmul.f32 %v9037, %v9037
  %v9174 = vmul.f32 %v9038, %v9038
  %v9175 = vmul.f32 %v9039, %v9039
  %v9176 = vmul.f32 %v9040, %v9040
  %v9177 = vmul.f32 %v9041, %v9041
  %v9178 = vmul.f32 %v9042, %v9042
  %v9179 = vmul.f32 %v9043, %v9043
  %v9180 = vmul.f32 %v9044, %v9044
  %v9181 = vmul.f32 %v9045, %v9045
  %v9182 = vmul.f32 %v9046, %v9046
  %v9183 = vmul.f32 %v9047, %v9047
  %v9184 = vmul.f32 %v9048, %v9048
  %v9185 = vmul.f32 %v9049, %v9049
  %v9186 = vmul.f32 %v9050, %v9050
  %v9187 = vmul.f32 %v9051, %v9051
  %v9188 = vmul.f32 %v9052, %v9052
  %v9189 = vmul.f32 %v9053, %v9053
  %v9190 = vmul.f32 %v9054, %v9054
  %v9191 = vmul.f32 %v9055, %v9055
  %v9192 = vadd.f32 %v9128, %v9129
  %v9193 = vadd.f32 %v9192, %v9130
  %v9194 = vadd.f32 %v9193, %v9131
  %v9195 = vadd.f32 %v9194, %v9132
  %v9196 = vadd.f32 %v9195, %v9133
  %v9197 = vadd.f32 %v9196, %v9134
  %v9198 = vadd.f32 %v9197, %v9135
  %v9199 = vadd.f32 %v9198, %v9136
  %v9200 = vadd.f32 %v9199, %v9137
  %v9201 = vadd.f32 %v9200, %v9138
  %v9202 = vadd.f32 %v9201, %v9139
  %v9203 = vadd.f32 %v9202, %v9140
  %v9204 = vadd.f32 %v9203, %v9141
  %v9205 = vadd.f32 %v9204, %v9142
  %v9206 = vadd.f32 %v9205, %v9143
  %v9207 = vadd.f32 %v9206, %v9144
  %v9208 = vadd.f32 %v9207, %v9145
  %v9209 = vadd.f32 %v9208, %v9146
  %v9210 = vadd.f32 %v9209, %v9147
  %v9211 = vadd.f32 %v9210, %v9148
  %v9212 = vadd.f32 %v9211, %v9149
  %v9213 = vadd.f32 %v9212, %v9150
  %v9214 = vadd.f32 %v9213, %v9151
  %v9215 = vadd.f32 %v9214, %v9152
  %v9216 = vadd.f32 %v9215, %v9153
  %v9217 = vadd.f32 %v9216, %v9154
  %v9218 = vadd.f32 %v9217, %v9155
  %v9219 = vadd.f32 %v9218, %v9156
  %v9220 = vadd.f32 %v9219, %v9157
  %v9221 = vadd.f32 %v9220, %v9158
  %v9222 = vadd.f32 %v9221, %v9159
  %v9223 = vadd.f32 %v9222, %v9160
  %v9224 = vadd.f32 %v9223, %v9161
  %v9225 = vadd.f32 %v9224, %v9162
  %v9226 = vadd.f32 %v9225, %v9163
  %v9227 = vadd.f32 %v9226, %v9164
  %v9228 = vadd.f32 %v9227, %v9165
  %v9229 = vadd.f32 %v9228, %v9166
  %v9230 = vadd.f32 %v9229, %v9167
  %v9231 = vadd.f32 %v9230, %v9168
  %v9232 = vadd.f32 %v9231, %v9169
  %v9233 = vadd.f32 %v9232, %v9170
  %v9234 = vadd.f32 %v9233, %v9171
  %v9235 = vadd.f32 %v9234, %v9172
  %v9236 = vadd.f32 %v9235, %v9173
  %v9237 = vadd.f32 %v9236, %v9174
  %v9238 = vadd.f32 %v9237, %v9175
  %v9239 = vadd.f32 %v9238, %v9176
  %v9240 = vadd.f32 %v9239, %v9177
  %v9241 = vadd.f32 %v9240, %v9178
  %v9242 = vadd.f32 %v9241, %v9179
  %v9243 = vadd.f32 %v9242, %v9180
  %v9244 = vadd.f32 %v9243, %v9181
  %v9245 = vadd.f32 %v9244, %v9182
  %v9246 = vadd.f32 %v9245, %v9183
  %v9247 = vadd.f32 %v9246, %v9184
  %v9248 = vadd.f32 %v9247, %v9185
  %v9249 = vadd.f32 %v9248, %v9186
  %v9250 = vadd.f32 %v9249, %v9187
  %v9251 = vadd.f32 %v9250, %v9188
  %v9252 = vadd.f32 %v9251, %v9189
  %v9253 = vadd.f32 %v9252, %v9190
  %v9254 = vadd.f32 %v9253, %v9191
  %v9255 = vrot.slane %v9254, 4
  %v9256 = vadd.f32 %v9254, %v9255
  %v9257 = vrot.slane %v9256, 2
  %v9258 = vadd.f32 %v9256, %v9257
  %v9259 = vrot.slane %v9258, 1
  %v9260 = vadd.f32 %v9258, %v9259
  %v9261 = vmul.f32 %v9260, 0.001953125
  %v9262 = vmul.f32 %v9127, %v9127
  %v9263 = vsub.f32 %v9261, %v9262
  %v9264 = vmax.f32 %v9263, 0.0
  %v9265 = vadd.f32 %v9264, 1e-05
  %v9266 = vrsqrt.pop %v9265
  %v9267 = vmul.f32 %v9056, %v9266
  %v9268 = vmul.f32 %v9127, %v9267
  %v9269 = vsub.f32 %v9057, %v9268
  %v9271 = vlaneseq
  %v9272 = vshrl.u32 %v9271, 7
  %v9273 = vsub.s32 0, %v9272
  %v9274 = vrot.slane %v9267, %v9273
  %v9276 = vmul.f32 %v8992, %v9274
  %v9277 = vmul.f32 %v8993, %v9274
  %v9278 = vmul.f32 %v8994, %v9274
  %v9279 = vmul.f32 %v8995, %v9274
  %v9280 = vmul.f32 %v8996, %v9274
  %v9281 = vmul.f32 %v8997, %v9274
  %v9282 = vmul.f32 %v8998, %v9274
  %v9283 = vmul.f32 %v8999, %v9274
  %v9284 = vmul.f32 %v9000, %v9274
  %v9285 = vmul.f32 %v9001, %v9274
  %v9286 = vmul.f32 %v9002, %v9274
  %v9287 = vmul.f32 %v9003, %v9274
  %v9288 = vmul.f32 %v9004, %v9274
  %v9289 = vmul.f32 %v9005, %v9274
  %v9290 = vmul.f32 %v9006, %v9274
  %v9291 = vmul.f32 %v9007, %v9274
  %v9292 = vmul.f32 %v9008, %v9274
  %v9293 = vmul.f32 %v9009, %v9274
  %v9294 = vmul.f32 %v9010, %v9274
  %v9295 = vmul.f32 %v9011, %v9274
  %v9296 = vmul.f32 %v9012, %v9274
  %v9297 = vmul.f32 %v9013, %v9274
  %v9298 = vmul.f32 %v9014, %v9274
  %v9299 = vmul.f32 %v9015, %v9274
  %v9300 = vmul.f32 %v9016, %v9274
  %v9301 = vmul.f32 %v9017, %v9274
  %v9302 = vmul.f32 %v9018, %v9274
  %v9303 = vmul.f32 %v9019, %v9274
  %v9304 = vmul.f32 %v9020, %v9274
  %v9305 = vmul.f32 %v9021, %v9274
  %v9306 = vmul.f32 %v9022, %v9274
  %v9307 = vmul.f32 %v9023, %v9274
  %v9308 = vmul.f32 %v9024, %v9274
  %v9309 = vmul.f32 %v9025, %v9274
  %v9310 = vmul.f32 %v9026, %v9274
  %v9311 = vmul.f32 %v9027, %v9274
  %v9312 = vmul.f32 %v9028, %v9274
  %v9313 = vmul.f32 %v9029, %v9274
  %v9314 = vmul.f32 %v9030, %v9274
  %v9315 = vmul.f32 %v9031, %v9274
  %v9316 = vmul.f32 %v9032, %v9274
  %v9317 = vmul.f32 %v9033, %v9274
  %v9318 = vmul.f32 %v9034, %v9274
  %v9319 = vmul.f32 %v9035, %v9274
  %v9320 = vmul.f32 %v9036, %v9274
  %v9321 = vmul.f32 %v9037, %v9274
  %v9322 = vmul.f32 %v9038, %v9274
  %v9323 = vmul.f32 %v9039, %v9274
  %v9324 = vmul.f32 %v9040, %v9274
  %v9325 = vmul.f32 %v9041, %v9274
  %v9326 = vmul.f32 %v9042, %v9274
  %v9327 = vmul.f32 %v9043, %v9274
  %v9328 = vmul.f32 %v9044, %v9274
  %v9329 = vmul.f32 %v9045, %v9274
  %v9330 = vmul.f32 %v9046, %v9274
  %v9331 = vmul.f32 %v9047, %v9274
  %v9332 = vmul.f32 %v9048, %v9274
  %v9333 = vmul.f32 %v9049, %v9274
  %v9334 = vmul.f32 %v9050, %v9274
  %v9335 = vmul.f32 %v9051, %v9274
  %v9336 = vmul.f32 %v9052, %v9274
  %v9337 = vmul.f32 %v9053, %v9274
  %v9338 = vmul.f32 %v9054, %v9274
  %v9339 = vmul.f32 %v9055, %v9274
  %v9341 = vlaneseq
  %v9342 = vshrl.u32 %v9341, 7
  %v9343 = vsub.s32 0, %v9342
  %v9344 = vrot.slane %v9269, %v9343
  %v9346 = vadd.f32 %v9276, %v9344
  %v9347 = vadd.f32 %v9277, %v9344
  %v9348 = vadd.f32 %v9278, %v9344
  %v9349 = vadd.f32 %v9279, %v9344
  %v9350 = vadd.f32 %v9280, %v9344
  %v9351 = vadd.f32 %v9281, %v9344
  %v9352 = vadd.f32 %v9282, %v9344
  %v9353 = vadd.f32 %v9283, %v9344
  %v9354 = vadd.f32 %v9284, %v9344
  %v9355 = vadd.f32 %v9285, %v9344
  %v9356 = vadd.f32 %v9286, %v9344
  %v9357 = vadd.f32 %v9287, %v9344
  %v9358 = vadd.f32 %v9288, %v9344
  %v9359 = vadd.f32 %v9289, %v9344
  %v9360 = vadd.f32 %v9290, %v9344
  %v9361 = vadd.f32 %v9291, %v9344
  %v9362 = vadd.f32 %v9292, %v9344
  %v9363 = vadd.f32 %v9293, %v9344
  %v9364 = vadd.f32 %v9294, %v9344
  %v9365 = vadd.f32 %v9295, %v9344
  %v9366 = vadd.f32 %v9296, %v9344
  %v9367 = vadd.f32 %v9297, %v9344
  %v9368 = vadd.f32 %v9298, %v9344
  %v9369 = vadd.f32 %v9299, %v9344
  %v9370 = vadd.f32 %v9300, %v9344
  %v9371 = vadd.f32 %v9301, %v9344
  %v9372 = vadd.f32 %v9302, %v9344
  %v9373 = vadd.f32 %v9303, %v9344
  %v9374 = vadd.f32 %v9304, %v9344
  %v9375 = vadd.f32 %v9305, %v9344
  %v9376 = vadd.f32 %v9306, %v9344
  %v9377 = vadd.f32 %v9307, %v9344
  %v9378 = vadd.f32 %v9308, %v9344
  %v9379 = vadd.f32 %v9309, %v9344
  %v9380 = vadd.f32 %v9310, %v9344
  %v9381 = vadd.f32 %v9311, %v9344
  %v9382 = vadd.f32 %v9312, %v9344
  %v9383 = vadd.f32 %v9313, %v9344
  %v9384 = vadd.f32 %v9314, %v9344
  %v9385 = vadd.f32 %v9315, %v9344
  %v9386 = vadd.f32 %v9316, %v9344
  %v9387 = vadd.f32 %v9317, %v9344
  %v9388 = vadd.f32 %v9318, %v9344
  %v9389 = vadd.f32 %v9319, %v9344
  %v9390 = vadd.f32 %v9320, %v9344
  %v9391 = vadd.f32 %v9321, %v9344
  %v9392 = vadd.f32 %v9322, %v9344
  %v9393 = vadd.f32 %v9323, %v9344
  %v9394 = vadd.f32 %v9324, %v9344
  %v9395 = vadd.f32 %v9325, %v9344
  %v9396 = vadd.f32 %v9326, %v9344
  %v9397 = vadd.f32 %v9327, %v9344
  %v9398 = vadd.f32 %v9328, %v9344
  %v9399 = vadd.f32 %v9329, %v9344
  %v9400 = vadd.f32 %v9330, %v9344
  %v9401 = vadd.f32 %v9331, %v9344
  %v9402 = vadd.f32 %v9332, %v9344
  %v9403 = vadd.f32 %v9333, %v9344
  %v9404 = vadd.f32 %v9334, %v9344
  %v9405 = vadd.f32 %v9335, %v9344
  %v9406 = vadd.f32 %v9336, %v9344
  %v9407 = vadd.f32 %v9337, %v9344
  %v9408 = vadd.f32 %v9338, %v9344
  %v9409 = vadd.f32 %v9339, %v9344
  %v9410 = vmax.f32 %v9346, 0.0
  %v9411 = vmax.f32 %v9347, 0.0
  %v9412 = vmax.f32 %v9348, 0.0
  %v9413 = vmax.f32 %v9349, 0.0
  %v9414 = vmax.f32 %v9350, 0.0
  %v9415 = vmax.f32 %v9351, 0.0
  %v9416 = vmax.f32 %v9352, 0.0
  %v9417 = vmax.f32 %v9353, 0.0
  %v9418 = vmax.f32 %v9354, 0.0
  %v9419 = vmax.f32 %v9355, 0.0
  %v9420 = vmax.f32 %v9356, 0.0
  %v9421 = vmax.f32 %v9357, 0.0
  %v9422 = vmax.f32 %v9358, 0.0
  %v9423 = vmax.f32 %v9359, 0.0
  %v9424 = vmax.f32 %v9360, 0.0
  %v9425 = vmax.f32 %v9361, 0.0
  %v9426 = vmax.f32 %v9362, 0.0
  %v9427 = vmax.f32 %v9363, 0.0
  %v9428 = vmax.f32 %v9364, 0.0
  %v9429 = vmax.f32 %v9365, 0.0
  %v9430 = vmax.f32 %v9366, 0.0
  %v9431 = vmax.f32 %v9367, 0.0
  %v9432 = vmax.f32 %v9368, 0.0
  %v9433 = vmax.f32 %v9369, 0.0
  %v9434 = vmax.f32 %v9370, 0.0
  %v9435 = vmax.f32 %v9371, 0.0
  %v9436 = vmax.f32 %v9372, 0.0
  %v9437 = vmax.f32 %v9373, 0.0
  %v9438 = vmax.f32 %v9374, 0.0
  %v9439 = vmax.f32 %v9375, 0.0
  %v9440 = vmax.f32 %v9376, 0.0
  %v9441 = vmax.f32 %v9377, 0.0
  %v9442 = vmax.f32 %v9378, 0.0
  %v9443 = vmax.f32 %v9379, 0.0
  %v9444 = vmax.f32 %v9380, 0.0
  %v9445 = vmax.f32 %v9381, 0.0
  %v9446 = vmax.f32 %v9382, 0.0
  %v9447 = vmax.f32 %v9383, 0.0
  %v9448 = vmax.f32 %v9384, 0.0
  %v9449 = vmax.f32 %v9385, 0.0
  %v9450 = vmax.f32 %v9386, 0.0
  %v9451 = vmax.f32 %v9387, 0.0
  %v9452 = vmax.f32 %v9388, 0.0
  %v9453 = vmax.f32 %v9389, 0.0
  %v9454 = vmax.f32 %v9390, 0.0
  %v9455 = vmax.f32 %v9391, 0.0
  %v9456 = vmax.f32 %v9392, 0.0
  %v9457 = vmax.f32 %v9393, 0.0
  %v9458 = vmax.f32 %v9394, 0.0
  %v9459 = vmax.f32 %v9395, 0.0
  %v9460 = vmax.f32 %v9396, 0.0
  %v9461 = vmax.f32 %v9397, 0.0
  %v9462 = vmax.f32 %v9398, 0.0
  %v9463 = vmax.f32 %v9399, 0.0
  %v9464 = vmax.f32 %v9400, 0.0
  %v9465 = vmax.f32 %v9401, 0.0
  %v9466 = vmax.f32 %v9402, 0.0
  %v9467 = vmax.f32 %v9403, 0.0
  %v9468 = vmax.f32 %v9404, 0.0
  %v9469 = vmax.f32 %v9405, 0.0
  %v9470 = vmax.f32 %v9406, 0.0
  %v9471 = vmax.f32 %v9407, 0.0
  %v9472 = vmax.f32 %v9408, 0.0
  %v9473 = vmax.f32 %v9409, 0.0
  %v9474 = vpack.c.bf16 %v9411, %v9410
  %v9475 = vpack.c.bf16 %v9413, %v9412
  %v9476 = vpack.c.bf16 %v9415, %v9414
  %v9477 = vpack.c.bf16 %v9417, %v9416
  %v9478 = vpack.c.bf16 %v9419, %v9418
  %v9479 = vpack.c.bf16 %v9421, %v9420
  %v9480 = vpack.c.bf16 %v9423, %v9422
  %v9481 = vpack.c.bf16 %v9425, %v9424
  %v9482 = vpack.c.bf16 %v9427, %v9426
  %v9483 = vpack.c.bf16 %v9429, %v9428
  %v9484 = vpack.c.bf16 %v9431, %v9430
  %v9485 = vpack.c.bf16 %v9433, %v9432
  %v9486 = vpack.c.bf16 %v9435, %v9434
  %v9487 = vpack.c.bf16 %v9437, %v9436
  %v9488 = vpack.c.bf16 %v9439, %v9438
  %v9489 = vpack.c.bf16 %v9441, %v9440
  %v9490 = vpack.c.bf16 %v9443, %v9442
  %v9491 = vpack.c.bf16 %v9445, %v9444
  %v9492 = vpack.c.bf16 %v9447, %v9446
  %v9493 = vpack.c.bf16 %v9449, %v9448
  %v9494 = vpack.c.bf16 %v9451, %v9450
  %v9495 = vpack.c.bf16 %v9453, %v9452
  %v9496 = vpack.c.bf16 %v9455, %v9454
  %v9497 = vpack.c.bf16 %v9457, %v9456
  %v9498 = vpack.c.bf16 %v9459, %v9458
  %v9499 = vpack.c.bf16 %v9461, %v9460
  %v9500 = vpack.c.bf16 %v9463, %v9462
  %v9501 = vpack.c.bf16 %v9465, %v9464
  %v9502 = vpack.c.bf16 %v9467, %v9466
  %v9503 = vpack.c.bf16 %v9469, %v9468
  %v9504 = vpack.c.bf16 %v9471, %v9470
  %v9505 = vpack.c.bf16 %v9473, %v9472
  %v9506 = vld [vmem:[%s3] sm:$0xf]
  %v9507 = vld [vmem:[%s3 + $0x4] sm:$0xf]
  %v9508 = vld [vmem:[%s3 + $0x8] sm:$0xf]
  %v9509 = vld [vmem:[%s3 + $0xc] sm:$0xf]
  %v9510 = vld [vmem:[%s3 + $0x10] sm:$0xf]
  %v9511 = vld [vmem:[%s3 + $0x14] sm:$0xf]
  %v9512 = vld [vmem:[%s3 + $0x18] sm:$0xf]
  %v9513 = vld [vmem:[%s3 + $0x1c] sm:$0xf]
  %v9514 = vld [vmem:[%s3 + $0x20] sm:$0xf]
  %v9515 = vld [vmem:[%s3 + $0x24] sm:$0xf]
  %v9516 = vld [vmem:[%s3 + $0x28] sm:$0xf]
  %v9517 = vld [vmem:[%s3 + $0x2c] sm:$0xf]
  %v9518 = vld [vmem:[%s3 + $0x30] sm:$0xf]
  %v9519 = vld [vmem:[%s3 + $0x34] sm:$0xf]
  %v9520 = vld [vmem:[%s3 + $0x38] sm:$0xf]
  %v9521 = vld [vmem:[%s3 + $0x3c] sm:$0xf]
  %v9538 = vunpack.c.l.b16 %v9506
  %v9539 = vunpack.c.l.b16 %v9507
  %v9540 = vunpack.c.l.b16 %v9508
  %v9541 = vunpack.c.l.b16 %v9509
  %v9542 = vunpack.c.l.b16 %v9510
  %v9543 = vunpack.c.l.b16 %v9511
  %v9544 = vunpack.c.l.b16 %v9512
  %v9545 = vunpack.c.l.b16 %v9513
  %v9546 = vunpack.c.l.b16 %v9514
  %v9547 = vunpack.c.l.b16 %v9515
  %v9548 = vunpack.c.l.b16 %v9516
  %v9549 = vunpack.c.l.b16 %v9517
  %v9550 = vunpack.c.l.b16 %v9518
  %v9551 = vunpack.c.l.b16 %v9519
  %v9552 = vunpack.c.l.b16 %v9520
  %v9553 = vunpack.c.l.b16 %v9521
  %v9554 = vpack.c.b16 %v9539, %v9538
  %v9555 = vpack.c.b16 %v9541, %v9540
  %v9556 = vpack.c.b16 %v9543, %v9542
  %v9557 = vpack.c.b16 %v9545, %v9544
  %v9558 = vpack.c.b16 %v9547, %v9546
  %v9559 = vpack.c.b16 %v9549, %v9548
  %v9560 = vpack.c.b16 %v9551, %v9550
  %v9561 = vpack.c.b16 %v9553, %v9552
  %9570 = vmatprep.subr.bf16.mxu0 0
  %9571 = vmatpush1.bf16.msra.mxu0 %v9554
  %9572 = vmatprep.subr.bf16.mxu0 0
  %9573 = vmatpush1.bf16.msra.mxu0 %v9555
  %9574 = vmatprep.subr.bf16.mxu0 0
  %9575 = vmatpush1.bf16.msra.mxu0 %v9556
  %9576 = vmatprep.subr.bf16.mxu0 0
  %9577 = vmatpush1.bf16.msra.mxu0 %v9557
  %9578 = vmatprep.subr.bf16.mxu0 0
  %9579 = vmatpush1.bf16.msra.mxu0 %v9558
  %9580 = vmatprep.subr.bf16.mxu0 0
  %9581 = vmatpush1.bf16.msra.mxu0 %v9559
  %9582 = vmatprep.subr.bf16.mxu0 0
  %9583 = vmatpush1.bf16.msra.mxu0 %v9560
  %9584 = vmatprep.subr.bf16.mxu0 0
  %9585 = vmatpush1.bf16.msra.mxu0 %v9561
  %9586 = vmatprep.subr.bf16.mxu0 0
  %9587 = vmatpush1.bf16.msra.mxu0 0
  %9588 = vmatprep.subr.bf16.mxu0 0
  %9589 = vmatpush1.bf16.msra.mxu0 0
  %9590 = vmatprep.subr.bf16.mxu0 0
  %9591 = vmatpush1.bf16.msra.mxu0 0
  %9592 = vmatprep.subr.bf16.mxu0 0
  %9593 = vmatpush1.bf16.msra.mxu0 0
  %9594 = vmatprep.subr.bf16.mxu0 0
  %9595 = vmatpush1.bf16.msra.mxu0 0
  %9596 = vmatprep.subr.bf16.mxu0 0
  %9597 = vmatpush1.bf16.msra.mxu0 0
  %9598 = vmatprep.subr.bf16.mxu0 0
  %9599 = vmatpush1.bf16.msra.mxu0 0
  %9600 = vmatprep.subr.bf16.mxu0 0
  %9601 = vmatpush1.bf16.msra.mxu0 0
  %9602 = vmatprep.mubr.bf16.mxu0 0
  %9603 = vmatmul.mubr.bf16.gmra.mrb[0].mxu0 %v9474
  %v9604 = vpop.f32.mrb[0].mxu0
  %v9605 = vadd.f32 0.0, %v9604
  %v9606 = vpop.f32.mrb[0].mxu0
  %v9607 = vpop.f32.mrb[0].mxu0
  %v9608 = vadd.f32 0.0, %v9607
  %v9609 = vpop.f32.mrb[0].mxu0
  %9610 = vmatprep.mubr.bf16.mxu0 0
  %9611 = vmatmul.mubr.bf16.gmra.mrb[0].mxu0 %v9475
  %v9612 = vpop.f32.mrb[0].mxu0
  %v9613 = vadd.f32 0.0, %v9612
  %v9614 = vpop.f32.mrb[0].mxu0
  %v9615 = vpop.f32.mrb[0].mxu0
  %v9616 = vadd.f32 0.0, %v9615
  %v9617 = vpop.f32.mrb[0].mxu0
  %9618 = vmatprep.mubr.bf16.mxu0 0
  %9619 = vmatmul.mubr.bf16.gmra.mrb[0].mxu0 %v9476
  %v9620 = vpop.f32.mrb[0].mxu0
  %v9621 = vadd.f32 0.0, %v9620
  %v9622 = vpop.f32.mrb[0].mxu0
  %v9623 = vpop.f32.mrb[0].mxu0
  %v9624 = vadd.f32 0.0, %v9623
  %v9625 = vpop.f32.mrb[0].mxu0
  %9626 = vmatprep.mubr.bf16.mxu0 0
  %9627 = vmatmul.mubr.bf16.gmra.mrb[0].mxu0 %v9477
  %v9628 = vpop.f32.mrb[0].mxu0
  %v9629 = vadd.f32 0.0, %v9628
  %v9630 = vpop.f32.mrb[0].mxu0
  %v9631 = vpop.f32.mrb[0].mxu0
  %v9632 = vadd.f32 0.0, %v9631
  %v9633 = vpop.f32.mrb[0].mxu0
  %9634 = vmatprep.mubr.bf16.mxu0 0
  %9635 = vmatmul.mubr.bf16.gmra.mrb[0].mxu0 %v9478
  %v9636 = vpop.f32.mrb[0].mxu0
  %v9637 = vadd.f32 0.0, %v9636
  %v9638 = vpop.f32.mrb[0].mxu0
  %v9639 = vpop.f32.mrb[0].mxu0
  %v9640 = vadd.f32 0.0, %v9639
  %v9641 = vpop.f32.mrb[0].mxu0
  %9642 = vmatprep.mubr.bf16.mxu0 0
  %9643 = vmatmul.mubr.bf16.gmra.mrb[0].mxu0 %v9479
  %v9644 = vpop.f32.mrb[0].mxu0
  %v9645 = vadd.f32 0.0, %v9644
  %v9646 = vpop.f32.mrb[0].mxu0
  %v9647 = vpop.f32.mrb[0].mxu0
  %v9648 = vadd.f32 0.0, %v9647
  %v9649 = vpop.f32.mrb[0].mxu0
  %9650 = vmatprep.mubr.bf16.mxu0 0
  %9651 = vmatmul.mubr.bf16.gmra.mrb[0].mxu0 %v9480
  %v9652 = vpop.f32.mrb[0].mxu0
  %v9653 = vadd.f32 0.0, %v9652
  %v9654 = vpop.f32.mrb[0].mxu0
  %v9655 = vpop.f32.mrb[0].mxu0
  %v9656 = vadd.f32 0.0, %v9655
  %v9657 = vpop.f32.mrb[0].mxu0
  %9658 = vmatprep.mubr.bf16.mxu0 0
  %9659 = vmatmul.mubr.bf16.gmra.mrb[0].mxu0 %v9481
  %v9660 = vpop.f32.mrb[0].mxu0
  %v9661 = vadd.f32 0.0, %v9660
  %v9662 = vpop.f32.mrb[0].mxu0
  %v9663 = vpop.f32.mrb[0].mxu0
  %v9664 = vadd.f32 0.0, %v9663
  %v9665 = vpop.f32.mrb[0].mxu0
  %9666 = vmatprep.mubr.bf16.mxu0 0
  %9667 = vmatmul.mubr.bf16.gmra.mrb[0].mxu0 %v9482
  %v9668 = vpop.f32.mrb[0].mxu0
  %v9669 = vadd.f32 0.0, %v9668
  %v9670 = vpop.f32.mrb[0].mxu0
  %v9671 = vpop.f32.mrb[0].mxu0
  %v9672 = vadd.f32 0.0, %v9671
  %v9673 = vpop.f32.mrb[0].mxu0
  %9674 = vmatprep.mubr.bf16.mxu0 0
  %9675 = vmatmul.mubr.bf16.gmra.mrb[0].mxu0 %v9483
  %v9676 = vpop.f32.mrb[0].mxu0
  %v9677 = vadd.f32 0.0, %v9676
  %v9678 = vpop.f32.mrb[0].mxu0
  %v9679 = vpop.f32.mrb[0].mxu0
  %v9680 = vadd.f32 0.0, %v9679
  %v9681 = vpop.f32.mrb[0].mxu0
  %9682 = vmatprep.mubr.bf16.mxu0 0
  %9683 = vmatmul.mubr.bf16.gmra.mrb[0].mxu0 %v9484
  %v9684 = vpop.f32.mrb[0].mxu0
  %v9685 = vadd.f32 0.0, %v9684
  %v9686 = vpop.f32.mrb[0].mxu0
  %v9687 = vpop.f32.mrb[0].mxu0
  %v9688 = vadd.f32 0.0, %v9687
  %v9689 = vpop.f32.mrb[0].mxu0
  %9690 = vmatprep.mubr.bf16.mxu0 0
  %9691 = vmatmul.mubr.bf16.gmra.mrb[0].mxu0 %v9485
  %v9692 = vpop.f32.mrb[0].mxu0
  %v9693 = vadd.f32 0.0, %v9692
  %v9694 = vpop.f32.mrb[0].mxu0
  %v9695 = vpop.f32.mrb[0].mxu0
  %v9696 = vadd.f32 0.0, %v9695
  %v9697 = vpop.f32.mrb[0].mxu0
  %9698 = vmatprep.mubr.bf16.mxu0 0
  %9699 = vmatmul.mubr.bf16.gmra.mrb[0].mxu0 %v9486
  %v9700 = vpop.f32.mrb[0].mxu0
  %v9701 = vadd.f32 0.0, %v9700
  %v9702 = vpop.f32.mrb[0].mxu0
  %v9703 = vpop.f32.mrb[0].mxu0
  %v9704 = vadd.f32 0.0, %v9703
  %v9705 = vpop.f32.mrb[0].mxu0
  %9706 = vmatprep.mubr.bf16.mxu0 0
  %9707 = vmatmul.mubr.bf16.gmra.mrb[0].mxu0 %v9487
  %v9708 = vpop.f32.mrb[0].mxu0
  %v9709 = vadd.f32 0.0, %v9708
  %v9710 = vpop.f32.mrb[0].mxu0
  %v9711 = vpop.f32.mrb[0].mxu0
  %v9712 = vadd.f32 0.0, %v9711
  %v9713 = vpop.f32.mrb[0].mxu0
  %9714 = vmatprep.mubr.bf16.mxu0 0
  %9715 = vmatmul.mubr.bf16.gmra.mrb[0].mxu0 %v9488
  %v9716 = vpop.f32.mrb[0].mxu0
  %v9717 = vadd.f32 0.0, %v9716
  %v9718 = vpop.f32.mrb[0].mxu0
  %v9719 = vpop.f32.mrb[0].mxu0
  %v9720 = vadd.f32 0.0, %v9719
  %v9721 = vpop.f32.mrb[0].mxu0
  %9722 = vmatprep.mubr.bf16.mxu0 0
  %9723 = vmatmul.mubr.bf16.gmra.mrb[0].mxu0 %v9489
  %v9724 = vpop.f32.mrb[0].mxu0
  %v9725 = vadd.f32 0.0, %v9724
  %v9726 = vpop.f32.mrb[0].mxu0
  %v9727 = vpop.f32.mrb[0].mxu0
  %v9728 = vadd.f32 0.0, %v9727
  %v9729 = vpop.f32.mrb[0].mxu0
  %9730 = vmatprep.mubr.bf16.mxu0 0
  %9731 = vmatmul.mubr.bf16.gmra.mrb[0].mxu0 %v9490
  %v9732 = vpop.f32.mrb[0].mxu0
  %v9733 = vadd.f32 0.0, %v9732
  %v9734 = vpop.f32.mrb[0].mxu0
  %v9735 = vpop.f32.mrb[0].mxu0
  %v9736 = vadd.f32 0.0, %v9735
  %v9737 = vpop.f32.mrb[0].mxu0
  %9738 = vmatprep.mubr.bf16.mxu0 0
  %9739 = vmatmul.mubr.bf16.gmra.mrb[0].mxu0 %v9491
  %v9740 = vpop.f32.mrb[0].mxu0
  %v9741 = vadd.f32 0.0, %v9740
  %v9742 = vpop.f32.mrb[0].mxu0
  %v9743 = vpop.f32.mrb[0].mxu0
  %v9744 = vadd.f32 0.0, %v9743
  %v9745 = vpop.f32.mrb[0].mxu0
  %9746 = vmatprep.mubr.bf16.mxu0 0
  %9747 = vmatmul.mubr.bf16.gmra.mrb[0].mxu0 %v9492
  %v9748 = vpop.f32.mrb[0].mxu0
  %v9749 = vadd.f32 0.0, %v9748
  %v9750 = vpop.f32.mrb[0].mxu0
  %v9751 = vpop.f32.mrb[0].mxu0
  %v9752 = vadd.f32 0.0, %v9751
  %v9753 = vpop.f32.mrb[0].mxu0
  %9754 = vmatprep.mubr.bf16.mxu0 0
  %9755 = vmatmul.mubr.bf16.gmra.mrb[0].mxu0 %v9493
  %v9756 = vpop.f32.mrb[0].mxu0
  %v9757 = vadd.f32 0.0, %v9756
  %v9758 = vpop.f32.mrb[0].mxu0
  %v9759 = vpop.f32.mrb[0].mxu0
  %v9760 = vadd.f32 0.0, %v9759
  %v9761 = vpop.f32.mrb[0].mxu0
  %9762 = vmatprep.mubr.bf16.mxu0 0
  %9763 = vmatmul.mubr.bf16.gmra.mrb[0].mxu0 %v9494
  %v9764 = vpop.f32.mrb[0].mxu0
  %v9765 = vadd.f32 0.0, %v9764
  %v9766 = vpop.f32.mrb[0].mxu0
  %v9767 = vpop.f32.mrb[0].mxu0
  %v9768 = vadd.f32 0.0, %v9767
  %v9769 = vpop.f32.mrb[0].mxu0
  %9770 = vmatprep.mubr.bf16.mxu0 0
  %9771 = vmatmul.mubr.bf16.gmra.mrb[0].mxu0 %v9495
  %v9772 = vpop.f32.mrb[0].mxu0
  %v9773 = vadd.f32 0.0, %v9772
  %v9774 = vpop.f32.mrb[0].mxu0
  %v9775 = vpop.f32.mrb[0].mxu0
  %v9776 = vadd.f32 0.0, %v9775
  %v9777 = vpop.f32.mrb[0].mxu0
  %9778 = vmatprep.mubr.bf16.mxu0 0
  %9779 = vmatmul.mubr.bf16.gmra.mrb[0].mxu0 %v9496
  %v9780 = vpop.f32.mrb[0].mxu0
  %v9781 = vadd.f32 0.0, %v9780
  %v9782 = vpop.f32.mrb[0].mxu0
  %v9783 = vpop.f32.mrb[0].mxu0
  %v9784 = vadd.f32 0.0, %v9783
  %v9785 = vpop.f32.mrb[0].mxu0
  %9786 = vmatprep.mubr.bf16.mxu0 0
  %9787 = vmatmul.mubr.bf16.gmra.mrb[0].mxu0 %v9497
  %v9788 = vpop.f32.mrb[0].mxu0
  %v9789 = vadd.f32 0.0, %v9788
  %v9790 = vpop.f32.mrb[0].mxu0
  %v9791 = vpop.f32.mrb[0].mxu0
  %v9792 = vadd.f32 0.0, %v9791
  %v9793 = vpop.f32.mrb[0].mxu0
  %9794 = vmatprep.mubr.bf16.mxu0 0
  %9795 = vmatmul.mubr.bf16.gmra.mrb[0].mxu0 %v9498
  %v9796 = vpop.f32.mrb[0].mxu0
  %v9797 = vadd.f32 0.0, %v9796
  %v9798 = vpop.f32.mrb[0].mxu0
  %v9799 = vpop.f32.mrb[0].mxu0
  %v9800 = vadd.f32 0.0, %v9799
  %v9801 = vpop.f32.mrb[0].mxu0
  %9802 = vmatprep.mubr.bf16.mxu0 0
  %9803 = vmatmul.mubr.bf16.gmra.mrb[0].mxu0 %v9499
  %v9804 = vpop.f32.mrb[0].mxu0
  %v9805 = vadd.f32 0.0, %v9804
  %v9806 = vpop.f32.mrb[0].mxu0
  %v9807 = vpop.f32.mrb[0].mxu0
  %v9808 = vadd.f32 0.0, %v9807
  %v9809 = vpop.f32.mrb[0].mxu0
  %9810 = vmatprep.mubr.bf16.mxu0 0
  %9811 = vmatmul.mubr.bf16.gmra.mrb[0].mxu0 %v9500
  %v9812 = vpop.f32.mrb[0].mxu0
  %v9813 = vadd.f32 0.0, %v9812
  %v9814 = vpop.f32.mrb[0].mxu0
  %v9815 = vpop.f32.mrb[0].mxu0
  %v9816 = vadd.f32 0.0, %v9815
  %v9817 = vpop.f32.mrb[0].mxu0
  %9818 = vmatprep.mubr.bf16.mxu0 0
  %9819 = vmatmul.mubr.bf16.gmra.mrb[0].mxu0 %v9501
  %v9820 = vpop.f32.mrb[0].mxu0
  %v9821 = vadd.f32 0.0, %v9820
  %v9822 = vpop.f32.mrb[0].mxu0
  %v9823 = vpop.f32.mrb[0].mxu0
  %v9824 = vadd.f32 0.0, %v9823
  %v9825 = vpop.f32.mrb[0].mxu0
  %9826 = vmatprep.mubr.bf16.mxu0 0
  %9827 = vmatmul.mubr.bf16.gmra.mrb[0].mxu0 %v9502
  %v9828 = vpop.f32.mrb[0].mxu0
  %v9829 = vadd.f32 0.0, %v9828
  %v9830 = vpop.f32.mrb[0].mxu0
  %v9831 = vpop.f32.mrb[0].mxu0
  %v9832 = vadd.f32 0.0, %v9831
  %v9833 = vpop.f32.mrb[0].mxu0
  %9834 = vmatprep.mubr.bf16.mxu0 0
  %9835 = vmatmul.mubr.bf16.gmra.mrb[0].mxu0 %v9503
  %v9836 = vpop.f32.mrb[0].mxu0
  %v9837 = vadd.f32 0.0, %v9836
  %v9838 = vpop.f32.mrb[0].mxu0
  %v9839 = vpop.f32.mrb[0].mxu0
  %v9840 = vadd.f32 0.0, %v9839
  %v9841 = vpop.f32.mrb[0].mxu0
  %9842 = vmatprep.mubr.bf16.mxu0 0
  %9843 = vmatmul.mubr.bf16.gmra.mrb[0].mxu0 %v9504
  %v9844 = vpop.f32.mrb[0].mxu0
  %v9845 = vadd.f32 0.0, %v9844
  %v9846 = vpop.f32.mrb[0].mxu0
  %v9847 = vpop.f32.mrb[0].mxu0
  %v9848 = vadd.f32 0.0, %v9847
  %v9849 = vpop.f32.mrb[0].mxu0
  %9850 = vmatprep.mubr.bf16.mxu0 0
  %9851 = vmatmul.mubr.bf16.gmra.mrb[0].mxu0 %v9505
  %v9852 = vpop.f32.mrb[0].mxu0
  %v9853 = vadd.f32 0.0, %v9852
  %v9854 = vpop.f32.mrb[0].mxu0
  %v9855 = vpop.f32.mrb[0].mxu0
  %v9856 = vadd.f32 0.0, %v9855
  %v9857 = vpop.f32.mrb[0].mxu0
  %9858 = vdwg.mxu0
  %9859 = vst [vmem:[#allocation4] sm:$0xff] %v9605
  %9860 = vst [vmem:[#allocation4 + $0x8] sm:$0xff] %v9608
  %9861 = vst [vmem:[#allocation4 + $0x10] sm:$0xff] %v9613
  %9862 = vst [vmem:[#allocation4 + $0x18] sm:$0xff] %v9616
  %9863 = vst [vmem:[#allocation4 + $0x20] sm:$0xff] %v9621
  %9864 = vst [vmem:[#allocation4 + $0x28] sm:$0xff] %v9624
  %9865 = vst [vmem:[#allocation4 + $0x30] sm:$0xff] %v9629
  %9866 = vst [vmem:[#allocation4 + $0x38] sm:$0xff] %v9632
  %9867 = vst [vmem:[#allocation4 + $0x40] sm:$0xff] %v9637
  %9868 = vst [vmem:[#allocation4 + $0x48] sm:$0xff] %v9640
  %9869 = vst [vmem:[#allocation4 + $0x50] sm:$0xff] %v9645
  %9870 = vst [vmem:[#allocation4 + $0x58] sm:$0xff] %v9648
  %9871 = vst [vmem:[#allocation4 + $0x60] sm:$0xff] %v9653
  %9872 = vst [vmem:[#allocation4 + $0x68] sm:$0xff] %v9656
  %9873 = vst [vmem:[#allocation4 + $0x70] sm:$0xff] %v9661
  %9874 = vst [vmem:[#allocation4 + $0x78] sm:$0xff] %v9664
  %9875 = vst [vmem:[#allocation4 + $0x80] sm:$0xff] %v9669
  %9876 = vst [vmem:[#allocation4 + $0x88] sm:$0xff] %v9672
  %9877 = vst [vmem:[#allocation4 + $0x90] sm:$0xff] %v9677
  %9878 = vst [vmem:[#allocation4 + $0x98] sm:$0xff] %v9680
  %9879 = vst [vmem:[#allocation4 + $0xa0] sm:$0xff] %v9685
  %9880 = vst [vmem:[#allocation4 + $0xa8] sm:$0xff] %v9688
  %9881 = vst [vmem:[#allocation4 + $0xb0] sm:$0xff] %v9693
  %9882 = vst [vmem:[#allocation4 + $0xb8] sm:$0xff] %v9696
  %9883 = vst [vmem:[#allocation4 + $0xc0] sm:$0xff] %v9701
  %9884 = vst [vmem:[#allocation4 + $0xc8] sm:$0xff] %v9704
  %9885 = vst [vmem:[#allocation4 + $0xd0] sm:$0xff] %v9709
  %9886 = vst [vmem:[#allocation4 + $0xd8] sm:$0xff] %v9712
  %9887 = vst [vmem:[#allocation4 + $0xe0] sm:$0xff] %v9717
  %9888 = vst [vmem:[#allocation4 + $0xe8] sm:$0xff] %v9720
  %9889 = vst [vmem:[#allocation4 + $0xf0] sm:$0xff] %v9725
  %9890 = vst [vmem:[#allocation4 + $0xf8] sm:$0xff] %v9728
  %9891 = vst [vmem:[#allocation4 + $0x100] sm:$0xff] %v9733
  %9892 = vst [vmem:[#allocation4 + $0x108] sm:$0xff] %v9736
  %9893 = vst [vmem:[#allocation4 + $0x110] sm:$0xff] %v9741
  %9894 = vst [vmem:[#allocation4 + $0x118] sm:$0xff] %v9744
  %9895 = vst [vmem:[#allocation4 + $0x120] sm:$0xff] %v9749
  %9896 = vst [vmem:[#allocation4 + $0x128] sm:$0xff] %v9752
  %9897 = vst [vmem:[#allocation4 + $0x130] sm:$0xff] %v9757
  %9898 = vst [vmem:[#allocation4 + $0x138] sm:$0xff] %v9760
  %9899 = vst [vmem:[#allocation4 + $0x140] sm:$0xff] %v9765
  %9900 = vst [vmem:[#allocation4 + $0x148] sm:$0xff] %v9768
  %9901 = vst [vmem:[#allocation4 + $0x150] sm:$0xff] %v9773
  %9902 = vst [vmem:[#allocation4 + $0x158] sm:$0xff] %v9776
  %9903 = vst [vmem:[#allocation4 + $0x160] sm:$0xff] %v9781
  %9904 = vst [vmem:[#allocation4 + $0x168] sm:$0xff] %v9784
  %9905 = vst [vmem:[#allocation4 + $0x170] sm:$0xff] %v9789
  %9906 = vst [vmem:[#allocation4 + $0x178] sm:$0xff] %v9792
  %9907 = vst [vmem:[#allocation4 + $0x180] sm:$0xff] %v9797
  %9908 = vst [vmem:[#allocation4 + $0x188] sm:$0xff] %v9800
  %9909 = vst [vmem:[#allocation4 + $0x190] sm:$0xff] %v9805
  %9910 = vst [vmem:[#allocation4 + $0x198] sm:$0xff] %v9808
  %9911 = vst [vmem:[#allocation4 + $0x1a0] sm:$0xff] %v9813
  %9912 = vst [vmem:[#allocation4 + $0x1a8] sm:$0xff] %v9816
  %9913 = vst [vmem:[#allocation4 + $0x1b0] sm:$0xff] %v9821
  %9914 = vst [vmem:[#allocation4 + $0x1b8] sm:$0xff] %v9824
  %9915 = vst [vmem:[#allocation4 + $0x1c0] sm:$0xff] %v9829
  %9916 = vst [vmem:[#allocation4 + $0x1c8] sm:$0xff] %v9832
  %9917 = vst [vmem:[#allocation4 + $0x1d0] sm:$0xff] %v9837
  %9918 = vst [vmem:[#allocation4 + $0x1d8] sm:$0xff] %v9840
  %9919 = vst [vmem:[#allocation4 + $0x1e0] sm:$0xff] %v9845
  %9920 = vst [vmem:[#allocation4 + $0x1e8] sm:$0xff] %v9848
  %9921 = vst [vmem:[#allocation4 + $0x1f0] sm:$0xff] %v9853
  %9922 = vst [vmem:[#allocation4 + $0x1f8] sm:$0xff] %v9856
  %v9923 = vld [vmem:[#allocation4] sm:$0xff]
  %v9924 = vld [vmem:[#allocation4 + $0x8] sm:$0xff]
  %v9925 = vld [vmem:[#allocation4 + $0x10] sm:$0xff]
  %v9926 = vld [vmem:[#allocation4 + $0x18] sm:$0xff]
  %v9927 = vld [vmem:[#allocation4 + $0x20] sm:$0xff]
  %v9928 = vld [vmem:[#allocation4 + $0x28] sm:$0xff]
  %v9929 = vld [vmem:[#allocation4 + $0x30] sm:$0xff]
  %v9930 = vld [vmem:[#allocation4 + $0x38] sm:$0xff]
  %v9931 = vld [vmem:[#allocation4 + $0x40] sm:$0xff]
  %v9932 = vld [vmem:[#allocation4 + $0x48] sm:$0xff]
  %v9933 = vld [vmem:[#allocation4 + $0x50] sm:$0xff]
  %v9934 = vld [vmem:[#allocation4 + $0x58] sm:$0xff]
  %v9935 = vld [vmem:[#allocation4 + $0x60] sm:$0xff]
  %v9936 = vld [vmem:[#allocation4 + $0x68] sm:$0xff]
  %v9937 = vld [vmem:[#allocation4 + $0x70] sm:$0xff]
  %v9938 = vld [vmem:[#allocation4 + $0x78] sm:$0xff]
  %v9939 = vld [vmem:[#allocation4 + $0x80] sm:$0xff]
  %v9940 = vld [vmem:[#allocation4 + $0x88] sm:$0xff]
  %v9941 = vld [vmem:[#allocation4 + $0x90] sm:$0xff]
  %v9942 = vld [vmem:[#allocation4 + $0x98] sm:$0xff]
  %v9943 = vld [vmem:[#allocation4 + $0xa0] sm:$0xff]
  %v9944 = vld [vmem:[#allocation4 + $0xa8] sm:$0xff]
  %v9945 = vld [vmem:[#allocation4 + $0xb0] sm:$0xff]
  %v9946 = vld [vmem:[#allocation4 + $0xb8] sm:$0xff]
  %v9947 = vld [vmem:[#allocation4 + $0xc0] sm:$0xff]
  %v9948 = vld [vmem:[#allocation4 + $0xc8] sm:$0xff]
  %v9949 = vld [vmem:[#allocation4 + $0xd0] sm:$0xff]
  %v9950 = vld [vmem:[#allocation4 + $0xd8] sm:$0xff]
  %v9951 = vld [vmem:[#allocation4 + $0xe0] sm:$0xff]
  %v9952 = vld [vmem:[#allocation4 + $0xe8] sm:$0xff]
  %v9953 = vld [vmem:[#allocation4 + $0xf0] sm:$0xff]
  %v9954 = vld [vmem:[#allocation4 + $0xf8] sm:$0xff]
  %v9955 = vld [vmem:[#allocation4 + $0x100] sm:$0xff]
  %v9956 = vld [vmem:[#allocation4 + $0x108] sm:$0xff]
  %v9957 = vld [vmem:[#allocation4 + $0x110] sm:$0xff]
  %v9958 = vld [vmem:[#allocation4 + $0x118] sm:$0xff]
  %v9959 = vld [vmem:[#allocation4 + $0x120] sm:$0xff]
  %v9960 = vld [vmem:[#allocation4 + $0x128] sm:$0xff]
  %v9961 = vld [vmem:[#allocation4 + $0x130] sm:$0xff]
  %v9962 = vld [vmem:[#allocation4 + $0x138] sm:$0xff]
  %v9963 = vld [vmem:[#allocation4 + $0x140] sm:$0xff]
  %v9964 = vld [vmem:[#allocation4 + $0x148] sm:$0xff]
  %v9965 = vld [vmem:[#allocation4 + $0x150] sm:$0xff]
  %v9966 = vld [vmem:[#allocation4 + $0x158] sm:$0xff]
  %v9967 = vld [vmem:[#allocation4 + $0x160] sm:$0xff]
  %v9968 = vld [vmem:[#allocation4 + $0x168] sm:$0xff]
  %v9969 = vld [vmem:[#allocation4 + $0x170] sm:$0xff]
  %v9970 = vld [vmem:[#allocation4 + $0x178] sm:$0xff]
  %v9971 = vld [vmem:[#allocation4 + $0x180] sm:$0xff]
  %v9972 = vld [vmem:[#allocation4 + $0x188] sm:$0xff]
  %v9973 = vld [vmem:[#allocation4 + $0x190] sm:$0xff]
  %v9974 = vld [vmem:[#allocation4 + $0x198] sm:$0xff]
  %v9975 = vld [vmem:[#allocation4 + $0x1a0] sm:$0xff]
  %v9976 = vld [vmem:[#allocation4 + $0x1a8] sm:$0xff]
  %v9977 = vld [vmem:[#allocation4 + $0x1b0] sm:$0xff]
  %v9978 = vld [vmem:[#allocation4 + $0x1b8] sm:$0xff]
  %v9979 = vld [vmem:[#allocation4 + $0x1c0] sm:$0xff]
  %v9980 = vld [vmem:[#allocation4 + $0x1c8] sm:$0xff]
  %v9981 = vld [vmem:[#allocation4 + $0x1d0] sm:$0xff]
  %v9982 = vld [vmem:[#allocation4 + $0x1d8] sm:$0xff]
  %v9983 = vld [vmem:[#allocation4 + $0x1e0] sm:$0xff]
  %v9984 = vld [vmem:[#allocation4 + $0x1e8] sm:$0xff]
  %v9985 = vld [vmem:[#allocation4 + $0x1f0] sm:$0xff]
  %v9986 = vld [vmem:[#allocation4 + $0x1f8] sm:$0xff]
  %v9987 = vld [vmem:[%s8] sm:$0x1]
  %v9988 = vld [vmem:[%s9] sm:$0x1]
  %v9989 = vadd.f32 %v9923, %v9924
  %v9990 = vadd.f32 %v9989, %v9925
  %v9991 = vadd.f32 %v9990, %v9926
  %v9992 = vadd.f32 %v9991, %v9927
  %v9993 = vadd.f32 %v9992, %v9928
  %v9994 = vadd.f32 %v9993, %v9929
  %v9995 = vadd.f32 %v9994, %v9930
  %v9996 = vadd.f32 %v9995, %v9931
  %v9997 = vadd.f32 %v9996, %v9932
  %v9998 = vadd.f32 %v9997, %v9933
  %v9999 = vadd.f32 %v9998, %v9934
  %v10000 = vadd.f32 %v9999, %v9935
  %v10001 = vadd.f32 %v10000, %v9936
  %v10002 = vadd.f32 %v10001, %v9937
  %v10003 = vadd.f32 %v10002, %v9938
  %v10004 = vadd.f32 %v10003, %v9939
  %v10005 = vadd.f32 %v10004, %v9940
  %v10006 = vadd.f32 %v10005, %v9941
  %v10007 = vadd.f32 %v10006, %v9942
  %v10008 = vadd.f32 %v10007, %v9943
  %v10009 = vadd.f32 %v10008, %v9944
  %v10010 = vadd.f32 %v10009, %v9945
  %v10011 = vadd.f32 %v10010, %v9946
  %v10012 = vadd.f32 %v10011, %v9947
  %v10013 = vadd.f32 %v10012, %v9948
  %v10014 = vadd.f32 %v10013, %v9949
  %v10015 = vadd.f32 %v10014, %v9950
  %v10016 = vadd.f32 %v10015, %v9951
  %v10017 = vadd.f32 %v10016, %v9952
  %v10018 = vadd.f32 %v10017, %v9953
  %v10019 = vadd.f32 %v10018, %v9954
  %v10020 = vadd.f32 %v10019, %v9955
  %v10021 = vadd.f32 %v10020, %v9956
  %v10022 = vadd.f32 %v10021, %v9957
  %v10023 = vadd.f32 %v10022, %v9958
  %v10024 = vadd.f32 %v10023, %v9959
  %v10025 = vadd.f32 %v10024, %v9960
  %v10026 = vadd.f32 %v10025, %v9961
  %v10027 = vadd.f32 %v10026, %v9962
  %v10028 = vadd.f32 %v10027, %v9963
  %v10029 = vadd.f32 %v10028, %v9964
  %v10030 = vadd.f32 %v10029, %v9965
  %v10031 = vadd.f32 %v10030, %v9966
  %v10032 = vadd.f32 %v10031, %v9967
  %v10033 = vadd.f32 %v10032, %v9968
  %v10034 = vadd.f32 %v10033, %v9969
  %v10035 = vadd.f32 %v10034, %v9970
  %v10036 = vadd.f32 %v10035, %v9971
  %v10037 = vadd.f32 %v10036, %v9972
  %v10038 = vadd.f32 %v10037, %v9973
  %v10039 = vadd.f32 %v10038, %v9974
  %v10040 = vadd.f32 %v10039, %v9975
  %v10041 = vadd.f32 %v10040, %v9976
  %v10042 = vadd.f32 %v10041, %v9977
  %v10043 = vadd.f32 %v10042, %v9978
  %v10044 = vadd.f32 %v10043, %v9979
  %v10045 = vadd.f32 %v10044, %v9980
  %v10046 = vadd.f32 %v10045, %v9981
  %v10047 = vadd.f32 %v10046, %v9982
  %v10048 = vadd.f32 %v10047, %v9983
  %v10049 = vadd.f32 %v10048, %v9984
  %v10050 = vadd.f32 %v10049, %v9985
  %v10051 = vadd.f32 %v10050, %v9986
  %v10052 = vrot.slane %v10051, 4
  %v10053 = vadd.f32 %v10051, %v10052
  %v10054 = vrot.slane %v10053, 2
  %v10055 = vadd.f32 %v10053, %v10054
  %v10056 = vrot.slane %v10055, 1
  %v10057 = vadd.f32 %v10055, %v10056
  %v10058 = vmul.f32 %v10057, 0.001953125
  %v10059 = vmul.f32 %v9923, %v9923
  %v10060 = vmul.f32 %v9924, %v9924
  %v10061 = vmul.f32 %v9925, %v9925
  %v10062 = vmul.f32 %v9926, %v9926
  %v10063 = vmul.f32 %v9927, %v9927
  %v10064 = vmul.f32 %v9928, %v9928
  %v10065 = vmul.f32 %v9929, %v9929
  %v10066 = vmul.f32 %v9930, %v9930
  %v10067 = vmul.f32 %v9931, %v9931
  %v10068 = vmul.f32 %v9932, %v9932
  %v10069 = vmul.f32 %v9933, %v9933
  %v10070 = vmul.f32 %v9934, %v9934
  %v10071 = vmul.f32 %v9935, %v9935
  %v10072 = vmul.f32 %v9936, %v9936
  %v10073 = vmul.f32 %v9937, %v9937
  %v10074 = vmul.f32 %v9938, %v9938
  %v10075 = vmul.f32 %v9939, %v9939
  %v10076 = vmul.f32 %v9940, %v9940
  %v10077 = vmul.f32 %v9941, %v9941
  %v10078 = vmul.f32 %v9942, %v9942
  %v10079 = vmul.f32 %v9943, %v9943
  %v10080 = vmul.f32 %v9944, %v9944
  %v10081 = vmul.f32 %v9945, %v9945
  %v10082 = vmul.f32 %v9946, %v9946
  %v10083 = vmul.f32 %v9947, %v9947
  %v10084 = vmul.f32 %v9948, %v9948
  %v10085 = vmul.f32 %v9949, %v9949
  %v10086 = vmul.f32 %v9950, %v9950
  %v10087 = vmul.f32 %v9951, %v9951
  %v10088 = vmul.f32 %v9952, %v9952
  %v10089 = vmul.f32 %v9953, %v9953
  %v10090 = vmul.f32 %v9954, %v9954
  %v10091 = vmul.f32 %v9955, %v9955
  %v10092 = vmul.f32 %v9956, %v9956
  %v10093 = vmul.f32 %v9957, %v9957
  %v10094 = vmul.f32 %v9958, %v9958
  %v10095 = vmul.f32 %v9959, %v9959
  %v10096 = vmul.f32 %v9960, %v9960
  %v10097 = vmul.f32 %v9961, %v9961
  %v10098 = vmul.f32 %v9962, %v9962
  %v10099 = vmul.f32 %v9963, %v9963
  %v10100 = vmul.f32 %v9964, %v9964
  %v10101 = vmul.f32 %v9965, %v9965
  %v10102 = vmul.f32 %v9966, %v9966
  %v10103 = vmul.f32 %v9967, %v9967
  %v10104 = vmul.f32 %v9968, %v9968
  %v10105 = vmul.f32 %v9969, %v9969
  %v10106 = vmul.f32 %v9970, %v9970
  %v10107 = vmul.f32 %v9971, %v9971
  %v10108 = vmul.f32 %v9972, %v9972
  %v10109 = vmul.f32 %v9973, %v9973
  %v10110 = vmul.f32 %v9974, %v9974
  %v10111 = vmul.f32 %v9975, %v9975
  %v10112 = vmul.f32 %v9976, %v9976
  %v10113 = vmul.f32 %v9977, %v9977
  %v10114 = vmul.f32 %v9978, %v9978
  %v10115 = vmul.f32 %v9979, %v9979
  %v10116 = vmul.f32 %v9980, %v9980
  %v10117 = vmul.f32 %v9981, %v9981
  %v10118 = vmul.f32 %v9982, %v9982
  %v10119 = vmul.f32 %v9983, %v9983
  %v10120 = vmul.f32 %v9984, %v9984
  %v10121 = vmul.f32 %v9985, %v9985
  %v10122 = vmul.f32 %v9986, %v9986
  %v10123 = vadd.f32 %v10059, %v10060
  %v10124 = vadd.f32 %v10123, %v10061
  %v10125 = vadd.f32 %v10124, %v10062
  %v10126 = vadd.f32 %v10125, %v10063
  %v10127 = vadd.f32 %v10126, %v10064
  %v10128 = vadd.f32 %v10127, %v10065
  %v10129 = vadd.f32 %v10128, %v10066
  %v10130 = vadd.f32 %v10129, %v10067
  %v10131 = vadd.f32 %v10130, %v10068
  %v10132 = vadd.f32 %v10131, %v10069
  %v10133 = vadd.f32 %v10132, %v10070
  %v10134 = vadd.f32 %v10133, %v10071
  %v10135 = vadd.f32 %v10134, %v10072
  %v10136 = vadd.f32 %v10135, %v10073
  %v10137 = vadd.f32 %v10136, %v10074
  %v10138 = vadd.f32 %v10137, %v10075
  %v10139 = vadd.f32 %v10138, %v10076
  %v10140 = vadd.f32 %v10139, %v10077
  %v10141 = vadd.f32 %v10140, %v10078
  %v10142 = vadd.f32 %v10141, %v10079
  %v10143 = vadd.f32 %v10142, %v10080
  %v10144 = vadd.f32 %v10143, %v10081
  %v10145 = vadd.f32 %v10144, %v10082
  %v10146 = vadd.f32 %v10145, %v10083
  %v10147 = vadd.f32 %v10146, %v10084
  %v10148 = vadd.f32 %v10147, %v10085
  %v10149 = vadd.f32 %v10148, %v10086
  %v10150 = vadd.f32 %v10149, %v10087
  %v10151 = vadd.f32 %v10150, %v10088
  %v10152 = vadd.f32 %v10151, %v10089
  %v10153 = vadd.f32 %v10152, %v10090
  %v10154 = vadd.f32 %v10153, %v10091
  %v10155 = vadd.f32 %v10154, %v10092
  %v10156 = vadd.f32 %v10155, %v10093
  %v10157 = vadd.f32 %v10156, %v10094
  %v10158 = vadd.f32 %v10157, %v10095
  %v10159 = vadd.f32 %v10158, %v10096
  %v10160 = vadd.f32 %v10159, %v10097
  %v10161 = vadd.f32 %v10160, %v10098
  %v10162 = vadd.f32 %v10161, %v10099
  %v10163 = vadd.f32 %v10162, %v10100
  %v10164 = vadd.f32 %v10163, %v10101
  %v10165 = vadd.f32 %v10164, %v10102
  %v10166 = vadd.f32 %v10165, %v10103
  %v10167 = vadd.f32 %v10166, %v10104
  %v10168 = vadd.f32 %v10167, %v10105
  %v10169 = vadd.f32 %v10168, %v10106
  %v10170 = vadd.f32 %v10169, %v10107
  %v10171 = vadd.f32 %v10170, %v10108
  %v10172 = vadd.f32 %v10171, %v10109
  %v10173 = vadd.f32 %v10172, %v10110
  %v10174 = vadd.f32 %v10173, %v10111
  %v10175 = vadd.f32 %v10174, %v10112
  %v10176 = vadd.f32 %v10175, %v10113
  %v10177 = vadd.f32 %v10176, %v10114
  %v10178 = vadd.f32 %v10177, %v10115
  %v10179 = vadd.f32 %v10178, %v10116
  %v10180 = vadd.f32 %v10179, %v10117
  %v10181 = vadd.f32 %v10180, %v10118
  %v10182 = vadd.f32 %v10181, %v10119
  %v10183 = vadd.f32 %v10182, %v10120
  %v10184 = vadd.f32 %v10183, %v10121
  %v10185 = vadd.f32 %v10184, %v10122
  %v10186 = vrot.slane %v10185, 4
  %v10187 = vadd.f32 %v10185, %v10186
  %v10188 = vrot.slane %v10187, 2
  %v10189 = vadd.f32 %v10187, %v10188
  %v10190 = vrot.slane %v10189, 1
  %v10191 = vadd.f32 %v10189, %v10190
  %v10192 = vmul.f32 %v10191, 0.001953125
  %v10193 = vmul.f32 %v10058, %v10058
  %v10194 = vsub.f32 %v10192, %v10193
  %v10195 = vmax.f32 %v10194, 0.0
  %v10196 = vadd.f32 %v10195, 1e-05
  %v10197 = vrsqrt.pop %v10196
  %v10198 = vmul.f32 %v9987, %v10197
  %v10199 = vmul.f32 %v10058, %v10198
  %v10200 = vsub.f32 %v9988, %v10199
  %v10202 = vlaneseq
  %v10203 = vshrl.u32 %v10202, 7
  %v10204 = vsub.s32 0, %v10203
  %v10205 = vrot.slane %v10198, %v10204
  %v10207 = vmul.f32 %v9923, %v10205
  %v10208 = vmul.f32 %v9924, %v10205
  %v10209 = vmul.f32 %v9925, %v10205
  %v10210 = vmul.f32 %v9926, %v10205
  %v10211 = vmul.f32 %v9927, %v10205
  %v10212 = vmul.f32 %v9928, %v10205
  %v10213 = vmul.f32 %v9929, %v10205
  %v10214 = vmul.f32 %v9930, %v10205
  %v10215 = vmul.f32 %v9931, %v10205
  %v10216 = vmul.f32 %v9932, %v10205
  %v10217 = vmul.f32 %v9933, %v10205
  %v10218 = vmul.f32 %v9934, %v10205
  %v10219 = vmul.f32 %v9935, %v10205
  %v10220 = vmul.f32 %v9936, %v10205
  %v10221 = vmul.f32 %v9937, %v10205
  %v10222 = vmul.f32 %v9938, %v10205
  %v10223 = vmul.f32 %v9939, %v10205
  %v10224 = vmul.f32 %v9940, %v10205
  %v10225 = vmul.f32 %v9941, %v10205
  %v10226 = vmul.f32 %v9942, %v10205
  %v10227 = vmul.f32 %v9943, %v10205
  %v10228 = vmul.f32 %v9944, %v10205
  %v10229 = vmul.f32 %v9945, %v10205
  %v10230 = vmul.f32 %v9946, %v10205
  %v10231 = vmul.f32 %v9947, %v10205
  %v10232 = vmul.f32 %v9948, %v10205
  %v10233 = vmul.f32 %v9949, %v10205
  %v10234 = vmul.f32 %v9950, %v10205
  %v10235 = vmul.f32 %v9951, %v10205
  %v10236 = vmul.f32 %v9952, %v10205
  %v10237 = vmul.f32 %v9953, %v10205
  %v10238 = vmul.f32 %v9954, %v10205
  %v10239 = vmul.f32 %v9955, %v10205
  %v10240 = vmul.f32 %v9956, %v10205
  %v10241 = vmul.f32 %v9957, %v10205
  %v10242 = vmul.f32 %v9958, %v10205
  %v10243 = vmul.f32 %v9959, %v10205
  %v10244 = vmul.f32 %v9960, %v10205
  %v10245 = vmul.f32 %v9961, %v10205
  %v10246 = vmul.f32 %v9962, %v10205
  %v10247 = vmul.f32 %v9963, %v10205
  %v10248 = vmul.f32 %v9964, %v10205
  %v10249 = vmul.f32 %v9965, %v10205
  %v10250 = vmul.f32 %v9966, %v10205
  %v10251 = vmul.f32 %v9967, %v10205
  %v10252 = vmul.f32 %v9968, %v10205
  %v10253 = vmul.f32 %v9969, %v10205
  %v10254 = vmul.f32 %v9970, %v10205
  %v10255 = vmul.f32 %v9971, %v10205
  %v10256 = vmul.f32 %v9972, %v10205
  %v10257 = vmul.f32 %v9973, %v10205
  %v10258 = vmul.f32 %v9974, %v10205
  %v10259 = vmul.f32 %v9975, %v10205
  %v10260 = vmul.f32 %v9976, %v10205
  %v10261 = vmul.f32 %v9977, %v10205
  %v10262 = vmul.f32 %v9978, %v10205
  %v10263 = vmul.f32 %v9979, %v10205
  %v10264 = vmul.f32 %v9980, %v10205
  %v10265 = vmul.f32 %v9981, %v10205
  %v10266 = vmul.f32 %v9982, %v10205
  %v10267 = vmul.f32 %v9983, %v10205
  %v10268 = vmul.f32 %v9984, %v10205
  %v10269 = vmul.f32 %v9985, %v10205
  %v10270 = vmul.f32 %v9986, %v10205
  %v10272 = vlaneseq
  %v10273 = vshrl.u32 %v10272, 7
  %v10274 = vsub.s32 0, %v10273
  %v10275 = vrot.slane %v10200, %v10274
  %v10277 = vadd.f32 %v10207, %v10275
  %v10278 = vadd.f32 %v10208, %v10275
  %v10279 = vadd.f32 %v10209, %v10275
  %v10280 = vadd.f32 %v10210, %v10275
  %v10281 = vadd.f32 %v10211, %v10275
  %v10282 = vadd.f32 %v10212, %v10275
  %v10283 = vadd.f32 %v10213, %v10275
  %v10284 = vadd.f32 %v10214, %v10275
  %v10285 = vadd.f32 %v10215, %v10275
  %v10286 = vadd.f32 %v10216, %v10275
  %v10287 = vadd.f32 %v10217, %v10275
  %v10288 = vadd.f32 %v10218, %v10275
  %v10289 = vadd.f32 %v10219, %v10275
  %v10290 = vadd.f32 %v10220, %v10275
  %v10291 = vadd.f32 %v10221, %v10275
  %v10292 = vadd.f32 %v10222, %v10275
  %v10293 = vadd.f32 %v10223, %v10275
  %v10294 = vadd.f32 %v10224, %v10275
  %v10295 = vadd.f32 %v10225, %v10275
  %v10296 = vadd.f32 %v10226, %v10275
  %v10297 = vadd.f32 %v10227, %v10275
  %v10298 = vadd.f32 %v10228, %v10275
  %v10299 = vadd.f32 %v10229, %v10275
  %v10300 = vadd.f32 %v10230, %v10275
  %v10301 = vadd.f32 %v10231, %v10275
  %v10302 = vadd.f32 %v10232, %v10275
  %v10303 = vadd.f32 %v10233, %v10275
  %v10304 = vadd.f32 %v10234, %v10275
  %v10305 = vadd.f32 %v10235, %v10275
  %v10306 = vadd.f32 %v10236, %v10275
  %v10307 = vadd.f32 %v10237, %v10275
  %v10308 = vadd.f32 %v10238, %v10275
  %v10309 = vadd.f32 %v10239, %v10275
  %v10310 = vadd.f32 %v10240, %v10275
  %v10311 = vadd.f32 %v10241, %v10275
  %v10312 = vadd.f32 %v10242, %v10275
  %v10313 = vadd.f32 %v10243, %v10275
  %v10314 = vadd.f32 %v10244, %v10275
  %v10315 = vadd.f32 %v10245, %v10275
  %v10316 = vadd.f32 %v10246, %v10275
  %v10317 = vadd.f32 %v10247, %v10275
  %v10318 = vadd.f32 %v10248, %v10275
  %v10319 = vadd.f32 %v10249, %v10275
  %v10320 = vadd.f32 %v10250, %v10275
  %v10321 = vadd.f32 %v10251, %v10275
  %v10322 = vadd.f32 %v10252, %v10275
  %v10323 = vadd.f32 %v10253, %v10275
  %v10324 = vadd.f32 %v10254, %v10275
  %v10325 = vadd.f32 %v10255, %v10275
  %v10326 = vadd.f32 %v10256, %v10275
  %v10327 = vadd.f32 %v10257, %v10275
  %v10328 = vadd.f32 %v10258, %v10275
  %v10329 = vadd.f32 %v10259, %v10275
  %v10330 = vadd.f32 %v10260, %v10275
  %v10331 = vadd.f32 %v10261, %v10275
  %v10332 = vadd.f32 %v10262, %v10275
  %v10333 = vadd.f32 %v10263, %v10275
  %v10334 = vadd.f32 %v10264, %v10275
  %v10335 = vadd.f32 %v10265, %v10275
  %v10336 = vadd.f32 %v10266, %v10275
  %v10337 = vadd.f32 %v10267, %v10275
  %v10338 = vadd.f32 %v10268, %v10275
  %v10339 = vadd.f32 %v10269, %v10275
  %v10340 = vadd.f32 %v10270, %v10275
  %v10341 = vld [vmem:[%s0] sm:$0xff]
  %v10342 = vld [vmem:[%s0 + $0x8] sm:$0xff]
  %v10343 = vld [vmem:[%s0 + $0x10] sm:$0xff]
  %v10344 = vld [vmem:[%s0 + $0x18] sm:$0xff]
  %v10345 = vld [vmem:[%s0 + $0x20] sm:$0xff]
  %v10346 = vld [vmem:[%s0 + $0x28] sm:$0xff]
  %v10347 = vld [vmem:[%s0 + $0x30] sm:$0xff]
  %v10348 = vld [vmem:[%s0 + $0x38] sm:$0xff]
  %v10349 = vld [vmem:[%s0 + $0x40] sm:$0xff]
  %v10350 = vld [vmem:[%s0 + $0x48] sm:$0xff]
  %v10351 = vld [vmem:[%s0 + $0x50] sm:$0xff]
  %v10352 = vld [vmem:[%s0 + $0x58] sm:$0xff]
  %v10353 = vld [vmem:[%s0 + $0x60] sm:$0xff]
  %v10354 = vld [vmem:[%s0 + $0x68] sm:$0xff]
  %v10355 = vld [vmem:[%s0 + $0x70] sm:$0xff]
  %v10356 = vld [vmem:[%s0 + $0x78] sm:$0xff]
  %v10357 = vld [vmem:[%s0 + $0x80] sm:$0xff]
  %v10358 = vld [vmem:[%s0 + $0x88] sm:$0xff]
  %v10359 = vld [vmem:[%s0 + $0x90] sm:$0xff]
  %v10360 = vld [vmem:[%s0 + $0x98] sm:$0xff]
  %v10361 = vld [vmem:[%s0 + $0xa0] sm:$0xff]
  %v10362 = vld [vmem:[%s0 + $0xa8] sm:$0xff]
  %v10363 = vld [vmem:[%s0 + $0xb0] sm:$0xff]
  %v10364 = vld [vmem:[%s0 + $0xb8] sm:$0xff]
  %v10365 = vld [vmem:[%s0 + $0xc0] sm:$0xff]
  %v10366 = vld [vmem:[%s0 + $0xc8] sm:$0xff]
  %v10367 = vld [vmem:[%s0 + $0xd0] sm:$0xff]
  %v10368 = vld [vmem:[%s0 + $0xd8] sm:$0xff]
  %v10369 = vld [vmem:[%s0 + $0xe0] sm:$0xff]
  %v10370 = vld [vmem:[%s0 + $0xe8] sm:$0xff]
  %v10371 = vld [vmem:[%s0 + $0xf0] sm:$0xff]
  %v10372 = vld [vmem:[%s0 + $0xf8] sm:$0xff]
  %v10373 = vld [vmem:[%s0 + $0x100] sm:$0xff]
  %v10374 = vld [vmem:[%s0 + $0x108] sm:$0xff]
  %v10375 = vld [vmem:[%s0 + $0x110] sm:$0xff]
  %v10376 = vld [vmem:[%s0 + $0x118] sm:$0xff]
  %v10377 = vld [vmem:[%s0 + $0x120] sm:$0xff]
  %v10378 = vld [vmem:[%s0 + $0x128] sm:$0xff]
  %v10379 = vld [vmem:[%s0 + $0x130] sm:$0xff]
  %v10380 = vld [vmem:[%s0 + $0x138] sm:$0xff]
  %v10381 = vld [vmem:[%s0 + $0x140] sm:$0xff]
  %v10382 = vld [vmem:[%s0 + $0x148] sm:$0xff]
  %v10383 = vld [vmem:[%s0 + $0x150] sm:$0xff]
  %v10384 = vld [vmem:[%s0 + $0x158] sm:$0xff]
  %v10385 = vld [vmem:[%s0 + $0x160] sm:$0xff]
  %v10386 = vld [vmem:[%s0 + $0x168] sm:$0xff]
  %v10387 = vld [vmem:[%s0 + $0x170] sm:$0xff]
  %v10388 = vld [vmem:[%s0 + $0x178] sm:$0xff]
  %v10389 = vld [vmem:[%s0 + $0x180] sm:$0xff]
  %v10390 = vld [vmem:[%s0 + $0x188] sm:$0xff]
  %v10391 = vld [vmem:[%s0 + $0x190] sm:$0xff]
  %v10392 = vld [vmem:[%s0 + $0x198] sm:$0xff]
  %v10393 = vld [vmem:[%s0 + $0x1a0] sm:$0xff]
  %v10394 = vld [vmem:[%s0 + $0x1a8] sm:$0xff]
  %v10395 = vld [vmem:[%s0 + $0x1b0] sm:$0xff]
  %v10396 = vld [vmem:[%s0 + $0x1b8] sm:$0xff]
  %v10397 = vld [vmem:[%s0 + $0x1c0] sm:$0xff]
  %v10398 = vld [vmem:[%s0 + $0x1c8] sm:$0xff]
  %v10399 = vld [vmem:[%s0 + $0x1d0] sm:$0xff]
  %v10400 = vld [vmem:[%s0 + $0x1d8] sm:$0xff]
  %v10401 = vld [vmem:[%s0 + $0x1e0] sm:$0xff]
  %v10402 = vld [vmem:[%s0 + $0x1e8] sm:$0xff]
  %v10403 = vld [vmem:[%s0 + $0x1f0] sm:$0xff]
  %v10404 = vld [vmem:[%s0 + $0x1f8] sm:$0xff]
  %v10405 = vadd.f32 %v10277, %v10341
  %v10406 = vadd.f32 %v10278, %v10342
  %v10407 = vadd.f32 %v10279, %v10343
  %v10408 = vadd.f32 %v10280, %v10344
  %v10409 = vadd.f32 %v10281, %v10345
  %v10410 = vadd.f32 %v10282, %v10346
  %v10411 = vadd.f32 %v10283, %v10347
  %v10412 = vadd.f32 %v10284, %v10348
  %v10413 = vadd.f32 %v10285, %v10349
  %v10414 = vadd.f32 %v10286, %v10350
  %v10415 = vadd.f32 %v10287, %v10351
  %v10416 = vadd.f32 %v10288, %v10352
  %v10417 = vadd.f32 %v10289, %v10353
  %v10418 = vadd.f32 %v10290, %v10354
  %v10419 = vadd.f32 %v10291, %v10355
  %v10420 = vadd.f32 %v10292, %v10356
  %v10421 = vadd.f32 %v10293, %v10357
  %v10422 = vadd.f32 %v10294, %v10358
  %v10423 = vadd.f32 %v10295, %v10359
  %v10424 = vadd.f32 %v10296, %v10360
  %v10425 = vadd.f32 %v10297, %v10361
  %v10426 = vadd.f32 %v10298, %v10362
  %v10427 = vadd.f32 %v10299, %v10363
  %v10428 = vadd.f32 %v10300, %v10364
  %v10429 = vadd.f32 %v10301, %v10365
  %v10430 = vadd.f32 %v10302, %v10366
  %v10431 = vadd.f32 %v10303, %v10367
  %v10432 = vadd.f32 %v10304, %v10368
  %v10433 = vadd.f32 %v10305, %v10369
  %v10434 = vadd.f32 %v10306, %v10370
  %v10435 = vadd.f32 %v10307, %v10371
  %v10436 = vadd.f32 %v10308, %v10372
  %v10437 = vadd.f32 %v10309, %v10373
  %v10438 = vadd.f32 %v10310, %v10374
  %v10439 = vadd.f32 %v10311, %v10375
  %v10440 = vadd.f32 %v10312, %v10376
  %v10441 = vadd.f32 %v10313, %v10377
  %v10442 = vadd.f32 %v10314, %v10378
  %v10443 = vadd.f32 %v10315, %v10379
  %v10444 = vadd.f32 %v10316, %v10380
  %v10445 = vadd.f32 %v10317, %v10381
  %v10446 = vadd.f32 %v10318, %v10382
  %v10447 = vadd.f32 %v10319, %v10383
  %v10448 = vadd.f32 %v10320, %v10384
  %v10449 = vadd.f32 %v10321, %v10385
  %v10450 = vadd.f32 %v10322, %v10386
  %v10451 = vadd.f32 %v10323, %v10387
  %v10452 = vadd.f32 %v10324, %v10388
  %v10453 = vadd.f32 %v10325, %v10389
  %v10454 = vadd.f32 %v10326, %v10390
  %v10455 = vadd.f32 %v10327, %v10391
  %v10456 = vadd.f32 %v10328, %v10392
  %v10457 = vadd.f32 %v10329, %v10393
  %v10458 = vadd.f32 %v10330, %v10394
  %v10459 = vadd.f32 %v10331, %v10395
  %v10460 = vadd.f32 %v10332, %v10396
  %v10461 = vadd.f32 %v10333, %v10397
  %v10462 = vadd.f32 %v10334, %v10398
  %v10463 = vadd.f32 %v10335, %v10399
  %v10464 = vadd.f32 %v10336, %v10400
  %v10465 = vadd.f32 %v10337, %v10401
  %v10466 = vadd.f32 %v10338, %v10402
  %v10467 = vadd.f32 %v10339, %v10403
  %v10468 = vadd.f32 %v10340, %v10404
  %v10469 = vmax.f32 %v10405, 0.0
  %v10470 = vmax.f32 %v10406, 0.0
  %v10471 = vmax.f32 %v10407, 0.0
  %v10472 = vmax.f32 %v10408, 0.0
  %v10473 = vmax.f32 %v10409, 0.0
  %v10474 = vmax.f32 %v10410, 0.0
  %v10475 = vmax.f32 %v10411, 0.0
  %v10476 = vmax.f32 %v10412, 0.0
  %v10477 = vmax.f32 %v10413, 0.0
  %v10478 = vmax.f32 %v10414, 0.0
  %v10479 = vmax.f32 %v10415, 0.0
  %v10480 = vmax.f32 %v10416, 0.0
  %v10481 = vmax.f32 %v10417, 0.0
  %v10482 = vmax.f32 %v10418, 0.0
  %v10483 = vmax.f32 %v10419, 0.0
  %v10484 = vmax.f32 %v10420, 0.0
  %v10485 = vmax.f32 %v10421, 0.0
  %v10486 = vmax.f32 %v10422, 0.0
  %v10487 = vmax.f32 %v10423, 0.0
  %v10488 = vmax.f32 %v10424, 0.0
  %v10489 = vmax.f32 %v10425, 0.0
  %v10490 = vmax.f32 %v10426, 0.0
  %v10491 = vmax.f32 %v10427, 0.0
  %v10492 = vmax.f32 %v10428, 0.0
  %v10493 = vmax.f32 %v10429, 0.0
  %v10494 = vmax.f32 %v10430, 0.0
  %v10495 = vmax.f32 %v10431, 0.0
  %v10496 = vmax.f32 %v10432, 0.0
  %v10497 = vmax.f32 %v10433, 0.0
  %v10498 = vmax.f32 %v10434, 0.0
  %v10499 = vmax.f32 %v10435, 0.0
  %v10500 = vmax.f32 %v10436, 0.0
  %v10501 = vmax.f32 %v10437, 0.0
  %v10502 = vmax.f32 %v10438, 0.0
  %v10503 = vmax.f32 %v10439, 0.0
  %v10504 = vmax.f32 %v10440, 0.0
  %v10505 = vmax.f32 %v10441, 0.0
  %v10506 = vmax.f32 %v10442, 0.0
  %v10507 = vmax.f32 %v10443, 0.0
  %v10508 = vmax.f32 %v10444, 0.0
  %v10509 = vmax.f32 %v10445, 0.0
  %v10510 = vmax.f32 %v10446, 0.0
  %v10511 = vmax.f32 %v10447, 0.0
  %v10512 = vmax.f32 %v10448, 0.0
  %v10513 = vmax.f32 %v10449, 0.0
  %v10514 = vmax.f32 %v10450, 0.0
  %v10515 = vmax.f32 %v10451, 0.0
  %v10516 = vmax.f32 %v10452, 0.0
  %v10517 = vmax.f32 %v10453, 0.0
  %v10518 = vmax.f32 %v10454, 0.0
  %v10519 = vmax.f32 %v10455, 0.0
  %v10520 = vmax.f32 %v10456, 0.0
  %v10521 = vmax.f32 %v10457, 0.0
  %v10522 = vmax.f32 %v10458, 0.0
  %v10523 = vmax.f32 %v10459, 0.0
  %v10524 = vmax.f32 %v10460, 0.0
  %v10525 = vmax.f32 %v10461, 0.0
  %v10526 = vmax.f32 %v10462, 0.0
  %v10527 = vmax.f32 %v10463, 0.0
  %v10528 = vmax.f32 %v10464, 0.0
  %v10529 = vmax.f32 %v10465, 0.0
  %v10530 = vmax.f32 %v10466, 0.0
  %v10531 = vmax.f32 %v10467, 0.0
  %v10532 = vmax.f32 %v10468, 0.0
  %10533 = vst [vmem:[%s10] sm:$0xff] %v10469
  %10534 = vst [vmem:[%s10 + $0x8] sm:$0xff] %v10470
  %10535 = vst [vmem:[%s10 + $0x10] sm:$0xff] %v10471
  %10536 = vst [vmem:[%s10 + $0x18] sm:$0xff] %v10472
  %10537 = vst [vmem:[%s10 + $0x20] sm:$0xff] %v10473
  %10538 = vst [vmem:[%s10 + $0x28] sm:$0xff] %v10474
  %10539 = vst [vmem:[%s10 + $0x30] sm:$0xff] %v10475
  %10540 = vst [vmem:[%s10 + $0x38] sm:$0xff] %v10476
  %10541 = vst [vmem:[%s10 + $0x40] sm:$0xff] %v10477
  %10542 = vst [vmem:[%s10 + $0x48] sm:$0xff] %v10478
  %10543 = vst [vmem:[%s10 + $0x50] sm:$0xff] %v10479
  %10544 = vst [vmem:[%s10 + $0x58] sm:$0xff] %v10480
  %10545 = vst [vmem:[%s10 + $0x60] sm:$0xff] %v10481
  %10546 = vst [vmem:[%s10 + $0x68] sm:$0xff] %v10482
  %10547 = vst [vmem:[%s10 + $0x70] sm:$0xff] %v10483
  %10548 = vst [vmem:[%s10 + $0x78] sm:$0xff] %v10484
  %10549 = vst [vmem:[%s10 + $0x80] sm:$0xff] %v10485
  %10550 = vst [vmem:[%s10 + $0x88] sm:$0xff] %v10486
  %10551 = vst [vmem:[%s10 + $0x90] sm:$0xff] %v10487
  %10552 = vst [vmem:[%s10 + $0x98] sm:$0xff] %v10488
  %10553 = vst [vmem:[%s10 + $0xa0] sm:$0xff] %v10489
  %10554 = vst [vmem:[%s10 + $0xa8] sm:$0xff] %v10490
  %10555 = vst [vmem:[%s10 + $0xb0] sm:$0xff] %v10491
  %10556 = vst [vmem:[%s10 + $0xb8] sm:$0xff] %v10492
  %10557 = vst [vmem:[%s10 + $0xc0] sm:$0xff] %v10493
  %10558 = vst [vmem:[%s10 + $0xc8] sm:$0xff] %v10494
  %10559 = vst [vmem:[%s10 + $0xd0] sm:$0xff] %v10495
  %10560 = vst [vmem:[%s10 + $0xd8] sm:$0xff] %v10496
  %10561 = vst [vmem:[%s10 + $0xe0] sm:$0xff] %v10497
  %10562 = vst [vmem:[%s10 + $0xe8] sm:$0xff] %v10498
  %10563 = vst [vmem:[%s10 + $0xf0] sm:$0xff] %v10499
  %10564 = vst [vmem:[%s10 + $0xf8] sm:$0xff] %v10500
  %10565 = vst [vmem:[%s10 + $0x100] sm:$0xff] %v10501
  %10566 = vst [vmem:[%s10 + $0x108] sm:$0xff] %v10502
  %10567 = vst [vmem:[%s10 + $0x110] sm:$0xff] %v10503
  %10568 = vst [vmem:[%s10 + $0x118] sm:$0xff] %v10504
  %10569 = vst [vmem:[%s10 + $0x120] sm:$0xff] %v10505
  %10570 = vst [vmem:[%s10 + $0x128] sm:$0xff] %v10506
  %10571 = vst [vmem:[%s10 + $0x130] sm:$0xff] %v10507
  %10572 = vst [vmem:[%s10 + $0x138] sm:$0xff] %v10508
  %10573 = vst [vmem:[%s10 + $0x140] sm:$0xff] %v10509
  %10574 = vst [vmem:[%s10 + $0x148] sm:$0xff] %v10510
  %10575 = vst [vmem:[%s10 + $0x150] sm:$0xff] %v10511
  %10576 = vst [vmem:[%s10 + $0x158] sm:$0xff] %v10512
  %10577 = vst [vmem:[%s10 + $0x160] sm:$0xff] %v10513
  %10578 = vst [vmem:[%s10 + $0x168] sm:$0xff] %v10514
  %10579 = vst [vmem:[%s10 + $0x170] sm:$0xff] %v10515
  %10580 = vst [vmem:[%s10 + $0x178] sm:$0xff] %v10516
  %10581 = vst [vmem:[%s10 + $0x180] sm:$0xff] %v10517
  %10582 = vst [vmem:[%s10 + $0x188] sm:$0xff] %v10518
  %10583 = vst [vmem:[%s10 + $0x190] sm:$0xff] %v10519
  %10584 = vst [vmem:[%s10 + $0x198] sm:$0xff] %v10520
  %10585 = vst [vmem:[%s10 + $0x1a0] sm:$0xff] %v10521
  %10586 = vst [vmem:[%s10 + $0x1a8] sm:$0xff] %v10522
  %10587 = vst [vmem:[%s10 + $0x1b0] sm:$0xff] %v10523
  %10588 = vst [vmem:[%s10 + $0x1b8] sm:$0xff] %v10524
  %10589 = vst [vmem:[%s10 + $0x1c0] sm:$0xff] %v10525
  %10590 = vst [vmem:[%s10 + $0x1c8] sm:$0xff] %v10526
  %10591 = vst [vmem:[%s10 + $0x1d0] sm:$0xff] %v10527
  %10592 = vst [vmem:[%s10 + $0x1d8] sm:$0xff] %v10528
  %10593 = vst [vmem:[%s10 + $0x1e0] sm:$0xff] %v10529
  %10594 = vst [vmem:[%s10 + $0x1e8] sm:$0xff] %v10530
  %10595 = vst [vmem:[%s10 + $0x1f0] sm:$0xff] %v10531
  %10596 = vst [vmem:[%s10 + $0x1f8] sm:$0xff] %v10532
  // Predicated region
  $region42: #{bottleneck_forward.1} parent=0 // pred_check
    _
  $region43: #{bottleneck_forward.1} parent=0 // pred_check_branch
    %10598 = sbr.rel (0) target = $region45
  $region44: #{bottleneck_forward.1} parent=0 // pred_region
    _
  $region45: #{bottleneck_forward.1} parent=0 // pred_fallthru
    _
  // Predicated region
  $region46: #{bottleneck_forward.1} parent=0 // pred_check
    _
  $region47: #{bottleneck_forward.1} parent=0 // pred_check_branch
    %10600 = sbr.rel (0) target = $region49
  $region48: #{bottleneck_forward.1} parent=0 // pred_region
    _
  $region49: #{bottleneck_forward.1} parent=0 // pred_fallthru
    _

</llo_original>
